<compile_context>
chip_gen: v5e
topology: v5e:2x2
jax: 0.10.0
libtpu: 0.0.40
codegen_flags: <defaults>
</compile_context>

<pallas_src>
import functools
import math

import jax
import jax.numpy as jnp
from jax import lax
from jax.experimental import pallas as pl
from jax.experimental.pallas import tpu as pltpu

BN_EPS = 1e-5
NUM_CLASSES = 10


def _round_up(x, m):
    return ((x + m - 1) // m) * m


def _chip_config():
    """Pick VMEM budget + max M-tile per TPU generation.

    v5e / v6e have 128 MiB physical VMEM -> 96 MiB limit, tm up to 1024.
    v7x has 64 MiB per TensorCore -> 48 MiB limit, tm up to 512 (both TCs are
    used via the 'parallel' M axis).  Fallback is the conservative v7x config.
    """
    vmem_phys = 64 << 20
    try:
        vmem_phys = int(pltpu.get_tpu_info().vmem_capacity_bytes)
    except Exception:
        pass
    if vmem_phys >= (100 << 20):
        return 96 << 20, 1024
    return 48 << 20, 512


VMEM_LIMIT, TM_MAX = _chip_config()


# ----------------------------------------------------------------------------
# Pallas kernel 1: fused  out = maybe_relu( (X @ W) + shift )
# (BN scale is pre-folded into W; shift = beta + (bias - mean)*scale.)
# Grid is 1-D over M; W / shift blocks have constant index maps -> resident.
# ----------------------------------------------------------------------------
def _matmul_shift_kernel(x_ref, w_ref, shift_ref, o_ref, *, apply_relu):
    acc = jnp.dot(x_ref[...], w_ref[...], preferred_element_type=jnp.float32)
    y = acc + shift_ref[...]
    if apply_relu:
        y = jnp.maximum(y, 0.0)
    o_ref[...] = y.astype(o_ref.dtype)


def fused_matmul(x, w, shift, *, apply_relu, out_dtype):
    """x: [M, K] bf16, w: [K, N] bf16, shift: [1, N] f32 -> [M, N] out_dtype."""
    M, K = x.shape
    Kw, N = w.shape
    assert K == Kw
    tm = min(TM_MAX, _round_up(M, 16))        # bf16 packs 16 sublanes
    Mp = _round_up(M, tm)
    if Mp != M:
        x = jnp.pad(x, ((0, Mp - M), (0, 0)))

    out = pl.pallas_call(
        functools.partial(_matmul_shift_kernel, apply_relu=apply_relu),
        out_shape=jax.ShapeDtypeStruct((Mp, N), out_dtype),
        grid_spec=pl.GridSpec(
            grid=(Mp // tm,),
            in_specs=[
                pl.BlockSpec((tm, K), lambda i: (i, 0)),
                pl.BlockSpec((K, N), lambda i: (0, 0)),     # resident weight
                pl.BlockSpec((1, N), lambda i: (0, 0)),     # resident shift
            ],
            out_specs=pl.BlockSpec((tm, N), lambda i: (i, 0)),
        ),
        compiler_params=pltpu.CompilerParams(
            dimension_semantics=("parallel",),
            vmem_limit_bytes=VMEM_LIMIT,
        ),
    )(x, w, shift)
    if Mp != M:
        out = out[:M]
    return out


# ----------------------------------------------------------------------------
# Pallas kernel 2: fused FC(4096->512)+BN+ReLU + classifier(512->128 padded).
# M-tiled grid; all weights/shifts pinned at block (0,0) -> resident in VMEM.
# The 512-wide intermediate stays in VMEM/registers; logits are f32.
# ----------------------------------------------------------------------------
def _fc_head_kernel(x_ref, w1_ref, s1_ref, w2_ref, b2_ref, o_ref):
    h = jnp.dot(x_ref[...], w1_ref[...], preferred_element_type=jnp.float32)
    h = jnp.maximum(h + s1_ref[...], 0.0)
    logits = jnp.dot(h.astype(jnp.bfloat16), w2_ref[...],
                     preferred_element_type=jnp.float32)
    o_ref[...] = (logits + b2_ref[...]).astype(o_ref.dtype)


def fc_head(x, w1, s1, w2, b2):
    """x: [M, 4096] bf16, w1: [4096, 512] bf16, w2: [512, 128(pad)] bf16."""
    M, K = x.shape
    N1 = w1.shape[1]
    N2 = w2.shape[1]
    tm = min(TM_MAX, _round_up(M, 16))
    Mp = _round_up(M, tm)
    if Mp != M:
        x = jnp.pad(x, ((0, Mp - M), (0, 0)))

    out = pl.pallas_call(
        _fc_head_kernel,
        out_shape=jax.ShapeDtypeStruct((Mp, N2), jnp.float32),
        grid_spec=pl.GridSpec(
            grid=(Mp // tm,),
            in_specs=[
                pl.BlockSpec((tm, K), lambda i: (i, 0)),
                pl.BlockSpec((K, N1), lambda i: (0, 0)),    # resident FC1 W
                pl.BlockSpec((1, N1), lambda i: (0, 0)),    # resident FC1 shift
                pl.BlockSpec((N1, N2), lambda i: (0, 0)),   # resident cls W
                pl.BlockSpec((1, N2), lambda i: (0, 0)),    # resident cls b
            ],
            out_specs=pl.BlockSpec((tm, N2), lambda i: (i, 0)),
        ),
        compiler_params=pltpu.CompilerParams(
            dimension_semantics=("parallel",),
            vmem_limit_bytes=VMEM_LIMIT,
        ),
    )(x, w1, s1, w2, b2)
    if Mp != M:
        out = out[:M]
    return out


# ----------------------------------------------------------------------------
# Glue: gather-free NHWC im2col (25 static strided slices + one concat),
# directly in (kh, kw, C) column order; optional zero-pad of K to a multiple
# of 128 for lane-dense x loads.
# ----------------------------------------------------------------------------
def im2col_nhwc(x, k=5, s=2, p=2, pad_k_to=None):
    """x: [B, H, W, C] -> patches [B*Ho*Wo, Kp] (kh-major, then kw, then C)."""
    B, H, W, C = x.shape
    xp = jnp.pad(x, ((0, 0), (p, p), (p, p), (0, 0)))
    Ho = (H + 2 * p - k) // s + 1
    Wo = (W + 2 * p - k) // s + 1
    cols = []
    for di in range(k):
        for dj in range(k):
            cols.append(lax.slice(
                xp,
                (0, di, dj, 0),
                (B, di + s * (Ho - 1) + 1, dj + s * (Wo - 1) + 1, C),
                (1, s, s, 1)))
    kk = k * k * C
    if pad_k_to is not None and pad_k_to > kk:
        cols.append(jnp.zeros((B, Ho, Wo, pad_k_to - kk), x.dtype))
        kk = pad_k_to
    patches = jnp.concatenate(cols, axis=-1)          # [B, Ho, Wo, kk]
    return patches.reshape(B * Ho * Wo, kk), B, Ho, Wo


# ----------------------------------------------------------------------------
# Parameter construction (deterministic, PyTorch-like shapes)
# ----------------------------------------------------------------------------
def init_params(key):
    params = {}
    conv_shapes = [(64, 3, 5, 5), (128, 64, 5, 5), (256, 128, 5, 5)]
    conv = []
    for shp in conv_shapes:
        key, k1, k2, k3, k4 = jax.random.split(key, 5)
        cout, cin, kh, kw = shp
        fan_in = cin * kh * kw
        bound = 1.0 / math.sqrt(fan_in)
        w = jax.random.uniform(k1, shp, jnp.float32, -bound, bound)
        b = jax.random.uniform(k2, (cout,), jnp.float32, -bound, bound)
        gamma = 1.0 + 0.05 * jax.random.normal(k3, (cout,), jnp.float32)
        beta = 0.05 * jax.random.normal(k4, (cout,), jnp.float32)
        mean = jnp.zeros((cout,), jnp.float32)   # running_mean (fresh BN)
        var = jnp.ones((cout,), jnp.float32)     # running_var  (fresh BN)
        conv.append((w, b, gamma, beta, mean, var))
    params["conv"] = conv

    key, k1, k2, k3, k4 = jax.random.split(key, 5)
    fan_in = 256 * 4 * 4
    bound = 1.0 / math.sqrt(fan_in)
    fw = jax.random.uniform(k1, (512, fan_in), jnp.float32, -bound, bound)
    fb = jax.random.uniform(k2, (512,), jnp.float32, -bound, bound)
    fgamma = 1.0 + 0.05 * jax.random.normal(k3, (512,), jnp.float32)
    fbeta = 0.05 * jax.random.normal(k4, (512,), jnp.float32)
    params["fc"] = (fw, fb, fgamma, fbeta,
                    jnp.zeros((512,), jnp.float32), jnp.ones((512,), jnp.float32))

    key, k1, k2 = jax.random.split(key, 3)
    bound = 1.0 / math.sqrt(512)
    cw = jax.random.uniform(k1, (10, 512), jnp.float32, -bound, bound)
    cb = jax.random.uniform(k2, (10,), jnp.float32, -bound, bound)
    params["cls"] = (cw, cb)
    return params


def prepare_params(params):
    """One-time (outside the jitted forward): fold BN+bias, transpose weights
    to matmul layout, zero-pad K to lane multiples, cast to bf16, pad the
    classifier to 128 output lanes, and permute the FC weight columns from the
    PyTorch NCHW-flatten order to the NHWC-flatten order used internally."""
    prepared = {"conv": []}
    for (w, b, gamma, beta, mean, var) in params["conv"]:
        cout = w.shape[0]
        scale = gamma / jnp.sqrt(var + BN_EPS)
        shift = beta + (b - mean) * scale
        # [Cout, Cin, kh, kw] -> [kh, kw, Cin, Cout] -> [k*k*Cin, Cout]
        wt = jnp.transpose(w, (2, 3, 1, 0)).reshape(-1, cout) * scale[None, :]
        k_raw = wt.shape[0]
        k_pad = _round_up(k_raw, 128)           # lane-dense contraction dim
        if k_pad != k_raw:
            wt = jnp.pad(wt, ((0, k_pad - k_raw), (0, 0)))
        prepared["conv"].append((wt.astype(jnp.bfloat16),
                                 shift.astype(jnp.float32).reshape(1, -1)))

    fw, fb, fgamma, fbeta, fmean, fvar = params["fc"]
    fscale = fgamma / jnp.sqrt(fvar + BN_EPS)
    fshift = fbeta + (fb - fmean) * fscale
    # PyTorch flattens NCHW (C,H,W); internal features are NHWC (H,W,C).
    fwr = fw.reshape(512, 256, 4, 4).transpose(0, 2, 3, 1).reshape(512, 4096)
    fwt = (fwr.T * fscale[None, :]).astype(jnp.bfloat16)    # [4096, 512]
    prepared["fc"] = (fwt, fshift.astype(jnp.float32).reshape(1, -1))

    cw, cb = params["cls"]
    n_cls = cw.shape[0]
    n_pad = _round_up(n_cls, 128)               # unmasked wide output stores
    cwt = jnp.pad(cw.T, ((0, 0), (0, n_pad - n_cls))).astype(jnp.bfloat16)
    cbp = jnp.pad(cb, (0, n_pad - n_cls)).astype(jnp.float32).reshape(1, -1)
    prepared["cls"] = (cwt, cbp)                # [512, 128], [1, 128]
    return prepared


# ----------------------------------------------------------------------------
# Forward pass (matches DTN.forward, eval mode)
# ----------------------------------------------------------------------------
def dtn_forward(x, prepared):
    # NCHW (PyTorch API) -> NHWC once, bf16 activations from here on.
    h = jnp.transpose(x, (0, 2, 3, 1)).astype(jnp.bfloat16)

    # conv_params: [Conv -> BN -> Dropout2d(id) -> ReLU] x 3
    for (wt, shift) in prepared["conv"]:
        patches, B, Ho, Wo = im2col_nhwc(h, k=5, s=2, p=2, pad_k_to=wt.shape[0])
        cout = wt.shape[1]
        out = fused_matmul(patches, wt, shift, apply_relu=True,
                           out_dtype=jnp.bfloat16)
        h = out.reshape(B, Ho, Wo, cout)                    # stay NHWC

    B = h.shape[0]
    feat = h.reshape(B, -1)                                 # NHWC flatten

    # fc_params (Linear -> BN1d -> ReLU -> Dropout(id)) + classifier, fused.
    fwt, fshift = prepared["fc"]
    cwt, cb = prepared["cls"]
    logits = fc_head(feat, fwt, fshift, cwt, cb)
    return logits[:, :NUM_CLASSES]


if __name__ == "__main__":
    key = jax.random.PRNGKey(0)
    kx, kp = jax.random.split(key)
    # DTN's fc layer requires 256*4*4 features -> input spatial must be 32x32.
    x = jax.random.normal(kx, (2, 3, 32, 32), jnp.float32)
    params = init_params(kp)
    prepared = prepare_params(params)   # static folds/transposes, done once

    fwd = jax.jit(dtn_forward)
    logits = fwd(x, prepared)
    jax.block_until_ready(logits)
    assert logits.shape == (2, 10), logits.shape
    assert logits.dtype == jnp.float32
    print("KERNEL_OK")
</pallas_src>

<mosaic_0001>
module attributes {stable_mosaic.version = 11 : i64} {
  func.func @_matmul_shift_kernel(%arg0: i32, %arg1: memref<512x128xbf16, #tpu.memory_space<vmem>>, %arg2: memref<128x64xbf16, #tpu.memory_space<vmem>>, %arg3: memref<1x64xf32, #tpu.memory_space<vmem>>, %arg4: memref<512x64xbf16, #tpu.memory_space<vmem>>) attributes {dimension_semantics = [#tpu.dimension_semantics<parallel>], iteration_bounds = array<i64: 1>, scalar_prefetch = 0 : i64, scratch_operands = 0 : i64, tpu.core_type = #tpu.core_type<tc>, window_params = [{transform_indices = @transform_0, window_bounds = array<i64: 512, 128>}, {pipeline_mode = #tpu.pipeline_mode<synchronous>, transform_indices = @transform_1, window_bounds = array<i64: 128, 64>}, {pipeline_mode = #tpu.pipeline_mode<synchronous>, transform_indices = @transform_2, window_bounds = array<i64: 1, 64>}, {transform_indices = @transform_3, window_bounds = array<i64: 512, 64>}]} {
    %c0 = arith.constant 0 : index
    %c0_0 = arith.constant 0 : index
    %0 = vector.load %arg1[%c0, %c0_0] : memref<512x128xbf16, #tpu.memory_space<vmem>>, vector<512x128xbf16>
    %c0_1 = arith.constant 0 : index
    %c0_2 = arith.constant 0 : index
    %1 = vector.load %arg2[%c0_1, %c0_2] : memref<128x64xbf16, #tpu.memory_space<vmem>>, vector<128x64xbf16>
    %cst = arith.constant dense<0.000000e+00> : vector<512x64xf32>
    %2 = tpu.matmul %0, %1, %cst {dimension_numbers = #tpu.dot_dimension_numbers<[1], [0], [0], [1], [0, 0, 1, 1], [], []>} : vector<512x128xbf16>, vector<128x64xbf16>, vector<512x64xf32> -> vector<512x64xf32>
    %c0_3 = arith.constant 0 : index
    %c0_4 = arith.constant 0 : index
    %3 = vector.load %arg3[%c0_3, %c0_4] : memref<1x64xf32, #tpu.memory_space<vmem>>, vector<1x64xf32>
    %4 = vector.broadcast %3 : vector<1x64xf32> to vector<512x64xf32>
    %5 = arith.addf %2, %4 : vector<512x64xf32>
    %cst_5 = arith.constant 0.000000e+00 : f32
    %6 = vector.broadcast %cst_5 : f32 to vector<512x64xf32>
    %7 = arith.maximumf %5, %6 : vector<512x64xf32>
    %8 = arith.truncf %7 : vector<512x64xf32> to vector<512x64xbf16>
    %c0_6 = arith.constant 0 : index
    %c0_7 = arith.constant 0 : index
    %9 = vector.load %arg4[%c0_6, %c0_7] : memref<512x64xbf16, #tpu.memory_space<vmem>>, vector<512x64xbf16>
    tpu.vector_store %arg4[%c0_6, %c0_7], %8 {strides = array<i32>} : memref<512x64xbf16, #tpu.memory_space<vmem>>, vector<512x64xbf16>,
    return
  }
  func.func @transform_0(%arg0: i32) -> (i32, i32) {
    %c0_i32 = arith.constant 0 : i32
    %c0_i32_0 = arith.constant 0 : i32
    return %arg0, %c0_i32 : i32, i32
  }
  func.func @transform_1(%arg0: i32) -> (i32, i32) {
    %c0_i32 = arith.constant 0 : i32
    %c0_i32_0 = arith.constant 0 : i32
    %c0_i32_1 = arith.constant 0 : i32
    return %c0_i32, %c0_i32_0 : i32, i32
  }
  func.func @transform_2(%arg0: i32) -> (i32, i32) {
    %c0_i32 = arith.constant 0 : i32
    %c0_i32_0 = arith.constant 0 : i32
    %c0_i32_1 = arith.constant 0 : i32
    return %c0_i32, %c0_i32_0 : i32, i32
  }
  func.func @transform_3(%arg0: i32) -> (i32, i32) {
    %c0_i32 = arith.constant 0 : i32
    %c0_i32_0 = arith.constant 0 : i32
    return %arg0, %c0_i32 : i32, i32
  }
}

module attributes {stable_mosaic.version = 11 : i64} {
  func.func @_matmul_shift_kernel(%arg0: i32, %arg1: memref<128x1664xbf16, #tpu.memory_space<vmem>>, %arg2: memref<1664x128xbf16, #tpu.memory_space<vmem>>, %arg3: memref<1x128xf32, #tpu.memory_space<vmem>>, %arg4: memref<128x128xbf16, #tpu.memory_space<vmem>>) attributes {dimension_semantics = [#tpu.dimension_semantics<parallel>], iteration_bounds = array<i64: 1>, scalar_prefetch = 0 : i64, scratch_operands = 0 : i64, tpu.core_type = #tpu.core_type<tc>, window_params = [{transform_indices = @transform_0, window_bounds = array<i64: 128, 1664>}, {pipeline_mode = #tpu.pipeline_mode<synchronous>, transform_indices = @transform_1, window_bounds = array<i64: 1664, 128>}, {pipeline_mode = #tpu.pipeline_mode<synchronous>, transform_indices = @transform_2, window_bounds = array<i64: 1, 128>}, {transform_indices = @transform_3, window_bounds = array<i64: 128, 128>}]} {
    %c0 = arith.constant 0 : index
    %c0_0 = arith.constant 0 : index
    %0 = vector.load %arg1[%c0, %c0_0] : memref<128x1664xbf16, #tpu.memory_space<vmem>>, vector<128x1664xbf16>
    %c0_1 = arith.constant 0 : index
    %c0_2 = arith.constant 0 : index
    %1 = vector.load %arg2[%c0_1, %c0_2] : memref<1664x128xbf16, #tpu.memory_space<vmem>>, vector<1664x128xbf16>
    %cst = arith.constant dense<0.000000e+00> : vector<128x128xf32>
    %2 = tpu.matmul %0, %1, %cst {dimension_numbers = #tpu.dot_dimension_numbers<[1], [0], [0], [1], [0, 0, 1, 1], [], []>} : vector<128x1664xbf16>, vector<1664x128xbf16>, vector<128x128xf32> -> vector<128x128xf32>
    %c0_3 = arith.constant 0 : index
    %c0_4 = arith.constant 0 : index
    %3 = vector.load %arg3[%c0_3, %c0_4] : memref<1x128xf32, #tpu.memory_space<vmem>>, vector<1x128xf32>
    %4 = vector.broadcast %3 : vector<1x128xf32> to vector<128x128xf32>
    %5 = arith.addf %2, %4 : vector<128x128xf32>
    %cst_5 = arith.constant 0.000000e+00 : f32
    %6 = vector.broadcast %cst_5 : f32 to vector<128x128xf32>
    %7 = arith.maximumf %5, %6 : vector<128x128xf32>
    %8 = arith.truncf %7 : vector<128x128xf32> to vector<128x128xbf16>
    %c0_6 = arith.constant 0 : index
    %c0_7 = arith.constant 0 : index
    %9 = vector.load %arg4[%c0_6, %c0_7] : memref<128x128xbf16, #tpu.memory_space<vmem>>, vector<128x128xbf16>
    tpu.vector_store %arg4[%c0_6, %c0_7], %8 {strides = array<i32>} : memref<128x128xbf16, #tpu.memory_space<vmem>>, vector<128x128xbf16>,
    return
  }
  func.func @transform_0(%arg0: i32) -> (i32, i32) {
    %c0_i32 = arith.constant 0 : i32
    %c0_i32_0 = arith.constant 0 : i32
    return %arg0, %c0_i32 : i32, i32
  }
  func.func @transform_1(%arg0: i32) -> (i32, i32) {
    %c0_i32 = arith.constant 0 : i32
    %c0_i32_0 = arith.constant 0 : i32
    %c0_i32_1 = arith.constant 0 : i32
    return %c0_i32, %c0_i32_0 : i32, i32
  }
  func.func @transform_2(%arg0: i32) -> (i32, i32) {
    %c0_i32 = arith.constant 0 : i32
    %c0_i32_0 = arith.constant 0 : i32
    %c0_i32_1 = arith.constant 0 : i32
    return %c0_i32, %c0_i32_0 : i32, i32
  }
  func.func @transform_3(%arg0: i32) -> (i32, i32) {
    %c0_i32 = arith.constant 0 : i32
    %c0_i32_0 = arith.constant 0 : i32
    return %arg0, %c0_i32 : i32, i32
  }
}

module attributes {stable_mosaic.version = 11 : i64} {
  func.func @_matmul_shift_kernel(%arg0: i32, %arg1: memref<32x3200xbf16, #tpu.memory_space<vmem>>, %arg2: memref<3200x256xbf16, #tpu.memory_space<vmem>>, %arg3: memref<1x256xf32, #tpu.memory_space<vmem>>, %arg4: memref<32x256xbf16, #tpu.memory_space<vmem>>) attributes {dimension_semantics = [#tpu.dimension_semantics<parallel>], iteration_bounds = array<i64: 1>, scalar_prefetch = 0 : i64, scratch_operands = 0 : i64, tpu.core_type = #tpu.core_type<tc>, window_params = [{transform_indices = @transform_0, window_bounds = array<i64: 32, 3200>}, {pipeline_mode = #tpu.pipeline_mode<synchronous>, transform_indices = @transform_1, window_bounds = array<i64: 3200, 256>}, {pipeline_mode = #tpu.pipeline_mode<synchronous>, transform_indices = @transform_2, window_bounds = array<i64: 1, 256>}, {transform_indices = @transform_3, window_bounds = array<i64: 32, 256>}]} {
    %c0 = arith.constant 0 : index
    %c0_0 = arith.constant 0 : index
    %0 = vector.load %arg1[%c0, %c0_0] : memref<32x3200xbf16, #tpu.memory_space<vmem>>, vector<32x3200xbf16>
    %c0_1 = arith.constant 0 : index
    %c0_2 = arith.constant 0 : index
    %1 = vector.load %arg2[%c0_1, %c0_2] : memref<3200x256xbf16, #tpu.memory_space<vmem>>, vector<3200x256xbf16>
    %cst = arith.constant dense<0.000000e+00> : vector<32x256xf32>
    %2 = tpu.matmul %0, %1, %cst {dimension_numbers = #tpu.dot_dimension_numbers<[1], [0], [0], [1], [0, 0, 1, 1], [], []>} : vector<32x3200xbf16>, vector<3200x256xbf16>, vector<32x256xf32> -> vector<32x256xf32>
    %c0_3 = arith.constant 0 : index
    %c0_4 = arith.constant 0 : index
    %3 = vector.load %arg3[%c0_3, %c0_4] : memref<1x256xf32, #tpu.memory_space<vmem>>, vector<1x256xf32>
    %4 = vector.broadcast %3 : vector<1x256xf32> to vector<32x256xf32>
    %5 = arith.addf %2, %4 : vector<32x256xf32>
    %cst_5 = arith.constant 0.000000e+00 : f32
    %6 = vector.broadcast %cst_5 : f32 to vector<32x256xf32>
    %7 = arith.maximumf %5, %6 : vector<32x256xf32>
    %8 = arith.truncf %7 : vector<32x256xf32> to vector<32x256xbf16>
    %c0_6 = arith.constant 0 : index
    %c0_7 = arith.constant 0 : index
    %9 = vector.load %arg4[%c0_6, %c0_7] : memref<32x256xbf16, #tpu.memory_space<vmem>>, vector<32x256xbf16>
    tpu.vector_store %arg4[%c0_6, %c0_7], %8 {strides = array<i32>} : memref<32x256xbf16, #tpu.memory_space<vmem>>, vector<32x256xbf16>,
    return
  }
  func.func @transform_0(%arg0: i32) -> (i32, i32) {
    %c0_i32 = arith.constant 0 : i32
    %c0_i32_0 = arith.constant 0 : i32
    return %arg0, %c0_i32 : i32, i32
  }
  func.func @transform_1(%arg0: i32) -> (i32, i32) {
    %c0_i32 = arith.constant 0 : i32
    %c0_i32_0 = arith.constant 0 : i32
    %c0_i32_1 = arith.constant 0 : i32
    return %c0_i32, %c0_i32_0 : i32, i32
  }
  func.func @transform_2(%arg0: i32) -> (i32, i32) {
    %c0_i32 = arith.constant 0 : i32
    %c0_i32_0 = arith.constant 0 : i32
    %c0_i32_1 = arith.constant 0 : i32
    return %c0_i32, %c0_i32_0 : i32, i32
  }
  func.func @transform_3(%arg0: i32) -> (i32, i32) {
    %c0_i32 = arith.constant 0 : i32
    %c0_i32_0 = arith.constant 0 : i32
    return %arg0, %c0_i32 : i32, i32
  }
}

module attributes {stable_mosaic.version = 11 : i64} {
  func.func @_fc_head_kernel(%arg0: i32, %arg1: memref<16x4096xbf16, #tpu.memory_space<vmem>>, %arg2: memref<4096x512xbf16, #tpu.memory_space<vmem>>, %arg3: memref<1x512xf32, #tpu.memory_space<vmem>>, %arg4: memref<512x128xbf16, #tpu.memory_space<vmem>>, %arg5: memref<1x128xf32, #tpu.memory_space<vmem>>, %arg6: memref<16x128xf32, #tpu.memory_space<vmem>>) attributes {dimension_semantics = [#tpu.dimension_semantics<parallel>], iteration_bounds = array<i64: 1>, scalar_prefetch = 0 : i64, scratch_operands = 0 : i64, tpu.core_type = #tpu.core_type<tc>, window_params = [{transform_indices = @transform_0, window_bounds = array<i64: 16, 4096>}, {pipeline_mode = #tpu.pipeline_mode<synchronous>, transform_indices = @transform_1, window_bounds = array<i64: 4096, 512>}, {pipeline_mode = #tpu.pipeline_mode<synchronous>, transform_indices = @transform_2, window_bounds = array<i64: 1, 512>}, {pipeline_mode = #tpu.pipeline_mode<synchronous>, transform_indices = @transform_3, window_bounds = array<i64: 512, 128>}, {pipeline_mode = #tpu.pipeline_mode<synchronous>, transform_indices = @transform_4, window_bounds = array<i64: 1, 128>}, {transform_indices = @transform_5, window_bounds = array<i64: 16, 128>}]} {
    %c0 = arith.constant 0 : index
    %c0_0 = arith.constant 0 : index
    %0 = vector.load %arg1[%c0, %c0_0] : memref<16x4096xbf16, #tpu.memory_space<vmem>>, vector<16x4096xbf16>
    %c0_1 = arith.constant 0 : index
    %c0_2 = arith.constant 0 : index
    %1 = vector.load %arg2[%c0_1, %c0_2] : memref<4096x512xbf16, #tpu.memory_space<vmem>>, vector<4096x512xbf16>
    %cst = arith.constant dense<0.000000e+00> : vector<16x512xf32>
    %2 = tpu.matmul %0, %1, %cst {dimension_numbers = #tpu.dot_dimension_numbers<[1], [0], [0], [1], [0, 0, 1, 1], [], []>} : vector<16x4096xbf16>, vector<4096x512xbf16>, vector<16x512xf32> -> vector<16x512xf32>
    %c0_3 = arith.constant 0 : index
    %c0_4 = arith.constant 0 : index
    %3 = vector.load %arg3[%c0_3, %c0_4] : memref<1x512xf32, #tpu.memory_space<vmem>>, vector<1x512xf32>
    %4 = vector.broadcast %3 : vector<1x512xf32> to vector<16x512xf32>
    %5 = arith.addf %2, %4 : vector<16x512xf32>
    %cst_5 = arith.constant 0.000000e+00 : f32
    %6 = vector.broadcast %cst_5 : f32 to vector<16x512xf32>
    %7 = arith.maximumf %5, %6 : vector<16x512xf32>
    %8 = arith.truncf %7 : vector<16x512xf32> to vector<16x512xbf16>
    %c0_6 = arith.constant 0 : index
    %c0_7 = arith.constant 0 : index
    %9 = vector.load %arg4[%c0_6, %c0_7] : memref<512x128xbf16, #tpu.memory_space<vmem>>, vector<512x128xbf16>
    %cst_8 = arith.constant dense<0.000000e+00> : vector<16x128xf32>
    %10 = tpu.matmul %8, %9, %cst_8 {dimension_numbers = #tpu.dot_dimension_numbers<[1], [0], [0], [1], [0, 0, 1, 1], [], []>} : vector<16x512xbf16>, vector<512x128xbf16>, vector<16x128xf32> -> vector<16x128xf32>
    %c0_9 = arith.constant 0 : index
    %c0_10 = arith.constant 0 : index
    %11 = vector.load %arg5[%c0_9, %c0_10] : memref<1x128xf32, #tpu.memory_space<vmem>>, vector<1x128xf32>
    %12 = vector.broadcast %11 : vector<1x128xf32> to vector<16x128xf32>
    %13 = arith.addf %10, %12 : vector<16x128xf32>
    %c0_11 = arith.constant 0 : index
    %c0_12 = arith.constant 0 : index
    %14 = vector.load %arg6[%c0_11, %c0_12] : memref<16x128xf32, #tpu.memory_space<vmem>>, vector<16x128xf32>
    tpu.vector_store %arg6[%c0_11, %c0_12], %13 {strides = array<i32>} : memref<16x128xf32, #tpu.memory_space<vmem>>, vector<16x128xf32>,
    return
  }
  func.func @transform_0(%arg0: i32) -> (i32, i32) {
    %c0_i32 = arith.constant 0 : i32
    %c0_i32_0 = arith.constant 0 : i32
    return %arg0, %c0_i32 : i32, i32
  }
  func.func @transform_1(%arg0: i32) -> (i32, i32) {
    %c0_i32 = arith.constant 0 : i32
    %c0_i32_0 = arith.constant 0 : i32
    %c0_i32_1 = arith.constant 0 : i32
    return %c0_i32, %c0_i32_0 : i32, i32
  }
  func.func @transform_2(%arg0: i32) -> (i32, i32) {
    %c0_i32 = arith.constant 0 : i32
    %c0_i32_0 = arith.constant 0 : i32
    %c0_i32_1 = arith.constant 0 : i32
    return %c0_i32, %c0_i32_0 : i32, i32
  }
  func.func @transform_3(%arg0: i32) -> (i32, i32) {
    %c0_i32 = arith.constant 0 : i32
    %c0_i32_0 = arith.constant 0 : i32
    %c0_i32_1 = arith.constant 0 : i32
    return %c0_i32, %c0_i32_0 : i32, i32
  }
  func.func @transform_4(%arg0: i32) -> (i32, i32) {
    %c0_i32 = arith.constant 0 : i32
    %c0_i32_0 = arith.constant 0 : i32
    %c0_i32_1 = arith.constant 0 : i32
    return %c0_i32, %c0_i32_0 : i32, i32
  }
  func.func @transform_5(%arg0: i32) -> (i32, i32) {
    %c0_i32 = arith.constant 0 : i32
    %c0_i32_0 = arith.constant 0 : i32
    return %arg0, %c0_i32 : i32, i32
  }
}

</mosaic_0001>

<llo_original>
// kernel: dtn_forward.4
$region0: #{dtn_forward.4}
  #allocation0 [shape = 'u32[]', space=smem, size = 0x4, offset = 0x4, fixed_abs, tag = 'smem constant byte address 0x4 - core index']
  #allocation1 [shape = 'u32[72,128]{1,0:T(1,128)}', space=vmem, size = 0x9000, scoped, tag = 'internal scratch']
  %s0 = inlined_call_operand.vmem [shape: bf16[512,128], index: 0, kind: input, shape index: {}]
  %s1 = inlined_call_operand.vmem [shape: bf16[128,64], index: 1, kind: input, shape index: {}]
  %s2 = inlined_call_operand.vmem [shape: f32[1,64], index: 2, kind: input, shape index: {}]
  %s3 = inlined_call_operand.vmem [shape: bf16[512,64], index: 3, kind: output, shape index: {}]
  %s4 = sld [smem:[#allocation0]]
  $region22: #{dtn_forward.4} parent=0
    _
  %s6 = ssub.s32 1, %s4
  %s7 = scalar_select 0, %s6, %s4
  // Predicated region
  $region2: #{dtn_forward.4} parent=0 // pred_check
    _
  $region3: #{dtn_forward.4} parent=0 // pred_check_branch
    %9 = sbr.rel (0) target = $region5
  $region4: #{dtn_forward.4} parent=0 // pred_region
    _
  $region5: #{dtn_forward.4} parent=0 // pred_fallthru
    _
  // Predicated region
  $region6: #{dtn_forward.4} parent=0 // pred_check
    _
  $region7: #{dtn_forward.4} parent=0 // pred_check_branch
    %11 = sbr.rel (0) target = $region9
  $region8: #{dtn_forward.4} parent=0 // pred_region
    _
  $region9: #{dtn_forward.4} parent=0 // pred_fallthru
    _
  // Predicated region
  $region10: #{dtn_forward.4} parent=0 // pred_check
    _
  $region11: #{dtn_forward.4} parent=0 // pred_check_branch
    %13 = sbr.rel (0) target = $region13
  $region12: #{dtn_forward.4} parent=0 // pred_region
    _
  $region13: #{dtn_forward.4} parent=0 // pred_fallthru
    _
  %v14 = vld [vmem:[%s0] sm:$0xf]
  %v15 = vld [vmem:[%s0 + $0x4] sm:$0xf]
  %v16 = vld [vmem:[%s0 + $0x8] sm:$0xf]
  %v17 = vld [vmem:[%s0 + $0xc] sm:$0xf]
  %v18 = vld [vmem:[%s0 + $0x10] sm:$0xf]
  %v19 = vld [vmem:[%s0 + $0x14] sm:$0xf]
  %v20 = vld [vmem:[%s0 + $0x18] sm:$0xf]
  %v21 = vld [vmem:[%s0 + $0x1c] sm:$0xf]
  %v22 = vld [vmem:[%s0 + $0x20] sm:$0xf]
  %v23 = vld [vmem:[%s0 + $0x24] sm:$0xf]
  %v24 = vld [vmem:[%s0 + $0x28] sm:$0xf]
  %v25 = vld [vmem:[%s0 + $0x2c] sm:$0xf]
  %v26 = vld [vmem:[%s0 + $0x30] sm:$0xf]
  %v27 = vld [vmem:[%s0 + $0x34] sm:$0xf]
  %v28 = vld [vmem:[%s0 + $0x38] sm:$0xf]
  %v29 = vld [vmem:[%s0 + $0x3c] sm:$0xf]
  %v30 = vld [vmem:[%s0 + $0x40] sm:$0xf]
  %v31 = vld [vmem:[%s0 + $0x44] sm:$0xf]
  %v32 = vld [vmem:[%s0 + $0x48] sm:$0xf]
  %v33 = vld [vmem:[%s0 + $0x4c] sm:$0xf]
  %v34 = vld [vmem:[%s0 + $0x50] sm:$0xf]
  %v35 = vld [vmem:[%s0 + $0x54] sm:$0xf]
  %v36 = vld [vmem:[%s0 + $0x58] sm:$0xf]
  %v37 = vld [vmem:[%s0 + $0x5c] sm:$0xf]
  %v38 = vld [vmem:[%s0 + $0x60] sm:$0xf]
  %v39 = vld [vmem:[%s0 + $0x64] sm:$0xf]
  %v40 = vld [vmem:[%s0 + $0x68] sm:$0xf]
  %v41 = vld [vmem:[%s0 + $0x6c] sm:$0xf]
  %v42 = vld [vmem:[%s0 + $0x70] sm:$0xf]
  %v43 = vld [vmem:[%s0 + $0x74] sm:$0xf]
  %v44 = vld [vmem:[%s0 + $0x78] sm:$0xf]
  %v45 = vld [vmem:[%s0 + $0x7c] sm:$0xf]
  %v46 = vld [vmem:[%s0 + $0x80] sm:$0xf]
  %v47 = vld [vmem:[%s0 + $0x84] sm:$0xf]
  %v48 = vld [vmem:[%s0 + $0x88] sm:$0xf]
  %v49 = vld [vmem:[%s0 + $0x8c] sm:$0xf]
  %v50 = vld [vmem:[%s0 + $0x90] sm:$0xf]
  %v51 = vld [vmem:[%s0 + $0x94] sm:$0xf]
  %v52 = vld [vmem:[%s0 + $0x98] sm:$0xf]
  %v53 = vld [vmem:[%s0 + $0x9c] sm:$0xf]
  %v54 = vld [vmem:[%s0 + $0xa0] sm:$0xf]
  %v55 = vld [vmem:[%s0 + $0xa4] sm:$0xf]
  %v56 = vld [vmem:[%s0 + $0xa8] sm:$0xf]
  %v57 = vld [vmem:[%s0 + $0xac] sm:$0xf]
  %v58 = vld [vmem:[%s0 + $0xb0] sm:$0xf]
  %v59 = vld [vmem:[%s0 + $0xb4] sm:$0xf]
  %v60 = vld [vmem:[%s0 + $0xb8] sm:$0xf]
  %v61 = vld [vmem:[%s0 + $0xbc] sm:$0xf]
  %v62 = vld [vmem:[%s0 + $0xc0] sm:$0xf]
  %v63 = vld [vmem:[%s0 + $0xc4] sm:$0xf]
  %v64 = vld [vmem:[%s0 + $0xc8] sm:$0xf]
  %v65 = vld [vmem:[%s0 + $0xcc] sm:$0xf]
  %v66 = vld [vmem:[%s0 + $0xd0] sm:$0xf]
  %v67 = vld [vmem:[%s0 + $0xd4] sm:$0xf]
  %v68 = vld [vmem:[%s0 + $0xd8] sm:$0xf]
  %v69 = vld [vmem:[%s0 + $0xdc] sm:$0xf]
  %v70 = vld [vmem:[%s0 + $0xe0] sm:$0xf]
  %v71 = vld [vmem:[%s0 + $0xe4] sm:$0xf]
  %v72 = vld [vmem:[%s0 + $0xe8] sm:$0xf]
  %v73 = vld [vmem:[%s0 + $0xec] sm:$0xf]
  %v74 = vld [vmem:[%s0 + $0xf0] sm:$0xf]
  %v75 = vld [vmem:[%s0 + $0xf4] sm:$0xf]
  %v76 = vld [vmem:[%s0 + $0xf8] sm:$0xf]
  %v77 = vld [vmem:[%s0 + $0xfc] sm:$0xf]
  %v78 = vld [vmem:[%s1] sm:$0xf]
  %v79 = vld [vmem:[%s1 + $0x4] sm:$0xf]
  %v80 = vld [vmem:[%s1 + $0x8] sm:$0xf]
  %v81 = vld [vmem:[%s1 + $0xc] sm:$0xf]
  %v82 = vld [vmem:[%s1 + $0x10] sm:$0xf]
  %v83 = vld [vmem:[%s1 + $0x14] sm:$0xf]
  %v84 = vld [vmem:[%s1 + $0x18] sm:$0xf]
  %v85 = vld [vmem:[%s1 + $0x1c] sm:$0xf]
  %v86 = vld [vmem:[%s1 + $0x20] sm:$0xf]
  %v87 = vld [vmem:[%s1 + $0x24] sm:$0xf]
  %v88 = vld [vmem:[%s1 + $0x28] sm:$0xf]
  %v89 = vld [vmem:[%s1 + $0x2c] sm:$0xf]
  %v90 = vld [vmem:[%s1 + $0x30] sm:$0xf]
  %v91 = vld [vmem:[%s1 + $0x34] sm:$0xf]
  %v92 = vld [vmem:[%s1 + $0x38] sm:$0xf]
  %v93 = vld [vmem:[%s1 + $0x3c] sm:$0xf]
  %v94 = vld [vmem:[%s2] sm:$0x1]
  %v96 = vperm.slane %v94, 0
  %v162 = vunpack.c.l.b16 %v14
  %v163 = vunpack.c.l.b16 %v15
  %v164 = vunpack.c.l.b16 %v16
  %v165 = vunpack.c.l.b16 %v17
  %v166 = vunpack.c.l.b16 %v18
  %v167 = vunpack.c.l.b16 %v19
  %v168 = vunpack.c.l.b16 %v20
  %v169 = vunpack.c.l.b16 %v21
  %v170 = vunpack.c.l.b16 %v22
  %v171 = vunpack.c.l.b16 %v23
  %v172 = vunpack.c.l.b16 %v24
  %v173 = vunpack.c.l.b16 %v25
  %v174 = vunpack.c.l.b16 %v26
  %v175 = vunpack.c.l.b16 %v27
  %v176 = vunpack.c.l.b16 %v28
  %v177 = vunpack.c.l.b16 %v29
  %v178 = vunpack.c.l.b16 %v30
  %v179 = vunpack.c.l.b16 %v31
  %v180 = vunpack.c.l.b16 %v32
  %v181 = vunpack.c.l.b16 %v33
  %v182 = vunpack.c.l.b16 %v34
  %v183 = vunpack.c.l.b16 %v35
  %v184 = vunpack.c.l.b16 %v36
  %v185 = vunpack.c.l.b16 %v37
  %v186 = vunpack.c.l.b16 %v38
  %v187 = vunpack.c.l.b16 %v39
  %v188 = vunpack.c.l.b16 %v40
  %v189 = vunpack.c.l.b16 %v41
  %v190 = vunpack.c.l.b16 %v42
  %v191 = vunpack.c.l.b16 %v43
  %v192 = vunpack.c.l.b16 %v44
  %v193 = vunpack.c.l.b16 %v45
  %v194 = vunpack.c.l.b16 %v46
  %v195 = vunpack.c.l.b16 %v47
  %v196 = vunpack.c.l.b16 %v48
  %v197 = vunpack.c.l.b16 %v49
  %v198 = vunpack.c.l.b16 %v50
  %v199 = vunpack.c.l.b16 %v51
  %v200 = vunpack.c.l.b16 %v52
  %v201 = vunpack.c.l.b16 %v53
  %v202 = vunpack.c.l.b16 %v54
  %v203 = vunpack.c.l.b16 %v55
  %v204 = vunpack.c.l.b16 %v56
  %v205 = vunpack.c.l.b16 %v57
  %v206 = vunpack.c.l.b16 %v58
  %v207 = vunpack.c.l.b16 %v59
  %v208 = vunpack.c.l.b16 %v60
  %v209 = vunpack.c.l.b16 %v61
  %v210 = vunpack.c.l.b16 %v62
  %v211 = vunpack.c.l.b16 %v63
  %v212 = vunpack.c.l.b16 %v64
  %v213 = vunpack.c.l.b16 %v65
  %v214 = vunpack.c.l.b16 %v66
  %v215 = vunpack.c.l.b16 %v67
  %v216 = vunpack.c.l.b16 %v68
  %v217 = vunpack.c.l.b16 %v69
  %v218 = vunpack.c.l.b16 %v70
  %v219 = vunpack.c.l.b16 %v71
  %v220 = vunpack.c.l.b16 %v72
  %v221 = vunpack.c.l.b16 %v73
  %v222 = vunpack.c.l.b16 %v74
  %v223 = vunpack.c.l.b16 %v75
  %v224 = vunpack.c.l.b16 %v76
  %v225 = vunpack.c.l.b16 %v77
  %v226 = vpack.c.b16 %v163, %v162
  %v227 = vpack.c.b16 %v165, %v164
  %v228 = vpack.c.b16 %v167, %v166
  %v229 = vpack.c.b16 %v169, %v168
  %v230 = vpack.c.b16 %v171, %v170
  %v231 = vpack.c.b16 %v173, %v172
  %v232 = vpack.c.b16 %v175, %v174
  %v233 = vpack.c.b16 %v177, %v176
  %v234 = vpack.c.b16 %v179, %v178
  %v235 = vpack.c.b16 %v181, %v180
  %v236 = vpack.c.b16 %v183, %v182
  %v237 = vpack.c.b16 %v185, %v184
  %v238 = vpack.c.b16 %v187, %v186
  %v239 = vpack.c.b16 %v189, %v188
  %v240 = vpack.c.b16 %v191, %v190
  %v241 = vpack.c.b16 %v193, %v192
  %v242 = vpack.c.b16 %v195, %v194
  %v243 = vpack.c.b16 %v197, %v196
  %v244 = vpack.c.b16 %v199, %v198
  %v245 = vpack.c.b16 %v201, %v200
  %v246 = vpack.c.b16 %v203, %v202
  %v247 = vpack.c.b16 %v205, %v204
  %v248 = vpack.c.b16 %v207, %v206
  %v249 = vpack.c.b16 %v209, %v208
  %v250 = vpack.c.b16 %v211, %v210
  %v251 = vpack.c.b16 %v213, %v212
  %v252 = vpack.c.b16 %v215, %v214
  %v253 = vpack.c.b16 %v217, %v216
  %v254 = vpack.c.b16 %v219, %v218
  %v255 = vpack.c.b16 %v221, %v220
  %v256 = vpack.c.b16 %v223, %v222
  %v257 = vpack.c.b16 %v225, %v224
  %v306 = vunpack.c.l.b16 %v78
  %v307 = vunpack.c.l.b16 %v79
  %v308 = vunpack.c.l.b16 %v80
  %v309 = vunpack.c.l.b16 %v81
  %v310 = vunpack.c.l.b16 %v82
  %v311 = vunpack.c.l.b16 %v83
  %v312 = vunpack.c.l.b16 %v84
  %v313 = vunpack.c.l.b16 %v85
  %v314 = vunpack.c.l.b16 %v86
  %v315 = vunpack.c.l.b16 %v87
  %v316 = vunpack.c.l.b16 %v88
  %v317 = vunpack.c.l.b16 %v89
  %v318 = vunpack.c.l.b16 %v90
  %v319 = vunpack.c.l.b16 %v91
  %v320 = vunpack.c.l.b16 %v92
  %v321 = vunpack.c.l.b16 %v93
  %v322 = vpack.c.b16 %v307, %v306
  %v323 = vpack.c.b16 %v309, %v308
  %v324 = vpack.c.b16 %v311, %v310
  %v325 = vpack.c.b16 %v313, %v312
  %v326 = vpack.c.b16 %v315, %v314
  %v327 = vpack.c.b16 %v317, %v316
  %v328 = vpack.c.b16 %v319, %v318
  %v329 = vpack.c.b16 %v321, %v320
  %338 = vmatpush.bf16.msra.mxu0 %v329
  %339 = vmatpush.bf16.msra.mxu0 %v328
  %340 = vmatpush.bf16.msra.mxu0 %v327
  %341 = vmatpush.bf16.msra.mxu0 %v326
  %342 = vmatpush.bf16.msra.mxu0 %v325
  %343 = vmatpush.bf16.msra.mxu0 %v324
  %344 = vmatpush.bf16.msra.mxu0 %v323
  %345 = vmatpush.bf16.msra.mxu0 %v322
  %346 = vmatmul.bf16.gmra.mxu0 %v226
  %v347 = vpop.f32.mrf.mxu0
  %v348 = vadd.f32 %v96, %v347
  %v349 = vpop.f32.mrf.mxu0
  %v350 = vadd.f32 %v96, %v349
  %351 = vmatmul.bf16.gmra.mxu0 %v227
  %v352 = vpop.f32.mrf.mxu0
  %v353 = vadd.f32 %v96, %v352
  %v354 = vpop.f32.mrf.mxu0
  %v355 = vadd.f32 %v96, %v354
  %356 = vmatmul.bf16.gmra.mxu0 %v228
  %v357 = vpop.f32.mrf.mxu0
  %v358 = vadd.f32 %v96, %v357
  %v359 = vpop.f32.mrf.mxu0
  %v360 = vadd.f32 %v96, %v359
  %361 = vmatmul.bf16.gmra.mxu0 %v229
  %v362 = vpop.f32.mrf.mxu0
  %v363 = vadd.f32 %v96, %v362
  %v364 = vpop.f32.mrf.mxu0
  %v365 = vadd.f32 %v96, %v364
  %366 = vmatmul.bf16.gmra.mxu0 %v230
  %v367 = vpop.f32.mrf.mxu0
  %v368 = vadd.f32 %v96, %v367
  %v369 = vpop.f32.mrf.mxu0
  %v370 = vadd.f32 %v96, %v369
  %371 = vmatmul.bf16.gmra.mxu0 %v231
  %v372 = vpop.f32.mrf.mxu0
  %v373 = vadd.f32 %v96, %v372
  %v374 = vpop.f32.mrf.mxu0
  %v375 = vadd.f32 %v96, %v374
  %376 = vmatmul.bf16.gmra.mxu0 %v232
  %v377 = vpop.f32.mrf.mxu0
  %v378 = vadd.f32 %v96, %v377
  %v379 = vpop.f32.mrf.mxu0
  %v380 = vadd.f32 %v96, %v379
  %381 = vmatmul.bf16.gmra.mxu0 %v233
  %v382 = vpop.f32.mrf.mxu0
  %v383 = vadd.f32 %v96, %v382
  %v384 = vpop.f32.mrf.mxu0
  %v385 = vadd.f32 %v96, %v384
  %386 = vmatmul.bf16.gmra.mxu0 %v234
  %v387 = vpop.f32.mrf.mxu0
  %v388 = vadd.f32 %v96, %v387
  %v389 = vpop.f32.mrf.mxu0
  %v390 = vadd.f32 %v96, %v389
  %391 = vmatmul.bf16.gmra.mxu0 %v235
  %v392 = vpop.f32.mrf.mxu0
  %v393 = vadd.f32 %v96, %v392
  %v394 = vpop.f32.mrf.mxu0
  %v395 = vadd.f32 %v96, %v394
  %396 = vmatmul.bf16.gmra.mxu0 %v236
  %v397 = vpop.f32.mrf.mxu0
  %v398 = vadd.f32 %v96, %v397
  %v399 = vpop.f32.mrf.mxu0
  %v400 = vadd.f32 %v96, %v399
  %401 = vmatmul.bf16.gmra.mxu0 %v237
  %v402 = vpop.f32.mrf.mxu0
  %v403 = vadd.f32 %v96, %v402
  %v404 = vpop.f32.mrf.mxu0
  %v405 = vadd.f32 %v96, %v404
  %406 = vmatmul.bf16.gmra.mxu0 %v238
  %v407 = vpop.f32.mrf.mxu0
  %v408 = vadd.f32 %v96, %v407
  %v409 = vpop.f32.mrf.mxu0
  %v410 = vadd.f32 %v96, %v409
  %411 = vmatmul.bf16.gmra.mxu0 %v239
  %v412 = vpop.f32.mrf.mxu0
  %v413 = vadd.f32 %v96, %v412
  %v414 = vpop.f32.mrf.mxu0
  %v415 = vadd.f32 %v96, %v414
  %416 = vmatmul.bf16.gmra.mxu0 %v240
  %v417 = vpop.f32.mrf.mxu0
  %v418 = vadd.f32 %v96, %v417
  %v419 = vpop.f32.mrf.mxu0
  %v420 = vadd.f32 %v96, %v419
  %421 = vmatmul.bf16.gmra.mxu0 %v241
  %v422 = vpop.f32.mrf.mxu0
  %v423 = vadd.f32 %v96, %v422
  %v424 = vpop.f32.mrf.mxu0
  %v425 = vadd.f32 %v96, %v424
  %426 = vmatmul.bf16.gmra.mxu0 %v242
  %v427 = vpop.f32.mrf.mxu0
  %v428 = vadd.f32 %v96, %v427
  %v429 = vpop.f32.mrf.mxu0
  %v430 = vadd.f32 %v96, %v429
  %431 = vmatmul.bf16.gmra.mxu0 %v243
  %v432 = vpop.f32.mrf.mxu0
  %v433 = vadd.f32 %v96, %v432
  %v434 = vpop.f32.mrf.mxu0
  %v435 = vadd.f32 %v96, %v434
  %436 = vmatmul.bf16.gmra.mxu0 %v244
  %v437 = vpop.f32.mrf.mxu0
  %v438 = vadd.f32 %v96, %v437
  %v439 = vpop.f32.mrf.mxu0
  %v440 = vadd.f32 %v96, %v439
  %441 = vmatmul.bf16.gmra.mxu0 %v245
  %v442 = vpop.f32.mrf.mxu0
  %v443 = vadd.f32 %v96, %v442
  %v444 = vpop.f32.mrf.mxu0
  %v445 = vadd.f32 %v96, %v444
  %446 = vmatmul.bf16.gmra.mxu0 %v246
  %v447 = vpop.f32.mrf.mxu0
  %v448 = vadd.f32 %v96, %v447
  %v449 = vpop.f32.mrf.mxu0
  %v450 = vadd.f32 %v96, %v449
  %451 = vmatmul.bf16.gmra.mxu0 %v247
  %v452 = vpop.f32.mrf.mxu0
  %v453 = vadd.f32 %v96, %v452
  %v454 = vpop.f32.mrf.mxu0
  %v455 = vadd.f32 %v96, %v454
  %456 = vmatmul.bf16.gmra.mxu0 %v248
  %v457 = vpop.f32.mrf.mxu0
  %v458 = vadd.f32 %v96, %v457
  %v459 = vpop.f32.mrf.mxu0
  %v460 = vadd.f32 %v96, %v459
  %461 = vmatmul.bf16.gmra.mxu0 %v249
  %v462 = vpop.f32.mrf.mxu0
  %v463 = vadd.f32 %v96, %v462
  %v464 = vpop.f32.mrf.mxu0
  %v465 = vadd.f32 %v96, %v464
  %466 = vmatmul.bf16.gmra.mxu0 %v250
  %v467 = vpop.f32.mrf.mxu0
  %v468 = vadd.f32 %v96, %v467
  %v469 = vpop.f32.mrf.mxu0
  %v470 = vadd.f32 %v96, %v469
  %471 = vmatmul.bf16.gmra.mxu0 %v251
  %v472 = vpop.f32.mrf.mxu0
  %v473 = vadd.f32 %v96, %v472
  %v474 = vpop.f32.mrf.mxu0
  %v475 = vadd.f32 %v96, %v474
  %476 = vmatmul.bf16.gmra.mxu0 %v252
  %v477 = vpop.f32.mrf.mxu0
  %v478 = vadd.f32 %v96, %v477
  %v479 = vpop.f32.mrf.mxu0
  %v480 = vadd.f32 %v96, %v479
  %481 = vmatmul.bf16.gmra.mxu0 %v253
  %v482 = vpop.f32.mrf.mxu0
  %v483 = vadd.f32 %v96, %v482
  %v484 = vpop.f32.mrf.mxu0
  %v485 = vadd.f32 %v96, %v484
  %486 = vmatmul.bf16.gmra.mxu0 %v254
  %v487 = vpop.f32.mrf.mxu0
  %v488 = vadd.f32 %v96, %v487
  %v489 = vpop.f32.mrf.mxu0
  %v490 = vadd.f32 %v96, %v489
  %491 = vmatmul.bf16.gmra.mxu0 %v255
  %v492 = vpop.f32.mrf.mxu0
  %v493 = vadd.f32 %v96, %v492
  %v494 = vpop.f32.mrf.mxu0
  %v495 = vadd.f32 %v96, %v494
  %496 = vmatmul.bf16.gmra.mxu0 %v256
  %v497 = vpop.f32.mrf.mxu0
  %v498 = vadd.f32 %v96, %v497
  %v499 = vpop.f32.mrf.mxu0
  %v500 = vadd.f32 %v96, %v499
  %501 = vmatmul.bf16.gmra.mxu0 %v257
  %v502 = vpop.f32.mrf.mxu0
  %v503 = vadd.f32 %v96, %v502
  %v504 = vpop.f32.mrf.mxu0
  %v505 = vadd.f32 %v96, %v504
  %506 = vdwg.mxu0
  %v507 = vmax.f32 %v348, 0.0
  %v508 = vmax.f32 %v350, 0.0
  %v509 = vmax.f32 %v353, 0.0
  %v510 = vmax.f32 %v355, 0.0
  %v511 = vmax.f32 %v358, 0.0
  %v512 = vmax.f32 %v360, 0.0
  %v513 = vmax.f32 %v363, 0.0
  %v514 = vmax.f32 %v365, 0.0
  %v515 = vmax.f32 %v368, 0.0
  %v516 = vmax.f32 %v370, 0.0
  %v517 = vmax.f32 %v373, 0.0
  %v518 = vmax.f32 %v375, 0.0
  %v519 = vmax.f32 %v378, 0.0
  %v520 = vmax.f32 %v380, 0.0
  %v521 = vmax.f32 %v383, 0.0
  %v522 = vmax.f32 %v385, 0.0
  %v523 = vmax.f32 %v388, 0.0
  %v524 = vmax.f32 %v390, 0.0
  %v525 = vmax.f32 %v393, 0.0
  %v526 = vmax.f32 %v395, 0.0
  %v527 = vmax.f32 %v398, 0.0
  %v528 = vmax.f32 %v400, 0.0
  %v529 = vmax.f32 %v403, 0.0
  %v530 = vmax.f32 %v405, 0.0
  %v531 = vmax.f32 %v408, 0.0
  %v532 = vmax.f32 %v410, 0.0
  %v533 = vmax.f32 %v413, 0.0
  %v534 = vmax.f32 %v415, 0.0
  %v535 = vmax.f32 %v418, 0.0
  %v536 = vmax.f32 %v420, 0.0
  %v537 = vmax.f32 %v423, 0.0
  %v538 = vmax.f32 %v425, 0.0
  %v539 = vmax.f32 %v428, 0.0
  %v540 = vmax.f32 %v430, 0.0
  %v541 = vmax.f32 %v433, 0.0
  %v542 = vmax.f32 %v435, 0.0
  %v543 = vmax.f32 %v438, 0.0
  %v544 = vmax.f32 %v440, 0.0
  %v545 = vmax.f32 %v443, 0.0
  %v546 = vmax.f32 %v445, 0.0
  %v547 = vmax.f32 %v448, 0.0
  %v548 = vmax.f32 %v450, 0.0
  %v549 = vmax.f32 %v453, 0.0
  %v550 = vmax.f32 %v455, 0.0
  %v551 = vmax.f32 %v458, 0.0
  %v552 = vmax.f32 %v460, 0.0
  %v553 = vmax.f32 %v463, 0.0
  %v554 = vmax.f32 %v465, 0.0
  %v555 = vmax.f32 %v468, 0.0
  %v556 = vmax.f32 %v470, 0.0
  %v557 = vmax.f32 %v473, 0.0
  %v558 = vmax.f32 %v475, 0.0
  %v559 = vmax.f32 %v478, 0.0
  %v560 = vmax.f32 %v480, 0.0
  %v561 = vmax.f32 %v483, 0.0
  %v562 = vmax.f32 %v485, 0.0
  %v563 = vmax.f32 %v488, 0.0
  %v564 = vmax.f32 %v490, 0.0
  %v565 = vmax.f32 %v493, 0.0
  %v566 = vmax.f32 %v495, 0.0
  %v567 = vmax.f32 %v498, 0.0
  %v568 = vmax.f32 %v500, 0.0
  %v569 = vmax.f32 %v503, 0.0
  %v570 = vmax.f32 %v505, 0.0
  %v571 = vpack.c.bf16 %v507, %v507
  %v572 = vpack.c.bf16 %v508, %v508
  %v573 = vpack.c.bf16 %v509, %v509
  %v574 = vpack.c.bf16 %v510, %v510
  %v575 = vpack.c.bf16 %v511, %v511
  %v576 = vpack.c.bf16 %v512, %v512
  %v577 = vpack.c.bf16 %v513, %v513
  %v578 = vpack.c.bf16 %v514, %v514
  %v579 = vpack.c.bf16 %v515, %v515
  %v580 = vpack.c.bf16 %v516, %v516
  %v581 = vpack.c.bf16 %v517, %v517
  %v582 = vpack.c.bf16 %v518, %v518
  %v583 = vpack.c.bf16 %v519, %v519
  %v584 = vpack.c.bf16 %v520, %v520
  %v585 = vpack.c.bf16 %v521, %v521
  %v586 = vpack.c.bf16 %v522, %v522
  %v587 = vpack.c.bf16 %v523, %v523
  %v588 = vpack.c.bf16 %v524, %v524
  %v589 = vpack.c.bf16 %v525, %v525
  %v590 = vpack.c.bf16 %v526, %v526
  %v591 = vpack.c.bf16 %v527, %v527
  %v592 = vpack.c.bf16 %v528, %v528
  %v593 = vpack.c.bf16 %v529, %v529
  %v594 = vpack.c.bf16 %v530, %v530
  %v595 = vpack.c.bf16 %v531, %v531
  %v596 = vpack.c.bf16 %v532, %v532
  %v597 = vpack.c.bf16 %v533, %v533
  %v598 = vpack.c.bf16 %v534, %v534
  %v599 = vpack.c.bf16 %v535, %v535
  %v600 = vpack.c.bf16 %v536, %v536
  %v601 = vpack.c.bf16 %v537, %v537
  %v602 = vpack.c.bf16 %v538, %v538
  %v603 = vpack.c.bf16 %v539, %v539
  %v604 = vpack.c.bf16 %v540, %v540
  %v605 = vpack.c.bf16 %v541, %v541
  %v606 = vpack.c.bf16 %v542, %v542
  %v607 = vpack.c.bf16 %v543, %v543
  %v608 = vpack.c.bf16 %v544, %v544
  %v609 = vpack.c.bf16 %v545, %v545
  %v610 = vpack.c.bf16 %v546, %v546
  %v611 = vpack.c.bf16 %v547, %v547
  %v612 = vpack.c.bf16 %v548, %v548
  %v613 = vpack.c.bf16 %v549, %v549
  %v614 = vpack.c.bf16 %v550, %v550
  %v615 = vpack.c.bf16 %v551, %v551
  %v616 = vpack.c.bf16 %v552, %v552
  %v617 = vpack.c.bf16 %v553, %v553
  %v618 = vpack.c.bf16 %v554, %v554
  %v619 = vpack.c.bf16 %v555, %v555
  %v620 = vpack.c.bf16 %v556, %v556
  %v621 = vpack.c.bf16 %v557, %v557
  %v622 = vpack.c.bf16 %v558, %v558
  %v623 = vpack.c.bf16 %v559, %v559
  %v624 = vpack.c.bf16 %v560, %v560
  %v625 = vpack.c.bf16 %v561, %v561
  %v626 = vpack.c.bf16 %v562, %v562
  %v627 = vpack.c.bf16 %v563, %v563
  %v628 = vpack.c.bf16 %v564, %v564
  %v629 = vpack.c.bf16 %v565, %v565
  %v630 = vpack.c.bf16 %v566, %v566
  %v631 = vpack.c.bf16 %v567, %v567
  %v632 = vpack.c.bf16 %v568, %v568
  %v633 = vpack.c.bf16 %v569, %v569
  %v634 = vpack.c.bf16 %v570, %v570
  %vm635 = vcmask 519168
  %636 = vst.msk [vmem:[%s3] sm:$0xf] %vm635, %v571
  %637 = vst.msk [vmem:[%s3 + $0x4] sm:$0xf] %vm635, %v572
  %638 = vst.msk [vmem:[%s3 + $0x8] sm:$0xf] %vm635, %v573
  %639 = vst.msk [vmem:[%s3 + $0xc] sm:$0xf] %vm635, %v574
  %640 = vst.msk [vmem:[%s3 + $0x10] sm:$0xf] %vm635, %v575
  %641 = vst.msk [vmem:[%s3 + $0x14] sm:$0xf] %vm635, %v576
  %642 = vst.msk [vmem:[%s3 + $0x18] sm:$0xf] %vm635, %v577
  %643 = vst.msk [vmem:[%s3 + $0x1c] sm:$0xf] %vm635, %v578
  %644 = vst.msk [vmem:[%s3 + $0x20] sm:$0xf] %vm635, %v579
  %645 = vst.msk [vmem:[%s3 + $0x24] sm:$0xf] %vm635, %v580
  %646 = vst.msk [vmem:[%s3 + $0x28] sm:$0xf] %vm635, %v581
  %647 = vst.msk [vmem:[%s3 + $0x2c] sm:$0xf] %vm635, %v582
  %648 = vst.msk [vmem:[%s3 + $0x30] sm:$0xf] %vm635, %v583
  %649 = vst.msk [vmem:[%s3 + $0x34] sm:$0xf] %vm635, %v584
  %650 = vst.msk [vmem:[%s3 + $0x38] sm:$0xf] %vm635, %v585
  %651 = vst.msk [vmem:[%s3 + $0x3c] sm:$0xf] %vm635, %v586
  %652 = vst.msk [vmem:[%s3 + $0x40] sm:$0xf] %vm635, %v587
  %653 = vst.msk [vmem:[%s3 + $0x44] sm:$0xf] %vm635, %v588
  %654 = vst.msk [vmem:[%s3 + $0x48] sm:$0xf] %vm635, %v589
  %655 = vst.msk [vmem:[%s3 + $0x4c] sm:$0xf] %vm635, %v590
  %656 = vst.msk [vmem:[%s3 + $0x50] sm:$0xf] %vm635, %v591
  %657 = vst.msk [vmem:[%s3 + $0x54] sm:$0xf] %vm635, %v592
  %658 = vst.msk [vmem:[%s3 + $0x58] sm:$0xf] %vm635, %v593
  %659 = vst.msk [vmem:[%s3 + $0x5c] sm:$0xf] %vm635, %v594
  %660 = vst.msk [vmem:[%s3 + $0x60] sm:$0xf] %vm635, %v595
  %661 = vst.msk [vmem:[%s3 + $0x64] sm:$0xf] %vm635, %v596
  %662 = vst.msk [vmem:[%s3 + $0x68] sm:$0xf] %vm635, %v597
  %663 = vst.msk [vmem:[%s3 + $0x6c] sm:$0xf] %vm635, %v598
  %664 = vst.msk [vmem:[%s3 + $0x70] sm:$0xf] %vm635, %v599
  %665 = vst.msk [vmem:[%s3 + $0x74] sm:$0xf] %vm635, %v600
  %666 = vst.msk [vmem:[%s3 + $0x78] sm:$0xf] %vm635, %v601
  %667 = vst.msk [vmem:[%s3 + $0x7c] sm:$0xf] %vm635, %v602
  %668 = vst.msk [vmem:[%s3 + $0x80] sm:$0xf] %vm635, %v603
  %669 = vst.msk [vmem:[%s3 + $0x84] sm:$0xf] %vm635, %v604
  %670 = vst.msk [vmem:[%s3 + $0x88] sm:$0xf] %vm635, %v605
  %671 = vst.msk [vmem:[%s3 + $0x8c] sm:$0xf] %vm635, %v606
  %672 = vst.msk [vmem:[%s3 + $0x90] sm:$0xf] %vm635, %v607
  %673 = vst.msk [vmem:[%s3 + $0x94] sm:$0xf] %vm635, %v608
  %674 = vst.msk [vmem:[%s3 + $0x98] sm:$0xf] %vm635, %v609
  %675 = vst.msk [vmem:[%s3 + $0x9c] sm:$0xf] %vm635, %v610
  %676 = vst.msk [vmem:[%s3 + $0xa0] sm:$0xf] %vm635, %v611
  %677 = vst.msk [vmem:[%s3 + $0xa4] sm:$0xf] %vm635, %v612
  %678 = vst.msk [vmem:[%s3 + $0xa8] sm:$0xf] %vm635, %v613
  %679 = vst.msk [vmem:[%s3 + $0xac] sm:$0xf] %vm635, %v614
  %680 = vst.msk [vmem:[%s3 + $0xb0] sm:$0xf] %vm635, %v615
  %681 = vst.msk [vmem:[%s3 + $0xb4] sm:$0xf] %vm635, %v616
  %682 = vst.msk [vmem:[%s3 + $0xb8] sm:$0xf] %vm635, %v617
  %683 = vst.msk [vmem:[%s3 + $0xbc] sm:$0xf] %vm635, %v618
  %684 = vst.msk [vmem:[%s3 + $0xc0] sm:$0xf] %vm635, %v619
  %685 = vst.msk [vmem:[%s3 + $0xc4] sm:$0xf] %vm635, %v620
  %686 = vst.msk [vmem:[%s3 + $0xc8] sm:$0xf] %vm635, %v621
  %687 = vst.msk [vmem:[%s3 + $0xcc] sm:$0xf] %vm635, %v622
  %688 = vst.msk [vmem:[%s3 + $0xd0] sm:$0xf] %vm635, %v623
  %689 = vst.msk [vmem:[%s3 + $0xd4] sm:$0xf] %vm635, %v624
  %690 = vst.msk [vmem:[%s3 + $0xd8] sm:$0xf] %vm635, %v625
  %691 = vst.msk [vmem:[%s3 + $0xdc] sm:$0xf] %vm635, %v626
  %692 = vst.msk [vmem:[%s3 + $0xe0] sm:$0xf] %vm635, %v627
  %693 = vst.msk [vmem:[%s3 + $0xe4] sm:$0xf] %vm635, %v628
  %694 = vst.msk [vmem:[%s3 + $0xe8] sm:$0xf] %vm635, %v629
  %695 = vst.msk [vmem:[%s3 + $0xec] sm:$0xf] %vm635, %v630
  %696 = vst.msk [vmem:[%s3 + $0xf0] sm:$0xf] %vm635, %v631
  %697 = vst.msk [vmem:[%s3 + $0xf4] sm:$0xf] %vm635, %v632
  %698 = vst.msk [vmem:[%s3 + $0xf8] sm:$0xf] %vm635, %v633
  %699 = vst.msk [vmem:[%s3 + $0xfc] sm:$0xf] %vm635, %v634
  // Predicated region
  $region14: #{dtn_forward.4} parent=0 // pred_check
    _
  $region15: #{dtn_forward.4} parent=0 // pred_check_branch
    %701 = sbr.rel (0) target = $region17
  $region16: #{dtn_forward.4} parent=0 // pred_region
    _
  $region17: #{dtn_forward.4} parent=0 // pred_fallthru
    _
  // Predicated region
  $region18: #{dtn_forward.4} parent=0 // pred_check
    _
  $region19: #{dtn_forward.4} parent=0 // pred_check_branch
    %703 = sbr.rel (0) target = $region21
  $region20: #{dtn_forward.4} parent=0 // pred_region
    _
  $region21: #{dtn_forward.4} parent=0 // pred_fallthru
    _

// kernel: dtn_forward.5
$region0: #{dtn_forward.5}
  #allocation0 [shape = 'u32[]', space=smem, size = 0x4, offset = 0x4, fixed_abs, tag = 'smem constant byte address 0x4 - core index']
  #allocation1 [shape = 'u32[72,128]{1,0:T(1,128)}', space=vmem, size = 0x9000, scoped, tag = 'internal scratch']
  %s0 = inlined_call_operand.vmem [shape: bf16[128,1664], index: 0, kind: input, shape index: {}]
  %s1 = inlined_call_operand.vmem [shape: bf16[1664,128], index: 1, kind: input, shape index: {}]
  %s2 = inlined_call_operand.vmem [shape: f32[1,128], index: 2, kind: input, shape index: {}]
  %s3 = inlined_call_operand.vmem [shape: bf16[128,128], index: 3, kind: output, shape index: {}]
  %s4 = sld [smem:[#allocation0]]
  $region22: #{dtn_forward.5} parent=0
    _
  %s6 = ssub.s32 1, %s4
  %s7 = scalar_select 0, %s6, %s4
  // Predicated region
  $region2: #{dtn_forward.5} parent=0 // pred_check
    _
  $region3: #{dtn_forward.5} parent=0 // pred_check_branch
    %9 = sbr.rel (0) target = $region5
  $region4: #{dtn_forward.5} parent=0 // pred_region
    _
  $region5: #{dtn_forward.5} parent=0 // pred_fallthru
    _
  // Predicated region
  $region6: #{dtn_forward.5} parent=0 // pred_check
    _
  $region7: #{dtn_forward.5} parent=0 // pred_check_branch
    %11 = sbr.rel (0) target = $region9
  $region8: #{dtn_forward.5} parent=0 // pred_region
    _
  $region9: #{dtn_forward.5} parent=0 // pred_fallthru
    _
  // Predicated region
  $region10: #{dtn_forward.5} parent=0 // pred_check
    _
  $region11: #{dtn_forward.5} parent=0 // pred_check_branch
    %13 = sbr.rel (0) target = $region13
  $region12: #{dtn_forward.5} parent=0 // pred_region
    _
  $region13: #{dtn_forward.5} parent=0 // pred_fallthru
    _
  %v14 = vld [vmem:[%s0] sm:$0xff]
  %v15 = vld [vmem:[%s0 + $0x8] sm:$0xff]
  %v16 = vld [vmem:[%s0 + $0x10] sm:$0xff]
  %v17 = vld [vmem:[%s0 + $0x18] sm:$0xff]
  %v18 = vld [vmem:[%s0 + $0x20] sm:$0xff]
  %v19 = vld [vmem:[%s0 + $0x28] sm:$0xff]
  %v20 = vld [vmem:[%s0 + $0x30] sm:$0xf]
  %v21 = vld [vmem:[%s0 + $0x34] sm:$0xff]
  %v22 = vld [vmem:[%s0 + $0x3c] sm:$0xff]
  %v23 = vld [vmem:[%s0 + $0x44] sm:$0xff]
  %v24 = vld [vmem:[%s0 + $0x4c] sm:$0xff]
  %v25 = vld [vmem:[%s0 + $0x54] sm:$0xff]
  %v26 = vld [vmem:[%s0 + $0x5c] sm:$0xff]
  %v27 = vld [vmem:[%s0 + $0x64] sm:$0xf]
  %v28 = vld [vmem:[%s0 + $0x68] sm:$0xff]
  %v29 = vld [vmem:[%s0 + $0x70] sm:$0xff]
  %v30 = vld [vmem:[%s0 + $0x78] sm:$0xff]
  %v31 = vld [vmem:[%s0 + $0x80] sm:$0xff]
  %v32 = vld [vmem:[%s0 + $0x88] sm:$0xff]
  %v33 = vld [vmem:[%s0 + $0x90] sm:$0xff]
  %v34 = vld [vmem:[%s0 + $0x98] sm:$0xf]
  %v35 = vld [vmem:[%s0 + $0x9c] sm:$0xff]
  %v36 = vld [vmem:[%s0 + $0xa4] sm:$0xff]
  %v37 = vld [vmem:[%s0 + $0xac] sm:$0xff]
  %v38 = vld [vmem:[%s0 + $0xb4] sm:$0xff]
  %v39 = vld [vmem:[%s0 + $0xbc] sm:$0xff]
  %v40 = vld [vmem:[%s0 + $0xc4] sm:$0xff]
  %v41 = vld [vmem:[%s0 + $0xcc] sm:$0xf]
  %v42 = vld [vmem:[%s0 + $0xd0] sm:$0xff]
  %v43 = vld [vmem:[%s0 + $0xd8] sm:$0xff]
  %v44 = vld [vmem:[%s0 + $0xe0] sm:$0xff]
  %v45 = vld [vmem:[%s0 + $0xe8] sm:$0xff]
  %v46 = vld [vmem:[%s0 + $0xf0] sm:$0xff]
  %v47 = vld [vmem:[%s0 + $0xf8] sm:$0xff]
  %v48 = vld [vmem:[%s0 + $0x100] sm:$0xf]
  %v49 = vld [vmem:[%s0 + $0x104] sm:$0xff]
  %v50 = vld [vmem:[%s0 + $0x10c] sm:$0xff]
  %v51 = vld [vmem:[%s0 + $0x114] sm:$0xff]
  %v52 = vld [vmem:[%s0 + $0x11c] sm:$0xff]
  %v53 = vld [vmem:[%s0 + $0x124] sm:$0xff]
  %v54 = vld [vmem:[%s0 + $0x12c] sm:$0xff]
  %v55 = vld [vmem:[%s0 + $0x134] sm:$0xf]
  %v56 = vld [vmem:[%s0 + $0x138] sm:$0xff]
  %v57 = vld [vmem:[%s0 + $0x140] sm:$0xff]
  %v58 = vld [vmem:[%s0 + $0x148] sm:$0xff]
  %v59 = vld [vmem:[%s0 + $0x150] sm:$0xff]
  %v60 = vld [vmem:[%s0 + $0x158] sm:$0xff]
  %v61 = vld [vmem:[%s0 + $0x160] sm:$0xff]
  %v62 = vld [vmem:[%s0 + $0x168] sm:$0xf]
  %v63 = vld [vmem:[%s0 + $0x16c] sm:$0xff]
  %v64 = vld [vmem:[%s0 + $0x174] sm:$0xff]
  %v65 = vld [vmem:[%s0 + $0x17c] sm:$0xff]
  %v66 = vld [vmem:[%s0 + $0x184] sm:$0xff]
  %v67 = vld [vmem:[%s0 + $0x18c] sm:$0xff]
  %v68 = vld [vmem:[%s0 + $0x194] sm:$0xff]
  %v69 = vld [vmem:[%s0 + $0x19c] sm:$0xf]
  %v70 = vld [vmem:[%s0 + $0x1a0] sm:$0xff]
  %v71 = vld [vmem:[%s0 + $0x1a8] sm:$0xff]
  %v72 = vld [vmem:[%s0 + $0x1b0] sm:$0xff]
  %v73 = vld [vmem:[%s0 + $0x1b8] sm:$0xff]
  %v74 = vld [vmem:[%s0 + $0x1c0] sm:$0xff]
  %v75 = vld [vmem:[%s0 + $0x1c8] sm:$0xff]
  %v76 = vld [vmem:[%s0 + $0x1d0] sm:$0xf]
  %v77 = vld [vmem:[%s0 + $0x1d4] sm:$0xff]
  %v78 = vld [vmem:[%s0 + $0x1dc] sm:$0xff]
  %v79 = vld [vmem:[%s0 + $0x1e4] sm:$0xff]
  %v80 = vld [vmem:[%s0 + $0x1ec] sm:$0xff]
  %v81 = vld [vmem:[%s0 + $0x1f4] sm:$0xff]
  %v82 = vld [vmem:[%s0 + $0x1fc] sm:$0xff]
  %v83 = vld [vmem:[%s0 + $0x204] sm:$0xf]
  %v84 = vld [vmem:[%s0 + $0x208] sm:$0xff]
  %v85 = vld [vmem:[%s0 + $0x210] sm:$0xff]
  %v86 = vld [vmem:[%s0 + $0x218] sm:$0xff]
  %v87 = vld [vmem:[%s0 + $0x220] sm:$0xff]
  %v88 = vld [vmem:[%s0 + $0x228] sm:$0xff]
  %v89 = vld [vmem:[%s0 + $0x230] sm:$0xff]
  %v90 = vld [vmem:[%s0 + $0x238] sm:$0xf]
  %v91 = vld [vmem:[%s0 + $0x23c] sm:$0xff]
  %v92 = vld [vmem:[%s0 + $0x244] sm:$0xff]
  %v93 = vld [vmem:[%s0 + $0x24c] sm:$0xff]
  %v94 = vld [vmem:[%s0 + $0x254] sm:$0xff]
  %v95 = vld [vmem:[%s0 + $0x25c] sm:$0xff]
  %v96 = vld [vmem:[%s0 + $0x264] sm:$0xff]
  %v97 = vld [vmem:[%s0 + $0x26c] sm:$0xf]
  %v98 = vld [vmem:[%s0 + $0x270] sm:$0xff]
  %v99 = vld [vmem:[%s0 + $0x278] sm:$0xff]
  %v100 = vld [vmem:[%s0 + $0x280] sm:$0xff]
  %v101 = vld [vmem:[%s0 + $0x288] sm:$0xff]
  %v102 = vld [vmem:[%s0 + $0x290] sm:$0xff]
  %v103 = vld [vmem:[%s0 + $0x298] sm:$0xff]
  %v104 = vld [vmem:[%s0 + $0x2a0] sm:$0xf]
  %v105 = vld [vmem:[%s0 + $0x2a4] sm:$0xff]
  %v106 = vld [vmem:[%s0 + $0x2ac] sm:$0xff]
  %v107 = vld [vmem:[%s0 + $0x2b4] sm:$0xff]
  %v108 = vld [vmem:[%s0 + $0x2bc] sm:$0xff]
  %v109 = vld [vmem:[%s0 + $0x2c4] sm:$0xff]
  %v110 = vld [vmem:[%s0 + $0x2cc] sm:$0xff]
  %v111 = vld [vmem:[%s0 + $0x2d4] sm:$0xf]
  %v112 = vld [vmem:[%s0 + $0x2d8] sm:$0xff]
  %v113 = vld [vmem:[%s0 + $0x2e0] sm:$0xff]
  %v114 = vld [vmem:[%s0 + $0x2e8] sm:$0xff]
  %v115 = vld [vmem:[%s0 + $0x2f0] sm:$0xff]
  %v116 = vld [vmem:[%s0 + $0x2f8] sm:$0xff]
  %v117 = vld [vmem:[%s0 + $0x300] sm:$0xff]
  %v118 = vld [vmem:[%s0 + $0x308] sm:$0xf]
  %v119 = vld [vmem:[%s0 + $0x30c] sm:$0xff]
  %v120 = vld [vmem:[%s0 + $0x314] sm:$0xff]
  %v121 = vld [vmem:[%s0 + $0x31c] sm:$0xff]
  %v122 = vld [vmem:[%s0 + $0x324] sm:$0xff]
  %v123 = vld [vmem:[%s0 + $0x32c] sm:$0xff]
  %v124 = vld [vmem:[%s0 + $0x334] sm:$0xff]
  %v125 = vld [vmem:[%s0 + $0x33c] sm:$0xf]
  %v126 = vld [vmem:[%s1] sm:$0xf]
  %v127 = vld [vmem:[%s1 + $0x4] sm:$0xf]
  %v128 = vld [vmem:[%s1 + $0x8] sm:$0xf]
  %v129 = vld [vmem:[%s1 + $0xc] sm:$0xf]
  %v130 = vld [vmem:[%s1 + $0x10] sm:$0xf]
  %v131 = vld [vmem:[%s1 + $0x14] sm:$0xf]
  %v132 = vld [vmem:[%s1 + $0x18] sm:$0xf]
  %v133 = vld [vmem:[%s1 + $0x1c] sm:$0xf]
  %v134 = vld [vmem:[%s1 + $0x20] sm:$0xf]
  %v135 = vld [vmem:[%s1 + $0x24] sm:$0xf]
  %v136 = vld [vmem:[%s1 + $0x28] sm:$0xf]
  %v137 = vld [vmem:[%s1 + $0x2c] sm:$0xf]
  %v138 = vld [vmem:[%s1 + $0x30] sm:$0xf]
  %v139 = vld [vmem:[%s1 + $0x34] sm:$0xf]
  %v140 = vld [vmem:[%s1 + $0x38] sm:$0xf]
  %v141 = vld [vmem:[%s1 + $0x3c] sm:$0xf]
  %v142 = vld [vmem:[%s1 + $0x40] sm:$0xf]
  %v143 = vld [vmem:[%s1 + $0x44] sm:$0xf]
  %v144 = vld [vmem:[%s1 + $0x48] sm:$0xf]
  %v145 = vld [vmem:[%s1 + $0x4c] sm:$0xf]
  %v146 = vld [vmem:[%s1 + $0x50] sm:$0xf]
  %v147 = vld [vmem:[%s1 + $0x54] sm:$0xf]
  %v148 = vld [vmem:[%s1 + $0x58] sm:$0xf]
  %v149 = vld [vmem:[%s1 + $0x5c] sm:$0xf]
  %v150 = vld [vmem:[%s1 + $0x60] sm:$0xf]
  %v151 = vld [vmem:[%s1 + $0x64] sm:$0xf]
  %v152 = vld [vmem:[%s1 + $0x68] sm:$0xf]
  %v153 = vld [vmem:[%s1 + $0x6c] sm:$0xf]
  %v154 = vld [vmem:[%s1 + $0x70] sm:$0xf]
  %v155 = vld [vmem:[%s1 + $0x74] sm:$0xf]
  %v156 = vld [vmem:[%s1 + $0x78] sm:$0xf]
  %v157 = vld [vmem:[%s1 + $0x7c] sm:$0xf]
  %v158 = vld [vmem:[%s1 + $0x80] sm:$0xf]
  %v159 = vld [vmem:[%s1 + $0x84] sm:$0xf]
  %v160 = vld [vmem:[%s1 + $0x88] sm:$0xf]
  %v161 = vld [vmem:[%s1 + $0x8c] sm:$0xf]
  %v162 = vld [vmem:[%s1 + $0x90] sm:$0xf]
  %v163 = vld [vmem:[%s1 + $0x94] sm:$0xf]
  %v164 = vld [vmem:[%s1 + $0x98] sm:$0xf]
  %v165 = vld [vmem:[%s1 + $0x9c] sm:$0xf]
  %v166 = vld [vmem:[%s1 + $0xa0] sm:$0xf]
  %v167 = vld [vmem:[%s1 + $0xa4] sm:$0xf]
  %v168 = vld [vmem:[%s1 + $0xa8] sm:$0xf]
  %v169 = vld [vmem:[%s1 + $0xac] sm:$0xf]
  %v170 = vld [vmem:[%s1 + $0xb0] sm:$0xf]
  %v171 = vld [vmem:[%s1 + $0xb4] sm:$0xf]
  %v172 = vld [vmem:[%s1 + $0xb8] sm:$0xf]
  %v173 = vld [vmem:[%s1 + $0xbc] sm:$0xf]
  %v174 = vld [vmem:[%s1 + $0xc0] sm:$0xf]
  %v175 = vld [vmem:[%s1 + $0xc4] sm:$0xf]
  %v176 = vld [vmem:[%s1 + $0xc8] sm:$0xf]
  %v177 = vld [vmem:[%s1 + $0xcc] sm:$0xf]
  %v178 = vld [vmem:[%s1 + $0xd0] sm:$0xf]
  %v179 = vld [vmem:[%s1 + $0xd4] sm:$0xf]
  %v180 = vld [vmem:[%s1 + $0xd8] sm:$0xf]
  %v181 = vld [vmem:[%s1 + $0xdc] sm:$0xf]
  %v182 = vld [vmem:[%s1 + $0xe0] sm:$0xf]
  %v183 = vld [vmem:[%s1 + $0xe4] sm:$0xf]
  %v184 = vld [vmem:[%s1 + $0xe8] sm:$0xf]
  %v185 = vld [vmem:[%s1 + $0xec] sm:$0xf]
  %v186 = vld [vmem:[%s1 + $0xf0] sm:$0xf]
  %v187 = vld [vmem:[%s1 + $0xf4] sm:$0xf]
  %v188 = vld [vmem:[%s1 + $0xf8] sm:$0xf]
  %v189 = vld [vmem:[%s1 + $0xfc] sm:$0xf]
  %v190 = vld [vmem:[%s1 + $0x100] sm:$0xf]
  %v191 = vld [vmem:[%s1 + $0x104] sm:$0xf]
  %v192 = vld [vmem:[%s1 + $0x108] sm:$0xf]
  %v193 = vld [vmem:[%s1 + $0x10c] sm:$0xf]
  %v194 = vld [vmem:[%s1 + $0x110] sm:$0xf]
  %v195 = vld [vmem:[%s1 + $0x114] sm:$0xf]
  %v196 = vld [vmem:[%s1 + $0x118] sm:$0xf]
  %v197 = vld [vmem:[%s1 + $0x11c] sm:$0xf]
  %v198 = vld [vmem:[%s1 + $0x120] sm:$0xf]
  %v199 = vld [vmem:[%s1 + $0x124] sm:$0xf]
  %v200 = vld [vmem:[%s1 + $0x128] sm:$0xf]
  %v201 = vld [vmem:[%s1 + $0x12c] sm:$0xf]
  %v202 = vld [vmem:[%s1 + $0x130] sm:$0xf]
  %v203 = vld [vmem:[%s1 + $0x134] sm:$0xf]
  %v204 = vld [vmem:[%s1 + $0x138] sm:$0xf]
  %v205 = vld [vmem:[%s1 + $0x13c] sm:$0xf]
  %v206 = vld [vmem:[%s1 + $0x140] sm:$0xf]
  %v207 = vld [vmem:[%s1 + $0x144] sm:$0xf]
  %v208 = vld [vmem:[%s1 + $0x148] sm:$0xf]
  %v209 = vld [vmem:[%s1 + $0x14c] sm:$0xf]
  %v210 = vld [vmem:[%s1 + $0x150] sm:$0xf]
  %v211 = vld [vmem:[%s1 + $0x154] sm:$0xf]
  %v212 = vld [vmem:[%s1 + $0x158] sm:$0xf]
  %v213 = vld [vmem:[%s1 + $0x15c] sm:$0xf]
  %v214 = vld [vmem:[%s1 + $0x160] sm:$0xf]
  %v215 = vld [vmem:[%s1 + $0x164] sm:$0xf]
  %v216 = vld [vmem:[%s1 + $0x168] sm:$0xf]
  %v217 = vld [vmem:[%s1 + $0x16c] sm:$0xf]
  %v218 = vld [vmem:[%s1 + $0x170] sm:$0xf]
  %v219 = vld [vmem:[%s1 + $0x174] sm:$0xf]
  %v220 = vld [vmem:[%s1 + $0x178] sm:$0xf]
  %v221 = vld [vmem:[%s1 + $0x17c] sm:$0xf]
  %v222 = vld [vmem:[%s1 + $0x180] sm:$0xf]
  %v223 = vld [vmem:[%s1 + $0x184] sm:$0xf]
  %v224 = vld [vmem:[%s1 + $0x188] sm:$0xf]
  %v225 = vld [vmem:[%s1 + $0x18c] sm:$0xf]
  %v226 = vld [vmem:[%s1 + $0x190] sm:$0xf]
  %v227 = vld [vmem:[%s1 + $0x194] sm:$0xf]
  %v228 = vld [vmem:[%s1 + $0x198] sm:$0xf]
  %v229 = vld [vmem:[%s1 + $0x19c] sm:$0xf]
  %v230 = vld [vmem:[%s1 + $0x1a0] sm:$0xf]
  %v231 = vld [vmem:[%s1 + $0x1a4] sm:$0xf]
  %v232 = vld [vmem:[%s1 + $0x1a8] sm:$0xf]
  %v233 = vld [vmem:[%s1 + $0x1ac] sm:$0xf]
  %v234 = vld [vmem:[%s1 + $0x1b0] sm:$0xf]
  %v235 = vld [vmem:[%s1 + $0x1b4] sm:$0xf]
  %v236 = vld [vmem:[%s1 + $0x1b8] sm:$0xf]
  %v237 = vld [vmem:[%s1 + $0x1bc] sm:$0xf]
  %v238 = vld [vmem:[%s1 + $0x1c0] sm:$0xf]
  %v239 = vld [vmem:[%s1 + $0x1c4] sm:$0xf]
  %v240 = vld [vmem:[%s1 + $0x1c8] sm:$0xf]
  %v241 = vld [vmem:[%s1 + $0x1cc] sm:$0xf]
  %v242 = vld [vmem:[%s1 + $0x1d0] sm:$0xf]
  %v243 = vld [vmem:[%s1 + $0x1d4] sm:$0xf]
  %v244 = vld [vmem:[%s1 + $0x1d8] sm:$0xf]
  %v245 = vld [vmem:[%s1 + $0x1dc] sm:$0xf]
  %v246 = vld [vmem:[%s1 + $0x1e0] sm:$0xf]
  %v247 = vld [vmem:[%s1 + $0x1e4] sm:$0xf]
  %v248 = vld [vmem:[%s1 + $0x1e8] sm:$0xf]
  %v249 = vld [vmem:[%s1 + $0x1ec] sm:$0xf]
  %v250 = vld [vmem:[%s1 + $0x1f0] sm:$0xf]
  %v251 = vld [vmem:[%s1 + $0x1f4] sm:$0xf]
  %v252 = vld [vmem:[%s1 + $0x1f8] sm:$0xf]
  %v253 = vld [vmem:[%s1 + $0x1fc] sm:$0xf]
  %v254 = vld [vmem:[%s1 + $0x200] sm:$0xf]
  %v255 = vld [vmem:[%s1 + $0x204] sm:$0xf]
  %v256 = vld [vmem:[%s1 + $0x208] sm:$0xf]
  %v257 = vld [vmem:[%s1 + $0x20c] sm:$0xf]
  %v258 = vld [vmem:[%s1 + $0x210] sm:$0xf]
  %v259 = vld [vmem:[%s1 + $0x214] sm:$0xf]
  %v260 = vld [vmem:[%s1 + $0x218] sm:$0xf]
  %v261 = vld [vmem:[%s1 + $0x21c] sm:$0xf]
  %v262 = vld [vmem:[%s1 + $0x220] sm:$0xf]
  %v263 = vld [vmem:[%s1 + $0x224] sm:$0xf]
  %v264 = vld [vmem:[%s1 + $0x228] sm:$0xf]
  %v265 = vld [vmem:[%s1 + $0x22c] sm:$0xf]
  %v266 = vld [vmem:[%s1 + $0x230] sm:$0xf]
  %v267 = vld [vmem:[%s1 + $0x234] sm:$0xf]
  %v268 = vld [vmem:[%s1 + $0x238] sm:$0xf]
  %v269 = vld [vmem:[%s1 + $0x23c] sm:$0xf]
  %v270 = vld [vmem:[%s1 + $0x240] sm:$0xf]
  %v271 = vld [vmem:[%s1 + $0x244] sm:$0xf]
  %v272 = vld [vmem:[%s1 + $0x248] sm:$0xf]
  %v273 = vld [vmem:[%s1 + $0x24c] sm:$0xf]
  %v274 = vld [vmem:[%s1 + $0x250] sm:$0xf]
  %v275 = vld [vmem:[%s1 + $0x254] sm:$0xf]
  %v276 = vld [vmem:[%s1 + $0x258] sm:$0xf]
  %v277 = vld [vmem:[%s1 + $0x25c] sm:$0xf]
  %v278 = vld [vmem:[%s1 + $0x260] sm:$0xf]
  %v279 = vld [vmem:[%s1 + $0x264] sm:$0xf]
  %v280 = vld [vmem:[%s1 + $0x268] sm:$0xf]
  %v281 = vld [vmem:[%s1 + $0x26c] sm:$0xf]
  %v282 = vld [vmem:[%s1 + $0x270] sm:$0xf]
  %v283 = vld [vmem:[%s1 + $0x274] sm:$0xf]
  %v284 = vld [vmem:[%s1 + $0x278] sm:$0xf]
  %v285 = vld [vmem:[%s1 + $0x27c] sm:$0xf]
  %v286 = vld [vmem:[%s1 + $0x280] sm:$0xf]
  %v287 = vld [vmem:[%s1 + $0x284] sm:$0xf]
  %v288 = vld [vmem:[%s1 + $0x288] sm:$0xf]
  %v289 = vld [vmem:[%s1 + $0x28c] sm:$0xf]
  %v290 = vld [vmem:[%s1 + $0x290] sm:$0xf]
  %v291 = vld [vmem:[%s1 + $0x294] sm:$0xf]
  %v292 = vld [vmem:[%s1 + $0x298] sm:$0xf]
  %v293 = vld [vmem:[%s1 + $0x29c] sm:$0xf]
  %v294 = vld [vmem:[%s1 + $0x2a0] sm:$0xf]
  %v295 = vld [vmem:[%s1 + $0x2a4] sm:$0xf]
  %v296 = vld [vmem:[%s1 + $0x2a8] sm:$0xf]
  %v297 = vld [vmem:[%s1 + $0x2ac] sm:$0xf]
  %v298 = vld [vmem:[%s1 + $0x2b0] sm:$0xf]
  %v299 = vld [vmem:[%s1 + $0x2b4] sm:$0xf]
  %v300 = vld [vmem:[%s1 + $0x2b8] sm:$0xf]
  %v301 = vld [vmem:[%s1 + $0x2bc] sm:$0xf]
  %v302 = vld [vmem:[%s1 + $0x2c0] sm:$0xf]
  %v303 = vld [vmem:[%s1 + $0x2c4] sm:$0xf]
  %v304 = vld [vmem:[%s1 + $0x2c8] sm:$0xf]
  %v305 = vld [vmem:[%s1 + $0x2cc] sm:$0xf]
  %v306 = vld [vmem:[%s1 + $0x2d0] sm:$0xf]
  %v307 = vld [vmem:[%s1 + $0x2d4] sm:$0xf]
  %v308 = vld [vmem:[%s1 + $0x2d8] sm:$0xf]
  %v309 = vld [vmem:[%s1 + $0x2dc] sm:$0xf]
  %v310 = vld [vmem:[%s1 + $0x2e0] sm:$0xf]
  %v311 = vld [vmem:[%s1 + $0x2e4] sm:$0xf]
  %v312 = vld [vmem:[%s1 + $0x2e8] sm:$0xf]
  %v313 = vld [vmem:[%s1 + $0x2ec] sm:$0xf]
  %v314 = vld [vmem:[%s1 + $0x2f0] sm:$0xf]
  %v315 = vld [vmem:[%s1 + $0x2f4] sm:$0xf]
  %v316 = vld [vmem:[%s1 + $0x2f8] sm:$0xf]
  %v317 = vld [vmem:[%s1 + $0x2fc] sm:$0xf]
  %v318 = vld [vmem:[%s1 + $0x300] sm:$0xf]
  %v319 = vld [vmem:[%s1 + $0x304] sm:$0xf]
  %v320 = vld [vmem:[%s1 + $0x308] sm:$0xf]
  %v321 = vld [vmem:[%s1 + $0x30c] sm:$0xf]
  %v322 = vld [vmem:[%s1 + $0x310] sm:$0xf]
  %v323 = vld [vmem:[%s1 + $0x314] sm:$0xf]
  %v324 = vld [vmem:[%s1 + $0x318] sm:$0xf]
  %v325 = vld [vmem:[%s1 + $0x31c] sm:$0xf]
  %v326 = vld [vmem:[%s1 + $0x320] sm:$0xf]
  %v327 = vld [vmem:[%s1 + $0x324] sm:$0xf]
  %v328 = vld [vmem:[%s1 + $0x328] sm:$0xf]
  %v329 = vld [vmem:[%s1 + $0x32c] sm:$0xf]
  %v330 = vld [vmem:[%s1 + $0x330] sm:$0xf]
  %v331 = vld [vmem:[%s1 + $0x334] sm:$0xf]
  %v332 = vld [vmem:[%s1 + $0x338] sm:$0xf]
  %v333 = vld [vmem:[%s1 + $0x33c] sm:$0xf]
  %v334 = vld [vmem:[%s2] sm:$0x1]
  %v336 = vperm.slane %v334, 0
  %v450 = vunpack.c.l.b16 %v14
  %v451 = vunpack.c.h.b16 %v14
  %v452 = vunpack.c.l.b16 %v15
  %v453 = vunpack.c.h.b16 %v15
  %v454 = vunpack.c.l.b16 %v16
  %v455 = vunpack.c.h.b16 %v16
  %v456 = vunpack.c.l.b16 %v17
  %v457 = vunpack.c.h.b16 %v17
  %v458 = vunpack.c.l.b16 %v18
  %v459 = vunpack.c.h.b16 %v18
  %v460 = vunpack.c.l.b16 %v19
  %v461 = vunpack.c.h.b16 %v19
  %v462 = vunpack.c.l.b16 %v20
  %v463 = vunpack.c.l.b16 %v21
  %v464 = vunpack.c.h.b16 %v21
  %v465 = vunpack.c.l.b16 %v22
  %v466 = vunpack.c.h.b16 %v22
  %v467 = vunpack.c.l.b16 %v23
  %v468 = vunpack.c.h.b16 %v23
  %v469 = vunpack.c.l.b16 %v24
  %v470 = vunpack.c.h.b16 %v24
  %v471 = vunpack.c.l.b16 %v25
  %v472 = vunpack.c.h.b16 %v25
  %v473 = vunpack.c.l.b16 %v26
  %v474 = vunpack.c.h.b16 %v26
  %v475 = vunpack.c.l.b16 %v27
  %v476 = vunpack.c.l.b16 %v28
  %v477 = vunpack.c.h.b16 %v28
  %v478 = vunpack.c.l.b16 %v29
  %v479 = vunpack.c.h.b16 %v29
  %v480 = vunpack.c.l.b16 %v30
  %v481 = vunpack.c.h.b16 %v30
  %v482 = vunpack.c.l.b16 %v31
  %v483 = vunpack.c.h.b16 %v31
  %v484 = vunpack.c.l.b16 %v32
  %v485 = vunpack.c.h.b16 %v32
  %v486 = vunpack.c.l.b16 %v33
  %v487 = vunpack.c.h.b16 %v33
  %v488 = vunpack.c.l.b16 %v34
  %v489 = vunpack.c.l.b16 %v35
  %v490 = vunpack.c.h.b16 %v35
  %v491 = vunpack.c.l.b16 %v36
  %v492 = vunpack.c.h.b16 %v36
  %v493 = vunpack.c.l.b16 %v37
  %v494 = vunpack.c.h.b16 %v37
  %v495 = vunpack.c.l.b16 %v38
  %v496 = vunpack.c.h.b16 %v38
  %v497 = vunpack.c.l.b16 %v39
  %v498 = vunpack.c.h.b16 %v39
  %v499 = vunpack.c.l.b16 %v40
  %v500 = vunpack.c.h.b16 %v40
  %v501 = vunpack.c.l.b16 %v41
  %v502 = vunpack.c.l.b16 %v42
  %v503 = vunpack.c.h.b16 %v42
  %v504 = vunpack.c.l.b16 %v43
  %v505 = vunpack.c.h.b16 %v43
  %v506 = vunpack.c.l.b16 %v44
  %v507 = vunpack.c.h.b16 %v44
  %v508 = vunpack.c.l.b16 %v45
  %v509 = vunpack.c.h.b16 %v45
  %v510 = vunpack.c.l.b16 %v46
  %v511 = vunpack.c.h.b16 %v46
  %v512 = vunpack.c.l.b16 %v47
  %v513 = vunpack.c.h.b16 %v47
  %v514 = vunpack.c.l.b16 %v48
  %v515 = vunpack.c.l.b16 %v49
  %v516 = vunpack.c.h.b16 %v49
  %v517 = vunpack.c.l.b16 %v50
  %v518 = vunpack.c.h.b16 %v50
  %v519 = vunpack.c.l.b16 %v51
  %v520 = vunpack.c.h.b16 %v51
  %v521 = vunpack.c.l.b16 %v52
  %v522 = vunpack.c.h.b16 %v52
  %v523 = vunpack.c.l.b16 %v53
  %v524 = vunpack.c.h.b16 %v53
  %v525 = vunpack.c.l.b16 %v54
  %v526 = vunpack.c.h.b16 %v54
  %v527 = vunpack.c.l.b16 %v55
  %v528 = vunpack.c.l.b16 %v56
  %v529 = vunpack.c.h.b16 %v56
  %v530 = vunpack.c.l.b16 %v57
  %v531 = vunpack.c.h.b16 %v57
  %v532 = vunpack.c.l.b16 %v58
  %v533 = vunpack.c.h.b16 %v58
  %v534 = vunpack.c.l.b16 %v59
  %v535 = vunpack.c.h.b16 %v59
  %v536 = vunpack.c.l.b16 %v60
  %v537 = vunpack.c.h.b16 %v60
  %v538 = vunpack.c.l.b16 %v61
  %v539 = vunpack.c.h.b16 %v61
  %v540 = vunpack.c.l.b16 %v62
  %v541 = vunpack.c.l.b16 %v63
  %v542 = vunpack.c.h.b16 %v63
  %v543 = vunpack.c.l.b16 %v64
  %v544 = vunpack.c.h.b16 %v64
  %v545 = vunpack.c.l.b16 %v65
  %v546 = vunpack.c.h.b16 %v65
  %v547 = vunpack.c.l.b16 %v66
  %v548 = vunpack.c.h.b16 %v66
  %v549 = vunpack.c.l.b16 %v67
  %v550 = vunpack.c.h.b16 %v67
  %v551 = vunpack.c.l.b16 %v68
  %v552 = vunpack.c.h.b16 %v68
  %v553 = vunpack.c.l.b16 %v69
  %v554 = vunpack.c.l.b16 %v70
  %v555 = vunpack.c.h.b16 %v70
  %v556 = vunpack.c.l.b16 %v71
  %v557 = vunpack.c.h.b16 %v71
  %v558 = vunpack.c.l.b16 %v72
  %v559 = vunpack.c.h.b16 %v72
  %v560 = vunpack.c.l.b16 %v73
  %v561 = vunpack.c.h.b16 %v73
  %v562 = vunpack.c.l.b16 %v74
  %v563 = vunpack.c.h.b16 %v74
  %v564 = vunpack.c.l.b16 %v75
  %v565 = vunpack.c.h.b16 %v75
  %v566 = vunpack.c.l.b16 %v76
  %v567 = vunpack.c.l.b16 %v77
  %v568 = vunpack.c.h.b16 %v77
  %v569 = vunpack.c.l.b16 %v78
  %v570 = vunpack.c.h.b16 %v78
  %v571 = vunpack.c.l.b16 %v79
  %v572 = vunpack.c.h.b16 %v79
  %v573 = vunpack.c.l.b16 %v80
  %v574 = vunpack.c.h.b16 %v80
  %v575 = vunpack.c.l.b16 %v81
  %v576 = vunpack.c.h.b16 %v81
  %v577 = vunpack.c.l.b16 %v82
  %v578 = vunpack.c.h.b16 %v82
  %v579 = vunpack.c.l.b16 %v83
  %v580 = vunpack.c.l.b16 %v84
  %v581 = vunpack.c.h.b16 %v84
  %v582 = vunpack.c.l.b16 %v85
  %v583 = vunpack.c.h.b16 %v85
  %v584 = vunpack.c.l.b16 %v86
  %v585 = vunpack.c.h.b16 %v86
  %v586 = vunpack.c.l.b16 %v87
  %v587 = vunpack.c.h.b16 %v87
  %v588 = vunpack.c.l.b16 %v88
  %v589 = vunpack.c.h.b16 %v88
  %v590 = vunpack.c.l.b16 %v89
  %v591 = vunpack.c.h.b16 %v89
  %v592 = vunpack.c.l.b16 %v90
  %v593 = vunpack.c.l.b16 %v91
  %v594 = vunpack.c.h.b16 %v91
  %v595 = vunpack.c.l.b16 %v92
  %v596 = vunpack.c.h.b16 %v92
  %v597 = vunpack.c.l.b16 %v93
  %v598 = vunpack.c.h.b16 %v93
  %v599 = vunpack.c.l.b16 %v94
  %v600 = vunpack.c.h.b16 %v94
  %v601 = vunpack.c.l.b16 %v95
  %v602 = vunpack.c.h.b16 %v95
  %v603 = vunpack.c.l.b16 %v96
  %v604 = vunpack.c.h.b16 %v96
  %v605 = vunpack.c.l.b16 %v97
  %v606 = vunpack.c.l.b16 %v98
  %v607 = vunpack.c.h.b16 %v98
  %v608 = vunpack.c.l.b16 %v99
  %v609 = vunpack.c.h.b16 %v99
  %v610 = vunpack.c.l.b16 %v100
  %v611 = vunpack.c.h.b16 %v100
  %v612 = vunpack.c.l.b16 %v101
  %v613 = vunpack.c.h.b16 %v101
  %v614 = vunpack.c.l.b16 %v102
  %v615 = vunpack.c.h.b16 %v102
  %v616 = vunpack.c.l.b16 %v103
  %v617 = vunpack.c.h.b16 %v103
  %v618 = vunpack.c.l.b16 %v104
  %v619 = vunpack.c.l.b16 %v105
  %v620 = vunpack.c.h.b16 %v105
  %v621 = vunpack.c.l.b16 %v106
  %v622 = vunpack.c.h.b16 %v106
  %v623 = vunpack.c.l.b16 %v107
  %v624 = vunpack.c.h.b16 %v107
  %v625 = vunpack.c.l.b16 %v108
  %v626 = vunpack.c.h.b16 %v108
  %v627 = vunpack.c.l.b16 %v109
  %v628 = vunpack.c.h.b16 %v109
  %v629 = vunpack.c.l.b16 %v110
  %v630 = vunpack.c.h.b16 %v110
  %v631 = vunpack.c.l.b16 %v111
  %v632 = vunpack.c.l.b16 %v112
  %v633 = vunpack.c.h.b16 %v112
  %v634 = vunpack.c.l.b16 %v113
  %v635 = vunpack.c.h.b16 %v113
  %v636 = vunpack.c.l.b16 %v114
  %v637 = vunpack.c.h.b16 %v114
  %v638 = vunpack.c.l.b16 %v115
  %v639 = vunpack.c.h.b16 %v115
  %v640 = vunpack.c.l.b16 %v116
  %v641 = vunpack.c.h.b16 %v116
  %v642 = vunpack.c.l.b16 %v117
  %v643 = vunpack.c.h.b16 %v117
  %v644 = vunpack.c.l.b16 %v118
  %v645 = vunpack.c.l.b16 %v119
  %v646 = vunpack.c.h.b16 %v119
  %v647 = vunpack.c.l.b16 %v120
  %v648 = vunpack.c.h.b16 %v120
  %v649 = vunpack.c.l.b16 %v121
  %v650 = vunpack.c.h.b16 %v121
  %v651 = vunpack.c.l.b16 %v122
  %v652 = vunpack.c.h.b16 %v122
  %v653 = vunpack.c.l.b16 %v123
  %v654 = vunpack.c.h.b16 %v123
  %v655 = vunpack.c.l.b16 %v124
  %v656 = vunpack.c.h.b16 %v124
  %v657 = vunpack.c.l.b16 %v125
  %v658 = vpack.c.b16 %v463, %v450
  %v659 = vpack.c.b16 %v464, %v451
  %v660 = vpack.c.b16 %v465, %v452
  %v661 = vpack.c.b16 %v466, %v453
  %v662 = vpack.c.b16 %v467, %v454
  %v663 = vpack.c.b16 %v468, %v455
  %v664 = vpack.c.b16 %v469, %v456
  %v665 = vpack.c.b16 %v470, %v457
  %v666 = vpack.c.b16 %v471, %v458
  %v667 = vpack.c.b16 %v472, %v459
  %v668 = vpack.c.b16 %v473, %v460
  %v669 = vpack.c.b16 %v474, %v461
  %v670 = vpack.c.b16 %v475, %v462
  %v671 = vpack.c.b16 %v489, %v476
  %v672 = vpack.c.b16 %v490, %v477
  %v673 = vpack.c.b16 %v491, %v478
  %v674 = vpack.c.b16 %v492, %v479
  %v675 = vpack.c.b16 %v493, %v480
  %v676 = vpack.c.b16 %v494, %v481
  %v677 = vpack.c.b16 %v495, %v482
  %v678 = vpack.c.b16 %v496, %v483
  %v679 = vpack.c.b16 %v497, %v484
  %v680 = vpack.c.b16 %v498, %v485
  %v681 = vpack.c.b16 %v499, %v486
  %v682 = vpack.c.b16 %v500, %v487
  %v683 = vpack.c.b16 %v501, %v488
  %v684 = vpack.c.b16 %v515, %v502
  %v685 = vpack.c.b16 %v516, %v503
  %v686 = vpack.c.b16 %v517, %v504
  %v687 = vpack.c.b16 %v518, %v505
  %v688 = vpack.c.b16 %v519, %v506
  %v689 = vpack.c.b16 %v520, %v507
  %v690 = vpack.c.b16 %v521, %v508
  %v691 = vpack.c.b16 %v522, %v509
  %v692 = vpack.c.b16 %v523, %v510
  %v693 = vpack.c.b16 %v524, %v511
  %v694 = vpack.c.b16 %v525, %v512
  %v695 = vpack.c.b16 %v526, %v513
  %v696 = vpack.c.b16 %v527, %v514
  %v697 = vpack.c.b16 %v541, %v528
  %v698 = vpack.c.b16 %v542, %v529
  %v699 = vpack.c.b16 %v543, %v530
  %v700 = vpack.c.b16 %v544, %v531
  %v701 = vpack.c.b16 %v545, %v532
  %v702 = vpack.c.b16 %v546, %v533
  %v703 = vpack.c.b16 %v547, %v534
  %v704 = vpack.c.b16 %v548, %v535
  %v705 = vpack.c.b16 %v549, %v536
  %v706 = vpack.c.b16 %v550, %v537
  %v707 = vpack.c.b16 %v551, %v538
  %v708 = vpack.c.b16 %v552, %v539
  %v709 = vpack.c.b16 %v553, %v540
  %v710 = vpack.c.b16 %v567, %v554
  %v711 = vpack.c.b16 %v568, %v555
  %v712 = vpack.c.b16 %v569, %v556
  %v713 = vpack.c.b16 %v570, %v557
  %v714 = vpack.c.b16 %v571, %v558
  %v715 = vpack.c.b16 %v572, %v559
  %v716 = vpack.c.b16 %v573, %v560
  %v717 = vpack.c.b16 %v574, %v561
  %v718 = vpack.c.b16 %v575, %v562
  %v719 = vpack.c.b16 %v576, %v563
  %v720 = vpack.c.b16 %v577, %v564
  %v721 = vpack.c.b16 %v578, %v565
  %v722 = vpack.c.b16 %v579, %v566
  %v723 = vpack.c.b16 %v593, %v580
  %v724 = vpack.c.b16 %v594, %v581
  %v725 = vpack.c.b16 %v595, %v582
  %v726 = vpack.c.b16 %v596, %v583
  %v727 = vpack.c.b16 %v597, %v584
  %v728 = vpack.c.b16 %v598, %v585
  %v729 = vpack.c.b16 %v599, %v586
  %v730 = vpack.c.b16 %v600, %v587
  %v731 = vpack.c.b16 %v601, %v588
  %v732 = vpack.c.b16 %v602, %v589
  %v733 = vpack.c.b16 %v603, %v590
  %v734 = vpack.c.b16 %v604, %v591
  %v735 = vpack.c.b16 %v605, %v592
  %v736 = vpack.c.b16 %v619, %v606
  %v737 = vpack.c.b16 %v620, %v607
  %v738 = vpack.c.b16 %v621, %v608
  %v739 = vpack.c.b16 %v622, %v609
  %v740 = vpack.c.b16 %v623, %v610
  %v741 = vpack.c.b16 %v624, %v611
  %v742 = vpack.c.b16 %v625, %v612
  %v743 = vpack.c.b16 %v626, %v613
  %v744 = vpack.c.b16 %v627, %v614
  %v745 = vpack.c.b16 %v628, %v615
  %v746 = vpack.c.b16 %v629, %v616
  %v747 = vpack.c.b16 %v630, %v617
  %v748 = vpack.c.b16 %v631, %v618
  %v749 = vpack.c.b16 %v645, %v632
  %v750 = vpack.c.b16 %v646, %v633
  %v751 = vpack.c.b16 %v647, %v634
  %v752 = vpack.c.b16 %v648, %v635
  %v753 = vpack.c.b16 %v649, %v636
  %v754 = vpack.c.b16 %v650, %v637
  %v755 = vpack.c.b16 %v651, %v638
  %v756 = vpack.c.b16 %v652, %v639
  %v757 = vpack.c.b16 %v653, %v640
  %v758 = vpack.c.b16 %v654, %v641
  %v759 = vpack.c.b16 %v655, %v642
  %v760 = vpack.c.b16 %v656, %v643
  %v761 = vpack.c.b16 %v657, %v644
  %v1074 = vunpack.c.l.b16 %v126
  %v1075 = vunpack.c.l.b16 %v127
  %v1076 = vunpack.c.l.b16 %v128
  %v1077 = vunpack.c.l.b16 %v129
  %v1078 = vunpack.c.l.b16 %v130
  %v1079 = vunpack.c.l.b16 %v131
  %v1080 = vunpack.c.l.b16 %v132
  %v1081 = vunpack.c.l.b16 %v133
  %v1082 = vunpack.c.l.b16 %v134
  %v1083 = vunpack.c.l.b16 %v135
  %v1084 = vunpack.c.l.b16 %v136
  %v1085 = vunpack.c.l.b16 %v137
  %v1086 = vunpack.c.l.b16 %v138
  %v1087 = vunpack.c.l.b16 %v139
  %v1088 = vunpack.c.l.b16 %v140
  %v1089 = vunpack.c.l.b16 %v141
  %v1090 = vunpack.c.l.b16 %v142
  %v1091 = vunpack.c.l.b16 %v143
  %v1092 = vunpack.c.l.b16 %v144
  %v1093 = vunpack.c.l.b16 %v145
  %v1094 = vunpack.c.l.b16 %v146
  %v1095 = vunpack.c.l.b16 %v147
  %v1096 = vunpack.c.l.b16 %v148
  %v1097 = vunpack.c.l.b16 %v149
  %v1098 = vunpack.c.l.b16 %v150
  %v1099 = vunpack.c.l.b16 %v151
  %v1100 = vunpack.c.l.b16 %v152
  %v1101 = vunpack.c.l.b16 %v153
  %v1102 = vunpack.c.l.b16 %v154
  %v1103 = vunpack.c.l.b16 %v155
  %v1104 = vunpack.c.l.b16 %v156
  %v1105 = vunpack.c.l.b16 %v157
  %v1106 = vunpack.c.l.b16 %v158
  %v1107 = vunpack.c.l.b16 %v159
  %v1108 = vunpack.c.l.b16 %v160
  %v1109 = vunpack.c.l.b16 %v161
  %v1110 = vunpack.c.l.b16 %v162
  %v1111 = vunpack.c.l.b16 %v163
  %v1112 = vunpack.c.l.b16 %v164
  %v1113 = vunpack.c.l.b16 %v165
  %v1114 = vunpack.c.l.b16 %v166
  %v1115 = vunpack.c.l.b16 %v167
  %v1116 = vunpack.c.l.b16 %v168
  %v1117 = vunpack.c.l.b16 %v169
  %v1118 = vunpack.c.l.b16 %v170
  %v1119 = vunpack.c.l.b16 %v171
  %v1120 = vunpack.c.l.b16 %v172
  %v1121 = vunpack.c.l.b16 %v173
  %v1122 = vunpack.c.l.b16 %v174
  %v1123 = vunpack.c.l.b16 %v175
  %v1124 = vunpack.c.l.b16 %v176
  %v1125 = vunpack.c.l.b16 %v177
  %v1126 = vunpack.c.l.b16 %v178
  %v1127 = vunpack.c.l.b16 %v179
  %v1128 = vunpack.c.l.b16 %v180
  %v1129 = vunpack.c.l.b16 %v181
  %v1130 = vunpack.c.l.b16 %v182
  %v1131 = vunpack.c.l.b16 %v183
  %v1132 = vunpack.c.l.b16 %v184
  %v1133 = vunpack.c.l.b16 %v185
  %v1134 = vunpack.c.l.b16 %v186
  %v1135 = vunpack.c.l.b16 %v187
  %v1136 = vunpack.c.l.b16 %v188
  %v1137 = vunpack.c.l.b16 %v189
  %v1138 = vunpack.c.l.b16 %v190
  %v1139 = vunpack.c.l.b16 %v191
  %v1140 = vunpack.c.l.b16 %v192
  %v1141 = vunpack.c.l.b16 %v193
  %v1142 = vunpack.c.l.b16 %v194
  %v1143 = vunpack.c.l.b16 %v195
  %v1144 = vunpack.c.l.b16 %v196
  %v1145 = vunpack.c.l.b16 %v197
  %v1146 = vunpack.c.l.b16 %v198
  %v1147 = vunpack.c.l.b16 %v199
  %v1148 = vunpack.c.l.b16 %v200
  %v1149 = vunpack.c.l.b16 %v201
  %v1150 = vunpack.c.l.b16 %v202
  %v1151 = vunpack.c.l.b16 %v203
  %v1152 = vunpack.c.l.b16 %v204
  %v1153 = vunpack.c.l.b16 %v205
  %v1154 = vunpack.c.l.b16 %v206
  %v1155 = vunpack.c.l.b16 %v207
  %v1156 = vunpack.c.l.b16 %v208
  %v1157 = vunpack.c.l.b16 %v209
  %v1158 = vunpack.c.l.b16 %v210
  %v1159 = vunpack.c.l.b16 %v211
  %v1160 = vunpack.c.l.b16 %v212
  %v1161 = vunpack.c.l.b16 %v213
  %v1162 = vunpack.c.l.b16 %v214
  %v1163 = vunpack.c.l.b16 %v215
  %v1164 = vunpack.c.l.b16 %v216
  %v1165 = vunpack.c.l.b16 %v217
  %v1166 = vunpack.c.l.b16 %v218
  %v1167 = vunpack.c.l.b16 %v219
  %v1168 = vunpack.c.l.b16 %v220
  %v1169 = vunpack.c.l.b16 %v221
  %v1170 = vunpack.c.l.b16 %v222
  %v1171 = vunpack.c.l.b16 %v223
  %v1172 = vunpack.c.l.b16 %v224
  %v1173 = vunpack.c.l.b16 %v225
  %v1174 = vunpack.c.l.b16 %v226
  %v1175 = vunpack.c.l.b16 %v227
  %v1176 = vunpack.c.l.b16 %v228
  %v1177 = vunpack.c.l.b16 %v229
  %v1178 = vunpack.c.l.b16 %v230
  %v1179 = vunpack.c.l.b16 %v231
  %v1180 = vunpack.c.l.b16 %v232
  %v1181 = vunpack.c.l.b16 %v233
  %v1182 = vunpack.c.l.b16 %v234
  %v1183 = vunpack.c.l.b16 %v235
  %v1184 = vunpack.c.l.b16 %v236
  %v1185 = vunpack.c.l.b16 %v237
  %v1186 = vunpack.c.l.b16 %v238
  %v1187 = vunpack.c.l.b16 %v239
  %v1188 = vunpack.c.l.b16 %v240
  %v1189 = vunpack.c.l.b16 %v241
  %v1190 = vunpack.c.l.b16 %v242
  %v1191 = vunpack.c.l.b16 %v243
  %v1192 = vunpack.c.l.b16 %v244
  %v1193 = vunpack.c.l.b16 %v245
  %v1194 = vunpack.c.l.b16 %v246
  %v1195 = vunpack.c.l.b16 %v247
  %v1196 = vunpack.c.l.b16 %v248
  %v1197 = vunpack.c.l.b16 %v249
  %v1198 = vunpack.c.l.b16 %v250
  %v1199 = vunpack.c.l.b16 %v251
  %v1200 = vunpack.c.l.b16 %v252
  %v1201 = vunpack.c.l.b16 %v253
  %v1202 = vunpack.c.l.b16 %v254
  %v1203 = vunpack.c.l.b16 %v255
  %v1204 = vunpack.c.l.b16 %v256
  %v1205 = vunpack.c.l.b16 %v257
  %v1206 = vunpack.c.l.b16 %v258
  %v1207 = vunpack.c.l.b16 %v259
  %v1208 = vunpack.c.l.b16 %v260
  %v1209 = vunpack.c.l.b16 %v261
  %v1210 = vunpack.c.l.b16 %v262
  %v1211 = vunpack.c.l.b16 %v263
  %v1212 = vunpack.c.l.b16 %v264
  %v1213 = vunpack.c.l.b16 %v265
  %v1214 = vunpack.c.l.b16 %v266
  %v1215 = vunpack.c.l.b16 %v267
  %v1216 = vunpack.c.l.b16 %v268
  %v1217 = vunpack.c.l.b16 %v269
  %v1218 = vunpack.c.l.b16 %v270
  %v1219 = vunpack.c.l.b16 %v271
  %v1220 = vunpack.c.l.b16 %v272
  %v1221 = vunpack.c.l.b16 %v273
  %v1222 = vunpack.c.l.b16 %v274
  %v1223 = vunpack.c.l.b16 %v275
  %v1224 = vunpack.c.l.b16 %v276
  %v1225 = vunpack.c.l.b16 %v277
  %v1226 = vunpack.c.l.b16 %v278
  %v1227 = vunpack.c.l.b16 %v279
  %v1228 = vunpack.c.l.b16 %v280
  %v1229 = vunpack.c.l.b16 %v281
  %v1230 = vunpack.c.l.b16 %v282
  %v1231 = vunpack.c.l.b16 %v283
  %v1232 = vunpack.c.l.b16 %v284
  %v1233 = vunpack.c.l.b16 %v285
  %v1234 = vunpack.c.l.b16 %v286
  %v1235 = vunpack.c.l.b16 %v287
  %v1236 = vunpack.c.l.b16 %v288
  %v1237 = vunpack.c.l.b16 %v289
  %v1238 = vunpack.c.l.b16 %v290
  %v1239 = vunpack.c.l.b16 %v291
  %v1240 = vunpack.c.l.b16 %v292
  %v1241 = vunpack.c.l.b16 %v293
  %v1242 = vunpack.c.l.b16 %v294
  %v1243 = vunpack.c.l.b16 %v295
  %v1244 = vunpack.c.l.b16 %v296
  %v1245 = vunpack.c.l.b16 %v297
  %v1246 = vunpack.c.l.b16 %v298
  %v1247 = vunpack.c.l.b16 %v299
  %v1248 = vunpack.c.l.b16 %v300
  %v1249 = vunpack.c.l.b16 %v301
  %v1250 = vunpack.c.l.b16 %v302
  %v1251 = vunpack.c.l.b16 %v303
  %v1252 = vunpack.c.l.b16 %v304
  %v1253 = vunpack.c.l.b16 %v305
  %v1254 = vunpack.c.l.b16 %v306
  %v1255 = vunpack.c.l.b16 %v307
  %v1256 = vunpack.c.l.b16 %v308
  %v1257 = vunpack.c.l.b16 %v309
  %v1258 = vunpack.c.l.b16 %v310
  %v1259 = vunpack.c.l.b16 %v311
  %v1260 = vunpack.c.l.b16 %v312
  %v1261 = vunpack.c.l.b16 %v313
  %v1262 = vunpack.c.l.b16 %v314
  %v1263 = vunpack.c.l.b16 %v315
  %v1264 = vunpack.c.l.b16 %v316
  %v1265 = vunpack.c.l.b16 %v317
  %v1266 = vunpack.c.l.b16 %v318
  %v1267 = vunpack.c.l.b16 %v319
  %v1268 = vunpack.c.l.b16 %v320
  %v1269 = vunpack.c.l.b16 %v321
  %v1270 = vunpack.c.l.b16 %v322
  %v1271 = vunpack.c.l.b16 %v323
  %v1272 = vunpack.c.l.b16 %v324
  %v1273 = vunpack.c.l.b16 %v325
  %v1274 = vunpack.c.l.b16 %v326
  %v1275 = vunpack.c.l.b16 %v327
  %v1276 = vunpack.c.l.b16 %v328
  %v1277 = vunpack.c.l.b16 %v329
  %v1278 = vunpack.c.l.b16 %v330
  %v1279 = vunpack.c.l.b16 %v331
  %v1280 = vunpack.c.l.b16 %v332
  %v1281 = vunpack.c.l.b16 %v333
  %v1282 = vpack.c.b16 %v1075, %v1074
  %v1283 = vpack.c.b16 %v1077, %v1076
  %v1284 = vpack.c.b16 %v1079, %v1078
  %v1285 = vpack.c.b16 %v1081, %v1080
  %v1286 = vpack.c.b16 %v1083, %v1082
  %v1287 = vpack.c.b16 %v1085, %v1084
  %v1288 = vpack.c.b16 %v1087, %v1086
  %v1289 = vpack.c.b16 %v1089, %v1088
  %v1290 = vpack.c.b16 %v1091, %v1090
  %v1291 = vpack.c.b16 %v1093, %v1092
  %v1292 = vpack.c.b16 %v1095, %v1094
  %v1293 = vpack.c.b16 %v1097, %v1096
  %v1294 = vpack.c.b16 %v1099, %v1098
  %v1295 = vpack.c.b16 %v1101, %v1100
  %v1296 = vpack.c.b16 %v1103, %v1102
  %v1297 = vpack.c.b16 %v1105, %v1104
  %v1298 = vpack.c.b16 %v1107, %v1106
  %v1299 = vpack.c.b16 %v1109, %v1108
  %v1300 = vpack.c.b16 %v1111, %v1110
  %v1301 = vpack.c.b16 %v1113, %v1112
  %v1302 = vpack.c.b16 %v1115, %v1114
  %v1303 = vpack.c.b16 %v1117, %v1116
  %v1304 = vpack.c.b16 %v1119, %v1118
  %v1305 = vpack.c.b16 %v1121, %v1120
  %v1306 = vpack.c.b16 %v1123, %v1122
  %v1307 = vpack.c.b16 %v1125, %v1124
  %v1308 = vpack.c.b16 %v1127, %v1126
  %v1309 = vpack.c.b16 %v1129, %v1128
  %v1310 = vpack.c.b16 %v1131, %v1130
  %v1311 = vpack.c.b16 %v1133, %v1132
  %v1312 = vpack.c.b16 %v1135, %v1134
  %v1313 = vpack.c.b16 %v1137, %v1136
  %v1314 = vpack.c.b16 %v1139, %v1138
  %v1315 = vpack.c.b16 %v1141, %v1140
  %v1316 = vpack.c.b16 %v1143, %v1142
  %v1317 = vpack.c.b16 %v1145, %v1144
  %v1318 = vpack.c.b16 %v1147, %v1146
  %v1319 = vpack.c.b16 %v1149, %v1148
  %v1320 = vpack.c.b16 %v1151, %v1150
  %v1321 = vpack.c.b16 %v1153, %v1152
  %v1322 = vpack.c.b16 %v1155, %v1154
  %v1323 = vpack.c.b16 %v1157, %v1156
  %v1324 = vpack.c.b16 %v1159, %v1158
  %v1325 = vpack.c.b16 %v1161, %v1160
  %v1326 = vpack.c.b16 %v1163, %v1162
  %v1327 = vpack.c.b16 %v1165, %v1164
  %v1328 = vpack.c.b16 %v1167, %v1166
  %v1329 = vpack.c.b16 %v1169, %v1168
  %v1330 = vpack.c.b16 %v1171, %v1170
  %v1331 = vpack.c.b16 %v1173, %v1172
  %v1332 = vpack.c.b16 %v1175, %v1174
  %v1333 = vpack.c.b16 %v1177, %v1176
  %v1334 = vpack.c.b16 %v1179, %v1178
  %v1335 = vpack.c.b16 %v1181, %v1180
  %v1336 = vpack.c.b16 %v1183, %v1182
  %v1337 = vpack.c.b16 %v1185, %v1184
  %v1338 = vpack.c.b16 %v1187, %v1186
  %v1339 = vpack.c.b16 %v1189, %v1188
  %v1340 = vpack.c.b16 %v1191, %v1190
  %v1341 = vpack.c.b16 %v1193, %v1192
  %v1342 = vpack.c.b16 %v1195, %v1194
  %v1343 = vpack.c.b16 %v1197, %v1196
  %v1344 = vpack.c.b16 %v1199, %v1198
  %v1345 = vpack.c.b16 %v1201, %v1200
  %v1346 = vpack.c.b16 %v1203, %v1202
  %v1347 = vpack.c.b16 %v1205, %v1204
  %v1348 = vpack.c.b16 %v1207, %v1206
  %v1349 = vpack.c.b16 %v1209, %v1208
  %v1350 = vpack.c.b16 %v1211, %v1210
  %v1351 = vpack.c.b16 %v1213, %v1212
  %v1352 = vpack.c.b16 %v1215, %v1214
  %v1353 = vpack.c.b16 %v1217, %v1216
  %v1354 = vpack.c.b16 %v1219, %v1218
  %v1355 = vpack.c.b16 %v1221, %v1220
  %v1356 = vpack.c.b16 %v1223, %v1222
  %v1357 = vpack.c.b16 %v1225, %v1224
  %v1358 = vpack.c.b16 %v1227, %v1226
  %v1359 = vpack.c.b16 %v1229, %v1228
  %v1360 = vpack.c.b16 %v1231, %v1230
  %v1361 = vpack.c.b16 %v1233, %v1232
  %v1362 = vpack.c.b16 %v1235, %v1234
  %v1363 = vpack.c.b16 %v1237, %v1236
  %v1364 = vpack.c.b16 %v1239, %v1238
  %v1365 = vpack.c.b16 %v1241, %v1240
  %v1366 = vpack.c.b16 %v1243, %v1242
  %v1367 = vpack.c.b16 %v1245, %v1244
  %v1368 = vpack.c.b16 %v1247, %v1246
  %v1369 = vpack.c.b16 %v1249, %v1248
  %v1370 = vpack.c.b16 %v1251, %v1250
  %v1371 = vpack.c.b16 %v1253, %v1252
  %v1372 = vpack.c.b16 %v1255, %v1254
  %v1373 = vpack.c.b16 %v1257, %v1256
  %v1374 = vpack.c.b16 %v1259, %v1258
  %v1375 = vpack.c.b16 %v1261, %v1260
  %v1376 = vpack.c.b16 %v1263, %v1262
  %v1377 = vpack.c.b16 %v1265, %v1264
  %v1378 = vpack.c.b16 %v1267, %v1266
  %v1379 = vpack.c.b16 %v1269, %v1268
  %v1380 = vpack.c.b16 %v1271, %v1270
  %v1381 = vpack.c.b16 %v1273, %v1272
  %v1382 = vpack.c.b16 %v1275, %v1274
  %v1383 = vpack.c.b16 %v1277, %v1276
  %v1384 = vpack.c.b16 %v1279, %v1278
  %v1385 = vpack.c.b16 %v1281, %v1280
  %1490 = vmatpush.bf16.msra.mxu0 %v1289
  %1491 = vmatpush.bf16.msra.mxu0 %v1288
  %1492 = vmatpush.bf16.msra.mxu0 %v1287
  %1493 = vmatpush.bf16.msra.mxu0 %v1286
  %1494 = vmatpush.bf16.msra.mxu0 %v1285
  %1495 = vmatpush.bf16.msra.mxu0 %v1284
  %1496 = vmatpush.bf16.msra.mxu0 %v1283
  %1497 = vmatpush.bf16.msra.mxu0 %v1282
  %1498 = vmatmul.bf16.gmra.mxu0 %v658
  %v1499 = vpop.f32.mrf.mxu0
  %v1500 = vadd.f32 %v336, %v1499
  %v1501 = vpop.f32.mrf.mxu0
  %v1502 = vadd.f32 %v336, %v1501
  %1503 = vmatmul.bf16.gmra.mxu0 %v671
  %v1504 = vpop.f32.mrf.mxu0
  %v1505 = vadd.f32 %v336, %v1504
  %v1506 = vpop.f32.mrf.mxu0
  %v1507 = vadd.f32 %v336, %v1506
  %1508 = vmatmul.bf16.gmra.mxu0 %v684
  %v1509 = vpop.f32.mrf.mxu0
  %v1510 = vadd.f32 %v336, %v1509
  %v1511 = vpop.f32.mrf.mxu0
  %v1512 = vadd.f32 %v336, %v1511
  %1513 = vmatmul.bf16.gmra.mxu0 %v697
  %v1514 = vpop.f32.mrf.mxu0
  %v1515 = vadd.f32 %v336, %v1514
  %v1516 = vpop.f32.mrf.mxu0
  %v1517 = vadd.f32 %v336, %v1516
  %1518 = vmatmul.bf16.gmra.mxu0 %v710
  %v1519 = vpop.f32.mrf.mxu0
  %v1520 = vadd.f32 %v336, %v1519
  %v1521 = vpop.f32.mrf.mxu0
  %v1522 = vadd.f32 %v336, %v1521
  %1523 = vmatmul.bf16.gmra.mxu0 %v723
  %v1524 = vpop.f32.mrf.mxu0
  %v1525 = vadd.f32 %v336, %v1524
  %v1526 = vpop.f32.mrf.mxu0
  %v1527 = vadd.f32 %v336, %v1526
  %1528 = vmatmul.bf16.gmra.mxu0 %v736
  %v1529 = vpop.f32.mrf.mxu0
  %v1530 = vadd.f32 %v336, %v1529
  %v1531 = vpop.f32.mrf.mxu0
  %v1532 = vadd.f32 %v336, %v1531
  %1533 = vmatmul.bf16.gmra.mxu0 %v749
  %v1534 = vpop.f32.mrf.mxu0
  %v1535 = vadd.f32 %v336, %v1534
  %v1536 = vpop.f32.mrf.mxu0
  %v1537 = vadd.f32 %v336, %v1536
  %1538 = vdwg.mxu0
  %1539 = vmatpush.bf16.msra.mxu0 %v1297
  %1540 = vmatpush.bf16.msra.mxu0 %v1296
  %1541 = vmatpush.bf16.msra.mxu0 %v1295
  %1542 = vmatpush.bf16.msra.mxu0 %v1294
  %1543 = vmatpush.bf16.msra.mxu0 %v1293
  %1544 = vmatpush.bf16.msra.mxu0 %v1292
  %1545 = vmatpush.bf16.msra.mxu0 %v1291
  %1546 = vmatpush.bf16.msra.mxu0 %v1290
  %1547 = vmatmul.bf16.gmra.mxu0 %v659
  %v1548 = vpop.f32.mrf.mxu0
  %v1549 = vadd.f32 %v1500, %v1548
  %v1550 = vpop.f32.mrf.mxu0
  %v1551 = vadd.f32 %v1502, %v1550
  %1552 = vmatmul.bf16.gmra.mxu0 %v672
  %v1553 = vpop.f32.mrf.mxu0
  %v1554 = vadd.f32 %v1505, %v1553
  %v1555 = vpop.f32.mrf.mxu0
  %v1556 = vadd.f32 %v1507, %v1555
  %1557 = vmatmul.bf16.gmra.mxu0 %v685
  %v1558 = vpop.f32.mrf.mxu0
  %v1559 = vadd.f32 %v1510, %v1558
  %v1560 = vpop.f32.mrf.mxu0
  %v1561 = vadd.f32 %v1512, %v1560
  %1562 = vmatmul.bf16.gmra.mxu0 %v698
  %v1563 = vpop.f32.mrf.mxu0
  %v1564 = vadd.f32 %v1515, %v1563
  %v1565 = vpop.f32.mrf.mxu0
  %v1566 = vadd.f32 %v1517, %v1565
  %1567 = vmatmul.bf16.gmra.mxu0 %v711
  %v1568 = vpop.f32.mrf.mxu0
  %v1569 = vadd.f32 %v1520, %v1568
  %v1570 = vpop.f32.mrf.mxu0
  %v1571 = vadd.f32 %v1522, %v1570
  %1572 = vmatmul.bf16.gmra.mxu0 %v724
  %v1573 = vpop.f32.mrf.mxu0
  %v1574 = vadd.f32 %v1525, %v1573
  %v1575 = vpop.f32.mrf.mxu0
  %v1576 = vadd.f32 %v1527, %v1575
  %1577 = vmatmul.bf16.gmra.mxu0 %v737
  %v1578 = vpop.f32.mrf.mxu0
  %v1579 = vadd.f32 %v1530, %v1578
  %v1580 = vpop.f32.mrf.mxu0
  %v1581 = vadd.f32 %v1532, %v1580
  %1582 = vmatmul.bf16.gmra.mxu0 %v750
  %v1583 = vpop.f32.mrf.mxu0
  %v1584 = vadd.f32 %v1535, %v1583
  %v1585 = vpop.f32.mrf.mxu0
  %v1586 = vadd.f32 %v1537, %v1585
  %1587 = vdwg.mxu0
  %1588 = vmatpush.bf16.msra.mxu0 %v1305
  %1589 = vmatpush.bf16.msra.mxu0 %v1304
  %1590 = vmatpush.bf16.msra.mxu0 %v1303
  %1591 = vmatpush.bf16.msra.mxu0 %v1302
  %1592 = vmatpush.bf16.msra.mxu0 %v1301
  %1593 = vmatpush.bf16.msra.mxu0 %v1300
  %1594 = vmatpush.bf16.msra.mxu0 %v1299
  %1595 = vmatpush.bf16.msra.mxu0 %v1298
  %1596 = vmatmul.bf16.gmra.mxu0 %v660
  %v1597 = vpop.f32.mrf.mxu0
  %v1598 = vadd.f32 %v1549, %v1597
  %v1599 = vpop.f32.mrf.mxu0
  %v1600 = vadd.f32 %v1551, %v1599
  %1601 = vmatmul.bf16.gmra.mxu0 %v673
  %v1602 = vpop.f32.mrf.mxu0
  %v1603 = vadd.f32 %v1554, %v1602
  %v1604 = vpop.f32.mrf.mxu0
  %v1605 = vadd.f32 %v1556, %v1604
  %1606 = vmatmul.bf16.gmra.mxu0 %v686
  %v1607 = vpop.f32.mrf.mxu0
  %v1608 = vadd.f32 %v1559, %v1607
  %v1609 = vpop.f32.mrf.mxu0
  %v1610 = vadd.f32 %v1561, %v1609
  %1611 = vmatmul.bf16.gmra.mxu0 %v699
  %v1612 = vpop.f32.mrf.mxu0
  %v1613 = vadd.f32 %v1564, %v1612
  %v1614 = vpop.f32.mrf.mxu0
  %v1615 = vadd.f32 %v1566, %v1614
  %1616 = vmatmul.bf16.gmra.mxu0 %v712
  %v1617 = vpop.f32.mrf.mxu0
  %v1618 = vadd.f32 %v1569, %v1617
  %v1619 = vpop.f32.mrf.mxu0
  %v1620 = vadd.f32 %v1571, %v1619
  %1621 = vmatmul.bf16.gmra.mxu0 %v725
  %v1622 = vpop.f32.mrf.mxu0
  %v1623 = vadd.f32 %v1574, %v1622
  %v1624 = vpop.f32.mrf.mxu0
  %v1625 = vadd.f32 %v1576, %v1624
  %1626 = vmatmul.bf16.gmra.mxu0 %v738
  %v1627 = vpop.f32.mrf.mxu0
  %v1628 = vadd.f32 %v1579, %v1627
  %v1629 = vpop.f32.mrf.mxu0
  %v1630 = vadd.f32 %v1581, %v1629
  %1631 = vmatmul.bf16.gmra.mxu0 %v751
  %v1632 = vpop.f32.mrf.mxu0
  %v1633 = vadd.f32 %v1584, %v1632
  %v1634 = vpop.f32.mrf.mxu0
  %v1635 = vadd.f32 %v1586, %v1634
  %1636 = vdwg.mxu0
  %1637 = vmatpush.bf16.msra.mxu0 %v1313
  %1638 = vmatpush.bf16.msra.mxu0 %v1312
  %1639 = vmatpush.bf16.msra.mxu0 %v1311
  %1640 = vmatpush.bf16.msra.mxu0 %v1310
  %1641 = vmatpush.bf16.msra.mxu0 %v1309
  %1642 = vmatpush.bf16.msra.mxu0 %v1308
  %1643 = vmatpush.bf16.msra.mxu0 %v1307
  %1644 = vmatpush.bf16.msra.mxu0 %v1306
  %1645 = vmatmul.bf16.gmra.mxu0 %v661
  %v1646 = vpop.f32.mrf.mxu0
  %v1647 = vadd.f32 %v1598, %v1646
  %v1648 = vpop.f32.mrf.mxu0
  %v1649 = vadd.f32 %v1600, %v1648
  %1650 = vmatmul.bf16.gmra.mxu0 %v674
  %v1651 = vpop.f32.mrf.mxu0
  %v1652 = vadd.f32 %v1603, %v1651
  %v1653 = vpop.f32.mrf.mxu0
  %v1654 = vadd.f32 %v1605, %v1653
  %1655 = vmatmul.bf16.gmra.mxu0 %v687
  %v1656 = vpop.f32.mrf.mxu0
  %v1657 = vadd.f32 %v1608, %v1656
  %v1658 = vpop.f32.mrf.mxu0
  %v1659 = vadd.f32 %v1610, %v1658
  %1660 = vmatmul.bf16.gmra.mxu0 %v700
  %v1661 = vpop.f32.mrf.mxu0
  %v1662 = vadd.f32 %v1613, %v1661
  %v1663 = vpop.f32.mrf.mxu0
  %v1664 = vadd.f32 %v1615, %v1663
  %1665 = vmatmul.bf16.gmra.mxu0 %v713
  %v1666 = vpop.f32.mrf.mxu0
  %v1667 = vadd.f32 %v1618, %v1666
  %v1668 = vpop.f32.mrf.mxu0
  %v1669 = vadd.f32 %v1620, %v1668
  %1670 = vmatmul.bf16.gmra.mxu0 %v726
  %v1671 = vpop.f32.mrf.mxu0
  %v1672 = vadd.f32 %v1623, %v1671
  %v1673 = vpop.f32.mrf.mxu0
  %v1674 = vadd.f32 %v1625, %v1673
  %1675 = vmatmul.bf16.gmra.mxu0 %v739
  %v1676 = vpop.f32.mrf.mxu0
  %v1677 = vadd.f32 %v1628, %v1676
  %v1678 = vpop.f32.mrf.mxu0
  %v1679 = vadd.f32 %v1630, %v1678
  %1680 = vmatmul.bf16.gmra.mxu0 %v752
  %v1681 = vpop.f32.mrf.mxu0
  %v1682 = vadd.f32 %v1633, %v1681
  %v1683 = vpop.f32.mrf.mxu0
  %v1684 = vadd.f32 %v1635, %v1683
  %1685 = vdwg.mxu0
  %1686 = vmatpush.bf16.msra.mxu0 %v1321
  %1687 = vmatpush.bf16.msra.mxu0 %v1320
  %1688 = vmatpush.bf16.msra.mxu0 %v1319
  %1689 = vmatpush.bf16.msra.mxu0 %v1318
  %1690 = vmatpush.bf16.msra.mxu0 %v1317
  %1691 = vmatpush.bf16.msra.mxu0 %v1316
  %1692 = vmatpush.bf16.msra.mxu0 %v1315
  %1693 = vmatpush.bf16.msra.mxu0 %v1314
  %1694 = vmatmul.bf16.gmra.mxu0 %v662
  %v1695 = vpop.f32.mrf.mxu0
  %v1696 = vadd.f32 %v1647, %v1695
  %v1697 = vpop.f32.mrf.mxu0
  %v1698 = vadd.f32 %v1649, %v1697
  %1699 = vmatmul.bf16.gmra.mxu0 %v675
  %v1700 = vpop.f32.mrf.mxu0
  %v1701 = vadd.f32 %v1652, %v1700
  %v1702 = vpop.f32.mrf.mxu0
  %v1703 = vadd.f32 %v1654, %v1702
  %1704 = vmatmul.bf16.gmra.mxu0 %v688
  %v1705 = vpop.f32.mrf.mxu0
  %v1706 = vadd.f32 %v1657, %v1705
  %v1707 = vpop.f32.mrf.mxu0
  %v1708 = vadd.f32 %v1659, %v1707
  %1709 = vmatmul.bf16.gmra.mxu0 %v701
  %v1710 = vpop.f32.mrf.mxu0
  %v1711 = vadd.f32 %v1662, %v1710
  %v1712 = vpop.f32.mrf.mxu0
  %v1713 = vadd.f32 %v1664, %v1712
  %1714 = vmatmul.bf16.gmra.mxu0 %v714
  %v1715 = vpop.f32.mrf.mxu0
  %v1716 = vadd.f32 %v1667, %v1715
  %v1717 = vpop.f32.mrf.mxu0
  %v1718 = vadd.f32 %v1669, %v1717
  %1719 = vmatmul.bf16.gmra.mxu0 %v727
  %v1720 = vpop.f32.mrf.mxu0
  %v1721 = vadd.f32 %v1672, %v1720
  %v1722 = vpop.f32.mrf.mxu0
  %v1723 = vadd.f32 %v1674, %v1722
  %1724 = vmatmul.bf16.gmra.mxu0 %v740
  %v1725 = vpop.f32.mrf.mxu0
  %v1726 = vadd.f32 %v1677, %v1725
  %v1727 = vpop.f32.mrf.mxu0
  %v1728 = vadd.f32 %v1679, %v1727
  %1729 = vmatmul.bf16.gmra.mxu0 %v753
  %v1730 = vpop.f32.mrf.mxu0
  %v1731 = vadd.f32 %v1682, %v1730
  %v1732 = vpop.f32.mrf.mxu0
  %v1733 = vadd.f32 %v1684, %v1732
  %1734 = vdwg.mxu0
  %1735 = vmatpush.bf16.msra.mxu0 %v1329
  %1736 = vmatpush.bf16.msra.mxu0 %v1328
  %1737 = vmatpush.bf16.msra.mxu0 %v1327
  %1738 = vmatpush.bf16.msra.mxu0 %v1326
  %1739 = vmatpush.bf16.msra.mxu0 %v1325
  %1740 = vmatpush.bf16.msra.mxu0 %v1324
  %1741 = vmatpush.bf16.msra.mxu0 %v1323
  %1742 = vmatpush.bf16.msra.mxu0 %v1322
  %1743 = vmatmul.bf16.gmra.mxu0 %v663
  %v1744 = vpop.f32.mrf.mxu0
  %v1745 = vadd.f32 %v1696, %v1744
  %v1746 = vpop.f32.mrf.mxu0
  %v1747 = vadd.f32 %v1698, %v1746
  %1748 = vmatmul.bf16.gmra.mxu0 %v676
  %v1749 = vpop.f32.mrf.mxu0
  %v1750 = vadd.f32 %v1701, %v1749
  %v1751 = vpop.f32.mrf.mxu0
  %v1752 = vadd.f32 %v1703, %v1751
  %1753 = vmatmul.bf16.gmra.mxu0 %v689
  %v1754 = vpop.f32.mrf.mxu0
  %v1755 = vadd.f32 %v1706, %v1754
  %v1756 = vpop.f32.mrf.mxu0
  %v1757 = vadd.f32 %v1708, %v1756
  %1758 = vmatmul.bf16.gmra.mxu0 %v702
  %v1759 = vpop.f32.mrf.mxu0
  %v1760 = vadd.f32 %v1711, %v1759
  %v1761 = vpop.f32.mrf.mxu0
  %v1762 = vadd.f32 %v1713, %v1761
  %1763 = vmatmul.bf16.gmra.mxu0 %v715
  %v1764 = vpop.f32.mrf.mxu0
  %v1765 = vadd.f32 %v1716, %v1764
  %v1766 = vpop.f32.mrf.mxu0
  %v1767 = vadd.f32 %v1718, %v1766
  %1768 = vmatmul.bf16.gmra.mxu0 %v728
  %v1769 = vpop.f32.mrf.mxu0
  %v1770 = vadd.f32 %v1721, %v1769
  %v1771 = vpop.f32.mrf.mxu0
  %v1772 = vadd.f32 %v1723, %v1771
  %1773 = vmatmul.bf16.gmra.mxu0 %v741
  %v1774 = vpop.f32.mrf.mxu0
  %v1775 = vadd.f32 %v1726, %v1774
  %v1776 = vpop.f32.mrf.mxu0
  %v1777 = vadd.f32 %v1728, %v1776
  %1778 = vmatmul.bf16.gmra.mxu0 %v754
  %v1779 = vpop.f32.mrf.mxu0
  %v1780 = vadd.f32 %v1731, %v1779
  %v1781 = vpop.f32.mrf.mxu0
  %v1782 = vadd.f32 %v1733, %v1781
  %1783 = vdwg.mxu0
  %1784 = vmatpush.bf16.msra.mxu0 %v1337
  %1785 = vmatpush.bf16.msra.mxu0 %v1336
  %1786 = vmatpush.bf16.msra.mxu0 %v1335
  %1787 = vmatpush.bf16.msra.mxu0 %v1334
  %1788 = vmatpush.bf16.msra.mxu0 %v1333
  %1789 = vmatpush.bf16.msra.mxu0 %v1332
  %1790 = vmatpush.bf16.msra.mxu0 %v1331
  %1791 = vmatpush.bf16.msra.mxu0 %v1330
  %1792 = vmatmul.bf16.gmra.mxu0 %v664
  %v1793 = vpop.f32.mrf.mxu0
  %v1794 = vadd.f32 %v1745, %v1793
  %v1795 = vpop.f32.mrf.mxu0
  %v1796 = vadd.f32 %v1747, %v1795
  %1797 = vmatmul.bf16.gmra.mxu0 %v677
  %v1798 = vpop.f32.mrf.mxu0
  %v1799 = vadd.f32 %v1750, %v1798
  %v1800 = vpop.f32.mrf.mxu0
  %v1801 = vadd.f32 %v1752, %v1800
  %1802 = vmatmul.bf16.gmra.mxu0 %v690
  %v1803 = vpop.f32.mrf.mxu0
  %v1804 = vadd.f32 %v1755, %v1803
  %v1805 = vpop.f32.mrf.mxu0
  %v1806 = vadd.f32 %v1757, %v1805
  %1807 = vmatmul.bf16.gmra.mxu0 %v703
  %v1808 = vpop.f32.mrf.mxu0
  %v1809 = vadd.f32 %v1760, %v1808
  %v1810 = vpop.f32.mrf.mxu0
  %v1811 = vadd.f32 %v1762, %v1810
  %1812 = vmatmul.bf16.gmra.mxu0 %v716
  %v1813 = vpop.f32.mrf.mxu0
  %v1814 = vadd.f32 %v1765, %v1813
  %v1815 = vpop.f32.mrf.mxu0
  %v1816 = vadd.f32 %v1767, %v1815
  %1817 = vmatmul.bf16.gmra.mxu0 %v729
  %v1818 = vpop.f32.mrf.mxu0
  %v1819 = vadd.f32 %v1770, %v1818
  %v1820 = vpop.f32.mrf.mxu0
  %v1821 = vadd.f32 %v1772, %v1820
  %1822 = vmatmul.bf16.gmra.mxu0 %v742
  %v1823 = vpop.f32.mrf.mxu0
  %v1824 = vadd.f32 %v1775, %v1823
  %v1825 = vpop.f32.mrf.mxu0
  %v1826 = vadd.f32 %v1777, %v1825
  %1827 = vmatmul.bf16.gmra.mxu0 %v755
  %v1828 = vpop.f32.mrf.mxu0
  %v1829 = vadd.f32 %v1780, %v1828
  %v1830 = vpop.f32.mrf.mxu0
  %v1831 = vadd.f32 %v1782, %v1830
  %1832 = vdwg.mxu0
  %1833 = vmatpush.bf16.msra.mxu0 %v1345
  %1834 = vmatpush.bf16.msra.mxu0 %v1344
  %1835 = vmatpush.bf16.msra.mxu0 %v1343
  %1836 = vmatpush.bf16.msra.mxu0 %v1342
  %1837 = vmatpush.bf16.msra.mxu0 %v1341
  %1838 = vmatpush.bf16.msra.mxu0 %v1340
  %1839 = vmatpush.bf16.msra.mxu0 %v1339
  %1840 = vmatpush.bf16.msra.mxu0 %v1338
  %1841 = vmatmul.bf16.gmra.mxu0 %v665
  %v1842 = vpop.f32.mrf.mxu0
  %v1843 = vadd.f32 %v1794, %v1842
  %v1844 = vpop.f32.mrf.mxu0
  %v1845 = vadd.f32 %v1796, %v1844
  %1846 = vmatmul.bf16.gmra.mxu0 %v678
  %v1847 = vpop.f32.mrf.mxu0
  %v1848 = vadd.f32 %v1799, %v1847
  %v1849 = vpop.f32.mrf.mxu0
  %v1850 = vadd.f32 %v1801, %v1849
  %1851 = vmatmul.bf16.gmra.mxu0 %v691
  %v1852 = vpop.f32.mrf.mxu0
  %v1853 = vadd.f32 %v1804, %v1852
  %v1854 = vpop.f32.mrf.mxu0
  %v1855 = vadd.f32 %v1806, %v1854
  %1856 = vmatmul.bf16.gmra.mxu0 %v704
  %v1857 = vpop.f32.mrf.mxu0
  %v1858 = vadd.f32 %v1809, %v1857
  %v1859 = vpop.f32.mrf.mxu0
  %v1860 = vadd.f32 %v1811, %v1859
  %1861 = vmatmul.bf16.gmra.mxu0 %v717
  %v1862 = vpop.f32.mrf.mxu0
  %v1863 = vadd.f32 %v1814, %v1862
  %v1864 = vpop.f32.mrf.mxu0
  %v1865 = vadd.f32 %v1816, %v1864
  %1866 = vmatmul.bf16.gmra.mxu0 %v730
  %v1867 = vpop.f32.mrf.mxu0
  %v1868 = vadd.f32 %v1819, %v1867
  %v1869 = vpop.f32.mrf.mxu0
  %v1870 = vadd.f32 %v1821, %v1869
  %1871 = vmatmul.bf16.gmra.mxu0 %v743
  %v1872 = vpop.f32.mrf.mxu0
  %v1873 = vadd.f32 %v1824, %v1872
  %v1874 = vpop.f32.mrf.mxu0
  %v1875 = vadd.f32 %v1826, %v1874
  %1876 = vmatmul.bf16.gmra.mxu0 %v756
  %v1877 = vpop.f32.mrf.mxu0
  %v1878 = vadd.f32 %v1829, %v1877
  %v1879 = vpop.f32.mrf.mxu0
  %v1880 = vadd.f32 %v1831, %v1879
  %1881 = vdwg.mxu0
  %1882 = vmatpush.bf16.msra.mxu0 %v1353
  %1883 = vmatpush.bf16.msra.mxu0 %v1352
  %1884 = vmatpush.bf16.msra.mxu0 %v1351
  %1885 = vmatpush.bf16.msra.mxu0 %v1350
  %1886 = vmatpush.bf16.msra.mxu0 %v1349
  %1887 = vmatpush.bf16.msra.mxu0 %v1348
  %1888 = vmatpush.bf16.msra.mxu0 %v1347
  %1889 = vmatpush.bf16.msra.mxu0 %v1346
  %1890 = vmatmul.bf16.gmra.mxu0 %v666
  %v1891 = vpop.f32.mrf.mxu0
  %v1892 = vadd.f32 %v1843, %v1891
  %v1893 = vpop.f32.mrf.mxu0
  %v1894 = vadd.f32 %v1845, %v1893
  %1895 = vmatmul.bf16.gmra.mxu0 %v679
  %v1896 = vpop.f32.mrf.mxu0
  %v1897 = vadd.f32 %v1848, %v1896
  %v1898 = vpop.f32.mrf.mxu0
  %v1899 = vadd.f32 %v1850, %v1898
  %1900 = vmatmul.bf16.gmra.mxu0 %v692
  %v1901 = vpop.f32.mrf.mxu0
  %v1902 = vadd.f32 %v1853, %v1901
  %v1903 = vpop.f32.mrf.mxu0
  %v1904 = vadd.f32 %v1855, %v1903
  %1905 = vmatmul.bf16.gmra.mxu0 %v705
  %v1906 = vpop.f32.mrf.mxu0
  %v1907 = vadd.f32 %v1858, %v1906
  %v1908 = vpop.f32.mrf.mxu0
  %v1909 = vadd.f32 %v1860, %v1908
  %1910 = vmatmul.bf16.gmra.mxu0 %v718
  %v1911 = vpop.f32.mrf.mxu0
  %v1912 = vadd.f32 %v1863, %v1911
  %v1913 = vpop.f32.mrf.mxu0
  %v1914 = vadd.f32 %v1865, %v1913
  %1915 = vmatmul.bf16.gmra.mxu0 %v731
  %v1916 = vpop.f32.mrf.mxu0
  %v1917 = vadd.f32 %v1868, %v1916
  %v1918 = vpop.f32.mrf.mxu0
  %v1919 = vadd.f32 %v1870, %v1918
  %1920 = vmatmul.bf16.gmra.mxu0 %v744
  %v1921 = vpop.f32.mrf.mxu0
  %v1922 = vadd.f32 %v1873, %v1921
  %v1923 = vpop.f32.mrf.mxu0
  %v1924 = vadd.f32 %v1875, %v1923
  %1925 = vmatmul.bf16.gmra.mxu0 %v757
  %v1926 = vpop.f32.mrf.mxu0
  %v1927 = vadd.f32 %v1878, %v1926
  %v1928 = vpop.f32.mrf.mxu0
  %v1929 = vadd.f32 %v1880, %v1928
  %1930 = vdwg.mxu0
  %1931 = vmatpush.bf16.msra.mxu0 %v1361
  %1932 = vmatpush.bf16.msra.mxu0 %v1360
  %1933 = vmatpush.bf16.msra.mxu0 %v1359
  %1934 = vmatpush.bf16.msra.mxu0 %v1358
  %1935 = vmatpush.bf16.msra.mxu0 %v1357
  %1936 = vmatpush.bf16.msra.mxu0 %v1356
  %1937 = vmatpush.bf16.msra.mxu0 %v1355
  %1938 = vmatpush.bf16.msra.mxu0 %v1354
  %1939 = vmatmul.bf16.gmra.mxu0 %v667
  %v1940 = vpop.f32.mrf.mxu0
  %v1941 = vadd.f32 %v1892, %v1940
  %v1942 = vpop.f32.mrf.mxu0
  %v1943 = vadd.f32 %v1894, %v1942
  %1944 = vmatmul.bf16.gmra.mxu0 %v680
  %v1945 = vpop.f32.mrf.mxu0
  %v1946 = vadd.f32 %v1897, %v1945
  %v1947 = vpop.f32.mrf.mxu0
  %v1948 = vadd.f32 %v1899, %v1947
  %1949 = vmatmul.bf16.gmra.mxu0 %v693
  %v1950 = vpop.f32.mrf.mxu0
  %v1951 = vadd.f32 %v1902, %v1950
  %v1952 = vpop.f32.mrf.mxu0
  %v1953 = vadd.f32 %v1904, %v1952
  %1954 = vmatmul.bf16.gmra.mxu0 %v706
  %v1955 = vpop.f32.mrf.mxu0
  %v1956 = vadd.f32 %v1907, %v1955
  %v1957 = vpop.f32.mrf.mxu0
  %v1958 = vadd.f32 %v1909, %v1957
  %1959 = vmatmul.bf16.gmra.mxu0 %v719
  %v1960 = vpop.f32.mrf.mxu0
  %v1961 = vadd.f32 %v1912, %v1960
  %v1962 = vpop.f32.mrf.mxu0
  %v1963 = vadd.f32 %v1914, %v1962
  %1964 = vmatmul.bf16.gmra.mxu0 %v732
  %v1965 = vpop.f32.mrf.mxu0
  %v1966 = vadd.f32 %v1917, %v1965
  %v1967 = vpop.f32.mrf.mxu0
  %v1968 = vadd.f32 %v1919, %v1967
  %1969 = vmatmul.bf16.gmra.mxu0 %v745
  %v1970 = vpop.f32.mrf.mxu0
  %v1971 = vadd.f32 %v1922, %v1970
  %v1972 = vpop.f32.mrf.mxu0
  %v1973 = vadd.f32 %v1924, %v1972
  %1974 = vmatmul.bf16.gmra.mxu0 %v758
  %v1975 = vpop.f32.mrf.mxu0
  %v1976 = vadd.f32 %v1927, %v1975
  %v1977 = vpop.f32.mrf.mxu0
  %v1978 = vadd.f32 %v1929, %v1977
  %1979 = vdwg.mxu0
  %1980 = vmatpush.bf16.msra.mxu0 %v1369
  %1981 = vmatpush.bf16.msra.mxu0 %v1368
  %1982 = vmatpush.bf16.msra.mxu0 %v1367
  %1983 = vmatpush.bf16.msra.mxu0 %v1366
  %1984 = vmatpush.bf16.msra.mxu0 %v1365
  %1985 = vmatpush.bf16.msra.mxu0 %v1364
  %1986 = vmatpush.bf16.msra.mxu0 %v1363
  %1987 = vmatpush.bf16.msra.mxu0 %v1362
  %1988 = vmatmul.bf16.gmra.mxu0 %v668
  %v1989 = vpop.f32.mrf.mxu0
  %v1990 = vadd.f32 %v1941, %v1989
  %v1991 = vpop.f32.mrf.mxu0
  %v1992 = vadd.f32 %v1943, %v1991
  %1993 = vmatmul.bf16.gmra.mxu0 %v681
  %v1994 = vpop.f32.mrf.mxu0
  %v1995 = vadd.f32 %v1946, %v1994
  %v1996 = vpop.f32.mrf.mxu0
  %v1997 = vadd.f32 %v1948, %v1996
  %1998 = vmatmul.bf16.gmra.mxu0 %v694
  %v1999 = vpop.f32.mrf.mxu0
  %v2000 = vadd.f32 %v1951, %v1999
  %v2001 = vpop.f32.mrf.mxu0
  %v2002 = vadd.f32 %v1953, %v2001
  %2003 = vmatmul.bf16.gmra.mxu0 %v707
  %v2004 = vpop.f32.mrf.mxu0
  %v2005 = vadd.f32 %v1956, %v2004
  %v2006 = vpop.f32.mrf.mxu0
  %v2007 = vadd.f32 %v1958, %v2006
  %2008 = vmatmul.bf16.gmra.mxu0 %v720
  %v2009 = vpop.f32.mrf.mxu0
  %v2010 = vadd.f32 %v1961, %v2009
  %v2011 = vpop.f32.mrf.mxu0
  %v2012 = vadd.f32 %v1963, %v2011
  %2013 = vmatmul.bf16.gmra.mxu0 %v733
  %v2014 = vpop.f32.mrf.mxu0
  %v2015 = vadd.f32 %v1966, %v2014
  %v2016 = vpop.f32.mrf.mxu0
  %v2017 = vadd.f32 %v1968, %v2016
  %2018 = vmatmul.bf16.gmra.mxu0 %v746
  %v2019 = vpop.f32.mrf.mxu0
  %v2020 = vadd.f32 %v1971, %v2019
  %v2021 = vpop.f32.mrf.mxu0
  %v2022 = vadd.f32 %v1973, %v2021
  %2023 = vmatmul.bf16.gmra.mxu0 %v759
  %v2024 = vpop.f32.mrf.mxu0
  %v2025 = vadd.f32 %v1976, %v2024
  %v2026 = vpop.f32.mrf.mxu0
  %v2027 = vadd.f32 %v1978, %v2026
  %2028 = vdwg.mxu0
  %2029 = vmatpush.bf16.msra.mxu0 %v1377
  %2030 = vmatpush.bf16.msra.mxu0 %v1376
  %2031 = vmatpush.bf16.msra.mxu0 %v1375
  %2032 = vmatpush.bf16.msra.mxu0 %v1374
  %2033 = vmatpush.bf16.msra.mxu0 %v1373
  %2034 = vmatpush.bf16.msra.mxu0 %v1372
  %2035 = vmatpush.bf16.msra.mxu0 %v1371
  %2036 = vmatpush.bf16.msra.mxu0 %v1370
  %2037 = vmatmul.bf16.gmra.mxu0 %v669
  %v2038 = vpop.f32.mrf.mxu0
  %v2039 = vadd.f32 %v1990, %v2038
  %v2040 = vpop.f32.mrf.mxu0
  %v2041 = vadd.f32 %v1992, %v2040
  %2042 = vmatmul.bf16.gmra.mxu0 %v682
  %v2043 = vpop.f32.mrf.mxu0
  %v2044 = vadd.f32 %v1995, %v2043
  %v2045 = vpop.f32.mrf.mxu0
  %v2046 = vadd.f32 %v1997, %v2045
  %2047 = vmatmul.bf16.gmra.mxu0 %v695
  %v2048 = vpop.f32.mrf.mxu0
  %v2049 = vadd.f32 %v2000, %v2048
  %v2050 = vpop.f32.mrf.mxu0
  %v2051 = vadd.f32 %v2002, %v2050
  %2052 = vmatmul.bf16.gmra.mxu0 %v708
  %v2053 = vpop.f32.mrf.mxu0
  %v2054 = vadd.f32 %v2005, %v2053
  %v2055 = vpop.f32.mrf.mxu0
  %v2056 = vadd.f32 %v2007, %v2055
  %2057 = vmatmul.bf16.gmra.mxu0 %v721
  %v2058 = vpop.f32.mrf.mxu0
  %v2059 = vadd.f32 %v2010, %v2058
  %v2060 = vpop.f32.mrf.mxu0
  %v2061 = vadd.f32 %v2012, %v2060
  %2062 = vmatmul.bf16.gmra.mxu0 %v734
  %v2063 = vpop.f32.mrf.mxu0
  %v2064 = vadd.f32 %v2015, %v2063
  %v2065 = vpop.f32.mrf.mxu0
  %v2066 = vadd.f32 %v2017, %v2065
  %2067 = vmatmul.bf16.gmra.mxu0 %v747
  %v2068 = vpop.f32.mrf.mxu0
  %v2069 = vadd.f32 %v2020, %v2068
  %v2070 = vpop.f32.mrf.mxu0
  %v2071 = vadd.f32 %v2022, %v2070
  %2072 = vmatmul.bf16.gmra.mxu0 %v760
  %v2073 = vpop.f32.mrf.mxu0
  %v2074 = vadd.f32 %v2025, %v2073
  %v2075 = vpop.f32.mrf.mxu0
  %v2076 = vadd.f32 %v2027, %v2075
  %2077 = vdwg.mxu0
  %2078 = vmatpush.bf16.msra.mxu0 %v1385
  %2079 = vmatpush.bf16.msra.mxu0 %v1384
  %2080 = vmatpush.bf16.msra.mxu0 %v1383
  %2081 = vmatpush.bf16.msra.mxu0 %v1382
  %2082 = vmatpush.bf16.msra.mxu0 %v1381
  %2083 = vmatpush.bf16.msra.mxu0 %v1380
  %2084 = vmatpush.bf16.msra.mxu0 %v1379
  %2085 = vmatpush.bf16.msra.mxu0 %v1378
  %2086 = vmatmul.bf16.gmra.mxu0 %v670
  %v2087 = vpop.f32.mrf.mxu0
  %v2088 = vadd.f32 %v2039, %v2087
  %v2089 = vpop.f32.mrf.mxu0
  %v2090 = vadd.f32 %v2041, %v2089
  %2091 = vmatmul.bf16.gmra.mxu0 %v683
  %v2092 = vpop.f32.mrf.mxu0
  %v2093 = vadd.f32 %v2044, %v2092
  %v2094 = vpop.f32.mrf.mxu0
  %v2095 = vadd.f32 %v2046, %v2094
  %2096 = vmatmul.bf16.gmra.mxu0 %v696
  %v2097 = vpop.f32.mrf.mxu0
  %v2098 = vadd.f32 %v2049, %v2097
  %v2099 = vpop.f32.mrf.mxu0
  %v2100 = vadd.f32 %v2051, %v2099
  %2101 = vmatmul.bf16.gmra.mxu0 %v709
  %v2102 = vpop.f32.mrf.mxu0
  %v2103 = vadd.f32 %v2054, %v2102
  %v2104 = vpop.f32.mrf.mxu0
  %v2105 = vadd.f32 %v2056, %v2104
  %2106 = vmatmul.bf16.gmra.mxu0 %v722
  %v2107 = vpop.f32.mrf.mxu0
  %v2108 = vadd.f32 %v2059, %v2107
  %v2109 = vpop.f32.mrf.mxu0
  %v2110 = vadd.f32 %v2061, %v2109
  %2111 = vmatmul.bf16.gmra.mxu0 %v735
  %v2112 = vpop.f32.mrf.mxu0
  %v2113 = vadd.f32 %v2064, %v2112
  %v2114 = vpop.f32.mrf.mxu0
  %v2115 = vadd.f32 %v2066, %v2114
  %2116 = vmatmul.bf16.gmra.mxu0 %v748
  %v2117 = vpop.f32.mrf.mxu0
  %v2118 = vadd.f32 %v2069, %v2117
  %v2119 = vpop.f32.mrf.mxu0
  %v2120 = vadd.f32 %v2071, %v2119
  %2121 = vmatmul.bf16.gmra.mxu0 %v761
  %v2122 = vpop.f32.mrf.mxu0
  %v2123 = vadd.f32 %v2074, %v2122
  %v2124 = vpop.f32.mrf.mxu0
  %v2125 = vadd.f32 %v2076, %v2124
  %2126 = vdwg.mxu0
  %v2127 = vmax.f32 %v2088, 0.0
  %v2128 = vmax.f32 %v2090, 0.0
  %v2129 = vmax.f32 %v2093, 0.0
  %v2130 = vmax.f32 %v2095, 0.0
  %v2131 = vmax.f32 %v2098, 0.0
  %v2132 = vmax.f32 %v2100, 0.0
  %v2133 = vmax.f32 %v2103, 0.0
  %v2134 = vmax.f32 %v2105, 0.0
  %v2135 = vmax.f32 %v2108, 0.0
  %v2136 = vmax.f32 %v2110, 0.0
  %v2137 = vmax.f32 %v2113, 0.0
  %v2138 = vmax.f32 %v2115, 0.0
  %v2139 = vmax.f32 %v2118, 0.0
  %v2140 = vmax.f32 %v2120, 0.0
  %v2141 = vmax.f32 %v2123, 0.0
  %v2142 = vmax.f32 %v2125, 0.0
  %v2143 = vpack.c.bf16 %v2127, %v2127
  %v2144 = vpack.c.bf16 %v2128, %v2128
  %v2145 = vpack.c.bf16 %v2129, %v2129
  %v2146 = vpack.c.bf16 %v2130, %v2130
  %v2147 = vpack.c.bf16 %v2131, %v2131
  %v2148 = vpack.c.bf16 %v2132, %v2132
  %v2149 = vpack.c.bf16 %v2133, %v2133
  %v2150 = vpack.c.bf16 %v2134, %v2134
  %v2151 = vpack.c.bf16 %v2135, %v2135
  %v2152 = vpack.c.bf16 %v2136, %v2136
  %v2153 = vpack.c.bf16 %v2137, %v2137
  %v2154 = vpack.c.bf16 %v2138, %v2138
  %v2155 = vpack.c.bf16 %v2139, %v2139
  %v2156 = vpack.c.bf16 %v2140, %v2140
  %v2157 = vpack.c.bf16 %v2141, %v2141
  %v2158 = vpack.c.bf16 %v2142, %v2142
  %2159 = vst [vmem:[%s3] sm:$0xf] %v2143
  %2160 = vst [vmem:[%s3 + $0x4] sm:$0xf] %v2144
  %2161 = vst [vmem:[%s3 + $0x8] sm:$0xf] %v2145
  %2162 = vst [vmem:[%s3 + $0xc] sm:$0xf] %v2146
  %2163 = vst [vmem:[%s3 + $0x10] sm:$0xf] %v2147
  %2164 = vst [vmem:[%s3 + $0x14] sm:$0xf] %v2148
  %2165 = vst [vmem:[%s3 + $0x18] sm:$0xf] %v2149
  %2166 = vst [vmem:[%s3 + $0x1c] sm:$0xf] %v2150
  %2167 = vst [vmem:[%s3 + $0x20] sm:$0xf] %v2151
  %2168 = vst [vmem:[%s3 + $0x24] sm:$0xf] %v2152
  %2169 = vst [vmem:[%s3 + $0x28] sm:$0xf] %v2153
  %2170 = vst [vmem:[%s3 + $0x2c] sm:$0xf] %v2154
  %2171 = vst [vmem:[%s3 + $0x30] sm:$0xf] %v2155
  %2172 = vst [vmem:[%s3 + $0x34] sm:$0xf] %v2156
  %2173 = vst [vmem:[%s3 + $0x38] sm:$0xf] %v2157
  %2174 = vst [vmem:[%s3 + $0x3c] sm:$0xf] %v2158
  // Predicated region
  $region14: #{dtn_forward.5} parent=0 // pred_check
    _
  $region15: #{dtn_forward.5} parent=0 // pred_check_branch
    %2176 = sbr.rel (0) target = $region17
  $region16: #{dtn_forward.5} parent=0 // pred_region
    _
  $region17: #{dtn_forward.5} parent=0 // pred_fallthru
    _
  // Predicated region
  $region18: #{dtn_forward.5} parent=0 // pred_check
    _
  $region19: #{dtn_forward.5} parent=0 // pred_check_branch
    %2178 = sbr.rel (0) target = $region21
  $region20: #{dtn_forward.5} parent=0 // pred_region
    _
  $region21: #{dtn_forward.5} parent=0 // pred_fallthru
    _

// kernel: dtn_forward.6
$region0: #{dtn_forward.6}
  #allocation0 [shape = 'u32[]', space=smem, size = 0x4, offset = 0x4, fixed_abs, tag = 'smem constant byte address 0x4 - core index']
  #allocation1 [shape = 'u32[72,128]{1,0:T(1,128)}', space=vmem, size = 0x9000, scoped, tag = 'internal scratch']
  %s0 = inlined_call_operand.vmem [shape: bf16[32,3200], index: 0, kind: input, shape index: {}]
  %s1 = inlined_call_operand.vmem [shape: bf16[3200,256], index: 1, kind: input, shape index: {}]
  %s2 = inlined_call_operand.vmem [shape: f32[1,256], index: 2, kind: input, shape index: {}]
  %s3 = inlined_call_operand.vmem [shape: bf16[32,256], index: 3, kind: output, shape index: {}]
  %s4 = sld [smem:[#allocation0]]
  $region22: #{dtn_forward.6} parent=0
    _
  %s6 = ssub.s32 1, %s4
  %s7 = scalar_select 0, %s6, %s4
  // Predicated region
  $region2: #{dtn_forward.6} parent=0 // pred_check
    _
  $region3: #{dtn_forward.6} parent=0 // pred_check_branch
    %9 = sbr.rel (0) target = $region5
  $region4: #{dtn_forward.6} parent=0 // pred_region
    _
  $region5: #{dtn_forward.6} parent=0 // pred_fallthru
    _
  // Predicated region
  $region6: #{dtn_forward.6} parent=0 // pred_check
    _
  $region7: #{dtn_forward.6} parent=0 // pred_check_branch
    %11 = sbr.rel (0) target = $region9
  $region8: #{dtn_forward.6} parent=0 // pred_region
    _
  $region9: #{dtn_forward.6} parent=0 // pred_fallthru
    _
  // Predicated region
  $region10: #{dtn_forward.6} parent=0 // pred_check
    _
  $region11: #{dtn_forward.6} parent=0 // pred_check_branch
    %13 = sbr.rel (0) target = $region13
  $region12: #{dtn_forward.6} parent=0 // pred_region
    _
  $region13: #{dtn_forward.6} parent=0 // pred_fallthru
    _
  %v14 = vld [vmem:[%s0] sm:$0xff]
  %v15 = vld [vmem:[%s0 + $0x8] sm:$0xff]
  %v16 = vld [vmem:[%s0 + $0x10] sm:$0xff]
  %v17 = vld [vmem:[%s0 + $0x18] sm:$0xff]
  %v18 = vld [vmem:[%s0 + $0x20] sm:$0xff]
  %v19 = vld [vmem:[%s0 + $0x28] sm:$0xff]
  %v20 = vld [vmem:[%s0 + $0x30] sm:$0xff]
  %v21 = vld [vmem:[%s0 + $0x38] sm:$0xff]
  %v22 = vld [vmem:[%s0 + $0x40] sm:$0xff]
  %v23 = vld [vmem:[%s0 + $0x48] sm:$0xff]
  %v24 = vld [vmem:[%s0 + $0x50] sm:$0xff]
  %v25 = vld [vmem:[%s0 + $0x58] sm:$0xff]
  %v26 = vld [vmem:[%s0 + $0x60] sm:$0xf]
  %v27 = vld [vmem:[%s0 + $0x64] sm:$0xff]
  %v28 = vld [vmem:[%s0 + $0x6c] sm:$0xff]
  %v29 = vld [vmem:[%s0 + $0x74] sm:$0xff]
  %v30 = vld [vmem:[%s0 + $0x7c] sm:$0xff]
  %v31 = vld [vmem:[%s0 + $0x84] sm:$0xff]
  %v32 = vld [vmem:[%s0 + $0x8c] sm:$0xff]
  %v33 = vld [vmem:[%s0 + $0x94] sm:$0xff]
  %v34 = vld [vmem:[%s0 + $0x9c] sm:$0xff]
  %v35 = vld [vmem:[%s0 + $0xa4] sm:$0xff]
  %v36 = vld [vmem:[%s0 + $0xac] sm:$0xff]
  %v37 = vld [vmem:[%s0 + $0xb4] sm:$0xff]
  %v38 = vld [vmem:[%s0 + $0xbc] sm:$0xff]
  %v39 = vld [vmem:[%s0 + $0xc4] sm:$0xf]
  %v40 = vld [vmem:[%s0 + $0xc8] sm:$0xff]
  %v41 = vld [vmem:[%s0 + $0xd0] sm:$0xff]
  %v42 = vld [vmem:[%s0 + $0xd8] sm:$0xff]
  %v43 = vld [vmem:[%s0 + $0xe0] sm:$0xff]
  %v44 = vld [vmem:[%s0 + $0xe8] sm:$0xff]
  %v45 = vld [vmem:[%s0 + $0xf0] sm:$0xff]
  %v46 = vld [vmem:[%s0 + $0xf8] sm:$0xff]
  %v47 = vld [vmem:[%s0 + $0x100] sm:$0xff]
  %v48 = vld [vmem:[%s0 + $0x108] sm:$0xff]
  %v49 = vld [vmem:[%s0 + $0x110] sm:$0xff]
  %v50 = vld [vmem:[%s0 + $0x118] sm:$0xff]
  %v51 = vld [vmem:[%s0 + $0x120] sm:$0xff]
  %v52 = vld [vmem:[%s0 + $0x128] sm:$0xf]
  %v53 = vld [vmem:[%s0 + $0x12c] sm:$0xff]
  %v54 = vld [vmem:[%s0 + $0x134] sm:$0xff]
  %v55 = vld [vmem:[%s0 + $0x13c] sm:$0xff]
  %v56 = vld [vmem:[%s0 + $0x144] sm:$0xff]
  %v57 = vld [vmem:[%s0 + $0x14c] sm:$0xff]
  %v58 = vld [vmem:[%s0 + $0x154] sm:$0xff]
  %v59 = vld [vmem:[%s0 + $0x15c] sm:$0xff]
  %v60 = vld [vmem:[%s0 + $0x164] sm:$0xff]
  %v61 = vld [vmem:[%s0 + $0x16c] sm:$0xff]
  %v62 = vld [vmem:[%s0 + $0x174] sm:$0xff]
  %v63 = vld [vmem:[%s0 + $0x17c] sm:$0xff]
  %v64 = vld [vmem:[%s0 + $0x184] sm:$0xff]
  %v65 = vld [vmem:[%s0 + $0x18c] sm:$0xf]
  %v66 = vld [vmem:[%s1] sm:$0xff]
  %v67 = vld [vmem:[%s1 + $0x8] sm:$0xff]
  %v68 = vld [vmem:[%s1 + $0x10] sm:$0xff]
  %v69 = vld [vmem:[%s1 + $0x18] sm:$0xff]
  %v70 = vld [vmem:[%s1 + $0x20] sm:$0xff]
  %v71 = vld [vmem:[%s1 + $0x28] sm:$0xff]
  %v72 = vld [vmem:[%s1 + $0x30] sm:$0xff]
  %v73 = vld [vmem:[%s1 + $0x38] sm:$0xff]
  %v74 = vld [vmem:[%s1 + $0x40] sm:$0xff]
  %v75 = vld [vmem:[%s1 + $0x48] sm:$0xff]
  %v76 = vld [vmem:[%s1 + $0x50] sm:$0xff]
  %v77 = vld [vmem:[%s1 + $0x58] sm:$0xff]
  %v78 = vld [vmem:[%s1 + $0x60] sm:$0xff]
  %v79 = vld [vmem:[%s1 + $0x68] sm:$0xff]
  %v80 = vld [vmem:[%s1 + $0x70] sm:$0xff]
  %v81 = vld [vmem:[%s1 + $0x78] sm:$0xff]
  %v82 = vld [vmem:[%s1 + $0x80] sm:$0xff]
  %v83 = vld [vmem:[%s1 + $0x88] sm:$0xff]
  %v84 = vld [vmem:[%s1 + $0x90] sm:$0xff]
  %v85 = vld [vmem:[%s1 + $0x98] sm:$0xff]
  %v86 = vld [vmem:[%s1 + $0xa0] sm:$0xff]
  %v87 = vld [vmem:[%s1 + $0xa8] sm:$0xff]
  %v88 = vld [vmem:[%s1 + $0xb0] sm:$0xff]
  %v89 = vld [vmem:[%s1 + $0xb8] sm:$0xff]
  %v90 = vld [vmem:[%s1 + $0xc0] sm:$0xff]
  %v91 = vld [vmem:[%s1 + $0xc8] sm:$0xff]
  %v92 = vld [vmem:[%s1 + $0xd0] sm:$0xff]
  %v93 = vld [vmem:[%s1 + $0xd8] sm:$0xff]
  %v94 = vld [vmem:[%s1 + $0xe0] sm:$0xff]
  %v95 = vld [vmem:[%s1 + $0xe8] sm:$0xff]
  %v96 = vld [vmem:[%s1 + $0xf0] sm:$0xff]
  %v97 = vld [vmem:[%s1 + $0xf8] sm:$0xff]
  %v98 = vld [vmem:[%s1 + $0x100] sm:$0xff]
  %v99 = vld [vmem:[%s1 + $0x108] sm:$0xff]
  %v100 = vld [vmem:[%s1 + $0x110] sm:$0xff]
  %v101 = vld [vmem:[%s1 + $0x118] sm:$0xff]
  %v102 = vld [vmem:[%s1 + $0x120] sm:$0xff]
  %v103 = vld [vmem:[%s1 + $0x128] sm:$0xff]
  %v104 = vld [vmem:[%s1 + $0x130] sm:$0xff]
  %v105 = vld [vmem:[%s1 + $0x138] sm:$0xff]
  %v106 = vld [vmem:[%s1 + $0x140] sm:$0xff]
  %v107 = vld [vmem:[%s1 + $0x148] sm:$0xff]
  %v108 = vld [vmem:[%s1 + $0x150] sm:$0xff]
  %v109 = vld [vmem:[%s1 + $0x158] sm:$0xff]
  %v110 = vld [vmem:[%s1 + $0x160] sm:$0xff]
  %v111 = vld [vmem:[%s1 + $0x168] sm:$0xff]
  %v112 = vld [vmem:[%s1 + $0x170] sm:$0xff]
  %v113 = vld [vmem:[%s1 + $0x178] sm:$0xff]
  %v114 = vld [vmem:[%s1 + $0x180] sm:$0xff]
  %v115 = vld [vmem:[%s1 + $0x188] sm:$0xff]
  %v116 = vld [vmem:[%s1 + $0x190] sm:$0xff]
  %v117 = vld [vmem:[%s1 + $0x198] sm:$0xff]
  %v118 = vld [vmem:[%s1 + $0x1a0] sm:$0xff]
  %v119 = vld [vmem:[%s1 + $0x1a8] sm:$0xff]
  %v120 = vld [vmem:[%s1 + $0x1b0] sm:$0xff]
  %v121 = vld [vmem:[%s1 + $0x1b8] sm:$0xff]
  %v122 = vld [vmem:[%s1 + $0x1c0] sm:$0xff]
  %v123 = vld [vmem:[%s1 + $0x1c8] sm:$0xff]
  %v124 = vld [vmem:[%s1 + $0x1d0] sm:$0xff]
  %v125 = vld [vmem:[%s1 + $0x1d8] sm:$0xff]
  %v126 = vld [vmem:[%s1 + $0x1e0] sm:$0xff]
  %v127 = vld [vmem:[%s1 + $0x1e8] sm:$0xff]
  %v128 = vld [vmem:[%s1 + $0x1f0] sm:$0xff]
  %v129 = vld [vmem:[%s1 + $0x1f8] sm:$0xff]
  %v130 = vld [vmem:[%s1 + $0x200] sm:$0xff]
  %v131 = vld [vmem:[%s1 + $0x208] sm:$0xff]
  %v132 = vld [vmem:[%s1 + $0x210] sm:$0xff]
  %v133 = vld [vmem:[%s1 + $0x218] sm:$0xff]
  %v134 = vld [vmem:[%s1 + $0x220] sm:$0xff]
  %v135 = vld [vmem:[%s1 + $0x228] sm:$0xff]
  %v136 = vld [vmem:[%s1 + $0x230] sm:$0xff]
  %v137 = vld [vmem:[%s1 + $0x238] sm:$0xff]
  %v138 = vld [vmem:[%s1 + $0x240] sm:$0xff]
  %v139 = vld [vmem:[%s1 + $0x248] sm:$0xff]
  %v140 = vld [vmem:[%s1 + $0x250] sm:$0xff]
  %v141 = vld [vmem:[%s1 + $0x258] sm:$0xff]
  %v142 = vld [vmem:[%s1 + $0x260] sm:$0xff]
  %v143 = vld [vmem:[%s1 + $0x268] sm:$0xff]
  %v144 = vld [vmem:[%s1 + $0x270] sm:$0xff]
  %v145 = vld [vmem:[%s1 + $0x278] sm:$0xff]
  %v146 = vld [vmem:[%s1 + $0x280] sm:$0xff]
  %v147 = vld [vmem:[%s1 + $0x288] sm:$0xff]
  %v148 = vld [vmem:[%s1 + $0x290] sm:$0xff]
  %v149 = vld [vmem:[%s1 + $0x298] sm:$0xff]
  %v150 = vld [vmem:[%s1 + $0x2a0] sm:$0xff]
  %v151 = vld [vmem:[%s1 + $0x2a8] sm:$0xff]
  %v152 = vld [vmem:[%s1 + $0x2b0] sm:$0xff]
  %v153 = vld [vmem:[%s1 + $0x2b8] sm:$0xff]
  %v154 = vld [vmem:[%s1 + $0x2c0] sm:$0xff]
  %v155 = vld [vmem:[%s1 + $0x2c8] sm:$0xff]
  %v156 = vld [vmem:[%s1 + $0x2d0] sm:$0xff]
  %v157 = vld [vmem:[%s1 + $0x2d8] sm:$0xff]
  %v158 = vld [vmem:[%s1 + $0x2e0] sm:$0xff]
  %v159 = vld [vmem:[%s1 + $0x2e8] sm:$0xff]
  %v160 = vld [vmem:[%s1 + $0x2f0] sm:$0xff]
  %v161 = vld [vmem:[%s1 + $0x2f8] sm:$0xff]
  %v162 = vld [vmem:[%s1 + $0x300] sm:$0xff]
  %v163 = vld [vmem:[%s1 + $0x308] sm:$0xff]
  %v164 = vld [vmem:[%s1 + $0x310] sm:$0xff]
  %v165 = vld [vmem:[%s1 + $0x318] sm:$0xff]
  %v166 = vld [vmem:[%s1 + $0x320] sm:$0xff]
  %v167 = vld [vmem:[%s1 + $0x328] sm:$0xff]
  %v168 = vld [vmem:[%s1 + $0x330] sm:$0xff]
  %v169 = vld [vmem:[%s1 + $0x338] sm:$0xff]
  %v170 = vld [vmem:[%s1 + $0x340] sm:$0xff]
  %v171 = vld [vmem:[%s1 + $0x348] sm:$0xff]
  %v172 = vld [vmem:[%s1 + $0x350] sm:$0xff]
  %v173 = vld [vmem:[%s1 + $0x358] sm:$0xff]
  %v174 = vld [vmem:[%s1 + $0x360] sm:$0xff]
  %v175 = vld [vmem:[%s1 + $0x368] sm:$0xff]
  %v176 = vld [vmem:[%s1 + $0x370] sm:$0xff]
  %v177 = vld [vmem:[%s1 + $0x378] sm:$0xff]
  %v178 = vld [vmem:[%s1 + $0x380] sm:$0xff]
  %v179 = vld [vmem:[%s1 + $0x388] sm:$0xff]
  %v180 = vld [vmem:[%s1 + $0x390] sm:$0xff]
  %v181 = vld [vmem:[%s1 + $0x398] sm:$0xff]
  %v182 = vld [vmem:[%s1 + $0x3a0] sm:$0xff]
  %v183 = vld [vmem:[%s1 + $0x3a8] sm:$0xff]
  %v184 = vld [vmem:[%s1 + $0x3b0] sm:$0xff]
  %v185 = vld [vmem:[%s1 + $0x3b8] sm:$0xff]
  %v186 = vld [vmem:[%s1 + $0x3c0] sm:$0xff]
  %v187 = vld [vmem:[%s1 + $0x3c8] sm:$0xff]
  %v188 = vld [vmem:[%s1 + $0x3d0] sm:$0xff]
  %v189 = vld [vmem:[%s1 + $0x3d8] sm:$0xff]
  %v190 = vld [vmem:[%s1 + $0x3e0] sm:$0xff]
  %v191 = vld [vmem:[%s1 + $0x3e8] sm:$0xff]
  %v192 = vld [vmem:[%s1 + $0x3f0] sm:$0xff]
  %v193 = vld [vmem:[%s1 + $0x3f8] sm:$0xff]
  %v194 = vld [vmem:[%s1 + $0x400] sm:$0xff]
  %v195 = vld [vmem:[%s1 + $0x408] sm:$0xff]
  %v196 = vld [vmem:[%s1 + $0x410] sm:$0xff]
  %v197 = vld [vmem:[%s1 + $0x418] sm:$0xff]
  %v198 = vld [vmem:[%s1 + $0x420] sm:$0xff]
  %v199 = vld [vmem:[%s1 + $0x428] sm:$0xff]
  %v200 = vld [vmem:[%s1 + $0x430] sm:$0xff]
  %v201 = vld [vmem:[%s1 + $0x438] sm:$0xff]
  %v202 = vld [vmem:[%s1 + $0x440] sm:$0xff]
  %v203 = vld [vmem:[%s1 + $0x448] sm:$0xff]
  %v204 = vld [vmem:[%s1 + $0x450] sm:$0xff]
  %v205 = vld [vmem:[%s1 + $0x458] sm:$0xff]
  %v206 = vld [vmem:[%s1 + $0x460] sm:$0xff]
  %v207 = vld [vmem:[%s1 + $0x468] sm:$0xff]
  %v208 = vld [vmem:[%s1 + $0x470] sm:$0xff]
  %v209 = vld [vmem:[%s1 + $0x478] sm:$0xff]
  %v210 = vld [vmem:[%s1 + $0x480] sm:$0xff]
  %v211 = vld [vmem:[%s1 + $0x488] sm:$0xff]
  %v212 = vld [vmem:[%s1 + $0x490] sm:$0xff]
  %v213 = vld [vmem:[%s1 + $0x498] sm:$0xff]
  %v214 = vld [vmem:[%s1 + $0x4a0] sm:$0xff]
  %v215 = vld [vmem:[%s1 + $0x4a8] sm:$0xff]
  %v216 = vld [vmem:[%s1 + $0x4b0] sm:$0xff]
  %v217 = vld [vmem:[%s1 + $0x4b8] sm:$0xff]
  %v218 = vld [vmem:[%s1 + $0x4c0] sm:$0xff]
  %v219 = vld [vmem:[%s1 + $0x4c8] sm:$0xff]
  %v220 = vld [vmem:[%s1 + $0x4d0] sm:$0xff]
  %v221 = vld [vmem:[%s1 + $0x4d8] sm:$0xff]
  %v222 = vld [vmem:[%s1 + $0x4e0] sm:$0xff]
  %v223 = vld [vmem:[%s1 + $0x4e8] sm:$0xff]
  %v224 = vld [vmem:[%s1 + $0x4f0] sm:$0xff]
  %v225 = vld [vmem:[%s1 + $0x4f8] sm:$0xff]
  %v226 = vld [vmem:[%s1 + $0x500] sm:$0xff]
  %v227 = vld [vmem:[%s1 + $0x508] sm:$0xff]
  %v228 = vld [vmem:[%s1 + $0x510] sm:$0xff]
  %v229 = vld [vmem:[%s1 + $0x518] sm:$0xff]
  %v230 = vld [vmem:[%s1 + $0x520] sm:$0xff]
  %v231 = vld [vmem:[%s1 + $0x528] sm:$0xff]
  %v232 = vld [vmem:[%s1 + $0x530] sm:$0xff]
  %v233 = vld [vmem:[%s1 + $0x538] sm:$0xff]
  %v234 = vld [vmem:[%s1 + $0x540] sm:$0xff]
  %v235 = vld [vmem:[%s1 + $0x548] sm:$0xff]
  %v236 = vld [vmem:[%s1 + $0x550] sm:$0xff]
  %v237 = vld [vmem:[%s1 + $0x558] sm:$0xff]
  %v238 = vld [vmem:[%s1 + $0x560] sm:$0xff]
  %v239 = vld [vmem:[%s1 + $0x568] sm:$0xff]
  %v240 = vld [vmem:[%s1 + $0x570] sm:$0xff]
  %v241 = vld [vmem:[%s1 + $0x578] sm:$0xff]
  %v242 = vld [vmem:[%s1 + $0x580] sm:$0xff]
  %v243 = vld [vmem:[%s1 + $0x588] sm:$0xff]
  %v244 = vld [vmem:[%s1 + $0x590] sm:$0xff]
  %v245 = vld [vmem:[%s1 + $0x598] sm:$0xff]
  %v246 = vld [vmem:[%s1 + $0x5a0] sm:$0xff]
  %v247 = vld [vmem:[%s1 + $0x5a8] sm:$0xff]
  %v248 = vld [vmem:[%s1 + $0x5b0] sm:$0xff]
  %v249 = vld [vmem:[%s1 + $0x5b8] sm:$0xff]
  %v250 = vld [vmem:[%s1 + $0x5c0] sm:$0xff]
  %v251 = vld [vmem:[%s1 + $0x5c8] sm:$0xff]
  %v252 = vld [vmem:[%s1 + $0x5d0] sm:$0xff]
  %v253 = vld [vmem:[%s1 + $0x5d8] sm:$0xff]
  %v254 = vld [vmem:[%s1 + $0x5e0] sm:$0xff]
  %v255 = vld [vmem:[%s1 + $0x5e8] sm:$0xff]
  %v256 = vld [vmem:[%s1 + $0x5f0] sm:$0xff]
  %v257 = vld [vmem:[%s1 + $0x5f8] sm:$0xff]
  %v258 = vld [vmem:[%s1 + $0x600] sm:$0xff]
  %v259 = vld [vmem:[%s1 + $0x608] sm:$0xff]
  %v260 = vld [vmem:[%s1 + $0x610] sm:$0xff]
  %v261 = vld [vmem:[%s1 + $0x618] sm:$0xff]
  %v262 = vld [vmem:[%s1 + $0x620] sm:$0xff]
  %v263 = vld [vmem:[%s1 + $0x628] sm:$0xff]
  %v264 = vld [vmem:[%s1 + $0x630] sm:$0xff]
  %v265 = vld [vmem:[%s1 + $0x638] sm:$0xff]
  %v266 = vld [vmem:[%s1 + $0x640] sm:$0xff]
  %v267 = vld [vmem:[%s1 + $0x648] sm:$0xff]
  %v268 = vld [vmem:[%s1 + $0x650] sm:$0xff]
  %v269 = vld [vmem:[%s1 + $0x658] sm:$0xff]
  %v270 = vld [vmem:[%s1 + $0x660] sm:$0xff]
  %v271 = vld [vmem:[%s1 + $0x668] sm:$0xff]
  %v272 = vld [vmem:[%s1 + $0x670] sm:$0xff]
  %v273 = vld [vmem:[%s1 + $0x678] sm:$0xff]
  %v274 = vld [vmem:[%s1 + $0x680] sm:$0xff]
  %v275 = vld [vmem:[%s1 + $0x688] sm:$0xff]
  %v276 = vld [vmem:[%s1 + $0x690] sm:$0xff]
  %v277 = vld [vmem:[%s1 + $0x698] sm:$0xff]
  %v278 = vld [vmem:[%s1 + $0x6a0] sm:$0xff]
  %v279 = vld [vmem:[%s1 + $0x6a8] sm:$0xff]
  %v280 = vld [vmem:[%s1 + $0x6b0] sm:$0xff]
  %v281 = vld [vmem:[%s1 + $0x6b8] sm:$0xff]
  %v282 = vld [vmem:[%s1 + $0x6c0] sm:$0xff]
  %v283 = vld [vmem:[%s1 + $0x6c8] sm:$0xff]
  %v284 = vld [vmem:[%s1 + $0x6d0] sm:$0xff]
  %v285 = vld [vmem:[%s1 + $0x6d8] sm:$0xff]
  %v286 = vld [vmem:[%s1 + $0x6e0] sm:$0xff]
  %v287 = vld [vmem:[%s1 + $0x6e8] sm:$0xff]
  %v288 = vld [vmem:[%s1 + $0x6f0] sm:$0xff]
  %v289 = vld [vmem:[%s1 + $0x6f8] sm:$0xff]
  %v290 = vld [vmem:[%s1 + $0x700] sm:$0xff]
  %v291 = vld [vmem:[%s1 + $0x708] sm:$0xff]
  %v292 = vld [vmem:[%s1 + $0x710] sm:$0xff]
  %v293 = vld [vmem:[%s1 + $0x718] sm:$0xff]
  %v294 = vld [vmem:[%s1 + $0x720] sm:$0xff]
  %v295 = vld [vmem:[%s1 + $0x728] sm:$0xff]
  %v296 = vld [vmem:[%s1 + $0x730] sm:$0xff]
  %v297 = vld [vmem:[%s1 + $0x738] sm:$0xff]
  %v298 = vld [vmem:[%s1 + $0x740] sm:$0xff]
  %v299 = vld [vmem:[%s1 + $0x748] sm:$0xff]
  %v300 = vld [vmem:[%s1 + $0x750] sm:$0xff]
  %v301 = vld [vmem:[%s1 + $0x758] sm:$0xff]
  %v302 = vld [vmem:[%s1 + $0x760] sm:$0xff]
  %v303 = vld [vmem:[%s1 + $0x768] sm:$0xff]
  %v304 = vld [vmem:[%s1 + $0x770] sm:$0xff]
  %v305 = vld [vmem:[%s1 + $0x778] sm:$0xff]
  %v306 = vld [vmem:[%s1 + $0x780] sm:$0xff]
  %v307 = vld [vmem:[%s1 + $0x788] sm:$0xff]
  %v308 = vld [vmem:[%s1 + $0x790] sm:$0xff]
  %v309 = vld [vmem:[%s1 + $0x798] sm:$0xff]
  %v310 = vld [vmem:[%s1 + $0x7a0] sm:$0xff]
  %v311 = vld [vmem:[%s1 + $0x7a8] sm:$0xff]
  %v312 = vld [vmem:[%s1 + $0x7b0] sm:$0xff]
  %v313 = vld [vmem:[%s1 + $0x7b8] sm:$0xff]
  %v314 = vld [vmem:[%s1 + $0x7c0] sm:$0xff]
  %v315 = vld [vmem:[%s1 + $0x7c8] sm:$0xff]
  %v316 = vld [vmem:[%s1 + $0x7d0] sm:$0xff]
  %v317 = vld [vmem:[%s1 + $0x7d8] sm:$0xff]
  %v318 = vld [vmem:[%s1 + $0x7e0] sm:$0xff]
  %v319 = vld [vmem:[%s1 + $0x7e8] sm:$0xff]
  %v320 = vld [vmem:[%s1 + $0x7f0] sm:$0xff]
  %v321 = vld [vmem:[%s1 + $0x7f8] sm:$0xff]
  %v322 = vld [vmem:[%s1 + $0x800] sm:$0xff]
  %v323 = vld [vmem:[%s1 + $0x808] sm:$0xff]
  %v324 = vld [vmem:[%s1 + $0x810] sm:$0xff]
  %v325 = vld [vmem:[%s1 + $0x818] sm:$0xff]
  %v326 = vld [vmem:[%s1 + $0x820] sm:$0xff]
  %v327 = vld [vmem:[%s1 + $0x828] sm:$0xff]
  %v328 = vld [vmem:[%s1 + $0x830] sm:$0xff]
  %v329 = vld [vmem:[%s1 + $0x838] sm:$0xff]
  %v330 = vld [vmem:[%s1 + $0x840] sm:$0xff]
  %v331 = vld [vmem:[%s1 + $0x848] sm:$0xff]
  %v332 = vld [vmem:[%s1 + $0x850] sm:$0xff]
  %v333 = vld [vmem:[%s1 + $0x858] sm:$0xff]
  %v334 = vld [vmem:[%s1 + $0x860] sm:$0xff]
  %v335 = vld [vmem:[%s1 + $0x868] sm:$0xff]
  %v336 = vld [vmem:[%s1 + $0x870] sm:$0xff]
  %v337 = vld [vmem:[%s1 + $0x878] sm:$0xff]
  %v338 = vld [vmem:[%s1 + $0x880] sm:$0xff]
  %v339 = vld [vmem:[%s1 + $0x888] sm:$0xff]
  %v340 = vld [vmem:[%s1 + $0x890] sm:$0xff]
  %v341 = vld [vmem:[%s1 + $0x898] sm:$0xff]
  %v342 = vld [vmem:[%s1 + $0x8a0] sm:$0xff]
  %v343 = vld [vmem:[%s1 + $0x8a8] sm:$0xff]
  %v344 = vld [vmem:[%s1 + $0x8b0] sm:$0xff]
  %v345 = vld [vmem:[%s1 + $0x8b8] sm:$0xff]
  %v346 = vld [vmem:[%s1 + $0x8c0] sm:$0xff]
  %v347 = vld [vmem:[%s1 + $0x8c8] sm:$0xff]
  %v348 = vld [vmem:[%s1 + $0x8d0] sm:$0xff]
  %v349 = vld [vmem:[%s1 + $0x8d8] sm:$0xff]
  %v350 = vld [vmem:[%s1 + $0x8e0] sm:$0xff]
  %v351 = vld [vmem:[%s1 + $0x8e8] sm:$0xff]
  %v352 = vld [vmem:[%s1 + $0x8f0] sm:$0xff]
  %v353 = vld [vmem:[%s1 + $0x8f8] sm:$0xff]
  %v354 = vld [vmem:[%s1 + $0x900] sm:$0xff]
  %v355 = vld [vmem:[%s1 + $0x908] sm:$0xff]
  %v356 = vld [vmem:[%s1 + $0x910] sm:$0xff]
  %v357 = vld [vmem:[%s1 + $0x918] sm:$0xff]
  %v358 = vld [vmem:[%s1 + $0x920] sm:$0xff]
  %v359 = vld [vmem:[%s1 + $0x928] sm:$0xff]
  %v360 = vld [vmem:[%s1 + $0x930] sm:$0xff]
  %v361 = vld [vmem:[%s1 + $0x938] sm:$0xff]
  %v362 = vld [vmem:[%s1 + $0x940] sm:$0xff]
  %v363 = vld [vmem:[%s1 + $0x948] sm:$0xff]
  %v364 = vld [vmem:[%s1 + $0x950] sm:$0xff]
  %v365 = vld [vmem:[%s1 + $0x958] sm:$0xff]
  %v366 = vld [vmem:[%s1 + $0x960] sm:$0xff]
  %v367 = vld [vmem:[%s1 + $0x968] sm:$0xff]
  %v368 = vld [vmem:[%s1 + $0x970] sm:$0xff]
  %v369 = vld [vmem:[%s1 + $0x978] sm:$0xff]
  %v370 = vld [vmem:[%s1 + $0x980] sm:$0xff]
  %v371 = vld [vmem:[%s1 + $0x988] sm:$0xff]
  %v372 = vld [vmem:[%s1 + $0x990] sm:$0xff]
  %v373 = vld [vmem:[%s1 + $0x998] sm:$0xff]
  %v374 = vld [vmem:[%s1 + $0x9a0] sm:$0xff]
  %v375 = vld [vmem:[%s1 + $0x9a8] sm:$0xff]
  %v376 = vld [vmem:[%s1 + $0x9b0] sm:$0xff]
  %v377 = vld [vmem:[%s1 + $0x9b8] sm:$0xff]
  %v378 = vld [vmem:[%s1 + $0x9c0] sm:$0xff]
  %v379 = vld [vmem:[%s1 + $0x9c8] sm:$0xff]
  %v380 = vld [vmem:[%s1 + $0x9d0] sm:$0xff]
  %v381 = vld [vmem:[%s1 + $0x9d8] sm:$0xff]
  %v382 = vld [vmem:[%s1 + $0x9e0] sm:$0xff]
  %v383 = vld [vmem:[%s1 + $0x9e8] sm:$0xff]
  %v384 = vld [vmem:[%s1 + $0x9f0] sm:$0xff]
  %v385 = vld [vmem:[%s1 + $0x9f8] sm:$0xff]
  %v386 = vld [vmem:[%s1 + $0xa00] sm:$0xff]
  %v387 = vld [vmem:[%s1 + $0xa08] sm:$0xff]
  %v388 = vld [vmem:[%s1 + $0xa10] sm:$0xff]
  %v389 = vld [vmem:[%s1 + $0xa18] sm:$0xff]
  %v390 = vld [vmem:[%s1 + $0xa20] sm:$0xff]
  %v391 = vld [vmem:[%s1 + $0xa28] sm:$0xff]
  %v392 = vld [vmem:[%s1 + $0xa30] sm:$0xff]
  %v393 = vld [vmem:[%s1 + $0xa38] sm:$0xff]
  %v394 = vld [vmem:[%s1 + $0xa40] sm:$0xff]
  %v395 = vld [vmem:[%s1 + $0xa48] sm:$0xff]
  %v396 = vld [vmem:[%s1 + $0xa50] sm:$0xff]
  %v397 = vld [vmem:[%s1 + $0xa58] sm:$0xff]
  %v398 = vld [vmem:[%s1 + $0xa60] sm:$0xff]
  %v399 = vld [vmem:[%s1 + $0xa68] sm:$0xff]
  %v400 = vld [vmem:[%s1 + $0xa70] sm:$0xff]
  %v401 = vld [vmem:[%s1 + $0xa78] sm:$0xff]
  %v402 = vld [vmem:[%s1 + $0xa80] sm:$0xff]
  %v403 = vld [vmem:[%s1 + $0xa88] sm:$0xff]
  %v404 = vld [vmem:[%s1 + $0xa90] sm:$0xff]
  %v405 = vld [vmem:[%s1 + $0xa98] sm:$0xff]
  %v406 = vld [vmem:[%s1 + $0xaa0] sm:$0xff]
  %v407 = vld [vmem:[%s1 + $0xaa8] sm:$0xff]
  %v408 = vld [vmem:[%s1 + $0xab0] sm:$0xff]
  %v409 = vld [vmem:[%s1 + $0xab8] sm:$0xff]
  %v410 = vld [vmem:[%s1 + $0xac0] sm:$0xff]
  %v411 = vld [vmem:[%s1 + $0xac8] sm:$0xff]
  %v412 = vld [vmem:[%s1 + $0xad0] sm:$0xff]
  %v413 = vld [vmem:[%s1 + $0xad8] sm:$0xff]
  %v414 = vld [vmem:[%s1 + $0xae0] sm:$0xff]
  %v415 = vld [vmem:[%s1 + $0xae8] sm:$0xff]
  %v416 = vld [vmem:[%s1 + $0xaf0] sm:$0xff]
  %v417 = vld [vmem:[%s1 + $0xaf8] sm:$0xff]
  %v418 = vld [vmem:[%s1 + $0xb00] sm:$0xff]
  %v419 = vld [vmem:[%s1 + $0xb08] sm:$0xff]
  %v420 = vld [vmem:[%s1 + $0xb10] sm:$0xff]
  %v421 = vld [vmem:[%s1 + $0xb18] sm:$0xff]
  %v422 = vld [vmem:[%s1 + $0xb20] sm:$0xff]
  %v423 = vld [vmem:[%s1 + $0xb28] sm:$0xff]
  %v424 = vld [vmem:[%s1 + $0xb30] sm:$0xff]
  %v425 = vld [vmem:[%s1 + $0xb38] sm:$0xff]
  %v426 = vld [vmem:[%s1 + $0xb40] sm:$0xff]
  %v427 = vld [vmem:[%s1 + $0xb48] sm:$0xff]
  %v428 = vld [vmem:[%s1 + $0xb50] sm:$0xff]
  %v429 = vld [vmem:[%s1 + $0xb58] sm:$0xff]
  %v430 = vld [vmem:[%s1 + $0xb60] sm:$0xff]
  %v431 = vld [vmem:[%s1 + $0xb68] sm:$0xff]
  %v432 = vld [vmem:[%s1 + $0xb70] sm:$0xff]
  %v433 = vld [vmem:[%s1 + $0xb78] sm:$0xff]
  %v434 = vld [vmem:[%s1 + $0xb80] sm:$0xff]
  %v435 = vld [vmem:[%s1 + $0xb88] sm:$0xff]
  %v436 = vld [vmem:[%s1 + $0xb90] sm:$0xff]
  %v437 = vld [vmem:[%s1 + $0xb98] sm:$0xff]
  %v438 = vld [vmem:[%s1 + $0xba0] sm:$0xff]
  %v439 = vld [vmem:[%s1 + $0xba8] sm:$0xff]
  %v440 = vld [vmem:[%s1 + $0xbb0] sm:$0xff]
  %v441 = vld [vmem:[%s1 + $0xbb8] sm:$0xff]
  %v442 = vld [vmem:[%s1 + $0xbc0] sm:$0xff]
  %v443 = vld [vmem:[%s1 + $0xbc8] sm:$0xff]
  %v444 = vld [vmem:[%s1 + $0xbd0] sm:$0xff]
  %v445 = vld [vmem:[%s1 + $0xbd8] sm:$0xff]
  %v446 = vld [vmem:[%s1 + $0xbe0] sm:$0xff]
  %v447 = vld [vmem:[%s1 + $0xbe8] sm:$0xff]
  %v448 = vld [vmem:[%s1 + $0xbf0] sm:$0xff]
  %v449 = vld [vmem:[%s1 + $0xbf8] sm:$0xff]
  %v450 = vld [vmem:[%s1 + $0xc00] sm:$0xff]
  %v451 = vld [vmem:[%s1 + $0xc08] sm:$0xff]
  %v452 = vld [vmem:[%s1 + $0xc10] sm:$0xff]
  %v453 = vld [vmem:[%s1 + $0xc18] sm:$0xff]
  %v454 = vld [vmem:[%s1 + $0xc20] sm:$0xff]
  %v455 = vld [vmem:[%s1 + $0xc28] sm:$0xff]
  %v456 = vld [vmem:[%s1 + $0xc30] sm:$0xff]
  %v457 = vld [vmem:[%s1 + $0xc38] sm:$0xff]
  %v458 = vld [vmem:[%s1 + $0xc40] sm:$0xff]
  %v459 = vld [vmem:[%s1 + $0xc48] sm:$0xff]
  %v460 = vld [vmem:[%s1 + $0xc50] sm:$0xff]
  %v461 = vld [vmem:[%s1 + $0xc58] sm:$0xff]
  %v462 = vld [vmem:[%s1 + $0xc60] sm:$0xff]
  %v463 = vld [vmem:[%s1 + $0xc68] sm:$0xff]
  %v464 = vld [vmem:[%s1 + $0xc70] sm:$0xff]
  %v465 = vld [vmem:[%s1 + $0xc78] sm:$0xff]
  %v466 = vld [vmem:[%s2] sm:$0x3]
  %v468 = vperm.slane %v466, 0
  %v469 = vperm.slane %v466, 1
  %v524 = vunpack.c.l.b16 %v14
  %v525 = vunpack.c.h.b16 %v14
  %v526 = vunpack.c.l.b16 %v15
  %v527 = vunpack.c.h.b16 %v15
  %v528 = vunpack.c.l.b16 %v16
  %v529 = vunpack.c.h.b16 %v16
  %v530 = vunpack.c.l.b16 %v17
  %v531 = vunpack.c.h.b16 %v17
  %v532 = vunpack.c.l.b16 %v18
  %v533 = vunpack.c.h.b16 %v18
  %v534 = vunpack.c.l.b16 %v19
  %v535 = vunpack.c.h.b16 %v19
  %v536 = vunpack.c.l.b16 %v20
  %v537 = vunpack.c.h.b16 %v20
  %v538 = vunpack.c.l.b16 %v21
  %v539 = vunpack.c.h.b16 %v21
  %v540 = vunpack.c.l.b16 %v22
  %v541 = vunpack.c.h.b16 %v22
  %v542 = vunpack.c.l.b16 %v23
  %v543 = vunpack.c.h.b16 %v23
  %v544 = vunpack.c.l.b16 %v24
  %v545 = vunpack.c.h.b16 %v24
  %v546 = vunpack.c.l.b16 %v25
  %v547 = vunpack.c.h.b16 %v25
  %v548 = vunpack.c.l.b16 %v26
  %v549 = vunpack.c.l.b16 %v27
  %v550 = vunpack.c.h.b16 %v27
  %v551 = vunpack.c.l.b16 %v28
  %v552 = vunpack.c.h.b16 %v28
  %v553 = vunpack.c.l.b16 %v29
  %v554 = vunpack.c.h.b16 %v29
  %v555 = vunpack.c.l.b16 %v30
  %v556 = vunpack.c.h.b16 %v30
  %v557 = vunpack.c.l.b16 %v31
  %v558 = vunpack.c.h.b16 %v31
  %v559 = vunpack.c.l.b16 %v32
  %v560 = vunpack.c.h.b16 %v32
  %v561 = vunpack.c.l.b16 %v33
  %v562 = vunpack.c.h.b16 %v33
  %v563 = vunpack.c.l.b16 %v34
  %v564 = vunpack.c.h.b16 %v34
  %v565 = vunpack.c.l.b16 %v35
  %v566 = vunpack.c.h.b16 %v35
  %v567 = vunpack.c.l.b16 %v36
  %v568 = vunpack.c.h.b16 %v36
  %v569 = vunpack.c.l.b16 %v37
  %v570 = vunpack.c.h.b16 %v37
  %v571 = vunpack.c.l.b16 %v38
  %v572 = vunpack.c.h.b16 %v38
  %v573 = vunpack.c.l.b16 %v39
  %v574 = vunpack.c.l.b16 %v40
  %v575 = vunpack.c.h.b16 %v40
  %v576 = vunpack.c.l.b16 %v41
  %v577 = vunpack.c.h.b16 %v41
  %v578 = vunpack.c.l.b16 %v42
  %v579 = vunpack.c.h.b16 %v42
  %v580 = vunpack.c.l.b16 %v43
  %v581 = vunpack.c.h.b16 %v43
  %v582 = vunpack.c.l.b16 %v44
  %v583 = vunpack.c.h.b16 %v44
  %v584 = vunpack.c.l.b16 %v45
  %v585 = vunpack.c.h.b16 %v45
  %v586 = vunpack.c.l.b16 %v46
  %v587 = vunpack.c.h.b16 %v46
  %v588 = vunpack.c.l.b16 %v47
  %v589 = vunpack.c.h.b16 %v47
  %v590 = vunpack.c.l.b16 %v48
  %v591 = vunpack.c.h.b16 %v48
  %v592 = vunpack.c.l.b16 %v49
  %v593 = vunpack.c.h.b16 %v49
  %v594 = vunpack.c.l.b16 %v50
  %v595 = vunpack.c.h.b16 %v50
  %v596 = vunpack.c.l.b16 %v51
  %v597 = vunpack.c.h.b16 %v51
  %v598 = vunpack.c.l.b16 %v52
  %v599 = vunpack.c.l.b16 %v53
  %v600 = vunpack.c.h.b16 %v53
  %v601 = vunpack.c.l.b16 %v54
  %v602 = vunpack.c.h.b16 %v54
  %v603 = vunpack.c.l.b16 %v55
  %v604 = vunpack.c.h.b16 %v55
  %v605 = vunpack.c.l.b16 %v56
  %v606 = vunpack.c.h.b16 %v56
  %v607 = vunpack.c.l.b16 %v57
  %v608 = vunpack.c.h.b16 %v57
  %v609 = vunpack.c.l.b16 %v58
  %v610 = vunpack.c.h.b16 %v58
  %v611 = vunpack.c.l.b16 %v59
  %v612 = vunpack.c.h.b16 %v59
  %v613 = vunpack.c.l.b16 %v60
  %v614 = vunpack.c.h.b16 %v60
  %v615 = vunpack.c.l.b16 %v61
  %v616 = vunpack.c.h.b16 %v61
  %v617 = vunpack.c.l.b16 %v62
  %v618 = vunpack.c.h.b16 %v62
  %v619 = vunpack.c.l.b16 %v63
  %v620 = vunpack.c.h.b16 %v63
  %v621 = vunpack.c.l.b16 %v64
  %v622 = vunpack.c.h.b16 %v64
  %v623 = vunpack.c.l.b16 %v65
  %v624 = vpack.c.b16 %v549, %v524
  %v625 = vpack.c.b16 %v550, %v525
  %v626 = vpack.c.b16 %v551, %v526
  %v627 = vpack.c.b16 %v552, %v527
  %v628 = vpack.c.b16 %v553, %v528
  %v629 = vpack.c.b16 %v554, %v529
  %v630 = vpack.c.b16 %v555, %v530
  %v631 = vpack.c.b16 %v556, %v531
  %v632 = vpack.c.b16 %v557, %v532
  %v633 = vpack.c.b16 %v558, %v533
  %v634 = vpack.c.b16 %v559, %v534
  %v635 = vpack.c.b16 %v560, %v535
  %v636 = vpack.c.b16 %v561, %v536
  %v637 = vpack.c.b16 %v562, %v537
  %v638 = vpack.c.b16 %v563, %v538
  %v639 = vpack.c.b16 %v564, %v539
  %v640 = vpack.c.b16 %v565, %v540
  %v641 = vpack.c.b16 %v566, %v541
  %v642 = vpack.c.b16 %v567, %v542
  %v643 = vpack.c.b16 %v568, %v543
  %v644 = vpack.c.b16 %v569, %v544
  %v645 = vpack.c.b16 %v570, %v545
  %v646 = vpack.c.b16 %v571, %v546
  %v647 = vpack.c.b16 %v572, %v547
  %v648 = vpack.c.b16 %v573, %v548
  %v649 = vpack.c.b16 %v599, %v574
  %v650 = vpack.c.b16 %v600, %v575
  %v651 = vpack.c.b16 %v601, %v576
  %v652 = vpack.c.b16 %v602, %v577
  %v653 = vpack.c.b16 %v603, %v578
  %v654 = vpack.c.b16 %v604, %v579
  %v655 = vpack.c.b16 %v605, %v580
  %v656 = vpack.c.b16 %v606, %v581
  %v657 = vpack.c.b16 %v607, %v582
  %v658 = vpack.c.b16 %v608, %v583
  %v659 = vpack.c.b16 %v609, %v584
  %v660 = vpack.c.b16 %v610, %v585
  %v661 = vpack.c.b16 %v611, %v586
  %v662 = vpack.c.b16 %v612, %v587
  %v663 = vpack.c.b16 %v613, %v588
  %v664 = vpack.c.b16 %v614, %v589
  %v665 = vpack.c.b16 %v615, %v590
  %v666 = vpack.c.b16 %v616, %v591
  %v667 = vpack.c.b16 %v617, %v592
  %v668 = vpack.c.b16 %v618, %v593
  %v669 = vpack.c.b16 %v619, %v594
  %v670 = vpack.c.b16 %v620, %v595
  %v671 = vpack.c.b16 %v621, %v596
  %v672 = vpack.c.b16 %v622, %v597
  %v673 = vpack.c.b16 %v623, %v598
  %v1124 = vunpack.c.l.b16 %v66
  %v1125 = vunpack.c.h.b16 %v66
  %v1126 = vunpack.c.l.b16 %v67
  %v1127 = vunpack.c.h.b16 %v67
  %v1128 = vunpack.c.l.b16 %v68
  %v1129 = vunpack.c.h.b16 %v68
  %v1130 = vunpack.c.l.b16 %v69
  %v1131 = vunpack.c.h.b16 %v69
  %v1132 = vunpack.c.l.b16 %v70
  %v1133 = vunpack.c.h.b16 %v70
  %v1134 = vunpack.c.l.b16 %v71
  %v1135 = vunpack.c.h.b16 %v71
  %v1136 = vunpack.c.l.b16 %v72
  %v1137 = vunpack.c.h.b16 %v72
  %v1138 = vunpack.c.l.b16 %v73
  %v1139 = vunpack.c.h.b16 %v73
  %v1140 = vunpack.c.l.b16 %v74
  %v1141 = vunpack.c.h.b16 %v74
  %v1142 = vunpack.c.l.b16 %v75
  %v1143 = vunpack.c.h.b16 %v75
  %v1144 = vunpack.c.l.b16 %v76
  %v1145 = vunpack.c.h.b16 %v76
  %v1146 = vunpack.c.l.b16 %v77
  %v1147 = vunpack.c.h.b16 %v77
  %v1148 = vunpack.c.l.b16 %v78
  %v1149 = vunpack.c.h.b16 %v78
  %v1150 = vunpack.c.l.b16 %v79
  %v1151 = vunpack.c.h.b16 %v79
  %v1152 = vunpack.c.l.b16 %v80
  %v1153 = vunpack.c.h.b16 %v80
  %v1154 = vunpack.c.l.b16 %v81
  %v1155 = vunpack.c.h.b16 %v81
  %v1156 = vunpack.c.l.b16 %v82
  %v1157 = vunpack.c.h.b16 %v82
  %v1158 = vunpack.c.l.b16 %v83
  %v1159 = vunpack.c.h.b16 %v83
  %v1160 = vunpack.c.l.b16 %v84
  %v1161 = vunpack.c.h.b16 %v84
  %v1162 = vunpack.c.l.b16 %v85
  %v1163 = vunpack.c.h.b16 %v85
  %v1164 = vunpack.c.l.b16 %v86
  %v1165 = vunpack.c.h.b16 %v86
  %v1166 = vunpack.c.l.b16 %v87
  %v1167 = vunpack.c.h.b16 %v87
  %v1168 = vunpack.c.l.b16 %v88
  %v1169 = vunpack.c.h.b16 %v88
  %v1170 = vunpack.c.l.b16 %v89
  %v1171 = vunpack.c.h.b16 %v89
  %v1172 = vunpack.c.l.b16 %v90
  %v1173 = vunpack.c.h.b16 %v90
  %v1174 = vunpack.c.l.b16 %v91
  %v1175 = vunpack.c.h.b16 %v91
  %v1176 = vunpack.c.l.b16 %v92
  %v1177 = vunpack.c.h.b16 %v92
  %v1178 = vunpack.c.l.b16 %v93
  %v1179 = vunpack.c.h.b16 %v93
  %v1180 = vunpack.c.l.b16 %v94
  %v1181 = vunpack.c.h.b16 %v94
  %v1182 = vunpack.c.l.b16 %v95
  %v1183 = vunpack.c.h.b16 %v95
  %v1184 = vunpack.c.l.b16 %v96
  %v1185 = vunpack.c.h.b16 %v96
  %v1186 = vunpack.c.l.b16 %v97
  %v1187 = vunpack.c.h.b16 %v97
  %v1188 = vunpack.c.l.b16 %v98
  %v1189 = vunpack.c.h.b16 %v98
  %v1190 = vunpack.c.l.b16 %v99
  %v1191 = vunpack.c.h.b16 %v99
  %v1192 = vunpack.c.l.b16 %v100
  %v1193 = vunpack.c.h.b16 %v100
  %v1194 = vunpack.c.l.b16 %v101
  %v1195 = vunpack.c.h.b16 %v101
  %v1196 = vunpack.c.l.b16 %v102
  %v1197 = vunpack.c.h.b16 %v102
  %v1198 = vunpack.c.l.b16 %v103
  %v1199 = vunpack.c.h.b16 %v103
  %v1200 = vunpack.c.l.b16 %v104
  %v1201 = vunpack.c.h.b16 %v104
  %v1202 = vunpack.c.l.b16 %v105
  %v1203 = vunpack.c.h.b16 %v105
  %v1204 = vunpack.c.l.b16 %v106
  %v1205 = vunpack.c.h.b16 %v106
  %v1206 = vunpack.c.l.b16 %v107
  %v1207 = vunpack.c.h.b16 %v107
  %v1208 = vunpack.c.l.b16 %v108
  %v1209 = vunpack.c.h.b16 %v108
  %v1210 = vunpack.c.l.b16 %v109
  %v1211 = vunpack.c.h.b16 %v109
  %v1212 = vunpack.c.l.b16 %v110
  %v1213 = vunpack.c.h.b16 %v110
  %v1214 = vunpack.c.l.b16 %v111
  %v1215 = vunpack.c.h.b16 %v111
  %v1216 = vunpack.c.l.b16 %v112
  %v1217 = vunpack.c.h.b16 %v112
  %v1218 = vunpack.c.l.b16 %v113
  %v1219 = vunpack.c.h.b16 %v113
  %v1220 = vunpack.c.l.b16 %v114
  %v1221 = vunpack.c.h.b16 %v114
  %v1222 = vunpack.c.l.b16 %v115
  %v1223 = vunpack.c.h.b16 %v115
  %v1224 = vunpack.c.l.b16 %v116
  %v1225 = vunpack.c.h.b16 %v116
  %v1226 = vunpack.c.l.b16 %v117
  %v1227 = vunpack.c.h.b16 %v117
  %v1228 = vunpack.c.l.b16 %v118
  %v1229 = vunpack.c.h.b16 %v118
  %v1230 = vunpack.c.l.b16 %v119
  %v1231 = vunpack.c.h.b16 %v119
  %v1232 = vunpack.c.l.b16 %v120
  %v1233 = vunpack.c.h.b16 %v120
  %v1234 = vunpack.c.l.b16 %v121
  %v1235 = vunpack.c.h.b16 %v121
  %v1236 = vunpack.c.l.b16 %v122
  %v1237 = vunpack.c.h.b16 %v122
  %v1238 = vunpack.c.l.b16 %v123
  %v1239 = vunpack.c.h.b16 %v123
  %v1240 = vunpack.c.l.b16 %v124
  %v1241 = vunpack.c.h.b16 %v124
  %v1242 = vunpack.c.l.b16 %v125
  %v1243 = vunpack.c.h.b16 %v125
  %v1244 = vunpack.c.l.b16 %v126
  %v1245 = vunpack.c.h.b16 %v126
  %v1246 = vunpack.c.l.b16 %v127
  %v1247 = vunpack.c.h.b16 %v127
  %v1248 = vunpack.c.l.b16 %v128
  %v1249 = vunpack.c.h.b16 %v128
  %v1250 = vunpack.c.l.b16 %v129
  %v1251 = vunpack.c.h.b16 %v129
  %v1252 = vunpack.c.l.b16 %v130
  %v1253 = vunpack.c.h.b16 %v130
  %v1254 = vunpack.c.l.b16 %v131
  %v1255 = vunpack.c.h.b16 %v131
  %v1256 = vunpack.c.l.b16 %v132
  %v1257 = vunpack.c.h.b16 %v132
  %v1258 = vunpack.c.l.b16 %v133
  %v1259 = vunpack.c.h.b16 %v133
  %v1260 = vunpack.c.l.b16 %v134
  %v1261 = vunpack.c.h.b16 %v134
  %v1262 = vunpack.c.l.b16 %v135
  %v1263 = vunpack.c.h.b16 %v135
  %v1264 = vunpack.c.l.b16 %v136
  %v1265 = vunpack.c.h.b16 %v136
  %v1266 = vunpack.c.l.b16 %v137
  %v1267 = vunpack.c.h.b16 %v137
  %v1268 = vunpack.c.l.b16 %v138
  %v1269 = vunpack.c.h.b16 %v138
  %v1270 = vunpack.c.l.b16 %v139
  %v1271 = vunpack.c.h.b16 %v139
  %v1272 = vunpack.c.l.b16 %v140
  %v1273 = vunpack.c.h.b16 %v140
  %v1274 = vunpack.c.l.b16 %v141
  %v1275 = vunpack.c.h.b16 %v141
  %v1276 = vunpack.c.l.b16 %v142
  %v1277 = vunpack.c.h.b16 %v142
  %v1278 = vunpack.c.l.b16 %v143
  %v1279 = vunpack.c.h.b16 %v143
  %v1280 = vunpack.c.l.b16 %v144
  %v1281 = vunpack.c.h.b16 %v144
  %v1282 = vunpack.c.l.b16 %v145
  %v1283 = vunpack.c.h.b16 %v145
  %v1284 = vunpack.c.l.b16 %v146
  %v1285 = vunpack.c.h.b16 %v146
  %v1286 = vunpack.c.l.b16 %v147
  %v1287 = vunpack.c.h.b16 %v147
  %v1288 = vunpack.c.l.b16 %v148
  %v1289 = vunpack.c.h.b16 %v148
  %v1290 = vunpack.c.l.b16 %v149
  %v1291 = vunpack.c.h.b16 %v149
  %v1292 = vunpack.c.l.b16 %v150
  %v1293 = vunpack.c.h.b16 %v150
  %v1294 = vunpack.c.l.b16 %v151
  %v1295 = vunpack.c.h.b16 %v151
  %v1296 = vunpack.c.l.b16 %v152
  %v1297 = vunpack.c.h.b16 %v152
  %v1298 = vunpack.c.l.b16 %v153
  %v1299 = vunpack.c.h.b16 %v153
  %v1300 = vunpack.c.l.b16 %v154
  %v1301 = vunpack.c.h.b16 %v154
  %v1302 = vunpack.c.l.b16 %v155
  %v1303 = vunpack.c.h.b16 %v155
  %v1304 = vunpack.c.l.b16 %v156
  %v1305 = vunpack.c.h.b16 %v156
  %v1306 = vunpack.c.l.b16 %v157
  %v1307 = vunpack.c.h.b16 %v157
  %v1308 = vunpack.c.l.b16 %v158
  %v1309 = vunpack.c.h.b16 %v158
  %v1310 = vunpack.c.l.b16 %v159
  %v1311 = vunpack.c.h.b16 %v159
  %v1312 = vunpack.c.l.b16 %v160
  %v1313 = vunpack.c.h.b16 %v160
  %v1314 = vunpack.c.l.b16 %v161
  %v1315 = vunpack.c.h.b16 %v161
  %v1316 = vunpack.c.l.b16 %v162
  %v1317 = vunpack.c.h.b16 %v162
  %v1318 = vunpack.c.l.b16 %v163
  %v1319 = vunpack.c.h.b16 %v163
  %v1320 = vunpack.c.l.b16 %v164
  %v1321 = vunpack.c.h.b16 %v164
  %v1322 = vunpack.c.l.b16 %v165
  %v1323 = vunpack.c.h.b16 %v165
  %v1324 = vunpack.c.l.b16 %v166
  %v1325 = vunpack.c.h.b16 %v166
  %v1326 = vunpack.c.l.b16 %v167
  %v1327 = vunpack.c.h.b16 %v167
  %v1328 = vunpack.c.l.b16 %v168
  %v1329 = vunpack.c.h.b16 %v168
  %v1330 = vunpack.c.l.b16 %v169
  %v1331 = vunpack.c.h.b16 %v169
  %v1332 = vunpack.c.l.b16 %v170
  %v1333 = vunpack.c.h.b16 %v170
  %v1334 = vunpack.c.l.b16 %v171
  %v1335 = vunpack.c.h.b16 %v171
  %v1336 = vunpack.c.l.b16 %v172
  %v1337 = vunpack.c.h.b16 %v172
  %v1338 = vunpack.c.l.b16 %v173
  %v1339 = vunpack.c.h.b16 %v173
  %v1340 = vunpack.c.l.b16 %v174
  %v1341 = vunpack.c.h.b16 %v174
  %v1342 = vunpack.c.l.b16 %v175
  %v1343 = vunpack.c.h.b16 %v175
  %v1344 = vunpack.c.l.b16 %v176
  %v1345 = vunpack.c.h.b16 %v176
  %v1346 = vunpack.c.l.b16 %v177
  %v1347 = vunpack.c.h.b16 %v177
  %v1348 = vunpack.c.l.b16 %v178
  %v1349 = vunpack.c.h.b16 %v178
  %v1350 = vunpack.c.l.b16 %v179
  %v1351 = vunpack.c.h.b16 %v179
  %v1352 = vunpack.c.l.b16 %v180
  %v1353 = vunpack.c.h.b16 %v180
  %v1354 = vunpack.c.l.b16 %v181
  %v1355 = vunpack.c.h.b16 %v181
  %v1356 = vunpack.c.l.b16 %v182
  %v1357 = vunpack.c.h.b16 %v182
  %v1358 = vunpack.c.l.b16 %v183
  %v1359 = vunpack.c.h.b16 %v183
  %v1360 = vunpack.c.l.b16 %v184
  %v1361 = vunpack.c.h.b16 %v184
  %v1362 = vunpack.c.l.b16 %v185
  %v1363 = vunpack.c.h.b16 %v185
  %v1364 = vunpack.c.l.b16 %v186
  %v1365 = vunpack.c.h.b16 %v186
  %v1366 = vunpack.c.l.b16 %v187
  %v1367 = vunpack.c.h.b16 %v187
  %v1368 = vunpack.c.l.b16 %v188
  %v1369 = vunpack.c.h.b16 %v188
  %v1370 = vunpack.c.l.b16 %v189
  %v1371 = vunpack.c.h.b16 %v189
  %v1372 = vunpack.c.l.b16 %v190
  %v1373 = vunpack.c.h.b16 %v190
  %v1374 = vunpack.c.l.b16 %v191
  %v1375 = vunpack.c.h.b16 %v191
  %v1376 = vunpack.c.l.b16 %v192
  %v1377 = vunpack.c.h.b16 %v192
  %v1378 = vunpack.c.l.b16 %v193
  %v1379 = vunpack.c.h.b16 %v193
  %v1380 = vunpack.c.l.b16 %v194
  %v1381 = vunpack.c.h.b16 %v194
  %v1382 = vunpack.c.l.b16 %v195
  %v1383 = vunpack.c.h.b16 %v195
  %v1384 = vunpack.c.l.b16 %v196
  %v1385 = vunpack.c.h.b16 %v196
  %v1386 = vunpack.c.l.b16 %v197
  %v1387 = vunpack.c.h.b16 %v197
  %v1388 = vunpack.c.l.b16 %v198
  %v1389 = vunpack.c.h.b16 %v198
  %v1390 = vunpack.c.l.b16 %v199
  %v1391 = vunpack.c.h.b16 %v199
  %v1392 = vunpack.c.l.b16 %v200
  %v1393 = vunpack.c.h.b16 %v200
  %v1394 = vunpack.c.l.b16 %v201
  %v1395 = vunpack.c.h.b16 %v201
  %v1396 = vunpack.c.l.b16 %v202
  %v1397 = vunpack.c.h.b16 %v202
  %v1398 = vunpack.c.l.b16 %v203
  %v1399 = vunpack.c.h.b16 %v203
  %v1400 = vunpack.c.l.b16 %v204
  %v1401 = vunpack.c.h.b16 %v204
  %v1402 = vunpack.c.l.b16 %v205
  %v1403 = vunpack.c.h.b16 %v205
  %v1404 = vunpack.c.l.b16 %v206
  %v1405 = vunpack.c.h.b16 %v206
  %v1406 = vunpack.c.l.b16 %v207
  %v1407 = vunpack.c.h.b16 %v207
  %v1408 = vunpack.c.l.b16 %v208
  %v1409 = vunpack.c.h.b16 %v208
  %v1410 = vunpack.c.l.b16 %v209
  %v1411 = vunpack.c.h.b16 %v209
  %v1412 = vunpack.c.l.b16 %v210
  %v1413 = vunpack.c.h.b16 %v210
  %v1414 = vunpack.c.l.b16 %v211
  %v1415 = vunpack.c.h.b16 %v211
  %v1416 = vunpack.c.l.b16 %v212
  %v1417 = vunpack.c.h.b16 %v212
  %v1418 = vunpack.c.l.b16 %v213
  %v1419 = vunpack.c.h.b16 %v213
  %v1420 = vunpack.c.l.b16 %v214
  %v1421 = vunpack.c.h.b16 %v214
  %v1422 = vunpack.c.l.b16 %v215
  %v1423 = vunpack.c.h.b16 %v215
  %v1424 = vunpack.c.l.b16 %v216
  %v1425 = vunpack.c.h.b16 %v216
  %v1426 = vunpack.c.l.b16 %v217
  %v1427 = vunpack.c.h.b16 %v217
  %v1428 = vunpack.c.l.b16 %v218
  %v1429 = vunpack.c.h.b16 %v218
  %v1430 = vunpack.c.l.b16 %v219
  %v1431 = vunpack.c.h.b16 %v219
  %v1432 = vunpack.c.l.b16 %v220
  %v1433 = vunpack.c.h.b16 %v220
  %v1434 = vunpack.c.l.b16 %v221
  %v1435 = vunpack.c.h.b16 %v221
  %v1436 = vunpack.c.l.b16 %v222
  %v1437 = vunpack.c.h.b16 %v222
  %v1438 = vunpack.c.l.b16 %v223
  %v1439 = vunpack.c.h.b16 %v223
  %v1440 = vunpack.c.l.b16 %v224
  %v1441 = vunpack.c.h.b16 %v224
  %v1442 = vunpack.c.l.b16 %v225
  %v1443 = vunpack.c.h.b16 %v225
  %v1444 = vunpack.c.l.b16 %v226
  %v1445 = vunpack.c.h.b16 %v226
  %v1446 = vunpack.c.l.b16 %v227
  %v1447 = vunpack.c.h.b16 %v227
  %v1448 = vunpack.c.l.b16 %v228
  %v1449 = vunpack.c.h.b16 %v228
  %v1450 = vunpack.c.l.b16 %v229
  %v1451 = vunpack.c.h.b16 %v229
  %v1452 = vunpack.c.l.b16 %v230
  %v1453 = vunpack.c.h.b16 %v230
  %v1454 = vunpack.c.l.b16 %v231
  %v1455 = vunpack.c.h.b16 %v231
  %v1456 = vunpack.c.l.b16 %v232
  %v1457 = vunpack.c.h.b16 %v232
  %v1458 = vunpack.c.l.b16 %v233
  %v1459 = vunpack.c.h.b16 %v233
  %v1460 = vunpack.c.l.b16 %v234
  %v1461 = vunpack.c.h.b16 %v234
  %v1462 = vunpack.c.l.b16 %v235
  %v1463 = vunpack.c.h.b16 %v235
  %v1464 = vunpack.c.l.b16 %v236
  %v1465 = vunpack.c.h.b16 %v236
  %v1466 = vunpack.c.l.b16 %v237
  %v1467 = vunpack.c.h.b16 %v237
  %v1468 = vunpack.c.l.b16 %v238
  %v1469 = vunpack.c.h.b16 %v238
  %v1470 = vunpack.c.l.b16 %v239
  %v1471 = vunpack.c.h.b16 %v239
  %v1472 = vunpack.c.l.b16 %v240
  %v1473 = vunpack.c.h.b16 %v240
  %v1474 = vunpack.c.l.b16 %v241
  %v1475 = vunpack.c.h.b16 %v241
  %v1476 = vunpack.c.l.b16 %v242
  %v1477 = vunpack.c.h.b16 %v242
  %v1478 = vunpack.c.l.b16 %v243
  %v1479 = vunpack.c.h.b16 %v243
  %v1480 = vunpack.c.l.b16 %v244
  %v1481 = vunpack.c.h.b16 %v244
  %v1482 = vunpack.c.l.b16 %v245
  %v1483 = vunpack.c.h.b16 %v245
  %v1484 = vunpack.c.l.b16 %v246
  %v1485 = vunpack.c.h.b16 %v246
  %v1486 = vunpack.c.l.b16 %v247
  %v1487 = vunpack.c.h.b16 %v247
  %v1488 = vunpack.c.l.b16 %v248
  %v1489 = vunpack.c.h.b16 %v248
  %v1490 = vunpack.c.l.b16 %v249
  %v1491 = vunpack.c.h.b16 %v249
  %v1492 = vunpack.c.l.b16 %v250
  %v1493 = vunpack.c.h.b16 %v250
  %v1494 = vunpack.c.l.b16 %v251
  %v1495 = vunpack.c.h.b16 %v251
  %v1496 = vunpack.c.l.b16 %v252
  %v1497 = vunpack.c.h.b16 %v252
  %v1498 = vunpack.c.l.b16 %v253
  %v1499 = vunpack.c.h.b16 %v253
  %v1500 = vunpack.c.l.b16 %v254
  %v1501 = vunpack.c.h.b16 %v254
  %v1502 = vunpack.c.l.b16 %v255
  %v1503 = vunpack.c.h.b16 %v255
  %v1504 = vunpack.c.l.b16 %v256
  %v1505 = vunpack.c.h.b16 %v256
  %v1506 = vunpack.c.l.b16 %v257
  %v1507 = vunpack.c.h.b16 %v257
  %v1508 = vunpack.c.l.b16 %v258
  %v1509 = vunpack.c.h.b16 %v258
  %v1510 = vunpack.c.l.b16 %v259
  %v1511 = vunpack.c.h.b16 %v259
  %v1512 = vunpack.c.l.b16 %v260
  %v1513 = vunpack.c.h.b16 %v260
  %v1514 = vunpack.c.l.b16 %v261
  %v1515 = vunpack.c.h.b16 %v261
  %v1516 = vunpack.c.l.b16 %v262
  %v1517 = vunpack.c.h.b16 %v262
  %v1518 = vunpack.c.l.b16 %v263
  %v1519 = vunpack.c.h.b16 %v263
  %v1520 = vunpack.c.l.b16 %v264
  %v1521 = vunpack.c.h.b16 %v264
  %v1522 = vunpack.c.l.b16 %v265
  %v1523 = vunpack.c.h.b16 %v265
  %v1524 = vunpack.c.l.b16 %v266
  %v1525 = vunpack.c.h.b16 %v266
  %v1526 = vunpack.c.l.b16 %v267
  %v1527 = vunpack.c.h.b16 %v267
  %v1528 = vunpack.c.l.b16 %v268
  %v1529 = vunpack.c.h.b16 %v268
  %v1530 = vunpack.c.l.b16 %v269
  %v1531 = vunpack.c.h.b16 %v269
  %v1532 = vunpack.c.l.b16 %v270
  %v1533 = vunpack.c.h.b16 %v270
  %v1534 = vunpack.c.l.b16 %v271
  %v1535 = vunpack.c.h.b16 %v271
  %v1536 = vunpack.c.l.b16 %v272
  %v1537 = vunpack.c.h.b16 %v272
  %v1538 = vunpack.c.l.b16 %v273
  %v1539 = vunpack.c.h.b16 %v273
  %v1540 = vunpack.c.l.b16 %v274
  %v1541 = vunpack.c.h.b16 %v274
  %v1542 = vunpack.c.l.b16 %v275
  %v1543 = vunpack.c.h.b16 %v275
  %v1544 = vunpack.c.l.b16 %v276
  %v1545 = vunpack.c.h.b16 %v276
  %v1546 = vunpack.c.l.b16 %v277
  %v1547 = vunpack.c.h.b16 %v277
  %v1548 = vunpack.c.l.b16 %v278
  %v1549 = vunpack.c.h.b16 %v278
  %v1550 = vunpack.c.l.b16 %v279
  %v1551 = vunpack.c.h.b16 %v279
  %v1552 = vunpack.c.l.b16 %v280
  %v1553 = vunpack.c.h.b16 %v280
  %v1554 = vunpack.c.l.b16 %v281
  %v1555 = vunpack.c.h.b16 %v281
  %v1556 = vunpack.c.l.b16 %v282
  %v1557 = vunpack.c.h.b16 %v282
  %v1558 = vunpack.c.l.b16 %v283
  %v1559 = vunpack.c.h.b16 %v283
  %v1560 = vunpack.c.l.b16 %v284
  %v1561 = vunpack.c.h.b16 %v284
  %v1562 = vunpack.c.l.b16 %v285
  %v1563 = vunpack.c.h.b16 %v285
  %v1564 = vunpack.c.l.b16 %v286
  %v1565 = vunpack.c.h.b16 %v286
  %v1566 = vunpack.c.l.b16 %v287
  %v1567 = vunpack.c.h.b16 %v287
  %v1568 = vunpack.c.l.b16 %v288
  %v1569 = vunpack.c.h.b16 %v288
  %v1570 = vunpack.c.l.b16 %v289
  %v1571 = vunpack.c.h.b16 %v289
  %v1572 = vunpack.c.l.b16 %v290
  %v1573 = vunpack.c.h.b16 %v290
  %v1574 = vunpack.c.l.b16 %v291
  %v1575 = vunpack.c.h.b16 %v291
  %v1576 = vunpack.c.l.b16 %v292
  %v1577 = vunpack.c.h.b16 %v292
  %v1578 = vunpack.c.l.b16 %v293
  %v1579 = vunpack.c.h.b16 %v293
  %v1580 = vunpack.c.l.b16 %v294
  %v1581 = vunpack.c.h.b16 %v294
  %v1582 = vunpack.c.l.b16 %v295
  %v1583 = vunpack.c.h.b16 %v295
  %v1584 = vunpack.c.l.b16 %v296
  %v1585 = vunpack.c.h.b16 %v296
  %v1586 = vunpack.c.l.b16 %v297
  %v1587 = vunpack.c.h.b16 %v297
  %v1588 = vunpack.c.l.b16 %v298
  %v1589 = vunpack.c.h.b16 %v298
  %v1590 = vunpack.c.l.b16 %v299
  %v1591 = vunpack.c.h.b16 %v299
  %v1592 = vunpack.c.l.b16 %v300
  %v1593 = vunpack.c.h.b16 %v300
  %v1594 = vunpack.c.l.b16 %v301
  %v1595 = vunpack.c.h.b16 %v301
  %v1596 = vunpack.c.l.b16 %v302
  %v1597 = vunpack.c.h.b16 %v302
  %v1598 = vunpack.c.l.b16 %v303
  %v1599 = vunpack.c.h.b16 %v303
  %v1600 = vunpack.c.l.b16 %v304
  %v1601 = vunpack.c.h.b16 %v304
  %v1602 = vunpack.c.l.b16 %v305
  %v1603 = vunpack.c.h.b16 %v305
  %v1604 = vunpack.c.l.b16 %v306
  %v1605 = vunpack.c.h.b16 %v306
  %v1606 = vunpack.c.l.b16 %v307
  %v1607 = vunpack.c.h.b16 %v307
  %v1608 = vunpack.c.l.b16 %v308
  %v1609 = vunpack.c.h.b16 %v308
  %v1610 = vunpack.c.l.b16 %v309
  %v1611 = vunpack.c.h.b16 %v309
  %v1612 = vunpack.c.l.b16 %v310
  %v1613 = vunpack.c.h.b16 %v310
  %v1614 = vunpack.c.l.b16 %v311
  %v1615 = vunpack.c.h.b16 %v311
  %v1616 = vunpack.c.l.b16 %v312
  %v1617 = vunpack.c.h.b16 %v312
  %v1618 = vunpack.c.l.b16 %v313
  %v1619 = vunpack.c.h.b16 %v313
  %v1620 = vunpack.c.l.b16 %v314
  %v1621 = vunpack.c.h.b16 %v314
  %v1622 = vunpack.c.l.b16 %v315
  %v1623 = vunpack.c.h.b16 %v315
  %v1624 = vunpack.c.l.b16 %v316
  %v1625 = vunpack.c.h.b16 %v316
  %v1626 = vunpack.c.l.b16 %v317
  %v1627 = vunpack.c.h.b16 %v317
  %v1628 = vunpack.c.l.b16 %v318
  %v1629 = vunpack.c.h.b16 %v318
  %v1630 = vunpack.c.l.b16 %v319
  %v1631 = vunpack.c.h.b16 %v319
  %v1632 = vunpack.c.l.b16 %v320
  %v1633 = vunpack.c.h.b16 %v320
  %v1634 = vunpack.c.l.b16 %v321
  %v1635 = vunpack.c.h.b16 %v321
  %v1636 = vunpack.c.l.b16 %v322
  %v1637 = vunpack.c.h.b16 %v322
  %v1638 = vunpack.c.l.b16 %v323
  %v1639 = vunpack.c.h.b16 %v323
  %v1640 = vunpack.c.l.b16 %v324
  %v1641 = vunpack.c.h.b16 %v324
  %v1642 = vunpack.c.l.b16 %v325
  %v1643 = vunpack.c.h.b16 %v325
  %v1644 = vunpack.c.l.b16 %v326
  %v1645 = vunpack.c.h.b16 %v326
  %v1646 = vunpack.c.l.b16 %v327
  %v1647 = vunpack.c.h.b16 %v327
  %v1648 = vunpack.c.l.b16 %v328
  %v1649 = vunpack.c.h.b16 %v328
  %v1650 = vunpack.c.l.b16 %v329
  %v1651 = vunpack.c.h.b16 %v329
  %v1652 = vunpack.c.l.b16 %v330
  %v1653 = vunpack.c.h.b16 %v330
  %v1654 = vunpack.c.l.b16 %v331
  %v1655 = vunpack.c.h.b16 %v331
  %v1656 = vunpack.c.l.b16 %v332
  %v1657 = vunpack.c.h.b16 %v332
  %v1658 = vunpack.c.l.b16 %v333
  %v1659 = vunpack.c.h.b16 %v333
  %v1660 = vunpack.c.l.b16 %v334
  %v1661 = vunpack.c.h.b16 %v334
  %v1662 = vunpack.c.l.b16 %v335
  %v1663 = vunpack.c.h.b16 %v335
  %v1664 = vunpack.c.l.b16 %v336
  %v1665 = vunpack.c.h.b16 %v336
  %v1666 = vunpack.c.l.b16 %v337
  %v1667 = vunpack.c.h.b16 %v337
  %v1668 = vunpack.c.l.b16 %v338
  %v1669 = vunpack.c.h.b16 %v338
  %v1670 = vunpack.c.l.b16 %v339
  %v1671 = vunpack.c.h.b16 %v339
  %v1672 = vunpack.c.l.b16 %v340
  %v1673 = vunpack.c.h.b16 %v340
  %v1674 = vunpack.c.l.b16 %v341
  %v1675 = vunpack.c.h.b16 %v341
  %v1676 = vunpack.c.l.b16 %v342
  %v1677 = vunpack.c.h.b16 %v342
  %v1678 = vunpack.c.l.b16 %v343
  %v1679 = vunpack.c.h.b16 %v343
  %v1680 = vunpack.c.l.b16 %v344
  %v1681 = vunpack.c.h.b16 %v344
  %v1682 = vunpack.c.l.b16 %v345
  %v1683 = vunpack.c.h.b16 %v345
  %v1684 = vunpack.c.l.b16 %v346
  %v1685 = vunpack.c.h.b16 %v346
  %v1686 = vunpack.c.l.b16 %v347
  %v1687 = vunpack.c.h.b16 %v347
  %v1688 = vunpack.c.l.b16 %v348
  %v1689 = vunpack.c.h.b16 %v348
  %v1690 = vunpack.c.l.b16 %v349
  %v1691 = vunpack.c.h.b16 %v349
  %v1692 = vunpack.c.l.b16 %v350
  %v1693 = vunpack.c.h.b16 %v350
  %v1694 = vunpack.c.l.b16 %v351
  %v1695 = vunpack.c.h.b16 %v351
  %v1696 = vunpack.c.l.b16 %v352
  %v1697 = vunpack.c.h.b16 %v352
  %v1698 = vunpack.c.l.b16 %v353
  %v1699 = vunpack.c.h.b16 %v353
  %v1700 = vunpack.c.l.b16 %v354
  %v1701 = vunpack.c.h.b16 %v354
  %v1702 = vunpack.c.l.b16 %v355
  %v1703 = vunpack.c.h.b16 %v355
  %v1704 = vunpack.c.l.b16 %v356
  %v1705 = vunpack.c.h.b16 %v356
  %v1706 = vunpack.c.l.b16 %v357
  %v1707 = vunpack.c.h.b16 %v357
  %v1708 = vunpack.c.l.b16 %v358
  %v1709 = vunpack.c.h.b16 %v358
  %v1710 = vunpack.c.l.b16 %v359
  %v1711 = vunpack.c.h.b16 %v359
  %v1712 = vunpack.c.l.b16 %v360
  %v1713 = vunpack.c.h.b16 %v360
  %v1714 = vunpack.c.l.b16 %v361
  %v1715 = vunpack.c.h.b16 %v361
  %v1716 = vunpack.c.l.b16 %v362
  %v1717 = vunpack.c.h.b16 %v362
  %v1718 = vunpack.c.l.b16 %v363
  %v1719 = vunpack.c.h.b16 %v363
  %v1720 = vunpack.c.l.b16 %v364
  %v1721 = vunpack.c.h.b16 %v364
  %v1722 = vunpack.c.l.b16 %v365
  %v1723 = vunpack.c.h.b16 %v365
  %v1724 = vunpack.c.l.b16 %v366
  %v1725 = vunpack.c.h.b16 %v366
  %v1726 = vunpack.c.l.b16 %v367
  %v1727 = vunpack.c.h.b16 %v367
  %v1728 = vunpack.c.l.b16 %v368
  %v1729 = vunpack.c.h.b16 %v368
  %v1730 = vunpack.c.l.b16 %v369
  %v1731 = vunpack.c.h.b16 %v369
  %v1732 = vunpack.c.l.b16 %v370
  %v1733 = vunpack.c.h.b16 %v370
  %v1734 = vunpack.c.l.b16 %v371
  %v1735 = vunpack.c.h.b16 %v371
  %v1736 = vunpack.c.l.b16 %v372
  %v1737 = vunpack.c.h.b16 %v372
  %v1738 = vunpack.c.l.b16 %v373
  %v1739 = vunpack.c.h.b16 %v373
  %v1740 = vunpack.c.l.b16 %v374
  %v1741 = vunpack.c.h.b16 %v374
  %v1742 = vunpack.c.l.b16 %v375
  %v1743 = vunpack.c.h.b16 %v375
  %v1744 = vunpack.c.l.b16 %v376
  %v1745 = vunpack.c.h.b16 %v376
  %v1746 = vunpack.c.l.b16 %v377
  %v1747 = vunpack.c.h.b16 %v377
  %v1748 = vunpack.c.l.b16 %v378
  %v1749 = vunpack.c.h.b16 %v378
  %v1750 = vunpack.c.l.b16 %v379
  %v1751 = vunpack.c.h.b16 %v379
  %v1752 = vunpack.c.l.b16 %v380
  %v1753 = vunpack.c.h.b16 %v380
  %v1754 = vunpack.c.l.b16 %v381
  %v1755 = vunpack.c.h.b16 %v381
  %v1756 = vunpack.c.l.b16 %v382
  %v1757 = vunpack.c.h.b16 %v382
  %v1758 = vunpack.c.l.b16 %v383
  %v1759 = vunpack.c.h.b16 %v383
  %v1760 = vunpack.c.l.b16 %v384
  %v1761 = vunpack.c.h.b16 %v384
  %v1762 = vunpack.c.l.b16 %v385
  %v1763 = vunpack.c.h.b16 %v385
  %v1764 = vunpack.c.l.b16 %v386
  %v1765 = vunpack.c.h.b16 %v386
  %v1766 = vunpack.c.l.b16 %v387
  %v1767 = vunpack.c.h.b16 %v387
  %v1768 = vunpack.c.l.b16 %v388
  %v1769 = vunpack.c.h.b16 %v388
  %v1770 = vunpack.c.l.b16 %v389
  %v1771 = vunpack.c.h.b16 %v389
  %v1772 = vunpack.c.l.b16 %v390
  %v1773 = vunpack.c.h.b16 %v390
  %v1774 = vunpack.c.l.b16 %v391
  %v1775 = vunpack.c.h.b16 %v391
  %v1776 = vunpack.c.l.b16 %v392
  %v1777 = vunpack.c.h.b16 %v392
  %v1778 = vunpack.c.l.b16 %v393
  %v1779 = vunpack.c.h.b16 %v393
  %v1780 = vunpack.c.l.b16 %v394
  %v1781 = vunpack.c.h.b16 %v394
  %v1782 = vunpack.c.l.b16 %v395
  %v1783 = vunpack.c.h.b16 %v395
  %v1784 = vunpack.c.l.b16 %v396
  %v1785 = vunpack.c.h.b16 %v396
  %v1786 = vunpack.c.l.b16 %v397
  %v1787 = vunpack.c.h.b16 %v397
  %v1788 = vunpack.c.l.b16 %v398
  %v1789 = vunpack.c.h.b16 %v398
  %v1790 = vunpack.c.l.b16 %v399
  %v1791 = vunpack.c.h.b16 %v399
  %v1792 = vunpack.c.l.b16 %v400
  %v1793 = vunpack.c.h.b16 %v400
  %v1794 = vunpack.c.l.b16 %v401
  %v1795 = vunpack.c.h.b16 %v401
  %v1796 = vunpack.c.l.b16 %v402
  %v1797 = vunpack.c.h.b16 %v402
  %v1798 = vunpack.c.l.b16 %v403
  %v1799 = vunpack.c.h.b16 %v403
  %v1800 = vunpack.c.l.b16 %v404
  %v1801 = vunpack.c.h.b16 %v404
  %v1802 = vunpack.c.l.b16 %v405
  %v1803 = vunpack.c.h.b16 %v405
  %v1804 = vunpack.c.l.b16 %v406
  %v1805 = vunpack.c.h.b16 %v406
  %v1806 = vunpack.c.l.b16 %v407
  %v1807 = vunpack.c.h.b16 %v407
  %v1808 = vunpack.c.l.b16 %v408
  %v1809 = vunpack.c.h.b16 %v408
  %v1810 = vunpack.c.l.b16 %v409
  %v1811 = vunpack.c.h.b16 %v409
  %v1812 = vunpack.c.l.b16 %v410
  %v1813 = vunpack.c.h.b16 %v410
  %v1814 = vunpack.c.l.b16 %v411
  %v1815 = vunpack.c.h.b16 %v411
  %v1816 = vunpack.c.l.b16 %v412
  %v1817 = vunpack.c.h.b16 %v412
  %v1818 = vunpack.c.l.b16 %v413
  %v1819 = vunpack.c.h.b16 %v413
  %v1820 = vunpack.c.l.b16 %v414
  %v1821 = vunpack.c.h.b16 %v414
  %v1822 = vunpack.c.l.b16 %v415
  %v1823 = vunpack.c.h.b16 %v415
  %v1824 = vunpack.c.l.b16 %v416
  %v1825 = vunpack.c.h.b16 %v416
  %v1826 = vunpack.c.l.b16 %v417
  %v1827 = vunpack.c.h.b16 %v417
  %v1828 = vunpack.c.l.b16 %v418
  %v1829 = vunpack.c.h.b16 %v418
  %v1830 = vunpack.c.l.b16 %v419
  %v1831 = vunpack.c.h.b16 %v419
  %v1832 = vunpack.c.l.b16 %v420
  %v1833 = vunpack.c.h.b16 %v420
  %v1834 = vunpack.c.l.b16 %v421
  %v1835 = vunpack.c.h.b16 %v421
  %v1836 = vunpack.c.l.b16 %v422
  %v1837 = vunpack.c.h.b16 %v422
  %v1838 = vunpack.c.l.b16 %v423
  %v1839 = vunpack.c.h.b16 %v423
  %v1840 = vunpack.c.l.b16 %v424
  %v1841 = vunpack.c.h.b16 %v424
  %v1842 = vunpack.c.l.b16 %v425
  %v1843 = vunpack.c.h.b16 %v425
  %v1844 = vunpack.c.l.b16 %v426
  %v1845 = vunpack.c.h.b16 %v426
  %v1846 = vunpack.c.l.b16 %v427
  %v1847 = vunpack.c.h.b16 %v427
  %v1848 = vunpack.c.l.b16 %v428
  %v1849 = vunpack.c.h.b16 %v428
  %v1850 = vunpack.c.l.b16 %v429
  %v1851 = vunpack.c.h.b16 %v429
  %v1852 = vunpack.c.l.b16 %v430
  %v1853 = vunpack.c.h.b16 %v430
  %v1854 = vunpack.c.l.b16 %v431
  %v1855 = vunpack.c.h.b16 %v431
  %v1856 = vunpack.c.l.b16 %v432
  %v1857 = vunpack.c.h.b16 %v432
  %v1858 = vunpack.c.l.b16 %v433
  %v1859 = vunpack.c.h.b16 %v433
  %v1860 = vunpack.c.l.b16 %v434
  %v1861 = vunpack.c.h.b16 %v434
  %v1862 = vunpack.c.l.b16 %v435
  %v1863 = vunpack.c.h.b16 %v435
  %v1864 = vunpack.c.l.b16 %v436
  %v1865 = vunpack.c.h.b16 %v436
  %v1866 = vunpack.c.l.b16 %v437
  %v1867 = vunpack.c.h.b16 %v437
  %v1868 = vunpack.c.l.b16 %v438
  %v1869 = vunpack.c.h.b16 %v438
  %v1870 = vunpack.c.l.b16 %v439
  %v1871 = vunpack.c.h.b16 %v439
  %v1872 = vunpack.c.l.b16 %v440
  %v1873 = vunpack.c.h.b16 %v440
  %v1874 = vunpack.c.l.b16 %v441
  %v1875 = vunpack.c.h.b16 %v441
  %v1876 = vunpack.c.l.b16 %v442
  %v1877 = vunpack.c.h.b16 %v442
  %v1878 = vunpack.c.l.b16 %v443
  %v1879 = vunpack.c.h.b16 %v443
  %v1880 = vunpack.c.l.b16 %v444
  %v1881 = vunpack.c.h.b16 %v444
  %v1882 = vunpack.c.l.b16 %v445
  %v1883 = vunpack.c.h.b16 %v445
  %v1884 = vunpack.c.l.b16 %v446
  %v1885 = vunpack.c.h.b16 %v446
  %v1886 = vunpack.c.l.b16 %v447
  %v1887 = vunpack.c.h.b16 %v447
  %v1888 = vunpack.c.l.b16 %v448
  %v1889 = vunpack.c.h.b16 %v448
  %v1890 = vunpack.c.l.b16 %v449
  %v1891 = vunpack.c.h.b16 %v449
  %v1892 = vunpack.c.l.b16 %v450
  %v1893 = vunpack.c.h.b16 %v450
  %v1894 = vunpack.c.l.b16 %v451
  %v1895 = vunpack.c.h.b16 %v451
  %v1896 = vunpack.c.l.b16 %v452
  %v1897 = vunpack.c.h.b16 %v452
  %v1898 = vunpack.c.l.b16 %v453
  %v1899 = vunpack.c.h.b16 %v453
  %v1900 = vunpack.c.l.b16 %v454
  %v1901 = vunpack.c.h.b16 %v454
  %v1902 = vunpack.c.l.b16 %v455
  %v1903 = vunpack.c.h.b16 %v455
  %v1904 = vunpack.c.l.b16 %v456
  %v1905 = vunpack.c.h.b16 %v456
  %v1906 = vunpack.c.l.b16 %v457
  %v1907 = vunpack.c.h.b16 %v457
  %v1908 = vunpack.c.l.b16 %v458
  %v1909 = vunpack.c.h.b16 %v458
  %v1910 = vunpack.c.l.b16 %v459
  %v1911 = vunpack.c.h.b16 %v459
  %v1912 = vunpack.c.l.b16 %v460
  %v1913 = vunpack.c.h.b16 %v460
  %v1914 = vunpack.c.l.b16 %v461
  %v1915 = vunpack.c.h.b16 %v461
  %v1916 = vunpack.c.l.b16 %v462
  %v1917 = vunpack.c.h.b16 %v462
  %v1918 = vunpack.c.l.b16 %v463
  %v1919 = vunpack.c.h.b16 %v463
  %v1920 = vunpack.c.l.b16 %v464
  %v1921 = vunpack.c.h.b16 %v464
  %v1922 = vunpack.c.l.b16 %v465
  %v1923 = vunpack.c.h.b16 %v465
  %v1924 = vpack.c.b16 %v1126, %v1124
  %v1925 = vpack.c.b16 %v1127, %v1125
  %v1926 = vpack.c.b16 %v1130, %v1128
  %v1927 = vpack.c.b16 %v1131, %v1129
  %v1928 = vpack.c.b16 %v1134, %v1132
  %v1929 = vpack.c.b16 %v1135, %v1133
  %v1930 = vpack.c.b16 %v1138, %v1136
  %v1931 = vpack.c.b16 %v1139, %v1137
  %v1932 = vpack.c.b16 %v1142, %v1140
  %v1933 = vpack.c.b16 %v1143, %v1141
  %v1934 = vpack.c.b16 %v1146, %v1144
  %v1935 = vpack.c.b16 %v1147, %v1145
  %v1936 = vpack.c.b16 %v1150, %v1148
  %v1937 = vpack.c.b16 %v1151, %v1149
  %v1938 = vpack.c.b16 %v1154, %v1152
  %v1939 = vpack.c.b16 %v1155, %v1153
  %v1940 = vpack.c.b16 %v1158, %v1156
  %v1941 = vpack.c.b16 %v1159, %v1157
  %v1942 = vpack.c.b16 %v1162, %v1160
  %v1943 = vpack.c.b16 %v1163, %v1161
  %v1944 = vpack.c.b16 %v1166, %v1164
  %v1945 = vpack.c.b16 %v1167, %v1165
  %v1946 = vpack.c.b16 %v1170, %v1168
  %v1947 = vpack.c.b16 %v1171, %v1169
  %v1948 = vpack.c.b16 %v1174, %v1172
  %v1949 = vpack.c.b16 %v1175, %v1173
  %v1950 = vpack.c.b16 %v1178, %v1176
  %v1951 = vpack.c.b16 %v1179, %v1177
  %v1952 = vpack.c.b16 %v1182, %v1180
  %v1953 = vpack.c.b16 %v1183, %v1181
  %v1954 = vpack.c.b16 %v1186, %v1184
  %v1955 = vpack.c.b16 %v1187, %v1185
  %v1956 = vpack.c.b16 %v1190, %v1188
  %v1957 = vpack.c.b16 %v1191, %v1189
  %v1958 = vpack.c.b16 %v1194, %v1192
  %v1959 = vpack.c.b16 %v1195, %v1193
  %v1960 = vpack.c.b16 %v1198, %v1196
  %v1961 = vpack.c.b16 %v1199, %v1197
  %v1962 = vpack.c.b16 %v1202, %v1200
  %v1963 = vpack.c.b16 %v1203, %v1201
  %v1964 = vpack.c.b16 %v1206, %v1204
  %v1965 = vpack.c.b16 %v1207, %v1205
  %v1966 = vpack.c.b16 %v1210, %v1208
  %v1967 = vpack.c.b16 %v1211, %v1209
  %v1968 = vpack.c.b16 %v1214, %v1212
  %v1969 = vpack.c.b16 %v1215, %v1213
  %v1970 = vpack.c.b16 %v1218, %v1216
  %v1971 = vpack.c.b16 %v1219, %v1217
  %v1972 = vpack.c.b16 %v1222, %v1220
  %v1973 = vpack.c.b16 %v1223, %v1221
  %v1974 = vpack.c.b16 %v1226, %v1224
  %v1975 = vpack.c.b16 %v1227, %v1225
  %v1976 = vpack.c.b16 %v1230, %v1228
  %v1977 = vpack.c.b16 %v1231, %v1229
  %v1978 = vpack.c.b16 %v1234, %v1232
  %v1979 = vpack.c.b16 %v1235, %v1233
  %v1980 = vpack.c.b16 %v1238, %v1236
  %v1981 = vpack.c.b16 %v1239, %v1237
  %v1982 = vpack.c.b16 %v1242, %v1240
  %v1983 = vpack.c.b16 %v1243, %v1241
  %v1984 = vpack.c.b16 %v1246, %v1244
  %v1985 = vpack.c.b16 %v1247, %v1245
  %v1986 = vpack.c.b16 %v1250, %v1248
  %v1987 = vpack.c.b16 %v1251, %v1249
  %v1988 = vpack.c.b16 %v1254, %v1252
  %v1989 = vpack.c.b16 %v1255, %v1253
  %v1990 = vpack.c.b16 %v1258, %v1256
  %v1991 = vpack.c.b16 %v1259, %v1257
  %v1992 = vpack.c.b16 %v1262, %v1260
  %v1993 = vpack.c.b16 %v1263, %v1261
  %v1994 = vpack.c.b16 %v1266, %v1264
  %v1995 = vpack.c.b16 %v1267, %v1265
  %v1996 = vpack.c.b16 %v1270, %v1268
  %v1997 = vpack.c.b16 %v1271, %v1269
  %v1998 = vpack.c.b16 %v1274, %v1272
  %v1999 = vpack.c.b16 %v1275, %v1273
  %v2000 = vpack.c.b16 %v1278, %v1276
  %v2001 = vpack.c.b16 %v1279, %v1277
  %v2002 = vpack.c.b16 %v1282, %v1280
  %v2003 = vpack.c.b16 %v1283, %v1281
  %v2004 = vpack.c.b16 %v1286, %v1284
  %v2005 = vpack.c.b16 %v1287, %v1285
  %v2006 = vpack.c.b16 %v1290, %v1288
  %v2007 = vpack.c.b16 %v1291, %v1289
  %v2008 = vpack.c.b16 %v1294, %v1292
  %v2009 = vpack.c.b16 %v1295, %v1293
  %v2010 = vpack.c.b16 %v1298, %v1296
  %v2011 = vpack.c.b16 %v1299, %v1297
  %v2012 = vpack.c.b16 %v1302, %v1300
  %v2013 = vpack.c.b16 %v1303, %v1301
  %v2014 = vpack.c.b16 %v1306, %v1304
  %v2015 = vpack.c.b16 %v1307, %v1305
  %v2016 = vpack.c.b16 %v1310, %v1308
  %v2017 = vpack.c.b16 %v1311, %v1309
  %v2018 = vpack.c.b16 %v1314, %v1312
  %v2019 = vpack.c.b16 %v1315, %v1313
  %v2020 = vpack.c.b16 %v1318, %v1316
  %v2021 = vpack.c.b16 %v1319, %v1317
  %v2022 = vpack.c.b16 %v1322, %v1320
  %v2023 = vpack.c.b16 %v1323, %v1321
  %v2024 = vpack.c.b16 %v1326, %v1324
  %v2025 = vpack.c.b16 %v1327, %v1325
  %v2026 = vpack.c.b16 %v1330, %v1328
  %v2027 = vpack.c.b16 %v1331, %v1329
  %v2028 = vpack.c.b16 %v1334, %v1332
  %v2029 = vpack.c.b16 %v1335, %v1333
  %v2030 = vpack.c.b16 %v1338, %v1336
  %v2031 = vpack.c.b16 %v1339, %v1337
  %v2032 = vpack.c.b16 %v1342, %v1340
  %v2033 = vpack.c.b16 %v1343, %v1341
  %v2034 = vpack.c.b16 %v1346, %v1344
  %v2035 = vpack.c.b16 %v1347, %v1345
  %v2036 = vpack.c.b16 %v1350, %v1348
  %v2037 = vpack.c.b16 %v1351, %v1349
  %v2038 = vpack.c.b16 %v1354, %v1352
  %v2039 = vpack.c.b16 %v1355, %v1353
  %v2040 = vpack.c.b16 %v1358, %v1356
  %v2041 = vpack.c.b16 %v1359, %v1357
  %v2042 = vpack.c.b16 %v1362, %v1360
  %v2043 = vpack.c.b16 %v1363, %v1361
  %v2044 = vpack.c.b16 %v1366, %v1364
  %v2045 = vpack.c.b16 %v1367, %v1365
  %v2046 = vpack.c.b16 %v1370, %v1368
  %v2047 = vpack.c.b16 %v1371, %v1369
  %v2048 = vpack.c.b16 %v1374, %v1372
  %v2049 = vpack.c.b16 %v1375, %v1373
  %v2050 = vpack.c.b16 %v1378, %v1376
  %v2051 = vpack.c.b16 %v1379, %v1377
  %v2052 = vpack.c.b16 %v1382, %v1380
  %v2053 = vpack.c.b16 %v1383, %v1381
  %v2054 = vpack.c.b16 %v1386, %v1384
  %v2055 = vpack.c.b16 %v1387, %v1385
  %v2056 = vpack.c.b16 %v1390, %v1388
  %v2057 = vpack.c.b16 %v1391, %v1389
  %v2058 = vpack.c.b16 %v1394, %v1392
  %v2059 = vpack.c.b16 %v1395, %v1393
  %v2060 = vpack.c.b16 %v1398, %v1396
  %v2061 = vpack.c.b16 %v1399, %v1397
  %v2062 = vpack.c.b16 %v1402, %v1400
  %v2063 = vpack.c.b16 %v1403, %v1401
  %v2064 = vpack.c.b16 %v1406, %v1404
  %v2065 = vpack.c.b16 %v1407, %v1405
  %v2066 = vpack.c.b16 %v1410, %v1408
  %v2067 = vpack.c.b16 %v1411, %v1409
  %v2068 = vpack.c.b16 %v1414, %v1412
  %v2069 = vpack.c.b16 %v1415, %v1413
  %v2070 = vpack.c.b16 %v1418, %v1416
  %v2071 = vpack.c.b16 %v1419, %v1417
  %v2072 = vpack.c.b16 %v1422, %v1420
  %v2073 = vpack.c.b16 %v1423, %v1421
  %v2074 = vpack.c.b16 %v1426, %v1424
  %v2075 = vpack.c.b16 %v1427, %v1425
  %v2076 = vpack.c.b16 %v1430, %v1428
  %v2077 = vpack.c.b16 %v1431, %v1429
  %v2078 = vpack.c.b16 %v1434, %v1432
  %v2079 = vpack.c.b16 %v1435, %v1433
  %v2080 = vpack.c.b16 %v1438, %v1436
  %v2081 = vpack.c.b16 %v1439, %v1437
  %v2082 = vpack.c.b16 %v1442, %v1440
  %v2083 = vpack.c.b16 %v1443, %v1441
  %v2084 = vpack.c.b16 %v1446, %v1444
  %v2085 = vpack.c.b16 %v1447, %v1445
  %v2086 = vpack.c.b16 %v1450, %v1448
  %v2087 = vpack.c.b16 %v1451, %v1449
  %v2088 = vpack.c.b16 %v1454, %v1452
  %v2089 = vpack.c.b16 %v1455, %v1453
  %v2090 = vpack.c.b16 %v1458, %v1456
  %v2091 = vpack.c.b16 %v1459, %v1457
  %v2092 = vpack.c.b16 %v1462, %v1460
  %v2093 = vpack.c.b16 %v1463, %v1461
  %v2094 = vpack.c.b16 %v1466, %v1464
  %v2095 = vpack.c.b16 %v1467, %v1465
  %v2096 = vpack.c.b16 %v1470, %v1468
  %v2097 = vpack.c.b16 %v1471, %v1469
  %v2098 = vpack.c.b16 %v1474, %v1472
  %v2099 = vpack.c.b16 %v1475, %v1473
  %v2100 = vpack.c.b16 %v1478, %v1476
  %v2101 = vpack.c.b16 %v1479, %v1477
  %v2102 = vpack.c.b16 %v1482, %v1480
  %v2103 = vpack.c.b16 %v1483, %v1481
  %v2104 = vpack.c.b16 %v1486, %v1484
  %v2105 = vpack.c.b16 %v1487, %v1485
  %v2106 = vpack.c.b16 %v1490, %v1488
  %v2107 = vpack.c.b16 %v1491, %v1489
  %v2108 = vpack.c.b16 %v1494, %v1492
  %v2109 = vpack.c.b16 %v1495, %v1493
  %v2110 = vpack.c.b16 %v1498, %v1496
  %v2111 = vpack.c.b16 %v1499, %v1497
  %v2112 = vpack.c.b16 %v1502, %v1500
  %v2113 = vpack.c.b16 %v1503, %v1501
  %v2114 = vpack.c.b16 %v1506, %v1504
  %v2115 = vpack.c.b16 %v1507, %v1505
  %v2116 = vpack.c.b16 %v1510, %v1508
  %v2117 = vpack.c.b16 %v1511, %v1509
  %v2118 = vpack.c.b16 %v1514, %v1512
  %v2119 = vpack.c.b16 %v1515, %v1513
  %v2120 = vpack.c.b16 %v1518, %v1516
  %v2121 = vpack.c.b16 %v1519, %v1517
  %v2122 = vpack.c.b16 %v1522, %v1520
  %v2123 = vpack.c.b16 %v1523, %v1521
  %v2124 = vpack.c.b16 %v1526, %v1524
  %v2125 = vpack.c.b16 %v1527, %v1525
  %v2126 = vpack.c.b16 %v1530, %v1528
  %v2127 = vpack.c.b16 %v1531, %v1529
  %v2128 = vpack.c.b16 %v1534, %v1532
  %v2129 = vpack.c.b16 %v1535, %v1533
  %v2130 = vpack.c.b16 %v1538, %v1536
  %v2131 = vpack.c.b16 %v1539, %v1537
  %v2132 = vpack.c.b16 %v1542, %v1540
  %v2133 = vpack.c.b16 %v1543, %v1541
  %v2134 = vpack.c.b16 %v1546, %v1544
  %v2135 = vpack.c.b16 %v1547, %v1545
  %v2136 = vpack.c.b16 %v1550, %v1548
  %v2137 = vpack.c.b16 %v1551, %v1549
  %v2138 = vpack.c.b16 %v1554, %v1552
  %v2139 = vpack.c.b16 %v1555, %v1553
  %v2140 = vpack.c.b16 %v1558, %v1556
  %v2141 = vpack.c.b16 %v1559, %v1557
  %v2142 = vpack.c.b16 %v1562, %v1560
  %v2143 = vpack.c.b16 %v1563, %v1561
  %v2144 = vpack.c.b16 %v1566, %v1564
  %v2145 = vpack.c.b16 %v1567, %v1565
  %v2146 = vpack.c.b16 %v1570, %v1568
  %v2147 = vpack.c.b16 %v1571, %v1569
  %v2148 = vpack.c.b16 %v1574, %v1572
  %v2149 = vpack.c.b16 %v1575, %v1573
  %v2150 = vpack.c.b16 %v1578, %v1576
  %v2151 = vpack.c.b16 %v1579, %v1577
  %v2152 = vpack.c.b16 %v1582, %v1580
  %v2153 = vpack.c.b16 %v1583, %v1581
  %v2154 = vpack.c.b16 %v1586, %v1584
  %v2155 = vpack.c.b16 %v1587, %v1585
  %v2156 = vpack.c.b16 %v1590, %v1588
  %v2157 = vpack.c.b16 %v1591, %v1589
  %v2158 = vpack.c.b16 %v1594, %v1592
  %v2159 = vpack.c.b16 %v1595, %v1593
  %v2160 = vpack.c.b16 %v1598, %v1596
  %v2161 = vpack.c.b16 %v1599, %v1597
  %v2162 = vpack.c.b16 %v1602, %v1600
  %v2163 = vpack.c.b16 %v1603, %v1601
  %v2164 = vpack.c.b16 %v1606, %v1604
  %v2165 = vpack.c.b16 %v1607, %v1605
  %v2166 = vpack.c.b16 %v1610, %v1608
  %v2167 = vpack.c.b16 %v1611, %v1609
  %v2168 = vpack.c.b16 %v1614, %v1612
  %v2169 = vpack.c.b16 %v1615, %v1613
  %v2170 = vpack.c.b16 %v1618, %v1616
  %v2171 = vpack.c.b16 %v1619, %v1617
  %v2172 = vpack.c.b16 %v1622, %v1620
  %v2173 = vpack.c.b16 %v1623, %v1621
  %v2174 = vpack.c.b16 %v1626, %v1624
  %v2175 = vpack.c.b16 %v1627, %v1625
  %v2176 = vpack.c.b16 %v1630, %v1628
  %v2177 = vpack.c.b16 %v1631, %v1629
  %v2178 = vpack.c.b16 %v1634, %v1632
  %v2179 = vpack.c.b16 %v1635, %v1633
  %v2180 = vpack.c.b16 %v1638, %v1636
  %v2181 = vpack.c.b16 %v1639, %v1637
  %v2182 = vpack.c.b16 %v1642, %v1640
  %v2183 = vpack.c.b16 %v1643, %v1641
  %v2184 = vpack.c.b16 %v1646, %v1644
  %v2185 = vpack.c.b16 %v1647, %v1645
  %v2186 = vpack.c.b16 %v1650, %v1648
  %v2187 = vpack.c.b16 %v1651, %v1649
  %v2188 = vpack.c.b16 %v1654, %v1652
  %v2189 = vpack.c.b16 %v1655, %v1653
  %v2190 = vpack.c.b16 %v1658, %v1656
  %v2191 = vpack.c.b16 %v1659, %v1657
  %v2192 = vpack.c.b16 %v1662, %v1660
  %v2193 = vpack.c.b16 %v1663, %v1661
  %v2194 = vpack.c.b16 %v1666, %v1664
  %v2195 = vpack.c.b16 %v1667, %v1665
  %v2196 = vpack.c.b16 %v1670, %v1668
  %v2197 = vpack.c.b16 %v1671, %v1669
  %v2198 = vpack.c.b16 %v1674, %v1672
  %v2199 = vpack.c.b16 %v1675, %v1673
  %v2200 = vpack.c.b16 %v1678, %v1676
  %v2201 = vpack.c.b16 %v1679, %v1677
  %v2202 = vpack.c.b16 %v1682, %v1680
  %v2203 = vpack.c.b16 %v1683, %v1681
  %v2204 = vpack.c.b16 %v1686, %v1684
  %v2205 = vpack.c.b16 %v1687, %v1685
  %v2206 = vpack.c.b16 %v1690, %v1688
  %v2207 = vpack.c.b16 %v1691, %v1689
  %v2208 = vpack.c.b16 %v1694, %v1692
  %v2209 = vpack.c.b16 %v1695, %v1693
  %v2210 = vpack.c.b16 %v1698, %v1696
  %v2211 = vpack.c.b16 %v1699, %v1697
  %v2212 = vpack.c.b16 %v1702, %v1700
  %v2213 = vpack.c.b16 %v1703, %v1701
  %v2214 = vpack.c.b16 %v1706, %v1704
  %v2215 = vpack.c.b16 %v1707, %v1705
  %v2216 = vpack.c.b16 %v1710, %v1708
  %v2217 = vpack.c.b16 %v1711, %v1709
  %v2218 = vpack.c.b16 %v1714, %v1712
  %v2219 = vpack.c.b16 %v1715, %v1713
  %v2220 = vpack.c.b16 %v1718, %v1716
  %v2221 = vpack.c.b16 %v1719, %v1717
  %v2222 = vpack.c.b16 %v1722, %v1720
  %v2223 = vpack.c.b16 %v1723, %v1721
  %v2224 = vpack.c.b16 %v1726, %v1724
  %v2225 = vpack.c.b16 %v1727, %v1725
  %v2226 = vpack.c.b16 %v1730, %v1728
  %v2227 = vpack.c.b16 %v1731, %v1729
  %v2228 = vpack.c.b16 %v1734, %v1732
  %v2229 = vpack.c.b16 %v1735, %v1733
  %v2230 = vpack.c.b16 %v1738, %v1736
  %v2231 = vpack.c.b16 %v1739, %v1737
  %v2232 = vpack.c.b16 %v1742, %v1740
  %v2233 = vpack.c.b16 %v1743, %v1741
  %v2234 = vpack.c.b16 %v1746, %v1744
  %v2235 = vpack.c.b16 %v1747, %v1745
  %v2236 = vpack.c.b16 %v1750, %v1748
  %v2237 = vpack.c.b16 %v1751, %v1749
  %v2238 = vpack.c.b16 %v1754, %v1752
  %v2239 = vpack.c.b16 %v1755, %v1753
  %v2240 = vpack.c.b16 %v1758, %v1756
  %v2241 = vpack.c.b16 %v1759, %v1757
  %v2242 = vpack.c.b16 %v1762, %v1760
  %v2243 = vpack.c.b16 %v1763, %v1761
  %v2244 = vpack.c.b16 %v1766, %v1764
  %v2245 = vpack.c.b16 %v1767, %v1765
  %v2246 = vpack.c.b16 %v1770, %v1768
  %v2247 = vpack.c.b16 %v1771, %v1769
  %v2248 = vpack.c.b16 %v1774, %v1772
  %v2249 = vpack.c.b16 %v1775, %v1773
  %v2250 = vpack.c.b16 %v1778, %v1776
  %v2251 = vpack.c.b16 %v1779, %v1777
  %v2252 = vpack.c.b16 %v1782, %v1780
  %v2253 = vpack.c.b16 %v1783, %v1781
  %v2254 = vpack.c.b16 %v1786, %v1784
  %v2255 = vpack.c.b16 %v1787, %v1785
  %v2256 = vpack.c.b16 %v1790, %v1788
  %v2257 = vpack.c.b16 %v1791, %v1789
  %v2258 = vpack.c.b16 %v1794, %v1792
  %v2259 = vpack.c.b16 %v1795, %v1793
  %v2260 = vpack.c.b16 %v1798, %v1796
  %v2261 = vpack.c.b16 %v1799, %v1797
  %v2262 = vpack.c.b16 %v1802, %v1800
  %v2263 = vpack.c.b16 %v1803, %v1801
  %v2264 = vpack.c.b16 %v1806, %v1804
  %v2265 = vpack.c.b16 %v1807, %v1805
  %v2266 = vpack.c.b16 %v1810, %v1808
  %v2267 = vpack.c.b16 %v1811, %v1809
  %v2268 = vpack.c.b16 %v1814, %v1812
  %v2269 = vpack.c.b16 %v1815, %v1813
  %v2270 = vpack.c.b16 %v1818, %v1816
  %v2271 = vpack.c.b16 %v1819, %v1817
  %v2272 = vpack.c.b16 %v1822, %v1820
  %v2273 = vpack.c.b16 %v1823, %v1821
  %v2274 = vpack.c.b16 %v1826, %v1824
  %v2275 = vpack.c.b16 %v1827, %v1825
  %v2276 = vpack.c.b16 %v1830, %v1828
  %v2277 = vpack.c.b16 %v1831, %v1829
  %v2278 = vpack.c.b16 %v1834, %v1832
  %v2279 = vpack.c.b16 %v1835, %v1833
  %v2280 = vpack.c.b16 %v1838, %v1836
  %v2281 = vpack.c.b16 %v1839, %v1837
  %v2282 = vpack.c.b16 %v1842, %v1840
  %v2283 = vpack.c.b16 %v1843, %v1841
  %v2284 = vpack.c.b16 %v1846, %v1844
  %v2285 = vpack.c.b16 %v1847, %v1845
  %v2286 = vpack.c.b16 %v1850, %v1848
  %v2287 = vpack.c.b16 %v1851, %v1849
  %v2288 = vpack.c.b16 %v1854, %v1852
  %v2289 = vpack.c.b16 %v1855, %v1853
  %v2290 = vpack.c.b16 %v1858, %v1856
  %v2291 = vpack.c.b16 %v1859, %v1857
  %v2292 = vpack.c.b16 %v1862, %v1860
  %v2293 = vpack.c.b16 %v1863, %v1861
  %v2294 = vpack.c.b16 %v1866, %v1864
  %v2295 = vpack.c.b16 %v1867, %v1865
  %v2296 = vpack.c.b16 %v1870, %v1868
  %v2297 = vpack.c.b16 %v1871, %v1869
  %v2298 = vpack.c.b16 %v1874, %v1872
  %v2299 = vpack.c.b16 %v1875, %v1873
  %v2300 = vpack.c.b16 %v1878, %v1876
  %v2301 = vpack.c.b16 %v1879, %v1877
  %v2302 = vpack.c.b16 %v1882, %v1880
  %v2303 = vpack.c.b16 %v1883, %v1881
  %v2304 = vpack.c.b16 %v1886, %v1884
  %v2305 = vpack.c.b16 %v1887, %v1885
  %v2306 = vpack.c.b16 %v1890, %v1888
  %v2307 = vpack.c.b16 %v1891, %v1889
  %v2308 = vpack.c.b16 %v1894, %v1892
  %v2309 = vpack.c.b16 %v1895, %v1893
  %v2310 = vpack.c.b16 %v1898, %v1896
  %v2311 = vpack.c.b16 %v1899, %v1897
  %v2312 = vpack.c.b16 %v1902, %v1900
  %v2313 = vpack.c.b16 %v1903, %v1901
  %v2314 = vpack.c.b16 %v1906, %v1904
  %v2315 = vpack.c.b16 %v1907, %v1905
  %v2316 = vpack.c.b16 %v1910, %v1908
  %v2317 = vpack.c.b16 %v1911, %v1909
  %v2318 = vpack.c.b16 %v1914, %v1912
  %v2319 = vpack.c.b16 %v1915, %v1913
  %v2320 = vpack.c.b16 %v1918, %v1916
  %v2321 = vpack.c.b16 %v1919, %v1917
  %v2322 = vpack.c.b16 %v1922, %v1920
  %v2323 = vpack.c.b16 %v1923, %v1921
  %2724 = vmatpush.bf16.msra.mxu0 %v1938
  %2725 = vmatpush.bf16.msra.mxu0 %v1936
  %2726 = vmatpush.bf16.msra.mxu0 %v1934
  %2727 = vmatpush.bf16.msra.mxu0 %v1932
  %2728 = vmatpush.bf16.msra.mxu0 %v1930
  %2729 = vmatpush.bf16.msra.mxu0 %v1928
  %2730 = vmatpush.bf16.msra.mxu0 %v1926
  %2731 = vmatpush.bf16.msra.mxu0 %v1924
  %2732 = vmatmul.bf16.gmra.mxu0 %v624
  %v2733 = vpop.f32.mrf.mxu0
  %v2734 = vadd.f32 %v468, %v2733
  %v2735 = vpop.f32.mrf.mxu0
  %v2736 = vadd.f32 %v468, %v2735
  %2737 = vmatmul.bf16.gmra.mxu0 %v649
  %v2738 = vpop.f32.mrf.mxu0
  %v2739 = vadd.f32 %v468, %v2738
  %v2740 = vpop.f32.mrf.mxu0
  %v2741 = vadd.f32 %v468, %v2740
  %2742 = vdwg.mxu0
  %2743 = vmatpush.bf16.msra.mxu0 %v1954
  %2744 = vmatpush.bf16.msra.mxu0 %v1952
  %2745 = vmatpush.bf16.msra.mxu0 %v1950
  %2746 = vmatpush.bf16.msra.mxu0 %v1948
  %2747 = vmatpush.bf16.msra.mxu0 %v1946
  %2748 = vmatpush.bf16.msra.mxu0 %v1944
  %2749 = vmatpush.bf16.msra.mxu0 %v1942
  %2750 = vmatpush.bf16.msra.mxu0 %v1940
  %2751 = vmatmul.bf16.gmra.mxu0 %v625
  %v2752 = vpop.f32.mrf.mxu0
  %v2753 = vadd.f32 %v2734, %v2752
  %v2754 = vpop.f32.mrf.mxu0
  %v2755 = vadd.f32 %v2736, %v2754
  %2756 = vmatmul.bf16.gmra.mxu0 %v650
  %v2757 = vpop.f32.mrf.mxu0
  %v2758 = vadd.f32 %v2739, %v2757
  %v2759 = vpop.f32.mrf.mxu0
  %v2760 = vadd.f32 %v2741, %v2759
  %2761 = vdwg.mxu0
  %2762 = vmatpush.bf16.msra.mxu0 %v1970
  %2763 = vmatpush.bf16.msra.mxu0 %v1968
  %2764 = vmatpush.bf16.msra.mxu0 %v1966
  %2765 = vmatpush.bf16.msra.mxu0 %v1964
  %2766 = vmatpush.bf16.msra.mxu0 %v1962
  %2767 = vmatpush.bf16.msra.mxu0 %v1960
  %2768 = vmatpush.bf16.msra.mxu0 %v1958
  %2769 = vmatpush.bf16.msra.mxu0 %v1956
  %2770 = vmatmul.bf16.gmra.mxu0 %v626
  %v2771 = vpop.f32.mrf.mxu0
  %v2772 = vadd.f32 %v2753, %v2771
  %v2773 = vpop.f32.mrf.mxu0
  %v2774 = vadd.f32 %v2755, %v2773
  %2775 = vmatmul.bf16.gmra.mxu0 %v651
  %v2776 = vpop.f32.mrf.mxu0
  %v2777 = vadd.f32 %v2758, %v2776
  %v2778 = vpop.f32.mrf.mxu0
  %v2779 = vadd.f32 %v2760, %v2778
  %2780 = vdwg.mxu0
  %2781 = vmatpush.bf16.msra.mxu0 %v1986
  %2782 = vmatpush.bf16.msra.mxu0 %v1984
  %2783 = vmatpush.bf16.msra.mxu0 %v1982
  %2784 = vmatpush.bf16.msra.mxu0 %v1980
  %2785 = vmatpush.bf16.msra.mxu0 %v1978
  %2786 = vmatpush.bf16.msra.mxu0 %v1976
  %2787 = vmatpush.bf16.msra.mxu0 %v1974
  %2788 = vmatpush.bf16.msra.mxu0 %v1972
  %2789 = vmatmul.bf16.gmra.mxu0 %v627
  %v2790 = vpop.f32.mrf.mxu0
  %v2791 = vadd.f32 %v2772, %v2790
  %v2792 = vpop.f32.mrf.mxu0
  %v2793 = vadd.f32 %v2774, %v2792
  %2794 = vmatmul.bf16.gmra.mxu0 %v652
  %v2795 = vpop.f32.mrf.mxu0
  %v2796 = vadd.f32 %v2777, %v2795
  %v2797 = vpop.f32.mrf.mxu0
  %v2798 = vadd.f32 %v2779, %v2797
  %2799 = vdwg.mxu0
  %2800 = vmatpush.bf16.msra.mxu0 %v2002
  %2801 = vmatpush.bf16.msra.mxu0 %v2000
  %2802 = vmatpush.bf16.msra.mxu0 %v1998
  %2803 = vmatpush.bf16.msra.mxu0 %v1996
  %2804 = vmatpush.bf16.msra.mxu0 %v1994
  %2805 = vmatpush.bf16.msra.mxu0 %v1992
  %2806 = vmatpush.bf16.msra.mxu0 %v1990
  %2807 = vmatpush.bf16.msra.mxu0 %v1988
  %2808 = vmatmul.bf16.gmra.mxu0 %v628
  %v2809 = vpop.f32.mrf.mxu0
  %v2810 = vadd.f32 %v2791, %v2809
  %v2811 = vpop.f32.mrf.mxu0
  %v2812 = vadd.f32 %v2793, %v2811
  %2813 = vmatmul.bf16.gmra.mxu0 %v653
  %v2814 = vpop.f32.mrf.mxu0
  %v2815 = vadd.f32 %v2796, %v2814
  %v2816 = vpop.f32.mrf.mxu0
  %v2817 = vadd.f32 %v2798, %v2816
  %2818 = vdwg.mxu0
  %2819 = vmatpush.bf16.msra.mxu0 %v2018
  %2820 = vmatpush.bf16.msra.mxu0 %v2016
  %2821 = vmatpush.bf16.msra.mxu0 %v2014
  %2822 = vmatpush.bf16.msra.mxu0 %v2012
  %2823 = vmatpush.bf16.msra.mxu0 %v2010
  %2824 = vmatpush.bf16.msra.mxu0 %v2008
  %2825 = vmatpush.bf16.msra.mxu0 %v2006
  %2826 = vmatpush.bf16.msra.mxu0 %v2004
  %2827 = vmatmul.bf16.gmra.mxu0 %v629
  %v2828 = vpop.f32.mrf.mxu0
  %v2829 = vadd.f32 %v2810, %v2828
  %v2830 = vpop.f32.mrf.mxu0
  %v2831 = vadd.f32 %v2812, %v2830
  %2832 = vmatmul.bf16.gmra.mxu0 %v654
  %v2833 = vpop.f32.mrf.mxu0
  %v2834 = vadd.f32 %v2815, %v2833
  %v2835 = vpop.f32.mrf.mxu0
  %v2836 = vadd.f32 %v2817, %v2835
  %2837 = vdwg.mxu0
  %2838 = vmatpush.bf16.msra.mxu0 %v2034
  %2839 = vmatpush.bf16.msra.mxu0 %v2032
  %2840 = vmatpush.bf16.msra.mxu0 %v2030
  %2841 = vmatpush.bf16.msra.mxu0 %v2028
  %2842 = vmatpush.bf16.msra.mxu0 %v2026
  %2843 = vmatpush.bf16.msra.mxu0 %v2024
  %2844 = vmatpush.bf16.msra.mxu0 %v2022
  %2845 = vmatpush.bf16.msra.mxu0 %v2020
  %2846 = vmatmul.bf16.gmra.mxu0 %v630
  %v2847 = vpop.f32.mrf.mxu0
  %v2848 = vadd.f32 %v2829, %v2847
  %v2849 = vpop.f32.mrf.mxu0
  %v2850 = vadd.f32 %v2831, %v2849
  %2851 = vmatmul.bf16.gmra.mxu0 %v655
  %v2852 = vpop.f32.mrf.mxu0
  %v2853 = vadd.f32 %v2834, %v2852
  %v2854 = vpop.f32.mrf.mxu0
  %v2855 = vadd.f32 %v2836, %v2854
  %2856 = vdwg.mxu0
  %2857 = vmatpush.bf16.msra.mxu0 %v2050
  %2858 = vmatpush.bf16.msra.mxu0 %v2048
  %2859 = vmatpush.bf16.msra.mxu0 %v2046
  %2860 = vmatpush.bf16.msra.mxu0 %v2044
  %2861 = vmatpush.bf16.msra.mxu0 %v2042
  %2862 = vmatpush.bf16.msra.mxu0 %v2040
  %2863 = vmatpush.bf16.msra.mxu0 %v2038
  %2864 = vmatpush.bf16.msra.mxu0 %v2036
  %2865 = vmatmul.bf16.gmra.mxu0 %v631
  %v2866 = vpop.f32.mrf.mxu0
  %v2867 = vadd.f32 %v2848, %v2866
  %v2868 = vpop.f32.mrf.mxu0
  %v2869 = vadd.f32 %v2850, %v2868
  %2870 = vmatmul.bf16.gmra.mxu0 %v656
  %v2871 = vpop.f32.mrf.mxu0
  %v2872 = vadd.f32 %v2853, %v2871
  %v2873 = vpop.f32.mrf.mxu0
  %v2874 = vadd.f32 %v2855, %v2873
  %2875 = vdwg.mxu0
  %2876 = vmatpush.bf16.msra.mxu0 %v2066
  %2877 = vmatpush.bf16.msra.mxu0 %v2064
  %2878 = vmatpush.bf16.msra.mxu0 %v2062
  %2879 = vmatpush.bf16.msra.mxu0 %v2060
  %2880 = vmatpush.bf16.msra.mxu0 %v2058
  %2881 = vmatpush.bf16.msra.mxu0 %v2056
  %2882 = vmatpush.bf16.msra.mxu0 %v2054
  %2883 = vmatpush.bf16.msra.mxu0 %v2052
  %2884 = vmatmul.bf16.gmra.mxu0 %v632
  %v2885 = vpop.f32.mrf.mxu0
  %v2886 = vadd.f32 %v2867, %v2885
  %v2887 = vpop.f32.mrf.mxu0
  %v2888 = vadd.f32 %v2869, %v2887
  %2889 = vmatmul.bf16.gmra.mxu0 %v657
  %v2890 = vpop.f32.mrf.mxu0
  %v2891 = vadd.f32 %v2872, %v2890
  %v2892 = vpop.f32.mrf.mxu0
  %v2893 = vadd.f32 %v2874, %v2892
  %2894 = vdwg.mxu0
  %2895 = vmatpush.bf16.msra.mxu0 %v2082
  %2896 = vmatpush.bf16.msra.mxu0 %v2080
  %2897 = vmatpush.bf16.msra.mxu0 %v2078
  %2898 = vmatpush.bf16.msra.mxu0 %v2076
  %2899 = vmatpush.bf16.msra.mxu0 %v2074
  %2900 = vmatpush.bf16.msra.mxu0 %v2072
  %2901 = vmatpush.bf16.msra.mxu0 %v2070
  %2902 = vmatpush.bf16.msra.mxu0 %v2068
  %2903 = vmatmul.bf16.gmra.mxu0 %v633
  %v2904 = vpop.f32.mrf.mxu0
  %v2905 = vadd.f32 %v2886, %v2904
  %v2906 = vpop.f32.mrf.mxu0
  %v2907 = vadd.f32 %v2888, %v2906
  %2908 = vmatmul.bf16.gmra.mxu0 %v658
  %v2909 = vpop.f32.mrf.mxu0
  %v2910 = vadd.f32 %v2891, %v2909
  %v2911 = vpop.f32.mrf.mxu0
  %v2912 = vadd.f32 %v2893, %v2911
  %2913 = vdwg.mxu0
  %2914 = vmatpush.bf16.msra.mxu0 %v2098
  %2915 = vmatpush.bf16.msra.mxu0 %v2096
  %2916 = vmatpush.bf16.msra.mxu0 %v2094
  %2917 = vmatpush.bf16.msra.mxu0 %v2092
  %2918 = vmatpush.bf16.msra.mxu0 %v2090
  %2919 = vmatpush.bf16.msra.mxu0 %v2088
  %2920 = vmatpush.bf16.msra.mxu0 %v2086
  %2921 = vmatpush.bf16.msra.mxu0 %v2084
  %2922 = vmatmul.bf16.gmra.mxu0 %v634
  %v2923 = vpop.f32.mrf.mxu0
  %v2924 = vadd.f32 %v2905, %v2923
  %v2925 = vpop.f32.mrf.mxu0
  %v2926 = vadd.f32 %v2907, %v2925
  %2927 = vmatmul.bf16.gmra.mxu0 %v659
  %v2928 = vpop.f32.mrf.mxu0
  %v2929 = vadd.f32 %v2910, %v2928
  %v2930 = vpop.f32.mrf.mxu0
  %v2931 = vadd.f32 %v2912, %v2930
  %2932 = vdwg.mxu0
  %2933 = vmatpush.bf16.msra.mxu0 %v2114
  %2934 = vmatpush.bf16.msra.mxu0 %v2112
  %2935 = vmatpush.bf16.msra.mxu0 %v2110
  %2936 = vmatpush.bf16.msra.mxu0 %v2108
  %2937 = vmatpush.bf16.msra.mxu0 %v2106
  %2938 = vmatpush.bf16.msra.mxu0 %v2104
  %2939 = vmatpush.bf16.msra.mxu0 %v2102
  %2940 = vmatpush.bf16.msra.mxu0 %v2100
  %2941 = vmatmul.bf16.gmra.mxu0 %v635
  %v2942 = vpop.f32.mrf.mxu0
  %v2943 = vadd.f32 %v2924, %v2942
  %v2944 = vpop.f32.mrf.mxu0
  %v2945 = vadd.f32 %v2926, %v2944
  %2946 = vmatmul.bf16.gmra.mxu0 %v660
  %v2947 = vpop.f32.mrf.mxu0
  %v2948 = vadd.f32 %v2929, %v2947
  %v2949 = vpop.f32.mrf.mxu0
  %v2950 = vadd.f32 %v2931, %v2949
  %2951 = vdwg.mxu0
  %2952 = vmatpush.bf16.msra.mxu0 %v2130
  %2953 = vmatpush.bf16.msra.mxu0 %v2128
  %2954 = vmatpush.bf16.msra.mxu0 %v2126
  %2955 = vmatpush.bf16.msra.mxu0 %v2124
  %2956 = vmatpush.bf16.msra.mxu0 %v2122
  %2957 = vmatpush.bf16.msra.mxu0 %v2120
  %2958 = vmatpush.bf16.msra.mxu0 %v2118
  %2959 = vmatpush.bf16.msra.mxu0 %v2116
  %2960 = vmatmul.bf16.gmra.mxu0 %v636
  %v2961 = vpop.f32.mrf.mxu0
  %v2962 = vadd.f32 %v2943, %v2961
  %v2963 = vpop.f32.mrf.mxu0
  %v2964 = vadd.f32 %v2945, %v2963
  %2965 = vmatmul.bf16.gmra.mxu0 %v661
  %v2966 = vpop.f32.mrf.mxu0
  %v2967 = vadd.f32 %v2948, %v2966
  %v2968 = vpop.f32.mrf.mxu0
  %v2969 = vadd.f32 %v2950, %v2968
  %2970 = vdwg.mxu0
  %2971 = vmatpush.bf16.msra.mxu0 %v2146
  %2972 = vmatpush.bf16.msra.mxu0 %v2144
  %2973 = vmatpush.bf16.msra.mxu0 %v2142
  %2974 = vmatpush.bf16.msra.mxu0 %v2140
  %2975 = vmatpush.bf16.msra.mxu0 %v2138
  %2976 = vmatpush.bf16.msra.mxu0 %v2136
  %2977 = vmatpush.bf16.msra.mxu0 %v2134
  %2978 = vmatpush.bf16.msra.mxu0 %v2132
  %2979 = vmatmul.bf16.gmra.mxu0 %v637
  %v2980 = vpop.f32.mrf.mxu0
  %v2981 = vadd.f32 %v2962, %v2980
  %v2982 = vpop.f32.mrf.mxu0
  %v2983 = vadd.f32 %v2964, %v2982
  %2984 = vmatmul.bf16.gmra.mxu0 %v662
  %v2985 = vpop.f32.mrf.mxu0
  %v2986 = vadd.f32 %v2967, %v2985
  %v2987 = vpop.f32.mrf.mxu0
  %v2988 = vadd.f32 %v2969, %v2987
  %2989 = vdwg.mxu0
  %2990 = vmatpush.bf16.msra.mxu0 %v2162
  %2991 = vmatpush.bf16.msra.mxu0 %v2160
  %2992 = vmatpush.bf16.msra.mxu0 %v2158
  %2993 = vmatpush.bf16.msra.mxu0 %v2156
  %2994 = vmatpush.bf16.msra.mxu0 %v2154
  %2995 = vmatpush.bf16.msra.mxu0 %v2152
  %2996 = vmatpush.bf16.msra.mxu0 %v2150
  %2997 = vmatpush.bf16.msra.mxu0 %v2148
  %2998 = vmatmul.bf16.gmra.mxu0 %v638
  %v2999 = vpop.f32.mrf.mxu0
  %v3000 = vadd.f32 %v2981, %v2999
  %v3001 = vpop.f32.mrf.mxu0
  %v3002 = vadd.f32 %v2983, %v3001
  %3003 = vmatmul.bf16.gmra.mxu0 %v663
  %v3004 = vpop.f32.mrf.mxu0
  %v3005 = vadd.f32 %v2986, %v3004
  %v3006 = vpop.f32.mrf.mxu0
  %v3007 = vadd.f32 %v2988, %v3006
  %3008 = vdwg.mxu0
  %3009 = vmatpush.bf16.msra.mxu0 %v2178
  %3010 = vmatpush.bf16.msra.mxu0 %v2176
  %3011 = vmatpush.bf16.msra.mxu0 %v2174
  %3012 = vmatpush.bf16.msra.mxu0 %v2172
  %3013 = vmatpush.bf16.msra.mxu0 %v2170
  %3014 = vmatpush.bf16.msra.mxu0 %v2168
  %3015 = vmatpush.bf16.msra.mxu0 %v2166
  %3016 = vmatpush.bf16.msra.mxu0 %v2164
  %3017 = vmatmul.bf16.gmra.mxu0 %v639
  %v3018 = vpop.f32.mrf.mxu0
  %v3019 = vadd.f32 %v3000, %v3018
  %v3020 = vpop.f32.mrf.mxu0
  %v3021 = vadd.f32 %v3002, %v3020
  %3022 = vmatmul.bf16.gmra.mxu0 %v664
  %v3023 = vpop.f32.mrf.mxu0
  %v3024 = vadd.f32 %v3005, %v3023
  %v3025 = vpop.f32.mrf.mxu0
  %v3026 = vadd.f32 %v3007, %v3025
  %3027 = vdwg.mxu0
  %3028 = vmatpush.bf16.msra.mxu0 %v2194
  %3029 = vmatpush.bf16.msra.mxu0 %v2192
  %3030 = vmatpush.bf16.msra.mxu0 %v2190
  %3031 = vmatpush.bf16.msra.mxu0 %v2188
  %3032 = vmatpush.bf16.msra.mxu0 %v2186
  %3033 = vmatpush.bf16.msra.mxu0 %v2184
  %3034 = vmatpush.bf16.msra.mxu0 %v2182
  %3035 = vmatpush.bf16.msra.mxu0 %v2180
  %3036 = vmatmul.bf16.gmra.mxu0 %v640
  %v3037 = vpop.f32.mrf.mxu0
  %v3038 = vadd.f32 %v3019, %v3037
  %v3039 = vpop.f32.mrf.mxu0
  %v3040 = vadd.f32 %v3021, %v3039
  %3041 = vmatmul.bf16.gmra.mxu0 %v665
  %v3042 = vpop.f32.mrf.mxu0
  %v3043 = vadd.f32 %v3024, %v3042
  %v3044 = vpop.f32.mrf.mxu0
  %v3045 = vadd.f32 %v3026, %v3044
  %3046 = vdwg.mxu0
  %3047 = vmatpush.bf16.msra.mxu0 %v2210
  %3048 = vmatpush.bf16.msra.mxu0 %v2208
  %3049 = vmatpush.bf16.msra.mxu0 %v2206
  %3050 = vmatpush.bf16.msra.mxu0 %v2204
  %3051 = vmatpush.bf16.msra.mxu0 %v2202
  %3052 = vmatpush.bf16.msra.mxu0 %v2200
  %3053 = vmatpush.bf16.msra.mxu0 %v2198
  %3054 = vmatpush.bf16.msra.mxu0 %v2196
  %3055 = vmatmul.bf16.gmra.mxu0 %v641
  %v3056 = vpop.f32.mrf.mxu0
  %v3057 = vadd.f32 %v3038, %v3056
  %v3058 = vpop.f32.mrf.mxu0
  %v3059 = vadd.f32 %v3040, %v3058
  %3060 = vmatmul.bf16.gmra.mxu0 %v666
  %v3061 = vpop.f32.mrf.mxu0
  %v3062 = vadd.f32 %v3043, %v3061
  %v3063 = vpop.f32.mrf.mxu0
  %v3064 = vadd.f32 %v3045, %v3063
  %3065 = vdwg.mxu0
  %3066 = vmatpush.bf16.msra.mxu0 %v2226
  %3067 = vmatpush.bf16.msra.mxu0 %v2224
  %3068 = vmatpush.bf16.msra.mxu0 %v2222
  %3069 = vmatpush.bf16.msra.mxu0 %v2220
  %3070 = vmatpush.bf16.msra.mxu0 %v2218
  %3071 = vmatpush.bf16.msra.mxu0 %v2216
  %3072 = vmatpush.bf16.msra.mxu0 %v2214
  %3073 = vmatpush.bf16.msra.mxu0 %v2212
  %3074 = vmatmul.bf16.gmra.mxu0 %v642
  %v3075 = vpop.f32.mrf.mxu0
  %v3076 = vadd.f32 %v3057, %v3075
  %v3077 = vpop.f32.mrf.mxu0
  %v3078 = vadd.f32 %v3059, %v3077
  %3079 = vmatmul.bf16.gmra.mxu0 %v667
  %v3080 = vpop.f32.mrf.mxu0
  %v3081 = vadd.f32 %v3062, %v3080
  %v3082 = vpop.f32.mrf.mxu0
  %v3083 = vadd.f32 %v3064, %v3082
  %3084 = vdwg.mxu0
  %3085 = vmatpush.bf16.msra.mxu0 %v2242
  %3086 = vmatpush.bf16.msra.mxu0 %v2240
  %3087 = vmatpush.bf16.msra.mxu0 %v2238
  %3088 = vmatpush.bf16.msra.mxu0 %v2236
  %3089 = vmatpush.bf16.msra.mxu0 %v2234
  %3090 = vmatpush.bf16.msra.mxu0 %v2232
  %3091 = vmatpush.bf16.msra.mxu0 %v2230
  %3092 = vmatpush.bf16.msra.mxu0 %v2228
  %3093 = vmatmul.bf16.gmra.mxu0 %v643
  %v3094 = vpop.f32.mrf.mxu0
  %v3095 = vadd.f32 %v3076, %v3094
  %v3096 = vpop.f32.mrf.mxu0
  %v3097 = vadd.f32 %v3078, %v3096
  %3098 = vmatmul.bf16.gmra.mxu0 %v668
  %v3099 = vpop.f32.mrf.mxu0
  %v3100 = vadd.f32 %v3081, %v3099
  %v3101 = vpop.f32.mrf.mxu0
  %v3102 = vadd.f32 %v3083, %v3101
  %3103 = vdwg.mxu0
  %3104 = vmatpush.bf16.msra.mxu0 %v2258
  %3105 = vmatpush.bf16.msra.mxu0 %v2256
  %3106 = vmatpush.bf16.msra.mxu0 %v2254
  %3107 = vmatpush.bf16.msra.mxu0 %v2252
  %3108 = vmatpush.bf16.msra.mxu0 %v2250
  %3109 = vmatpush.bf16.msra.mxu0 %v2248
  %3110 = vmatpush.bf16.msra.mxu0 %v2246
  %3111 = vmatpush.bf16.msra.mxu0 %v2244
  %3112 = vmatmul.bf16.gmra.mxu0 %v644
  %v3113 = vpop.f32.mrf.mxu0
  %v3114 = vadd.f32 %v3095, %v3113
  %v3115 = vpop.f32.mrf.mxu0
  %v3116 = vadd.f32 %v3097, %v3115
  %3117 = vmatmul.bf16.gmra.mxu0 %v669
  %v3118 = vpop.f32.mrf.mxu0
  %v3119 = vadd.f32 %v3100, %v3118
  %v3120 = vpop.f32.mrf.mxu0
  %v3121 = vadd.f32 %v3102, %v3120
  %3122 = vdwg.mxu0
  %3123 = vmatpush.bf16.msra.mxu0 %v2274
  %3124 = vmatpush.bf16.msra.mxu0 %v2272
  %3125 = vmatpush.bf16.msra.mxu0 %v2270
  %3126 = vmatpush.bf16.msra.mxu0 %v2268
  %3127 = vmatpush.bf16.msra.mxu0 %v2266
  %3128 = vmatpush.bf16.msra.mxu0 %v2264
  %3129 = vmatpush.bf16.msra.mxu0 %v2262
  %3130 = vmatpush.bf16.msra.mxu0 %v2260
  %3131 = vmatmul.bf16.gmra.mxu0 %v645
  %v3132 = vpop.f32.mrf.mxu0
  %v3133 = vadd.f32 %v3114, %v3132
  %v3134 = vpop.f32.mrf.mxu0
  %v3135 = vadd.f32 %v3116, %v3134
  %3136 = vmatmul.bf16.gmra.mxu0 %v670
  %v3137 = vpop.f32.mrf.mxu0
  %v3138 = vadd.f32 %v3119, %v3137
  %v3139 = vpop.f32.mrf.mxu0
  %v3140 = vadd.f32 %v3121, %v3139
  %3141 = vdwg.mxu0
  %3142 = vmatpush.bf16.msra.mxu0 %v2290
  %3143 = vmatpush.bf16.msra.mxu0 %v2288
  %3144 = vmatpush.bf16.msra.mxu0 %v2286
  %3145 = vmatpush.bf16.msra.mxu0 %v2284
  %3146 = vmatpush.bf16.msra.mxu0 %v2282
  %3147 = vmatpush.bf16.msra.mxu0 %v2280
  %3148 = vmatpush.bf16.msra.mxu0 %v2278
  %3149 = vmatpush.bf16.msra.mxu0 %v2276
  %3150 = vmatmul.bf16.gmra.mxu0 %v646
  %v3151 = vpop.f32.mrf.mxu0
  %v3152 = vadd.f32 %v3133, %v3151
  %v3153 = vpop.f32.mrf.mxu0
  %v3154 = vadd.f32 %v3135, %v3153
  %3155 = vmatmul.bf16.gmra.mxu0 %v671
  %v3156 = vpop.f32.mrf.mxu0
  %v3157 = vadd.f32 %v3138, %v3156
  %v3158 = vpop.f32.mrf.mxu0
  %v3159 = vadd.f32 %v3140, %v3158
  %3160 = vdwg.mxu0
  %3161 = vmatpush.bf16.msra.mxu0 %v2306
  %3162 = vmatpush.bf16.msra.mxu0 %v2304
  %3163 = vmatpush.bf16.msra.mxu0 %v2302
  %3164 = vmatpush.bf16.msra.mxu0 %v2300
  %3165 = vmatpush.bf16.msra.mxu0 %v2298
  %3166 = vmatpush.bf16.msra.mxu0 %v2296
  %3167 = vmatpush.bf16.msra.mxu0 %v2294
  %3168 = vmatpush.bf16.msra.mxu0 %v2292
  %3169 = vmatmul.bf16.gmra.mxu0 %v647
  %v3170 = vpop.f32.mrf.mxu0
  %v3171 = vadd.f32 %v3152, %v3170
  %v3172 = vpop.f32.mrf.mxu0
  %v3173 = vadd.f32 %v3154, %v3172
  %3174 = vmatmul.bf16.gmra.mxu0 %v672
  %v3175 = vpop.f32.mrf.mxu0
  %v3176 = vadd.f32 %v3157, %v3175
  %v3177 = vpop.f32.mrf.mxu0
  %v3178 = vadd.f32 %v3159, %v3177
  %3179 = vdwg.mxu0
  %3180 = vmatpush.bf16.msra.mxu0 %v2322
  %3181 = vmatpush.bf16.msra.mxu0 %v2320
  %3182 = vmatpush.bf16.msra.mxu0 %v2318
  %3183 = vmatpush.bf16.msra.mxu0 %v2316
  %3184 = vmatpush.bf16.msra.mxu0 %v2314
  %3185 = vmatpush.bf16.msra.mxu0 %v2312
  %3186 = vmatpush.bf16.msra.mxu0 %v2310
  %3187 = vmatpush.bf16.msra.mxu0 %v2308
  %3188 = vmatmul.bf16.gmra.mxu0 %v648
  %v3189 = vpop.f32.mrf.mxu0
  %v3190 = vadd.f32 %v3171, %v3189
  %v3191 = vpop.f32.mrf.mxu0
  %v3192 = vadd.f32 %v3173, %v3191
  %3193 = vmatmul.bf16.gmra.mxu0 %v673
  %v3194 = vpop.f32.mrf.mxu0
  %v3195 = vadd.f32 %v3176, %v3194
  %v3196 = vpop.f32.mrf.mxu0
  %v3197 = vadd.f32 %v3178, %v3196
  %3198 = vdwg.mxu0
  %3199 = vmatpush.bf16.msra.mxu0 %v1939
  %3200 = vmatpush.bf16.msra.mxu0 %v1937
  %3201 = vmatpush.bf16.msra.mxu0 %v1935
  %3202 = vmatpush.bf16.msra.mxu0 %v1933
  %3203 = vmatpush.bf16.msra.mxu0 %v1931
  %3204 = vmatpush.bf16.msra.mxu0 %v1929
  %3205 = vmatpush.bf16.msra.mxu0 %v1927
  %3206 = vmatpush.bf16.msra.mxu0 %v1925
  %3207 = vmatmul.bf16.gmra.mxu0 %v624
  %v3208 = vpop.f32.mrf.mxu0
  %v3209 = vadd.f32 %v469, %v3208
  %v3210 = vpop.f32.mrf.mxu0
  %v3211 = vadd.f32 %v469, %v3210
  %3212 = vmatmul.bf16.gmra.mxu0 %v649
  %v3213 = vpop.f32.mrf.mxu0
  %v3214 = vadd.f32 %v469, %v3213
  %v3215 = vpop.f32.mrf.mxu0
  %v3216 = vadd.f32 %v469, %v3215
  %3217 = vdwg.mxu0
  %3218 = vmatpush.bf16.msra.mxu0 %v1955
  %3219 = vmatpush.bf16.msra.mxu0 %v1953
  %3220 = vmatpush.bf16.msra.mxu0 %v1951
  %3221 = vmatpush.bf16.msra.mxu0 %v1949
  %3222 = vmatpush.bf16.msra.mxu0 %v1947
  %3223 = vmatpush.bf16.msra.mxu0 %v1945
  %3224 = vmatpush.bf16.msra.mxu0 %v1943
  %3225 = vmatpush.bf16.msra.mxu0 %v1941
  %3226 = vmatmul.bf16.gmra.mxu0 %v625
  %v3227 = vpop.f32.mrf.mxu0
  %v3228 = vadd.f32 %v3209, %v3227
  %v3229 = vpop.f32.mrf.mxu0
  %v3230 = vadd.f32 %v3211, %v3229
  %3231 = vmatmul.bf16.gmra.mxu0 %v650
  %v3232 = vpop.f32.mrf.mxu0
  %v3233 = vadd.f32 %v3214, %v3232
  %v3234 = vpop.f32.mrf.mxu0
  %v3235 = vadd.f32 %v3216, %v3234
  %3236 = vdwg.mxu0
  %3237 = vmatpush.bf16.msra.mxu0 %v1971
  %3238 = vmatpush.bf16.msra.mxu0 %v1969
  %3239 = vmatpush.bf16.msra.mxu0 %v1967
  %3240 = vmatpush.bf16.msra.mxu0 %v1965
  %3241 = vmatpush.bf16.msra.mxu0 %v1963
  %3242 = vmatpush.bf16.msra.mxu0 %v1961
  %3243 = vmatpush.bf16.msra.mxu0 %v1959
  %3244 = vmatpush.bf16.msra.mxu0 %v1957
  %3245 = vmatmul.bf16.gmra.mxu0 %v626
  %v3246 = vpop.f32.mrf.mxu0
  %v3247 = vadd.f32 %v3228, %v3246
  %v3248 = vpop.f32.mrf.mxu0
  %v3249 = vadd.f32 %v3230, %v3248
  %3250 = vmatmul.bf16.gmra.mxu0 %v651
  %v3251 = vpop.f32.mrf.mxu0
  %v3252 = vadd.f32 %v3233, %v3251
  %v3253 = vpop.f32.mrf.mxu0
  %v3254 = vadd.f32 %v3235, %v3253
  %3255 = vdwg.mxu0
  %3256 = vmatpush.bf16.msra.mxu0 %v1987
  %3257 = vmatpush.bf16.msra.mxu0 %v1985
  %3258 = vmatpush.bf16.msra.mxu0 %v1983
  %3259 = vmatpush.bf16.msra.mxu0 %v1981
  %3260 = vmatpush.bf16.msra.mxu0 %v1979
  %3261 = vmatpush.bf16.msra.mxu0 %v1977
  %3262 = vmatpush.bf16.msra.mxu0 %v1975
  %3263 = vmatpush.bf16.msra.mxu0 %v1973
  %3264 = vmatmul.bf16.gmra.mxu0 %v627
  %v3265 = vpop.f32.mrf.mxu0
  %v3266 = vadd.f32 %v3247, %v3265
  %v3267 = vpop.f32.mrf.mxu0
  %v3268 = vadd.f32 %v3249, %v3267
  %3269 = vmatmul.bf16.gmra.mxu0 %v652
  %v3270 = vpop.f32.mrf.mxu0
  %v3271 = vadd.f32 %v3252, %v3270
  %v3272 = vpop.f32.mrf.mxu0
  %v3273 = vadd.f32 %v3254, %v3272
  %3274 = vdwg.mxu0
  %3275 = vmatpush.bf16.msra.mxu0 %v2003
  %3276 = vmatpush.bf16.msra.mxu0 %v2001
  %3277 = vmatpush.bf16.msra.mxu0 %v1999
  %3278 = vmatpush.bf16.msra.mxu0 %v1997
  %3279 = vmatpush.bf16.msra.mxu0 %v1995
  %3280 = vmatpush.bf16.msra.mxu0 %v1993
  %3281 = vmatpush.bf16.msra.mxu0 %v1991
  %3282 = vmatpush.bf16.msra.mxu0 %v1989
  %3283 = vmatmul.bf16.gmra.mxu0 %v628
  %v3284 = vpop.f32.mrf.mxu0
  %v3285 = vadd.f32 %v3266, %v3284
  %v3286 = vpop.f32.mrf.mxu0
  %v3287 = vadd.f32 %v3268, %v3286
  %3288 = vmatmul.bf16.gmra.mxu0 %v653
  %v3289 = vpop.f32.mrf.mxu0
  %v3290 = vadd.f32 %v3271, %v3289
  %v3291 = vpop.f32.mrf.mxu0
  %v3292 = vadd.f32 %v3273, %v3291
  %3293 = vdwg.mxu0
  %3294 = vmatpush.bf16.msra.mxu0 %v2019
  %3295 = vmatpush.bf16.msra.mxu0 %v2017
  %3296 = vmatpush.bf16.msra.mxu0 %v2015
  %3297 = vmatpush.bf16.msra.mxu0 %v2013
  %3298 = vmatpush.bf16.msra.mxu0 %v2011
  %3299 = vmatpush.bf16.msra.mxu0 %v2009
  %3300 = vmatpush.bf16.msra.mxu0 %v2007
  %3301 = vmatpush.bf16.msra.mxu0 %v2005
  %3302 = vmatmul.bf16.gmra.mxu0 %v629
  %v3303 = vpop.f32.mrf.mxu0
  %v3304 = vadd.f32 %v3285, %v3303
  %v3305 = vpop.f32.mrf.mxu0
  %v3306 = vadd.f32 %v3287, %v3305
  %3307 = vmatmul.bf16.gmra.mxu0 %v654
  %v3308 = vpop.f32.mrf.mxu0
  %v3309 = vadd.f32 %v3290, %v3308
  %v3310 = vpop.f32.mrf.mxu0
  %v3311 = vadd.f32 %v3292, %v3310
  %3312 = vdwg.mxu0
  %3313 = vmatpush.bf16.msra.mxu0 %v2035
  %3314 = vmatpush.bf16.msra.mxu0 %v2033
  %3315 = vmatpush.bf16.msra.mxu0 %v2031
  %3316 = vmatpush.bf16.msra.mxu0 %v2029
  %3317 = vmatpush.bf16.msra.mxu0 %v2027
  %3318 = vmatpush.bf16.msra.mxu0 %v2025
  %3319 = vmatpush.bf16.msra.mxu0 %v2023
  %3320 = vmatpush.bf16.msra.mxu0 %v2021
  %3321 = vmatmul.bf16.gmra.mxu0 %v630
  %v3322 = vpop.f32.mrf.mxu0
  %v3323 = vadd.f32 %v3304, %v3322
  %v3324 = vpop.f32.mrf.mxu0
  %v3325 = vadd.f32 %v3306, %v3324
  %3326 = vmatmul.bf16.gmra.mxu0 %v655
  %v3327 = vpop.f32.mrf.mxu0
  %v3328 = vadd.f32 %v3309, %v3327
  %v3329 = vpop.f32.mrf.mxu0
  %v3330 = vadd.f32 %v3311, %v3329
  %3331 = vdwg.mxu0
  %3332 = vmatpush.bf16.msra.mxu0 %v2051
  %3333 = vmatpush.bf16.msra.mxu0 %v2049
  %3334 = vmatpush.bf16.msra.mxu0 %v2047
  %3335 = vmatpush.bf16.msra.mxu0 %v2045
  %3336 = vmatpush.bf16.msra.mxu0 %v2043
  %3337 = vmatpush.bf16.msra.mxu0 %v2041
  %3338 = vmatpush.bf16.msra.mxu0 %v2039
  %3339 = vmatpush.bf16.msra.mxu0 %v2037
  %3340 = vmatmul.bf16.gmra.mxu0 %v631
  %v3341 = vpop.f32.mrf.mxu0
  %v3342 = vadd.f32 %v3323, %v3341
  %v3343 = vpop.f32.mrf.mxu0
  %v3344 = vadd.f32 %v3325, %v3343
  %3345 = vmatmul.bf16.gmra.mxu0 %v656
  %v3346 = vpop.f32.mrf.mxu0
  %v3347 = vadd.f32 %v3328, %v3346
  %v3348 = vpop.f32.mrf.mxu0
  %v3349 = vadd.f32 %v3330, %v3348
  %3350 = vdwg.mxu0
  %3351 = vmatpush.bf16.msra.mxu0 %v2067
  %3352 = vmatpush.bf16.msra.mxu0 %v2065
  %3353 = vmatpush.bf16.msra.mxu0 %v2063
  %3354 = vmatpush.bf16.msra.mxu0 %v2061
  %3355 = vmatpush.bf16.msra.mxu0 %v2059
  %3356 = vmatpush.bf16.msra.mxu0 %v2057
  %3357 = vmatpush.bf16.msra.mxu0 %v2055
  %3358 = vmatpush.bf16.msra.mxu0 %v2053
  %3359 = vmatmul.bf16.gmra.mxu0 %v632
  %v3360 = vpop.f32.mrf.mxu0
  %v3361 = vadd.f32 %v3342, %v3360
  %v3362 = vpop.f32.mrf.mxu0
  %v3363 = vadd.f32 %v3344, %v3362
  %3364 = vmatmul.bf16.gmra.mxu0 %v657
  %v3365 = vpop.f32.mrf.mxu0
  %v3366 = vadd.f32 %v3347, %v3365
  %v3367 = vpop.f32.mrf.mxu0
  %v3368 = vadd.f32 %v3349, %v3367
  %3369 = vdwg.mxu0
  %3370 = vmatpush.bf16.msra.mxu0 %v2083
  %3371 = vmatpush.bf16.msra.mxu0 %v2081
  %3372 = vmatpush.bf16.msra.mxu0 %v2079
  %3373 = vmatpush.bf16.msra.mxu0 %v2077
  %3374 = vmatpush.bf16.msra.mxu0 %v2075
  %3375 = vmatpush.bf16.msra.mxu0 %v2073
  %3376 = vmatpush.bf16.msra.mxu0 %v2071
  %3377 = vmatpush.bf16.msra.mxu0 %v2069
  %3378 = vmatmul.bf16.gmra.mxu0 %v633
  %v3379 = vpop.f32.mrf.mxu0
  %v3380 = vadd.f32 %v3361, %v3379
  %v3381 = vpop.f32.mrf.mxu0
  %v3382 = vadd.f32 %v3363, %v3381
  %3383 = vmatmul.bf16.gmra.mxu0 %v658
  %v3384 = vpop.f32.mrf.mxu0
  %v3385 = vadd.f32 %v3366, %v3384
  %v3386 = vpop.f32.mrf.mxu0
  %v3387 = vadd.f32 %v3368, %v3386
  %3388 = vdwg.mxu0
  %3389 = vmatpush.bf16.msra.mxu0 %v2099
  %3390 = vmatpush.bf16.msra.mxu0 %v2097
  %3391 = vmatpush.bf16.msra.mxu0 %v2095
  %3392 = vmatpush.bf16.msra.mxu0 %v2093
  %3393 = vmatpush.bf16.msra.mxu0 %v2091
  %3394 = vmatpush.bf16.msra.mxu0 %v2089
  %3395 = vmatpush.bf16.msra.mxu0 %v2087
  %3396 = vmatpush.bf16.msra.mxu0 %v2085
  %3397 = vmatmul.bf16.gmra.mxu0 %v634
  %v3398 = vpop.f32.mrf.mxu0
  %v3399 = vadd.f32 %v3380, %v3398
  %v3400 = vpop.f32.mrf.mxu0
  %v3401 = vadd.f32 %v3382, %v3400
  %3402 = vmatmul.bf16.gmra.mxu0 %v659
  %v3403 = vpop.f32.mrf.mxu0
  %v3404 = vadd.f32 %v3385, %v3403
  %v3405 = vpop.f32.mrf.mxu0
  %v3406 = vadd.f32 %v3387, %v3405
  %3407 = vdwg.mxu0
  %3408 = vmatpush.bf16.msra.mxu0 %v2115
  %3409 = vmatpush.bf16.msra.mxu0 %v2113
  %3410 = vmatpush.bf16.msra.mxu0 %v2111
  %3411 = vmatpush.bf16.msra.mxu0 %v2109
  %3412 = vmatpush.bf16.msra.mxu0 %v2107
  %3413 = vmatpush.bf16.msra.mxu0 %v2105
  %3414 = vmatpush.bf16.msra.mxu0 %v2103
  %3415 = vmatpush.bf16.msra.mxu0 %v2101
  %3416 = vmatmul.bf16.gmra.mxu0 %v635
  %v3417 = vpop.f32.mrf.mxu0
  %v3418 = vadd.f32 %v3399, %v3417
  %v3419 = vpop.f32.mrf.mxu0
  %v3420 = vadd.f32 %v3401, %v3419
  %3421 = vmatmul.bf16.gmra.mxu0 %v660
  %v3422 = vpop.f32.mrf.mxu0
  %v3423 = vadd.f32 %v3404, %v3422
  %v3424 = vpop.f32.mrf.mxu0
  %v3425 = vadd.f32 %v3406, %v3424
  %3426 = vdwg.mxu0
  %3427 = vmatpush.bf16.msra.mxu0 %v2131
  %3428 = vmatpush.bf16.msra.mxu0 %v2129
  %3429 = vmatpush.bf16.msra.mxu0 %v2127
  %3430 = vmatpush.bf16.msra.mxu0 %v2125
  %3431 = vmatpush.bf16.msra.mxu0 %v2123
  %3432 = vmatpush.bf16.msra.mxu0 %v2121
  %3433 = vmatpush.bf16.msra.mxu0 %v2119
  %3434 = vmatpush.bf16.msra.mxu0 %v2117
  %3435 = vmatmul.bf16.gmra.mxu0 %v636
  %v3436 = vpop.f32.mrf.mxu0
  %v3437 = vadd.f32 %v3418, %v3436
  %v3438 = vpop.f32.mrf.mxu0
  %v3439 = vadd.f32 %v3420, %v3438
  %3440 = vmatmul.bf16.gmra.mxu0 %v661
  %v3441 = vpop.f32.mrf.mxu0
  %v3442 = vadd.f32 %v3423, %v3441
  %v3443 = vpop.f32.mrf.mxu0
  %v3444 = vadd.f32 %v3425, %v3443
  %3445 = vdwg.mxu0
  %3446 = vmatpush.bf16.msra.mxu0 %v2147
  %3447 = vmatpush.bf16.msra.mxu0 %v2145
  %3448 = vmatpush.bf16.msra.mxu0 %v2143
  %3449 = vmatpush.bf16.msra.mxu0 %v2141
  %3450 = vmatpush.bf16.msra.mxu0 %v2139
  %3451 = vmatpush.bf16.msra.mxu0 %v2137
  %3452 = vmatpush.bf16.msra.mxu0 %v2135
  %3453 = vmatpush.bf16.msra.mxu0 %v2133
  %3454 = vmatmul.bf16.gmra.mxu0 %v637
  %v3455 = vpop.f32.mrf.mxu0
  %v3456 = vadd.f32 %v3437, %v3455
  %v3457 = vpop.f32.mrf.mxu0
  %v3458 = vadd.f32 %v3439, %v3457
  %3459 = vmatmul.bf16.gmra.mxu0 %v662
  %v3460 = vpop.f32.mrf.mxu0
  %v3461 = vadd.f32 %v3442, %v3460
  %v3462 = vpop.f32.mrf.mxu0
  %v3463 = vadd.f32 %v3444, %v3462
  %3464 = vdwg.mxu0
  %3465 = vmatpush.bf16.msra.mxu0 %v2163
  %3466 = vmatpush.bf16.msra.mxu0 %v2161
  %3467 = vmatpush.bf16.msra.mxu0 %v2159
  %3468 = vmatpush.bf16.msra.mxu0 %v2157
  %3469 = vmatpush.bf16.msra.mxu0 %v2155
  %3470 = vmatpush.bf16.msra.mxu0 %v2153
  %3471 = vmatpush.bf16.msra.mxu0 %v2151
  %3472 = vmatpush.bf16.msra.mxu0 %v2149
  %3473 = vmatmul.bf16.gmra.mxu0 %v638
  %v3474 = vpop.f32.mrf.mxu0
  %v3475 = vadd.f32 %v3456, %v3474
  %v3476 = vpop.f32.mrf.mxu0
  %v3477 = vadd.f32 %v3458, %v3476
  %3478 = vmatmul.bf16.gmra.mxu0 %v663
  %v3479 = vpop.f32.mrf.mxu0
  %v3480 = vadd.f32 %v3461, %v3479
  %v3481 = vpop.f32.mrf.mxu0
  %v3482 = vadd.f32 %v3463, %v3481
  %3483 = vdwg.mxu0
  %3484 = vmatpush.bf16.msra.mxu0 %v2179
  %3485 = vmatpush.bf16.msra.mxu0 %v2177
  %3486 = vmatpush.bf16.msra.mxu0 %v2175
  %3487 = vmatpush.bf16.msra.mxu0 %v2173
  %3488 = vmatpush.bf16.msra.mxu0 %v2171
  %3489 = vmatpush.bf16.msra.mxu0 %v2169
  %3490 = vmatpush.bf16.msra.mxu0 %v2167
  %3491 = vmatpush.bf16.msra.mxu0 %v2165
  %3492 = vmatmul.bf16.gmra.mxu0 %v639
  %v3493 = vpop.f32.mrf.mxu0
  %v3494 = vadd.f32 %v3475, %v3493
  %v3495 = vpop.f32.mrf.mxu0
  %v3496 = vadd.f32 %v3477, %v3495
  %3497 = vmatmul.bf16.gmra.mxu0 %v664
  %v3498 = vpop.f32.mrf.mxu0
  %v3499 = vadd.f32 %v3480, %v3498
  %v3500 = vpop.f32.mrf.mxu0
  %v3501 = vadd.f32 %v3482, %v3500
  %3502 = vdwg.mxu0
  %3503 = vmatpush.bf16.msra.mxu0 %v2195
  %3504 = vmatpush.bf16.msra.mxu0 %v2193
  %3505 = vmatpush.bf16.msra.mxu0 %v2191
  %3506 = vmatpush.bf16.msra.mxu0 %v2189
  %3507 = vmatpush.bf16.msra.mxu0 %v2187
  %3508 = vmatpush.bf16.msra.mxu0 %v2185
  %3509 = vmatpush.bf16.msra.mxu0 %v2183
  %3510 = vmatpush.bf16.msra.mxu0 %v2181
  %3511 = vmatmul.bf16.gmra.mxu0 %v640
  %v3512 = vpop.f32.mrf.mxu0
  %v3513 = vadd.f32 %v3494, %v3512
  %v3514 = vpop.f32.mrf.mxu0
  %v3515 = vadd.f32 %v3496, %v3514
  %3516 = vmatmul.bf16.gmra.mxu0 %v665
  %v3517 = vpop.f32.mrf.mxu0
  %v3518 = vadd.f32 %v3499, %v3517
  %v3519 = vpop.f32.mrf.mxu0
  %v3520 = vadd.f32 %v3501, %v3519
  %3521 = vdwg.mxu0
  %3522 = vmatpush.bf16.msra.mxu0 %v2211
  %3523 = vmatpush.bf16.msra.mxu0 %v2209
  %3524 = vmatpush.bf16.msra.mxu0 %v2207
  %3525 = vmatpush.bf16.msra.mxu0 %v2205
  %3526 = vmatpush.bf16.msra.mxu0 %v2203
  %3527 = vmatpush.bf16.msra.mxu0 %v2201
  %3528 = vmatpush.bf16.msra.mxu0 %v2199
  %3529 = vmatpush.bf16.msra.mxu0 %v2197
  %3530 = vmatmul.bf16.gmra.mxu0 %v641
  %v3531 = vpop.f32.mrf.mxu0
  %v3532 = vadd.f32 %v3513, %v3531
  %v3533 = vpop.f32.mrf.mxu0
  %v3534 = vadd.f32 %v3515, %v3533
  %3535 = vmatmul.bf16.gmra.mxu0 %v666
  %v3536 = vpop.f32.mrf.mxu0
  %v3537 = vadd.f32 %v3518, %v3536
  %v3538 = vpop.f32.mrf.mxu0
  %v3539 = vadd.f32 %v3520, %v3538
  %3540 = vdwg.mxu0
  %3541 = vmatpush.bf16.msra.mxu0 %v2227
  %3542 = vmatpush.bf16.msra.mxu0 %v2225
  %3543 = vmatpush.bf16.msra.mxu0 %v2223
  %3544 = vmatpush.bf16.msra.mxu0 %v2221
  %3545 = vmatpush.bf16.msra.mxu0 %v2219
  %3546 = vmatpush.bf16.msra.mxu0 %v2217
  %3547 = vmatpush.bf16.msra.mxu0 %v2215
  %3548 = vmatpush.bf16.msra.mxu0 %v2213
  %3549 = vmatmul.bf16.gmra.mxu0 %v642
  %v3550 = vpop.f32.mrf.mxu0
  %v3551 = vadd.f32 %v3532, %v3550
  %v3552 = vpop.f32.mrf.mxu0
  %v3553 = vadd.f32 %v3534, %v3552
  %3554 = vmatmul.bf16.gmra.mxu0 %v667
  %v3555 = vpop.f32.mrf.mxu0
  %v3556 = vadd.f32 %v3537, %v3555
  %v3557 = vpop.f32.mrf.mxu0
  %v3558 = vadd.f32 %v3539, %v3557
  %3559 = vdwg.mxu0
  %3560 = vmatpush.bf16.msra.mxu0 %v2243
  %3561 = vmatpush.bf16.msra.mxu0 %v2241
  %3562 = vmatpush.bf16.msra.mxu0 %v2239
  %3563 = vmatpush.bf16.msra.mxu0 %v2237
  %3564 = vmatpush.bf16.msra.mxu0 %v2235
  %3565 = vmatpush.bf16.msra.mxu0 %v2233
  %3566 = vmatpush.bf16.msra.mxu0 %v2231
  %3567 = vmatpush.bf16.msra.mxu0 %v2229
  %3568 = vmatmul.bf16.gmra.mxu0 %v643
  %v3569 = vpop.f32.mrf.mxu0
  %v3570 = vadd.f32 %v3551, %v3569
  %v3571 = vpop.f32.mrf.mxu0
  %v3572 = vadd.f32 %v3553, %v3571
  %3573 = vmatmul.bf16.gmra.mxu0 %v668
  %v3574 = vpop.f32.mrf.mxu0
  %v3575 = vadd.f32 %v3556, %v3574
  %v3576 = vpop.f32.mrf.mxu0
  %v3577 = vadd.f32 %v3558, %v3576
  %3578 = vdwg.mxu0
  %3579 = vmatpush.bf16.msra.mxu0 %v2259
  %3580 = vmatpush.bf16.msra.mxu0 %v2257
  %3581 = vmatpush.bf16.msra.mxu0 %v2255
  %3582 = vmatpush.bf16.msra.mxu0 %v2253
  %3583 = vmatpush.bf16.msra.mxu0 %v2251
  %3584 = vmatpush.bf16.msra.mxu0 %v2249
  %3585 = vmatpush.bf16.msra.mxu0 %v2247
  %3586 = vmatpush.bf16.msra.mxu0 %v2245
  %3587 = vmatmul.bf16.gmra.mxu0 %v644
  %v3588 = vpop.f32.mrf.mxu0
  %v3589 = vadd.f32 %v3570, %v3588
  %v3590 = vpop.f32.mrf.mxu0
  %v3591 = vadd.f32 %v3572, %v3590
  %3592 = vmatmul.bf16.gmra.mxu0 %v669
  %v3593 = vpop.f32.mrf.mxu0
  %v3594 = vadd.f32 %v3575, %v3593
  %v3595 = vpop.f32.mrf.mxu0
  %v3596 = vadd.f32 %v3577, %v3595
  %3597 = vdwg.mxu0
  %3598 = vmatpush.bf16.msra.mxu0 %v2275
  %3599 = vmatpush.bf16.msra.mxu0 %v2273
  %3600 = vmatpush.bf16.msra.mxu0 %v2271
  %3601 = vmatpush.bf16.msra.mxu0 %v2269
  %3602 = vmatpush.bf16.msra.mxu0 %v2267
  %3603 = vmatpush.bf16.msra.mxu0 %v2265
  %3604 = vmatpush.bf16.msra.mxu0 %v2263
  %3605 = vmatpush.bf16.msra.mxu0 %v2261
  %3606 = vmatmul.bf16.gmra.mxu0 %v645
  %v3607 = vpop.f32.mrf.mxu0
  %v3608 = vadd.f32 %v3589, %v3607
  %v3609 = vpop.f32.mrf.mxu0
  %v3610 = vadd.f32 %v3591, %v3609
  %3611 = vmatmul.bf16.gmra.mxu0 %v670
  %v3612 = vpop.f32.mrf.mxu0
  %v3613 = vadd.f32 %v3594, %v3612
  %v3614 = vpop.f32.mrf.mxu0
  %v3615 = vadd.f32 %v3596, %v3614
  %3616 = vdwg.mxu0
  %3617 = vmatpush.bf16.msra.mxu0 %v2291
  %3618 = vmatpush.bf16.msra.mxu0 %v2289
  %3619 = vmatpush.bf16.msra.mxu0 %v2287
  %3620 = vmatpush.bf16.msra.mxu0 %v2285
  %3621 = vmatpush.bf16.msra.mxu0 %v2283
  %3622 = vmatpush.bf16.msra.mxu0 %v2281
  %3623 = vmatpush.bf16.msra.mxu0 %v2279
  %3624 = vmatpush.bf16.msra.mxu0 %v2277
  %3625 = vmatmul.bf16.gmra.mxu0 %v646
  %v3626 = vpop.f32.mrf.mxu0
  %v3627 = vadd.f32 %v3608, %v3626
  %v3628 = vpop.f32.mrf.mxu0
  %v3629 = vadd.f32 %v3610, %v3628
  %3630 = vmatmul.bf16.gmra.mxu0 %v671
  %v3631 = vpop.f32.mrf.mxu0
  %v3632 = vadd.f32 %v3613, %v3631
  %v3633 = vpop.f32.mrf.mxu0
  %v3634 = vadd.f32 %v3615, %v3633
  %3635 = vdwg.mxu0
  %3636 = vmatpush.bf16.msra.mxu0 %v2307
  %3637 = vmatpush.bf16.msra.mxu0 %v2305
  %3638 = vmatpush.bf16.msra.mxu0 %v2303
  %3639 = vmatpush.bf16.msra.mxu0 %v2301
  %3640 = vmatpush.bf16.msra.mxu0 %v2299
  %3641 = vmatpush.bf16.msra.mxu0 %v2297
  %3642 = vmatpush.bf16.msra.mxu0 %v2295
  %3643 = vmatpush.bf16.msra.mxu0 %v2293
  %3644 = vmatmul.bf16.gmra.mxu0 %v647
  %v3645 = vpop.f32.mrf.mxu0
  %v3646 = vadd.f32 %v3627, %v3645
  %v3647 = vpop.f32.mrf.mxu0
  %v3648 = vadd.f32 %v3629, %v3647
  %3649 = vmatmul.bf16.gmra.mxu0 %v672
  %v3650 = vpop.f32.mrf.mxu0
  %v3651 = vadd.f32 %v3632, %v3650
  %v3652 = vpop.f32.mrf.mxu0
  %v3653 = vadd.f32 %v3634, %v3652
  %3654 = vdwg.mxu0
  %3655 = vmatpush.bf16.msra.mxu0 %v2323
  %3656 = vmatpush.bf16.msra.mxu0 %v2321
  %3657 = vmatpush.bf16.msra.mxu0 %v2319
  %3658 = vmatpush.bf16.msra.mxu0 %v2317
  %3659 = vmatpush.bf16.msra.mxu0 %v2315
  %3660 = vmatpush.bf16.msra.mxu0 %v2313
  %3661 = vmatpush.bf16.msra.mxu0 %v2311
  %3662 = vmatpush.bf16.msra.mxu0 %v2309
  %3663 = vmatmul.bf16.gmra.mxu0 %v648
  %v3664 = vpop.f32.mrf.mxu0
  %v3665 = vadd.f32 %v3646, %v3664
  %v3666 = vpop.f32.mrf.mxu0
  %v3667 = vadd.f32 %v3648, %v3666
  %3668 = vmatmul.bf16.gmra.mxu0 %v673
  %v3669 = vpop.f32.mrf.mxu0
  %v3670 = vadd.f32 %v3651, %v3669
  %v3671 = vpop.f32.mrf.mxu0
  %v3672 = vadd.f32 %v3653, %v3671
  %3673 = vdwg.mxu0
  %v3674 = vmax.f32 %v3190, 0.0
  %v3675 = vmax.f32 %v3665, 0.0
  %v3676 = vmax.f32 %v3192, 0.0
  %v3677 = vmax.f32 %v3667, 0.0
  %v3678 = vmax.f32 %v3195, 0.0
  %v3679 = vmax.f32 %v3670, 0.0
  %v3680 = vmax.f32 %v3197, 0.0
  %v3681 = vmax.f32 %v3672, 0.0
  %v3682 = vpack.c.bf16 %v3675, %v3674
  %v3683 = vpack.c.bf16 %v3677, %v3676
  %v3684 = vpack.c.bf16 %v3679, %v3678
  %v3685 = vpack.c.bf16 %v3681, %v3680
  %3686 = vst [vmem:[%s3] sm:$0xff] %v3682
  %3687 = vst [vmem:[%s3 + $0x8] sm:$0xff] %v3683
  %3688 = vst [vmem:[%s3 + $0x10] sm:$0xff] %v3684
  %3689 = vst [vmem:[%s3 + $0x18] sm:$0xff] %v3685
  // Predicated region
  $region14: #{dtn_forward.6} parent=0 // pred_check
    _
  $region15: #{dtn_forward.6} parent=0 // pred_check_branch
    %3691 = sbr.rel (0) target = $region17
  $region16: #{dtn_forward.6} parent=0 // pred_region
    _
  $region17: #{dtn_forward.6} parent=0 // pred_fallthru
    _
  // Predicated region
  $region18: #{dtn_forward.6} parent=0 // pred_check
    _
  $region19: #{dtn_forward.6} parent=0 // pred_check_branch
    %3693 = sbr.rel (0) target = $region21
  $region20: #{dtn_forward.6} parent=0 // pred_region
    _
  $region21: #{dtn_forward.6} parent=0 // pred_fallthru
    _

// kernel: dtn_forward.7
$region0: #{dtn_forward.7}
  #allocation0 [shape = 'u32[]', space=smem, size = 0x4, offset = 0x4, fixed_abs, tag = 'smem constant byte address 0x4 - core index']
  #allocation1 [shape = 'u32[72,128]{1,0:T(1,128)}', space=vmem, size = 0x9000, scoped, tag = 'internal scratch']
  %s0 = inlined_call_operand.vmem [shape: bf16[16,4096], index: 0, kind: input, shape index: {}]
  %s1 = inlined_call_operand.vmem [shape: bf16[4096,512], index: 1, kind: input, shape index: {}]
  %s2 = inlined_call_operand.vmem [shape: f32[1,512], index: 2, kind: input, shape index: {}]
  %s3 = inlined_call_operand.vmem [shape: bf16[512,128], index: 3, kind: input, shape index: {}]
  %s4 = inlined_call_operand.vmem [shape: f32[1,128], index: 4, kind: input, shape index: {}]
  %s5 = inlined_call_operand.vmem [shape: f32[16,128], index: 5, kind: output, shape index: {}]
  %s6 = sld [smem:[#allocation0]]
  $region30: #{dtn_forward.7} parent=0
    _
  %s8 = ssub.s32 1, %s6
  %s9 = scalar_select 0, %s8, %s6
  // Predicated region
  $region2: #{dtn_forward.7} parent=0 // pred_check
    _
  $region3: #{dtn_forward.7} parent=0 // pred_check_branch
    %11 = sbr.rel (0) target = $region5
  $region4: #{dtn_forward.7} parent=0 // pred_region
    _
  $region5: #{dtn_forward.7} parent=0 // pred_fallthru
    _
  // Predicated region
  $region6: #{dtn_forward.7} parent=0 // pred_check
    _
  $region7: #{dtn_forward.7} parent=0 // pred_check_branch
    %13 = sbr.rel (0) target = $region9
  $region8: #{dtn_forward.7} parent=0 // pred_region
    _
  $region9: #{dtn_forward.7} parent=0 // pred_fallthru
    _
  // Predicated region
  $region10: #{dtn_forward.7} parent=0 // pred_check
    _
  $region11: #{dtn_forward.7} parent=0 // pred_check_branch
    %15 = sbr.rel (0) target = $region13
  $region12: #{dtn_forward.7} parent=0 // pred_region
    _
  $region13: #{dtn_forward.7} parent=0 // pred_fallthru
    _
  // Predicated region
  $region14: #{dtn_forward.7} parent=0 // pred_check
    _
  $region15: #{dtn_forward.7} parent=0 // pred_check_branch
    %17 = sbr.rel (0) target = $region17
  $region16: #{dtn_forward.7} parent=0 // pred_region
    _
  $region17: #{dtn_forward.7} parent=0 // pred_fallthru
    _
  // Predicated region
  $region18: #{dtn_forward.7} parent=0 // pred_check
    _
  $region19: #{dtn_forward.7} parent=0 // pred_check_branch
    %19 = sbr.rel (0) target = $region21
  $region20: #{dtn_forward.7} parent=0 // pred_region
    _
  $region21: #{dtn_forward.7} parent=0 // pred_fallthru
    _
  %v20 = vld [vmem:[%s0] sm:$0xff]
  %v21 = vld [vmem:[%s0 + $0x8] sm:$0xff]
  %v22 = vld [vmem:[%s0 + $0x10] sm:$0xff]
  %v23 = vld [vmem:[%s0 + $0x18] sm:$0xff]
  %v24 = vld [vmem:[%s0 + $0x20] sm:$0xff]
  %v25 = vld [vmem:[%s0 + $0x28] sm:$0xff]
  %v26 = vld [vmem:[%s0 + $0x30] sm:$0xff]
  %v27 = vld [vmem:[%s0 + $0x38] sm:$0xff]
  %v28 = vld [vmem:[%s0 + $0x40] sm:$0xff]
  %v29 = vld [vmem:[%s0 + $0x48] sm:$0xff]
  %v30 = vld [vmem:[%s0 + $0x50] sm:$0xff]
  %v31 = vld [vmem:[%s0 + $0x58] sm:$0xff]
  %v32 = vld [vmem:[%s0 + $0x60] sm:$0xff]
  %v33 = vld [vmem:[%s0 + $0x68] sm:$0xff]
  %v34 = vld [vmem:[%s0 + $0x70] sm:$0xff]
  %v35 = vld [vmem:[%s0 + $0x78] sm:$0xff]
  %v36 = vld [vmem:[%s0 + $0x80] sm:$0xff]
  %v37 = vld [vmem:[%s0 + $0x88] sm:$0xff]
  %v38 = vld [vmem:[%s0 + $0x90] sm:$0xff]
  %v39 = vld [vmem:[%s0 + $0x98] sm:$0xff]
  %v40 = vld [vmem:[%s0 + $0xa0] sm:$0xff]
  %v41 = vld [vmem:[%s0 + $0xa8] sm:$0xff]
  %v42 = vld [vmem:[%s0 + $0xb0] sm:$0xff]
  %v43 = vld [vmem:[%s0 + $0xb8] sm:$0xff]
  %v44 = vld [vmem:[%s0 + $0xc0] sm:$0xff]
  %v45 = vld [vmem:[%s0 + $0xc8] sm:$0xff]
  %v46 = vld [vmem:[%s0 + $0xd0] sm:$0xff]
  %v47 = vld [vmem:[%s0 + $0xd8] sm:$0xff]
  %v48 = vld [vmem:[%s0 + $0xe0] sm:$0xff]
  %v49 = vld [vmem:[%s0 + $0xe8] sm:$0xff]
  %v50 = vld [vmem:[%s0 + $0xf0] sm:$0xff]
  %v51 = vld [vmem:[%s0 + $0xf8] sm:$0xff]
  %v52 = vld [vmem:[%s1] sm:$0xff]
  %v53 = vld [vmem:[%s1 + $0x8] sm:$0xff]
  %v54 = vld [vmem:[%s1 + $0x10] sm:$0xff]
  %v55 = vld [vmem:[%s1 + $0x18] sm:$0xff]
  %v56 = vld [vmem:[%s1 + $0x20] sm:$0xff]
  %v57 = vld [vmem:[%s1 + $0x28] sm:$0xff]
  %v58 = vld [vmem:[%s1 + $0x30] sm:$0xff]
  %v59 = vld [vmem:[%s1 + $0x38] sm:$0xff]
  %v60 = vld [vmem:[%s1 + $0x40] sm:$0xff]
  %v61 = vld [vmem:[%s1 + $0x48] sm:$0xff]
  %v62 = vld [vmem:[%s1 + $0x50] sm:$0xff]
  %v63 = vld [vmem:[%s1 + $0x58] sm:$0xff]
  %v64 = vld [vmem:[%s1 + $0x60] sm:$0xff]
  %v65 = vld [vmem:[%s1 + $0x68] sm:$0xff]
  %v66 = vld [vmem:[%s1 + $0x70] sm:$0xff]
  %v67 = vld [vmem:[%s1 + $0x78] sm:$0xff]
  %v68 = vld [vmem:[%s1 + $0x80] sm:$0xff]
  %v69 = vld [vmem:[%s1 + $0x88] sm:$0xff]
  %v70 = vld [vmem:[%s1 + $0x90] sm:$0xff]
  %v71 = vld [vmem:[%s1 + $0x98] sm:$0xff]
  %v72 = vld [vmem:[%s1 + $0xa0] sm:$0xff]
  %v73 = vld [vmem:[%s1 + $0xa8] sm:$0xff]
  %v74 = vld [vmem:[%s1 + $0xb0] sm:$0xff]
  %v75 = vld [vmem:[%s1 + $0xb8] sm:$0xff]
  %v76 = vld [vmem:[%s1 + $0xc0] sm:$0xff]
  %v77 = vld [vmem:[%s1 + $0xc8] sm:$0xff]
  %v78 = vld [vmem:[%s1 + $0xd0] sm:$0xff]
  %v79 = vld [vmem:[%s1 + $0xd8] sm:$0xff]
  %v80 = vld [vmem:[%s1 + $0xe0] sm:$0xff]
  %v81 = vld [vmem:[%s1 + $0xe8] sm:$0xff]
  %v82 = vld [vmem:[%s1 + $0xf0] sm:$0xff]
  %v83 = vld [vmem:[%s1 + $0xf8] sm:$0xff]
  %v84 = vld [vmem:[%s1 + $0x100] sm:$0xff]
  %v85 = vld [vmem:[%s1 + $0x108] sm:$0xff]
  %v86 = vld [vmem:[%s1 + $0x110] sm:$0xff]
  %v87 = vld [vmem:[%s1 + $0x118] sm:$0xff]
  %v88 = vld [vmem:[%s1 + $0x120] sm:$0xff]
  %v89 = vld [vmem:[%s1 + $0x128] sm:$0xff]
  %v90 = vld [vmem:[%s1 + $0x130] sm:$0xff]
  %v91 = vld [vmem:[%s1 + $0x138] sm:$0xff]
  %v92 = vld [vmem:[%s1 + $0x140] sm:$0xff]
  %v93 = vld [vmem:[%s1 + $0x148] sm:$0xff]
  %v94 = vld [vmem:[%s1 + $0x150] sm:$0xff]
  %v95 = vld [vmem:[%s1 + $0x158] sm:$0xff]
  %v96 = vld [vmem:[%s1 + $0x160] sm:$0xff]
  %v97 = vld [vmem:[%s1 + $0x168] sm:$0xff]
  %v98 = vld [vmem:[%s1 + $0x170] sm:$0xff]
  %v99 = vld [vmem:[%s1 + $0x178] sm:$0xff]
  %v100 = vld [vmem:[%s1 + $0x180] sm:$0xff]
  %v101 = vld [vmem:[%s1 + $0x188] sm:$0xff]
  %v102 = vld [vmem:[%s1 + $0x190] sm:$0xff]
  %v103 = vld [vmem:[%s1 + $0x198] sm:$0xff]
  %v104 = vld [vmem:[%s1 + $0x1a0] sm:$0xff]
  %v105 = vld [vmem:[%s1 + $0x1a8] sm:$0xff]
  %v106 = vld [vmem:[%s1 + $0x1b0] sm:$0xff]
  %v107 = vld [vmem:[%s1 + $0x1b8] sm:$0xff]
  %v108 = vld [vmem:[%s1 + $0x1c0] sm:$0xff]
  %v109 = vld [vmem:[%s1 + $0x1c8] sm:$0xff]
  %v110 = vld [vmem:[%s1 + $0x1d0] sm:$0xff]
  %v111 = vld [vmem:[%s1 + $0x1d8] sm:$0xff]
  %v112 = vld [vmem:[%s1 + $0x1e0] sm:$0xff]
  %v113 = vld [vmem:[%s1 + $0x1e8] sm:$0xff]
  %v114 = vld [vmem:[%s1 + $0x1f0] sm:$0xff]
  %v115 = vld [vmem:[%s1 + $0x1f8] sm:$0xff]
  %v116 = vld [vmem:[%s1 + $0x200] sm:$0xff]
  %v117 = vld [vmem:[%s1 + $0x208] sm:$0xff]
  %v118 = vld [vmem:[%s1 + $0x210] sm:$0xff]
  %v119 = vld [vmem:[%s1 + $0x218] sm:$0xff]
  %v120 = vld [vmem:[%s1 + $0x220] sm:$0xff]
  %v121 = vld [vmem:[%s1 + $0x228] sm:$0xff]
  %v122 = vld [vmem:[%s1 + $0x230] sm:$0xff]
  %v123 = vld [vmem:[%s1 + $0x238] sm:$0xff]
  %v124 = vld [vmem:[%s1 + $0x240] sm:$0xff]
  %v125 = vld [vmem:[%s1 + $0x248] sm:$0xff]
  %v126 = vld [vmem:[%s1 + $0x250] sm:$0xff]
  %v127 = vld [vmem:[%s1 + $0x258] sm:$0xff]
  %v128 = vld [vmem:[%s1 + $0x260] sm:$0xff]
  %v129 = vld [vmem:[%s1 + $0x268] sm:$0xff]
  %v130 = vld [vmem:[%s1 + $0x270] sm:$0xff]
  %v131 = vld [vmem:[%s1 + $0x278] sm:$0xff]
  %v132 = vld [vmem:[%s1 + $0x280] sm:$0xff]
  %v133 = vld [vmem:[%s1 + $0x288] sm:$0xff]
  %v134 = vld [vmem:[%s1 + $0x290] sm:$0xff]
  %v135 = vld [vmem:[%s1 + $0x298] sm:$0xff]
  %v136 = vld [vmem:[%s1 + $0x2a0] sm:$0xff]
  %v137 = vld [vmem:[%s1 + $0x2a8] sm:$0xff]
  %v138 = vld [vmem:[%s1 + $0x2b0] sm:$0xff]
  %v139 = vld [vmem:[%s1 + $0x2b8] sm:$0xff]
  %v140 = vld [vmem:[%s1 + $0x2c0] sm:$0xff]
  %v141 = vld [vmem:[%s1 + $0x2c8] sm:$0xff]
  %v142 = vld [vmem:[%s1 + $0x2d0] sm:$0xff]
  %v143 = vld [vmem:[%s1 + $0x2d8] sm:$0xff]
  %v144 = vld [vmem:[%s1 + $0x2e0] sm:$0xff]
  %v145 = vld [vmem:[%s1 + $0x2e8] sm:$0xff]
  %v146 = vld [vmem:[%s1 + $0x2f0] sm:$0xff]
  %v147 = vld [vmem:[%s1 + $0x2f8] sm:$0xff]
  %v148 = vld [vmem:[%s1 + $0x300] sm:$0xff]
  %v149 = vld [vmem:[%s1 + $0x308] sm:$0xff]
  %v150 = vld [vmem:[%s1 + $0x310] sm:$0xff]
  %v151 = vld [vmem:[%s1 + $0x318] sm:$0xff]
  %v152 = vld [vmem:[%s1 + $0x320] sm:$0xff]
  %v153 = vld [vmem:[%s1 + $0x328] sm:$0xff]
  %v154 = vld [vmem:[%s1 + $0x330] sm:$0xff]
  %v155 = vld [vmem:[%s1 + $0x338] sm:$0xff]
  %v156 = vld [vmem:[%s1 + $0x340] sm:$0xff]
  %v157 = vld [vmem:[%s1 + $0x348] sm:$0xff]
  %v158 = vld [vmem:[%s1 + $0x350] sm:$0xff]
  %v159 = vld [vmem:[%s1 + $0x358] sm:$0xff]
  %v160 = vld [vmem:[%s1 + $0x360] sm:$0xff]
  %v161 = vld [vmem:[%s1 + $0x368] sm:$0xff]
  %v162 = vld [vmem:[%s1 + $0x370] sm:$0xff]
  %v163 = vld [vmem:[%s1 + $0x378] sm:$0xff]
  %v164 = vld [vmem:[%s1 + $0x380] sm:$0xff]
  %v165 = vld [vmem:[%s1 + $0x388] sm:$0xff]
  %v166 = vld [vmem:[%s1 + $0x390] sm:$0xff]
  %v167 = vld [vmem:[%s1 + $0x398] sm:$0xff]
  %v168 = vld [vmem:[%s1 + $0x3a0] sm:$0xff]
  %v169 = vld [vmem:[%s1 + $0x3a8] sm:$0xff]
  %v170 = vld [vmem:[%s1 + $0x3b0] sm:$0xff]
  %v171 = vld [vmem:[%s1 + $0x3b8] sm:$0xff]
  %v172 = vld [vmem:[%s1 + $0x3c0] sm:$0xff]
  %v173 = vld [vmem:[%s1 + $0x3c8] sm:$0xff]
  %v174 = vld [vmem:[%s1 + $0x3d0] sm:$0xff]
  %v175 = vld [vmem:[%s1 + $0x3d8] sm:$0xff]
  %v176 = vld [vmem:[%s1 + $0x3e0] sm:$0xff]
  %v177 = vld [vmem:[%s1 + $0x3e8] sm:$0xff]
  %v178 = vld [vmem:[%s1 + $0x3f0] sm:$0xff]
  %v179 = vld [vmem:[%s1 + $0x3f8] sm:$0xff]
  %v180 = vld [vmem:[%s1 + $0x400] sm:$0xff]
  %v181 = vld [vmem:[%s1 + $0x408] sm:$0xff]
  %v182 = vld [vmem:[%s1 + $0x410] sm:$0xff]
  %v183 = vld [vmem:[%s1 + $0x418] sm:$0xff]
  %v184 = vld [vmem:[%s1 + $0x420] sm:$0xff]
  %v185 = vld [vmem:[%s1 + $0x428] sm:$0xff]
  %v186 = vld [vmem:[%s1 + $0x430] sm:$0xff]
  %v187 = vld [vmem:[%s1 + $0x438] sm:$0xff]
  %v188 = vld [vmem:[%s1 + $0x440] sm:$0xff]
  %v189 = vld [vmem:[%s1 + $0x448] sm:$0xff]
  %v190 = vld [vmem:[%s1 + $0x450] sm:$0xff]
  %v191 = vld [vmem:[%s1 + $0x458] sm:$0xff]
  %v192 = vld [vmem:[%s1 + $0x460] sm:$0xff]
  %v193 = vld [vmem:[%s1 + $0x468] sm:$0xff]
  %v194 = vld [vmem:[%s1 + $0x470] sm:$0xff]
  %v195 = vld [vmem:[%s1 + $0x478] sm:$0xff]
  %v196 = vld [vmem:[%s1 + $0x480] sm:$0xff]
  %v197 = vld [vmem:[%s1 + $0x488] sm:$0xff]
  %v198 = vld [vmem:[%s1 + $0x490] sm:$0xff]
  %v199 = vld [vmem:[%s1 + $0x498] sm:$0xff]
  %v200 = vld [vmem:[%s1 + $0x4a0] sm:$0xff]
  %v201 = vld [vmem:[%s1 + $0x4a8] sm:$0xff]
  %v202 = vld [vmem:[%s1 + $0x4b0] sm:$0xff]
  %v203 = vld [vmem:[%s1 + $0x4b8] sm:$0xff]
  %v204 = vld [vmem:[%s1 + $0x4c0] sm:$0xff]
  %v205 = vld [vmem:[%s1 + $0x4c8] sm:$0xff]
  %v206 = vld [vmem:[%s1 + $0x4d0] sm:$0xff]
  %v207 = vld [vmem:[%s1 + $0x4d8] sm:$0xff]
  %v208 = vld [vmem:[%s1 + $0x4e0] sm:$0xff]
  %v209 = vld [vmem:[%s1 + $0x4e8] sm:$0xff]
  %v210 = vld [vmem:[%s1 + $0x4f0] sm:$0xff]
  %v211 = vld [vmem:[%s1 + $0x4f8] sm:$0xff]
  %v212 = vld [vmem:[%s1 + $0x500] sm:$0xff]
  %v213 = vld [vmem:[%s1 + $0x508] sm:$0xff]
  %v214 = vld [vmem:[%s1 + $0x510] sm:$0xff]
  %v215 = vld [vmem:[%s1 + $0x518] sm:$0xff]
  %v216 = vld [vmem:[%s1 + $0x520] sm:$0xff]
  %v217 = vld [vmem:[%s1 + $0x528] sm:$0xff]
  %v218 = vld [vmem:[%s1 + $0x530] sm:$0xff]
  %v219 = vld [vmem:[%s1 + $0x538] sm:$0xff]
  %v220 = vld [vmem:[%s1 + $0x540] sm:$0xff]
  %v221 = vld [vmem:[%s1 + $0x548] sm:$0xff]
  %v222 = vld [vmem:[%s1 + $0x550] sm:$0xff]
  %v223 = vld [vmem:[%s1 + $0x558] sm:$0xff]
  %v224 = vld [vmem:[%s1 + $0x560] sm:$0xff]
  %v225 = vld [vmem:[%s1 + $0x568] sm:$0xff]
  %v226 = vld [vmem:[%s1 + $0x570] sm:$0xff]
  %v227 = vld [vmem:[%s1 + $0x578] sm:$0xff]
  %v228 = vld [vmem:[%s1 + $0x580] sm:$0xff]
  %v229 = vld [vmem:[%s1 + $0x588] sm:$0xff]
  %v230 = vld [vmem:[%s1 + $0x590] sm:$0xff]
  %v231 = vld [vmem:[%s1 + $0x598] sm:$0xff]
  %v232 = vld [vmem:[%s1 + $0x5a0] sm:$0xff]
  %v233 = vld [vmem:[%s1 + $0x5a8] sm:$0xff]
  %v234 = vld [vmem:[%s1 + $0x5b0] sm:$0xff]
  %v235 = vld [vmem:[%s1 + $0x5b8] sm:$0xff]
  %v236 = vld [vmem:[%s1 + $0x5c0] sm:$0xff]
  %v237 = vld [vmem:[%s1 + $0x5c8] sm:$0xff]
  %v238 = vld [vmem:[%s1 + $0x5d0] sm:$0xff]
  %v239 = vld [vmem:[%s1 + $0x5d8] sm:$0xff]
  %v240 = vld [vmem:[%s1 + $0x5e0] sm:$0xff]
  %v241 = vld [vmem:[%s1 + $0x5e8] sm:$0xff]
  %v242 = vld [vmem:[%s1 + $0x5f0] sm:$0xff]
  %v243 = vld [vmem:[%s1 + $0x5f8] sm:$0xff]
  %v244 = vld [vmem:[%s1 + $0x600] sm:$0xff]
  %v245 = vld [vmem:[%s1 + $0x608] sm:$0xff]
  %v246 = vld [vmem:[%s1 + $0x610] sm:$0xff]
  %v247 = vld [vmem:[%s1 + $0x618] sm:$0xff]
  %v248 = vld [vmem:[%s1 + $0x620] sm:$0xff]
  %v249 = vld [vmem:[%s1 + $0x628] sm:$0xff]
  %v250 = vld [vmem:[%s1 + $0x630] sm:$0xff]
  %v251 = vld [vmem:[%s1 + $0x638] sm:$0xff]
  %v252 = vld [vmem:[%s1 + $0x640] sm:$0xff]
  %v253 = vld [vmem:[%s1 + $0x648] sm:$0xff]
  %v254 = vld [vmem:[%s1 + $0x650] sm:$0xff]
  %v255 = vld [vmem:[%s1 + $0x658] sm:$0xff]
  %v256 = vld [vmem:[%s1 + $0x660] sm:$0xff]
  %v257 = vld [vmem:[%s1 + $0x668] sm:$0xff]
  %v258 = vld [vmem:[%s1 + $0x670] sm:$0xff]
  %v259 = vld [vmem:[%s1 + $0x678] sm:$0xff]
  %v260 = vld [vmem:[%s1 + $0x680] sm:$0xff]
  %v261 = vld [vmem:[%s1 + $0x688] sm:$0xff]
  %v262 = vld [vmem:[%s1 + $0x690] sm:$0xff]
  %v263 = vld [vmem:[%s1 + $0x698] sm:$0xff]
  %v264 = vld [vmem:[%s1 + $0x6a0] sm:$0xff]
  %v265 = vld [vmem:[%s1 + $0x6a8] sm:$0xff]
  %v266 = vld [vmem:[%s1 + $0x6b0] sm:$0xff]
  %v267 = vld [vmem:[%s1 + $0x6b8] sm:$0xff]
  %v268 = vld [vmem:[%s1 + $0x6c0] sm:$0xff]
  %v269 = vld [vmem:[%s1 + $0x6c8] sm:$0xff]
  %v270 = vld [vmem:[%s1 + $0x6d0] sm:$0xff]
  %v271 = vld [vmem:[%s1 + $0x6d8] sm:$0xff]
  %v272 = vld [vmem:[%s1 + $0x6e0] sm:$0xff]
  %v273 = vld [vmem:[%s1 + $0x6e8] sm:$0xff]
  %v274 = vld [vmem:[%s1 + $0x6f0] sm:$0xff]
  %v275 = vld [vmem:[%s1 + $0x6f8] sm:$0xff]
  %v276 = vld [vmem:[%s1 + $0x700] sm:$0xff]
  %v277 = vld [vmem:[%s1 + $0x708] sm:$0xff]
  %v278 = vld [vmem:[%s1 + $0x710] sm:$0xff]
  %v279 = vld [vmem:[%s1 + $0x718] sm:$0xff]
  %v280 = vld [vmem:[%s1 + $0x720] sm:$0xff]
  %v281 = vld [vmem:[%s1 + $0x728] sm:$0xff]
  %v282 = vld [vmem:[%s1 + $0x730] sm:$0xff]
  %v283 = vld [vmem:[%s1 + $0x738] sm:$0xff]
  %v284 = vld [vmem:[%s1 + $0x740] sm:$0xff]
  %v285 = vld [vmem:[%s1 + $0x748] sm:$0xff]
  %v286 = vld [vmem:[%s1 + $0x750] sm:$0xff]
  %v287 = vld [vmem:[%s1 + $0x758] sm:$0xff]
  %v288 = vld [vmem:[%s1 + $0x760] sm:$0xff]
  %v289 = vld [vmem:[%s1 + $0x768] sm:$0xff]
  %v290 = vld [vmem:[%s1 + $0x770] sm:$0xff]
  %v291 = vld [vmem:[%s1 + $0x778] sm:$0xff]
  %v292 = vld [vmem:[%s1 + $0x780] sm:$0xff]
  %v293 = vld [vmem:[%s1 + $0x788] sm:$0xff]
  %v294 = vld [vmem:[%s1 + $0x790] sm:$0xff]
  %v295 = vld [vmem:[%s1 + $0x798] sm:$0xff]
  %v296 = vld [vmem:[%s1 + $0x7a0] sm:$0xff]
  %v297 = vld [vmem:[%s1 + $0x7a8] sm:$0xff]
  %v298 = vld [vmem:[%s1 + $0x7b0] sm:$0xff]
  %v299 = vld [vmem:[%s1 + $0x7b8] sm:$0xff]
  %v300 = vld [vmem:[%s1 + $0x7c0] sm:$0xff]
  %v301 = vld [vmem:[%s1 + $0x7c8] sm:$0xff]
  %v302 = vld [vmem:[%s1 + $0x7d0] sm:$0xff]
  %v303 = vld [vmem:[%s1 + $0x7d8] sm:$0xff]
  %v304 = vld [vmem:[%s1 + $0x7e0] sm:$0xff]
  %v305 = vld [vmem:[%s1 + $0x7e8] sm:$0xff]
  %v306 = vld [vmem:[%s1 + $0x7f0] sm:$0xff]
  %v307 = vld [vmem:[%s1 + $0x7f8] sm:$0xff]
  %v308 = vld [vmem:[%s1 + $0x800] sm:$0xff]
  %v309 = vld [vmem:[%s1 + $0x808] sm:$0xff]
  %v310 = vld [vmem:[%s1 + $0x810] sm:$0xff]
  %v311 = vld [vmem:[%s1 + $0x818] sm:$0xff]
  %v312 = vld [vmem:[%s1 + $0x820] sm:$0xff]
  %v313 = vld [vmem:[%s1 + $0x828] sm:$0xff]
  %v314 = vld [vmem:[%s1 + $0x830] sm:$0xff]
  %v315 = vld [vmem:[%s1 + $0x838] sm:$0xff]
  %v316 = vld [vmem:[%s1 + $0x840] sm:$0xff]
  %v317 = vld [vmem:[%s1 + $0x848] sm:$0xff]
  %v318 = vld [vmem:[%s1 + $0x850] sm:$0xff]
  %v319 = vld [vmem:[%s1 + $0x858] sm:$0xff]
  %v320 = vld [vmem:[%s1 + $0x860] sm:$0xff]
  %v321 = vld [vmem:[%s1 + $0x868] sm:$0xff]
  %v322 = vld [vmem:[%s1 + $0x870] sm:$0xff]
  %v323 = vld [vmem:[%s1 + $0x878] sm:$0xff]
  %v324 = vld [vmem:[%s1 + $0x880] sm:$0xff]
  %v325 = vld [vmem:[%s1 + $0x888] sm:$0xff]
  %v326 = vld [vmem:[%s1 + $0x890] sm:$0xff]
  %v327 = vld [vmem:[%s1 + $0x898] sm:$0xff]
  %v328 = vld [vmem:[%s1 + $0x8a0] sm:$0xff]
  %v329 = vld [vmem:[%s1 + $0x8a8] sm:$0xff]
  %v330 = vld [vmem:[%s1 + $0x8b0] sm:$0xff]
  %v331 = vld [vmem:[%s1 + $0x8b8] sm:$0xff]
  %v332 = vld [vmem:[%s1 + $0x8c0] sm:$0xff]
  %v333 = vld [vmem:[%s1 + $0x8c8] sm:$0xff]
  %v334 = vld [vmem:[%s1 + $0x8d0] sm:$0xff]
  %v335 = vld [vmem:[%s1 + $0x8d8] sm:$0xff]
  %v336 = vld [vmem:[%s1 + $0x8e0] sm:$0xff]
  %v337 = vld [vmem:[%s1 + $0x8e8] sm:$0xff]
  %v338 = vld [vmem:[%s1 + $0x8f0] sm:$0xff]
  %v339 = vld [vmem:[%s1 + $0x8f8] sm:$0xff]
  %v340 = vld [vmem:[%s1 + $0x900] sm:$0xff]
  %v341 = vld [vmem:[%s1 + $0x908] sm:$0xff]
  %v342 = vld [vmem:[%s1 + $0x910] sm:$0xff]
  %v343 = vld [vmem:[%s1 + $0x918] sm:$0xff]
  %v344 = vld [vmem:[%s1 + $0x920] sm:$0xff]
  %v345 = vld [vmem:[%s1 + $0x928] sm:$0xff]
  %v346 = vld [vmem:[%s1 + $0x930] sm:$0xff]
  %v347 = vld [vmem:[%s1 + $0x938] sm:$0xff]
  %v348 = vld [vmem:[%s1 + $0x940] sm:$0xff]
  %v349 = vld [vmem:[%s1 + $0x948] sm:$0xff]
  %v350 = vld [vmem:[%s1 + $0x950] sm:$0xff]
  %v351 = vld [vmem:[%s1 + $0x958] sm:$0xff]
  %v352 = vld [vmem:[%s1 + $0x960] sm:$0xff]
  %v353 = vld [vmem:[%s1 + $0x968] sm:$0xff]
  %v354 = vld [vmem:[%s1 + $0x970] sm:$0xff]
  %v355 = vld [vmem:[%s1 + $0x978] sm:$0xff]
  %v356 = vld [vmem:[%s1 + $0x980] sm:$0xff]
  %v357 = vld [vmem:[%s1 + $0x988] sm:$0xff]
  %v358 = vld [vmem:[%s1 + $0x990] sm:$0xff]
  %v359 = vld [vmem:[%s1 + $0x998] sm:$0xff]
  %v360 = vld [vmem:[%s1 + $0x9a0] sm:$0xff]
  %v361 = vld [vmem:[%s1 + $0x9a8] sm:$0xff]
  %v362 = vld [vmem:[%s1 + $0x9b0] sm:$0xff]
  %v363 = vld [vmem:[%s1 + $0x9b8] sm:$0xff]
  %v364 = vld [vmem:[%s1 + $0x9c0] sm:$0xff]
  %v365 = vld [vmem:[%s1 + $0x9c8] sm:$0xff]
  %v366 = vld [vmem:[%s1 + $0x9d0] sm:$0xff]
  %v367 = vld [vmem:[%s1 + $0x9d8] sm:$0xff]
  %v368 = vld [vmem:[%s1 + $0x9e0] sm:$0xff]
  %v369 = vld [vmem:[%s1 + $0x9e8] sm:$0xff]
  %v370 = vld [vmem:[%s1 + $0x9f0] sm:$0xff]
  %v371 = vld [vmem:[%s1 + $0x9f8] sm:$0xff]
  %v372 = vld [vmem:[%s1 + $0xa00] sm:$0xff]
  %v373 = vld [vmem:[%s1 + $0xa08] sm:$0xff]
  %v374 = vld [vmem:[%s1 + $0xa10] sm:$0xff]
  %v375 = vld [vmem:[%s1 + $0xa18] sm:$0xff]
  %v376 = vld [vmem:[%s1 + $0xa20] sm:$0xff]
  %v377 = vld [vmem:[%s1 + $0xa28] sm:$0xff]
  %v378 = vld [vmem:[%s1 + $0xa30] sm:$0xff]
  %v379 = vld [vmem:[%s1 + $0xa38] sm:$0xff]
  %v380 = vld [vmem:[%s1 + $0xa40] sm:$0xff]
  %v381 = vld [vmem:[%s1 + $0xa48] sm:$0xff]
  %v382 = vld [vmem:[%s1 + $0xa50] sm:$0xff]
  %v383 = vld [vmem:[%s1 + $0xa58] sm:$0xff]
  %v384 = vld [vmem:[%s1 + $0xa60] sm:$0xff]
  %v385 = vld [vmem:[%s1 + $0xa68] sm:$0xff]
  %v386 = vld [vmem:[%s1 + $0xa70] sm:$0xff]
  %v387 = vld [vmem:[%s1 + $0xa78] sm:$0xff]
  %v388 = vld [vmem:[%s1 + $0xa80] sm:$0xff]
  %v389 = vld [vmem:[%s1 + $0xa88] sm:$0xff]
  %v390 = vld [vmem:[%s1 + $0xa90] sm:$0xff]
  %v391 = vld [vmem:[%s1 + $0xa98] sm:$0xff]
  %v392 = vld [vmem:[%s1 + $0xaa0] sm:$0xff]
  %v393 = vld [vmem:[%s1 + $0xaa8] sm:$0xff]
  %v394 = vld [vmem:[%s1 + $0xab0] sm:$0xff]
  %v395 = vld [vmem:[%s1 + $0xab8] sm:$0xff]
  %v396 = vld [vmem:[%s1 + $0xac0] sm:$0xff]
  %v397 = vld [vmem:[%s1 + $0xac8] sm:$0xff]
  %v398 = vld [vmem:[%s1 + $0xad0] sm:$0xff]
  %v399 = vld [vmem:[%s1 + $0xad8] sm:$0xff]
  %v400 = vld [vmem:[%s1 + $0xae0] sm:$0xff]
  %v401 = vld [vmem:[%s1 + $0xae8] sm:$0xff]
  %v402 = vld [vmem:[%s1 + $0xaf0] sm:$0xff]
  %v403 = vld [vmem:[%s1 + $0xaf8] sm:$0xff]
  %v404 = vld [vmem:[%s1 + $0xb00] sm:$0xff]
  %v405 = vld [vmem:[%s1 + $0xb08] sm:$0xff]
  %v406 = vld [vmem:[%s1 + $0xb10] sm:$0xff]
  %v407 = vld [vmem:[%s1 + $0xb18] sm:$0xff]
  %v408 = vld [vmem:[%s1 + $0xb20] sm:$0xff]
  %v409 = vld [vmem:[%s1 + $0xb28] sm:$0xff]
  %v410 = vld [vmem:[%s1 + $0xb30] sm:$0xff]
  %v411 = vld [vmem:[%s1 + $0xb38] sm:$0xff]
  %v412 = vld [vmem:[%s1 + $0xb40] sm:$0xff]
  %v413 = vld [vmem:[%s1 + $0xb48] sm:$0xff]
  %v414 = vld [vmem:[%s1 + $0xb50] sm:$0xff]
  %v415 = vld [vmem:[%s1 + $0xb58] sm:$0xff]
  %v416 = vld [vmem:[%s1 + $0xb60] sm:$0xff]
  %v417 = vld [vmem:[%s1 + $0xb68] sm:$0xff]
  %v418 = vld [vmem:[%s1 + $0xb70] sm:$0xff]
  %v419 = vld [vmem:[%s1 + $0xb78] sm:$0xff]
  %v420 = vld [vmem:[%s1 + $0xb80] sm:$0xff]
  %v421 = vld [vmem:[%s1 + $0xb88] sm:$0xff]
  %v422 = vld [vmem:[%s1 + $0xb90] sm:$0xff]
  %v423 = vld [vmem:[%s1 + $0xb98] sm:$0xff]
  %v424 = vld [vmem:[%s1 + $0xba0] sm:$0xff]
  %v425 = vld [vmem:[%s1 + $0xba8] sm:$0xff]
  %v426 = vld [vmem:[%s1 + $0xbb0] sm:$0xff]
  %v427 = vld [vmem:[%s1 + $0xbb8] sm:$0xff]
  %v428 = vld [vmem:[%s1 + $0xbc0] sm:$0xff]
  %v429 = vld [vmem:[%s1 + $0xbc8] sm:$0xff]
  %v430 = vld [vmem:[%s1 + $0xbd0] sm:$0xff]
  %v431 = vld [vmem:[%s1 + $0xbd8] sm:$0xff]
  %v432 = vld [vmem:[%s1 + $0xbe0] sm:$0xff]
  %v433 = vld [vmem:[%s1 + $0xbe8] sm:$0xff]
  %v434 = vld [vmem:[%s1 + $0xbf0] sm:$0xff]
  %v435 = vld [vmem:[%s1 + $0xbf8] sm:$0xff]
  %v436 = vld [vmem:[%s1 + $0xc00] sm:$0xff]
  %v437 = vld [vmem:[%s1 + $0xc08] sm:$0xff]
  %v438 = vld [vmem:[%s1 + $0xc10] sm:$0xff]
  %v439 = vld [vmem:[%s1 + $0xc18] sm:$0xff]
  %v440 = vld [vmem:[%s1 + $0xc20] sm:$0xff]
  %v441 = vld [vmem:[%s1 + $0xc28] sm:$0xff]
  %v442 = vld [vmem:[%s1 + $0xc30] sm:$0xff]
  %v443 = vld [vmem:[%s1 + $0xc38] sm:$0xff]
  %v444 = vld [vmem:[%s1 + $0xc40] sm:$0xff]
  %v445 = vld [vmem:[%s1 + $0xc48] sm:$0xff]
  %v446 = vld [vmem:[%s1 + $0xc50] sm:$0xff]
  %v447 = vld [vmem:[%s1 + $0xc58] sm:$0xff]
  %v448 = vld [vmem:[%s1 + $0xc60] sm:$0xff]
  %v449 = vld [vmem:[%s1 + $0xc68] sm:$0xff]
  %v450 = vld [vmem:[%s1 + $0xc70] sm:$0xff]
  %v451 = vld [vmem:[%s1 + $0xc78] sm:$0xff]
  %v452 = vld [vmem:[%s1 + $0xc80] sm:$0xff]
  %v453 = vld [vmem:[%s1 + $0xc88] sm:$0xff]
  %v454 = vld [vmem:[%s1 + $0xc90] sm:$0xff]
  %v455 = vld [vmem:[%s1 + $0xc98] sm:$0xff]
  %v456 = vld [vmem:[%s1 + $0xca0] sm:$0xff]
  %v457 = vld [vmem:[%s1 + $0xca8] sm:$0xff]
  %v458 = vld [vmem:[%s1 + $0xcb0] sm:$0xff]
  %v459 = vld [vmem:[%s1 + $0xcb8] sm:$0xff]
  %v460 = vld [vmem:[%s1 + $0xcc0] sm:$0xff]
  %v461 = vld [vmem:[%s1 + $0xcc8] sm:$0xff]
  %v462 = vld [vmem:[%s1 + $0xcd0] sm:$0xff]
  %v463 = vld [vmem:[%s1 + $0xcd8] sm:$0xff]
  %v464 = vld [vmem:[%s1 + $0xce0] sm:$0xff]
  %v465 = vld [vmem:[%s1 + $0xce8] sm:$0xff]
  %v466 = vld [vmem:[%s1 + $0xcf0] sm:$0xff]
  %v467 = vld [vmem:[%s1 + $0xcf8] sm:$0xff]
  %v468 = vld [vmem:[%s1 + $0xd00] sm:$0xff]
  %v469 = vld [vmem:[%s1 + $0xd08] sm:$0xff]
  %v470 = vld [vmem:[%s1 + $0xd10] sm:$0xff]
  %v471 = vld [vmem:[%s1 + $0xd18] sm:$0xff]
  %v472 = vld [vmem:[%s1 + $0xd20] sm:$0xff]
  %v473 = vld [vmem:[%s1 + $0xd28] sm:$0xff]
  %v474 = vld [vmem:[%s1 + $0xd30] sm:$0xff]
  %v475 = vld [vmem:[%s1 + $0xd38] sm:$0xff]
  %v476 = vld [vmem:[%s1 + $0xd40] sm:$0xff]
  %v477 = vld [vmem:[%s1 + $0xd48] sm:$0xff]
  %v478 = vld [vmem:[%s1 + $0xd50] sm:$0xff]
  %v479 = vld [vmem:[%s1 + $0xd58] sm:$0xff]
  %v480 = vld [vmem:[%s1 + $0xd60] sm:$0xff]
  %v481 = vld [vmem:[%s1 + $0xd68] sm:$0xff]
  %v482 = vld [vmem:[%s1 + $0xd70] sm:$0xff]
  %v483 = vld [vmem:[%s1 + $0xd78] sm:$0xff]
  %v484 = vld [vmem:[%s1 + $0xd80] sm:$0xff]
  %v485 = vld [vmem:[%s1 + $0xd88] sm:$0xff]
  %v486 = vld [vmem:[%s1 + $0xd90] sm:$0xff]
  %v487 = vld [vmem:[%s1 + $0xd98] sm:$0xff]
  %v488 = vld [vmem:[%s1 + $0xda0] sm:$0xff]
  %v489 = vld [vmem:[%s1 + $0xda8] sm:$0xff]
  %v490 = vld [vmem:[%s1 + $0xdb0] sm:$0xff]
  %v491 = vld [vmem:[%s1 + $0xdb8] sm:$0xff]
  %v492 = vld [vmem:[%s1 + $0xdc0] sm:$0xff]
  %v493 = vld [vmem:[%s1 + $0xdc8] sm:$0xff]
  %v494 = vld [vmem:[%s1 + $0xdd0] sm:$0xff]
  %v495 = vld [vmem:[%s1 + $0xdd8] sm:$0xff]
  %v496 = vld [vmem:[%s1 + $0xde0] sm:$0xff]
  %v497 = vld [vmem:[%s1 + $0xde8] sm:$0xff]
  %v498 = vld [vmem:[%s1 + $0xdf0] sm:$0xff]
  %v499 = vld [vmem:[%s1 + $0xdf8] sm:$0xff]
  %v500 = vld [vmem:[%s1 + $0xe00] sm:$0xff]
  %v501 = vld [vmem:[%s1 + $0xe08] sm:$0xff]
  %v502 = vld [vmem:[%s1 + $0xe10] sm:$0xff]
  %v503 = vld [vmem:[%s1 + $0xe18] sm:$0xff]
  %v504 = vld [vmem:[%s1 + $0xe20] sm:$0xff]
  %v505 = vld [vmem:[%s1 + $0xe28] sm:$0xff]
  %v506 = vld [vmem:[%s1 + $0xe30] sm:$0xff]
  %v507 = vld [vmem:[%s1 + $0xe38] sm:$0xff]
  %v508 = vld [vmem:[%s1 + $0xe40] sm:$0xff]
  %v509 = vld [vmem:[%s1 + $0xe48] sm:$0xff]
  %v510 = vld [vmem:[%s1 + $0xe50] sm:$0xff]
  %v511 = vld [vmem:[%s1 + $0xe58] sm:$0xff]
  %v512 = vld [vmem:[%s1 + $0xe60] sm:$0xff]
  %v513 = vld [vmem:[%s1 + $0xe68] sm:$0xff]
  %v514 = vld [vmem:[%s1 + $0xe70] sm:$0xff]
  %v515 = vld [vmem:[%s1 + $0xe78] sm:$0xff]
  %v516 = vld [vmem:[%s1 + $0xe80] sm:$0xff]
  %v517 = vld [vmem:[%s1 + $0xe88] sm:$0xff]
  %v518 = vld [vmem:[%s1 + $0xe90] sm:$0xff]
  %v519 = vld [vmem:[%s1 + $0xe98] sm:$0xff]
  %v520 = vld [vmem:[%s1 + $0xea0] sm:$0xff]
  %v521 = vld [vmem:[%s1 + $0xea8] sm:$0xff]
  %v522 = vld [vmem:[%s1 + $0xeb0] sm:$0xff]
  %v523 = vld [vmem:[%s1 + $0xeb8] sm:$0xff]
  %v524 = vld [vmem:[%s1 + $0xec0] sm:$0xff]
  %v525 = vld [vmem:[%s1 + $0xec8] sm:$0xff]
  %v526 = vld [vmem:[%s1 + $0xed0] sm:$0xff]
  %v527 = vld [vmem:[%s1 + $0xed8] sm:$0xff]
  %v528 = vld [vmem:[%s1 + $0xee0] sm:$0xff]
  %v529 = vld [vmem:[%s1 + $0xee8] sm:$0xff]
  %v530 = vld [vmem:[%s1 + $0xef0] sm:$0xff]
  %v531 = vld [vmem:[%s1 + $0xef8] sm:$0xff]
  %v532 = vld [vmem:[%s1 + $0xf00] sm:$0xff]
  %v533 = vld [vmem:[%s1 + $0xf08] sm:$0xff]
  %v534 = vld [vmem:[%s1 + $0xf10] sm:$0xff]
  %v535 = vld [vmem:[%s1 + $0xf18] sm:$0xff]
  %v536 = vld [vmem:[%s1 + $0xf20] sm:$0xff]
  %v537 = vld [vmem:[%s1 + $0xf28] sm:$0xff]
  %v538 = vld [vmem:[%s1 + $0xf30] sm:$0xff]
  %v539 = vld [vmem:[%s1 + $0xf38] sm:$0xff]
  %v540 = vld [vmem:[%s1 + $0xf40] sm:$0xff]
  %v541 = vld [vmem:[%s1 + $0xf48] sm:$0xff]
  %v542 = vld [vmem:[%s1 + $0xf50] sm:$0xff]
  %v543 = vld [vmem:[%s1 + $0xf58] sm:$0xff]
  %v544 = vld [vmem:[%s1 + $0xf60] sm:$0xff]
  %v545 = vld [vmem:[%s1 + $0xf68] sm:$0xff]
  %v546 = vld [vmem:[%s1 + $0xf70] sm:$0xff]
  %v547 = vld [vmem:[%s1 + $0xf78] sm:$0xff]
  %v548 = vld [vmem:[%s1 + $0xf80] sm:$0xff]
  %v549 = vld [vmem:[%s1 + $0xf88] sm:$0xff]
  %v550 = vld [vmem:[%s1 + $0xf90] sm:$0xff]
  %v551 = vld [vmem:[%s1 + $0xf98] sm:$0xff]
  %v552 = vld [vmem:[%s1 + $0xfa0] sm:$0xff]
  %v553 = vld [vmem:[%s1 + $0xfa8] sm:$0xff]
  %v554 = vld [vmem:[%s1 + $0xfb0] sm:$0xff]
  %v555 = vld [vmem:[%s1 + $0xfb8] sm:$0xff]
  %v556 = vld [vmem:[%s1 + $0xfc0] sm:$0xff]
  %v557 = vld [vmem:[%s1 + $0xfc8] sm:$0xff]
  %v558 = vld [vmem:[%s1 + $0xfd0] sm:$0xff]
  %v559 = vld [vmem:[%s1 + $0xfd8] sm:$0xff]
  %v560 = vld [vmem:[%s1 + $0xfe0] sm:$0xff]
  %v561 = vld [vmem:[%s1 + $0xfe8] sm:$0xff]
  %v562 = vld [vmem:[%s1 + $0xff0] sm:$0xff]
  %v563 = vld [vmem:[%s1 + $0xff8] sm:$0xff]
  %v564 = vld [vmem:[%s1 + $0x1000] sm:$0xff]
  %v565 = vld [vmem:[%s1 + $0x1008] sm:$0xff]
  %v566 = vld [vmem:[%s1 + $0x1010] sm:$0xff]
  %v567 = vld [vmem:[%s1 + $0x1018] sm:$0xff]
  %v568 = vld [vmem:[%s1 + $0x1020] sm:$0xff]
  %v569 = vld [vmem:[%s1 + $0x1028] sm:$0xff]
  %v570 = vld [vmem:[%s1 + $0x1030] sm:$0xff]
  %v571 = vld [vmem:[%s1 + $0x1038] sm:$0xff]
  %v572 = vld [vmem:[%s1 + $0x1040] sm:$0xff]
  %v573 = vld [vmem:[%s1 + $0x1048] sm:$0xff]
  %v574 = vld [vmem:[%s1 + $0x1050] sm:$0xff]
  %v575 = vld [vmem:[%s1 + $0x1058] sm:$0xff]
  %v576 = vld [vmem:[%s1 + $0x1060] sm:$0xff]
  %v577 = vld [vmem:[%s1 + $0x1068] sm:$0xff]
  %v578 = vld [vmem:[%s1 + $0x1070] sm:$0xff]
  %v579 = vld [vmem:[%s1 + $0x1078] sm:$0xff]
  %v580 = vld [vmem:[%s1 + $0x1080] sm:$0xff]
  %v581 = vld [vmem:[%s1 + $0x1088] sm:$0xff]
  %v582 = vld [vmem:[%s1 + $0x1090] sm:$0xff]
  %v583 = vld [vmem:[%s1 + $0x1098] sm:$0xff]
  %v584 = vld [vmem:[%s1 + $0x10a0] sm:$0xff]
  %v585 = vld [vmem:[%s1 + $0x10a8] sm:$0xff]
  %v586 = vld [vmem:[%s1 + $0x10b0] sm:$0xff]
  %v587 = vld [vmem:[%s1 + $0x10b8] sm:$0xff]
  %v588 = vld [vmem:[%s1 + $0x10c0] sm:$0xff]
  %v589 = vld [vmem:[%s1 + $0x10c8] sm:$0xff]
  %v590 = vld [vmem:[%s1 + $0x10d0] sm:$0xff]
  %v591 = vld [vmem:[%s1 + $0x10d8] sm:$0xff]
  %v592 = vld [vmem:[%s1 + $0x10e0] sm:$0xff]
  %v593 = vld [vmem:[%s1 + $0x10e8] sm:$0xff]
  %v594 = vld [vmem:[%s1 + $0x10f0] sm:$0xff]
  %v595 = vld [vmem:[%s1 + $0x10f8] sm:$0xff]
  %v596 = vld [vmem:[%s1 + $0x1100] sm:$0xff]
  %v597 = vld [vmem:[%s1 + $0x1108] sm:$0xff]
  %v598 = vld [vmem:[%s1 + $0x1110] sm:$0xff]
  %v599 = vld [vmem:[%s1 + $0x1118] sm:$0xff]
  %v600 = vld [vmem:[%s1 + $0x1120] sm:$0xff]
  %v601 = vld [vmem:[%s1 + $0x1128] sm:$0xff]
  %v602 = vld [vmem:[%s1 + $0x1130] sm:$0xff]
  %v603 = vld [vmem:[%s1 + $0x1138] sm:$0xff]
  %v604 = vld [vmem:[%s1 + $0x1140] sm:$0xff]
  %v605 = vld [vmem:[%s1 + $0x1148] sm:$0xff]
  %v606 = vld [vmem:[%s1 + $0x1150] sm:$0xff]
  %v607 = vld [vmem:[%s1 + $0x1158] sm:$0xff]
  %v608 = vld [vmem:[%s1 + $0x1160] sm:$0xff]
  %v609 = vld [vmem:[%s1 + $0x1168] sm:$0xff]
  %v610 = vld [vmem:[%s1 + $0x1170] sm:$0xff]
  %v611 = vld [vmem:[%s1 + $0x1178] sm:$0xff]
  %v612 = vld [vmem:[%s1 + $0x1180] sm:$0xff]
  %v613 = vld [vmem:[%s1 + $0x1188] sm:$0xff]
  %v614 = vld [vmem:[%s1 + $0x1190] sm:$0xff]
  %v615 = vld [vmem:[%s1 + $0x1198] sm:$0xff]
  %v616 = vld [vmem:[%s1 + $0x11a0] sm:$0xff]
  %v617 = vld [vmem:[%s1 + $0x11a8] sm:$0xff]
  %v618 = vld [vmem:[%s1 + $0x11b0] sm:$0xff]
  %v619 = vld [vmem:[%s1 + $0x11b8] sm:$0xff]
  %v620 = vld [vmem:[%s1 + $0x11c0] sm:$0xff]
  %v621 = vld [vmem:[%s1 + $0x11c8] sm:$0xff]
  %v622 = vld [vmem:[%s1 + $0x11d0] sm:$0xff]
  %v623 = vld [vmem:[%s1 + $0x11d8] sm:$0xff]
  %v624 = vld [vmem:[%s1 + $0x11e0] sm:$0xff]
  %v625 = vld [vmem:[%s1 + $0x11e8] sm:$0xff]
  %v626 = vld [vmem:[%s1 + $0x11f0] sm:$0xff]
  %v627 = vld [vmem:[%s1 + $0x11f8] sm:$0xff]
  %v628 = vld [vmem:[%s1 + $0x1200] sm:$0xff]
  %v629 = vld [vmem:[%s1 + $0x1208] sm:$0xff]
  %v630 = vld [vmem:[%s1 + $0x1210] sm:$0xff]
  %v631 = vld [vmem:[%s1 + $0x1218] sm:$0xff]
  %v632 = vld [vmem:[%s1 + $0x1220] sm:$0xff]
  %v633 = vld [vmem:[%s1 + $0x1228] sm:$0xff]
  %v634 = vld [vmem:[%s1 + $0x1230] sm:$0xff]
  %v635 = vld [vmem:[%s1 + $0x1238] sm:$0xff]
  %v636 = vld [vmem:[%s1 + $0x1240] sm:$0xff]
  %v637 = vld [vmem:[%s1 + $0x1248] sm:$0xff]
  %v638 = vld [vmem:[%s1 + $0x1250] sm:$0xff]
  %v639 = vld [vmem:[%s1 + $0x1258] sm:$0xff]
  %v640 = vld [vmem:[%s1 + $0x1260] sm:$0xff]
  %v641 = vld [vmem:[%s1 + $0x1268] sm:$0xff]
  %v642 = vld [vmem:[%s1 + $0x1270] sm:$0xff]
  %v643 = vld [vmem:[%s1 + $0x1278] sm:$0xff]
  %v644 = vld [vmem:[%s1 + $0x1280] sm:$0xff]
  %v645 = vld [vmem:[%s1 + $0x1288] sm:$0xff]
  %v646 = vld [vmem:[%s1 + $0x1290] sm:$0xff]
  %v647 = vld [vmem:[%s1 + $0x1298] sm:$0xff]
  %v648 = vld [vmem:[%s1 + $0x12a0] sm:$0xff]
  %v649 = vld [vmem:[%s1 + $0x12a8] sm:$0xff]
  %v650 = vld [vmem:[%s1 + $0x12b0] sm:$0xff]
  %v651 = vld [vmem:[%s1 + $0x12b8] sm:$0xff]
  %v652 = vld [vmem:[%s1 + $0x12c0] sm:$0xff]
  %v653 = vld [vmem:[%s1 + $0x12c8] sm:$0xff]
  %v654 = vld [vmem:[%s1 + $0x12d0] sm:$0xff]
  %v655 = vld [vmem:[%s1 + $0x12d8] sm:$0xff]
  %v656 = vld [vmem:[%s1 + $0x12e0] sm:$0xff]
  %v657 = vld [vmem:[%s1 + $0x12e8] sm:$0xff]
  %v658 = vld [vmem:[%s1 + $0x12f0] sm:$0xff]
  %v659 = vld [vmem:[%s1 + $0x12f8] sm:$0xff]
  %v660 = vld [vmem:[%s1 + $0x1300] sm:$0xff]
  %v661 = vld [vmem:[%s1 + $0x1308] sm:$0xff]
  %v662 = vld [vmem:[%s1 + $0x1310] sm:$0xff]
  %v663 = vld [vmem:[%s1 + $0x1318] sm:$0xff]
  %v664 = vld [vmem:[%s1 + $0x1320] sm:$0xff]
  %v665 = vld [vmem:[%s1 + $0x1328] sm:$0xff]
  %v666 = vld [vmem:[%s1 + $0x1330] sm:$0xff]
  %v667 = vld [vmem:[%s1 + $0x1338] sm:$0xff]
  %v668 = vld [vmem:[%s1 + $0x1340] sm:$0xff]
  %v669 = vld [vmem:[%s1 + $0x1348] sm:$0xff]
  %v670 = vld [vmem:[%s1 + $0x1350] sm:$0xff]
  %v671 = vld [vmem:[%s1 + $0x1358] sm:$0xff]
  %v672 = vld [vmem:[%s1 + $0x1360] sm:$0xff]
  %v673 = vld [vmem:[%s1 + $0x1368] sm:$0xff]
  %v674 = vld [vmem:[%s1 + $0x1370] sm:$0xff]
  %v675 = vld [vmem:[%s1 + $0x1378] sm:$0xff]
  %v676 = vld [vmem:[%s1 + $0x1380] sm:$0xff]
  %v677 = vld [vmem:[%s1 + $0x1388] sm:$0xff]
  %v678 = vld [vmem:[%s1 + $0x1390] sm:$0xff]
  %v679 = vld [vmem:[%s1 + $0x1398] sm:$0xff]
  %v680 = vld [vmem:[%s1 + $0x13a0] sm:$0xff]
  %v681 = vld [vmem:[%s1 + $0x13a8] sm:$0xff]
  %v682 = vld [vmem:[%s1 + $0x13b0] sm:$0xff]
  %v683 = vld [vmem:[%s1 + $0x13b8] sm:$0xff]
  %v684 = vld [vmem:[%s1 + $0x13c0] sm:$0xff]
  %v685 = vld [vmem:[%s1 + $0x13c8] sm:$0xff]
  %v686 = vld [vmem:[%s1 + $0x13d0] sm:$0xff]
  %v687 = vld [vmem:[%s1 + $0x13d8] sm:$0xff]
  %v688 = vld [vmem:[%s1 + $0x13e0] sm:$0xff]
  %v689 = vld [vmem:[%s1 + $0x13e8] sm:$0xff]
  %v690 = vld [vmem:[%s1 + $0x13f0] sm:$0xff]
  %v691 = vld [vmem:[%s1 + $0x13f8] sm:$0xff]
  %v692 = vld [vmem:[%s1 + $0x1400] sm:$0xff]
  %v693 = vld [vmem:[%s1 + $0x1408] sm:$0xff]
  %v694 = vld [vmem:[%s1 + $0x1410] sm:$0xff]
  %v695 = vld [vmem:[%s1 + $0x1418] sm:$0xff]
  %v696 = vld [vmem:[%s1 + $0x1420] sm:$0xff]
  %v697 = vld [vmem:[%s1 + $0x1428] sm:$0xff]
  %v698 = vld [vmem:[%s1 + $0x1430] sm:$0xff]
  %v699 = vld [vmem:[%s1 + $0x1438] sm:$0xff]
  %v700 = vld [vmem:[%s1 + $0x1440] sm:$0xff]
  %v701 = vld [vmem:[%s1 + $0x1448] sm:$0xff]
  %v702 = vld [vmem:[%s1 + $0x1450] sm:$0xff]
  %v703 = vld [vmem:[%s1 + $0x1458] sm:$0xff]
  %v704 = vld [vmem:[%s1 + $0x1460] sm:$0xff]
  %v705 = vld [vmem:[%s1 + $0x1468] sm:$0xff]
  %v706 = vld [vmem:[%s1 + $0x1470] sm:$0xff]
  %v707 = vld [vmem:[%s1 + $0x1478] sm:$0xff]
  %v708 = vld [vmem:[%s1 + $0x1480] sm:$0xff]
  %v709 = vld [vmem:[%s1 + $0x1488] sm:$0xff]
  %v710 = vld [vmem:[%s1 + $0x1490] sm:$0xff]
  %v711 = vld [vmem:[%s1 + $0x1498] sm:$0xff]
  %v712 = vld [vmem:[%s1 + $0x14a0] sm:$0xff]
  %v713 = vld [vmem:[%s1 + $0x14a8] sm:$0xff]
  %v714 = vld [vmem:[%s1 + $0x14b0] sm:$0xff]
  %v715 = vld [vmem:[%s1 + $0x14b8] sm:$0xff]
  %v716 = vld [vmem:[%s1 + $0x14c0] sm:$0xff]
  %v717 = vld [vmem:[%s1 + $0x14c8] sm:$0xff]
  %v718 = vld [vmem:[%s1 + $0x14d0] sm:$0xff]
  %v719 = vld [vmem:[%s1 + $0x14d8] sm:$0xff]
  %v720 = vld [vmem:[%s1 + $0x14e0] sm:$0xff]
  %v721 = vld [vmem:[%s1 + $0x14e8] sm:$0xff]
  %v722 = vld [vmem:[%s1 + $0x14f0] sm:$0xff]
  %v723 = vld [vmem:[%s1 + $0x14f8] sm:$0xff]
  %v724 = vld [vmem:[%s1 + $0x1500] sm:$0xff]
  %v725 = vld [vmem:[%s1 + $0x1508] sm:$0xff]
  %v726 = vld [vmem:[%s1 + $0x1510] sm:$0xff]
  %v727 = vld [vmem:[%s1 + $0x1518] sm:$0xff]
  %v728 = vld [vmem:[%s1 + $0x1520] sm:$0xff]
  %v729 = vld [vmem:[%s1 + $0x1528] sm:$0xff]
  %v730 = vld [vmem:[%s1 + $0x1530] sm:$0xff]
  %v731 = vld [vmem:[%s1 + $0x1538] sm:$0xff]
  %v732 = vld [vmem:[%s1 + $0x1540] sm:$0xff]
  %v733 = vld [vmem:[%s1 + $0x1548] sm:$0xff]
  %v734 = vld [vmem:[%s1 + $0x1550] sm:$0xff]
  %v735 = vld [vmem:[%s1 + $0x1558] sm:$0xff]
  %v736 = vld [vmem:[%s1 + $0x1560] sm:$0xff]
  %v737 = vld [vmem:[%s1 + $0x1568] sm:$0xff]
  %v738 = vld [vmem:[%s1 + $0x1570] sm:$0xff]
  %v739 = vld [vmem:[%s1 + $0x1578] sm:$0xff]
  %v740 = vld [vmem:[%s1 + $0x1580] sm:$0xff]
  %v741 = vld [vmem:[%s1 + $0x1588] sm:$0xff]
  %v742 = vld [vmem:[%s1 + $0x1590] sm:$0xff]
  %v743 = vld [vmem:[%s1 + $0x1598] sm:$0xff]
  %v744 = vld [vmem:[%s1 + $0x15a0] sm:$0xff]
  %v745 = vld [vmem:[%s1 + $0x15a8] sm:$0xff]
  %v746 = vld [vmem:[%s1 + $0x15b0] sm:$0xff]
  %v747 = vld [vmem:[%s1 + $0x15b8] sm:$0xff]
  %v748 = vld [vmem:[%s1 + $0x15c0] sm:$0xff]
  %v749 = vld [vmem:[%s1 + $0x15c8] sm:$0xff]
  %v750 = vld [vmem:[%s1 + $0x15d0] sm:$0xff]
  %v751 = vld [vmem:[%s1 + $0x15d8] sm:$0xff]
  %v752 = vld [vmem:[%s1 + $0x15e0] sm:$0xff]
  %v753 = vld [vmem:[%s1 + $0x15e8] sm:$0xff]
  %v754 = vld [vmem:[%s1 + $0x15f0] sm:$0xff]
  %v755 = vld [vmem:[%s1 + $0x15f8] sm:$0xff]
  %v756 = vld [vmem:[%s1 + $0x1600] sm:$0xff]
  %v757 = vld [vmem:[%s1 + $0x1608] sm:$0xff]
  %v758 = vld [vmem:[%s1 + $0x1610] sm:$0xff]
  %v759 = vld [vmem:[%s1 + $0x1618] sm:$0xff]
  %v760 = vld [vmem:[%s1 + $0x1620] sm:$0xff]
  %v761 = vld [vmem:[%s1 + $0x1628] sm:$0xff]
  %v762 = vld [vmem:[%s1 + $0x1630] sm:$0xff]
  %v763 = vld [vmem:[%s1 + $0x1638] sm:$0xff]
  %v764 = vld [vmem:[%s1 + $0x1640] sm:$0xff]
  %v765 = vld [vmem:[%s1 + $0x1648] sm:$0xff]
  %v766 = vld [vmem:[%s1 + $0x1650] sm:$0xff]
  %v767 = vld [vmem:[%s1 + $0x1658] sm:$0xff]
  %v768 = vld [vmem:[%s1 + $0x1660] sm:$0xff]
  %v769 = vld [vmem:[%s1 + $0x1668] sm:$0xff]
  %v770 = vld [vmem:[%s1 + $0x1670] sm:$0xff]
  %v771 = vld [vmem:[%s1 + $0x1678] sm:$0xff]
  %v772 = vld [vmem:[%s1 + $0x1680] sm:$0xff]
  %v773 = vld [vmem:[%s1 + $0x1688] sm:$0xff]
  %v774 = vld [vmem:[%s1 + $0x1690] sm:$0xff]
  %v775 = vld [vmem:[%s1 + $0x1698] sm:$0xff]
  %v776 = vld [vmem:[%s1 + $0x16a0] sm:$0xff]
  %v777 = vld [vmem:[%s1 + $0x16a8] sm:$0xff]
  %v778 = vld [vmem:[%s1 + $0x16b0] sm:$0xff]
  %v779 = vld [vmem:[%s1 + $0x16b8] sm:$0xff]
  %v780 = vld [vmem:[%s1 + $0x16c0] sm:$0xff]
  %v781 = vld [vmem:[%s1 + $0x16c8] sm:$0xff]
  %v782 = vld [vmem:[%s1 + $0x16d0] sm:$0xff]
  %v783 = vld [vmem:[%s1 + $0x16d8] sm:$0xff]
  %v784 = vld [vmem:[%s1 + $0x16e0] sm:$0xff]
  %v785 = vld [vmem:[%s1 + $0x16e8] sm:$0xff]
  %v786 = vld [vmem:[%s1 + $0x16f0] sm:$0xff]
  %v787 = vld [vmem:[%s1 + $0x16f8] sm:$0xff]
  %v788 = vld [vmem:[%s1 + $0x1700] sm:$0xff]
  %v789 = vld [vmem:[%s1 + $0x1708] sm:$0xff]
  %v790 = vld [vmem:[%s1 + $0x1710] sm:$0xff]
  %v791 = vld [vmem:[%s1 + $0x1718] sm:$0xff]
  %v792 = vld [vmem:[%s1 + $0x1720] sm:$0xff]
  %v793 = vld [vmem:[%s1 + $0x1728] sm:$0xff]
  %v794 = vld [vmem:[%s1 + $0x1730] sm:$0xff]
  %v795 = vld [vmem:[%s1 + $0x1738] sm:$0xff]
  %v796 = vld [vmem:[%s1 + $0x1740] sm:$0xff]
  %v797 = vld [vmem:[%s1 + $0x1748] sm:$0xff]
  %v798 = vld [vmem:[%s1 + $0x1750] sm:$0xff]
  %v799 = vld [vmem:[%s1 + $0x1758] sm:$0xff]
  %v800 = vld [vmem:[%s1 + $0x1760] sm:$0xff]
  %v801 = vld [vmem:[%s1 + $0x1768] sm:$0xff]
  %v802 = vld [vmem:[%s1 + $0x1770] sm:$0xff]
  %v803 = vld [vmem:[%s1 + $0x1778] sm:$0xff]
  %v804 = vld [vmem:[%s1 + $0x1780] sm:$0xff]
  %v805 = vld [vmem:[%s1 + $0x1788] sm:$0xff]
  %v806 = vld [vmem:[%s1 + $0x1790] sm:$0xff]
  %v807 = vld [vmem:[%s1 + $0x1798] sm:$0xff]
  %v808 = vld [vmem:[%s1 + $0x17a0] sm:$0xff]
  %v809 = vld [vmem:[%s1 + $0x17a8] sm:$0xff]
  %v810 = vld [vmem:[%s1 + $0x17b0] sm:$0xff]
  %v811 = vld [vmem:[%s1 + $0x17b8] sm:$0xff]
  %v812 = vld [vmem:[%s1 + $0x17c0] sm:$0xff]
  %v813 = vld [vmem:[%s1 + $0x17c8] sm:$0xff]
  %v814 = vld [vmem:[%s1 + $0x17d0] sm:$0xff]
  %v815 = vld [vmem:[%s1 + $0x17d8] sm:$0xff]
  %v816 = vld [vmem:[%s1 + $0x17e0] sm:$0xff]
  %v817 = vld [vmem:[%s1 + $0x17e8] sm:$0xff]
  %v818 = vld [vmem:[%s1 + $0x17f0] sm:$0xff]
  %v819 = vld [vmem:[%s1 + $0x17f8] sm:$0xff]
  %v820 = vld [vmem:[%s1 + $0x1800] sm:$0xff]
  %v821 = vld [vmem:[%s1 + $0x1808] sm:$0xff]
  %v822 = vld [vmem:[%s1 + $0x1810] sm:$0xff]
  %v823 = vld [vmem:[%s1 + $0x1818] sm:$0xff]
  %v824 = vld [vmem:[%s1 + $0x1820] sm:$0xff]
  %v825 = vld [vmem:[%s1 + $0x1828] sm:$0xff]
  %v826 = vld [vmem:[%s1 + $0x1830] sm:$0xff]
  %v827 = vld [vmem:[%s1 + $0x1838] sm:$0xff]
  %v828 = vld [vmem:[%s1 + $0x1840] sm:$0xff]
  %v829 = vld [vmem:[%s1 + $0x1848] sm:$0xff]
  %v830 = vld [vmem:[%s1 + $0x1850] sm:$0xff]
  %v831 = vld [vmem:[%s1 + $0x1858] sm:$0xff]
  %v832 = vld [vmem:[%s1 + $0x1860] sm:$0xff]
  %v833 = vld [vmem:[%s1 + $0x1868] sm:$0xff]
  %v834 = vld [vmem:[%s1 + $0x1870] sm:$0xff]
  %v835 = vld [vmem:[%s1 + $0x1878] sm:$0xff]
  %v836 = vld [vmem:[%s1 + $0x1880] sm:$0xff]
  %v837 = vld [vmem:[%s1 + $0x1888] sm:$0xff]
  %v838 = vld [vmem:[%s1 + $0x1890] sm:$0xff]
  %v839 = vld [vmem:[%s1 + $0x1898] sm:$0xff]
  %v840 = vld [vmem:[%s1 + $0x18a0] sm:$0xff]
  %v841 = vld [vmem:[%s1 + $0x18a8] sm:$0xff]
  %v842 = vld [vmem:[%s1 + $0x18b0] sm:$0xff]
  %v843 = vld [vmem:[%s1 + $0x18b8] sm:$0xff]
  %v844 = vld [vmem:[%s1 + $0x18c0] sm:$0xff]
  %v845 = vld [vmem:[%s1 + $0x18c8] sm:$0xff]
  %v846 = vld [vmem:[%s1 + $0x18d0] sm:$0xff]
  %v847 = vld [vmem:[%s1 + $0x18d8] sm:$0xff]
  %v848 = vld [vmem:[%s1 + $0x18e0] sm:$0xff]
  %v849 = vld [vmem:[%s1 + $0x18e8] sm:$0xff]
  %v850 = vld [vmem:[%s1 + $0x18f0] sm:$0xff]
  %v851 = vld [vmem:[%s1 + $0x18f8] sm:$0xff]
  %v852 = vld [vmem:[%s1 + $0x1900] sm:$0xff]
  %v853 = vld [vmem:[%s1 + $0x1908] sm:$0xff]
  %v854 = vld [vmem:[%s1 + $0x1910] sm:$0xff]
  %v855 = vld [vmem:[%s1 + $0x1918] sm:$0xff]
  %v856 = vld [vmem:[%s1 + $0x1920] sm:$0xff]
  %v857 = vld [vmem:[%s1 + $0x1928] sm:$0xff]
  %v858 = vld [vmem:[%s1 + $0x1930] sm:$0xff]
  %v859 = vld [vmem:[%s1 + $0x1938] sm:$0xff]
  %v860 = vld [vmem:[%s1 + $0x1940] sm:$0xff]
  %v861 = vld [vmem:[%s1 + $0x1948] sm:$0xff]
  %v862 = vld [vmem:[%s1 + $0x1950] sm:$0xff]
  %v863 = vld [vmem:[%s1 + $0x1958] sm:$0xff]
  %v864 = vld [vmem:[%s1 + $0x1960] sm:$0xff]
  %v865 = vld [vmem:[%s1 + $0x1968] sm:$0xff]
  %v866 = vld [vmem:[%s1 + $0x1970] sm:$0xff]
  %v867 = vld [vmem:[%s1 + $0x1978] sm:$0xff]
  %v868 = vld [vmem:[%s1 + $0x1980] sm:$0xff]
  %v869 = vld [vmem:[%s1 + $0x1988] sm:$0xff]
  %v870 = vld [vmem:[%s1 + $0x1990] sm:$0xff]
  %v871 = vld [vmem:[%s1 + $0x1998] sm:$0xff]
  %v872 = vld [vmem:[%s1 + $0x19a0] sm:$0xff]
  %v873 = vld [vmem:[%s1 + $0x19a8] sm:$0xff]
  %v874 = vld [vmem:[%s1 + $0x19b0] sm:$0xff]
  %v875 = vld [vmem:[%s1 + $0x19b8] sm:$0xff]
  %v876 = vld [vmem:[%s1 + $0x19c0] sm:$0xff]
  %v877 = vld [vmem:[%s1 + $0x19c8] sm:$0xff]
  %v878 = vld [vmem:[%s1 + $0x19d0] sm:$0xff]
  %v879 = vld [vmem:[%s1 + $0x19d8] sm:$0xff]
  %v880 = vld [vmem:[%s1 + $0x19e0] sm:$0xff]
  %v881 = vld [vmem:[%s1 + $0x19e8] sm:$0xff]
  %v882 = vld [vmem:[%s1 + $0x19f0] sm:$0xff]
  %v883 = vld [vmem:[%s1 + $0x19f8] sm:$0xff]
  %v884 = vld [vmem:[%s1 + $0x1a00] sm:$0xff]
  %v885 = vld [vmem:[%s1 + $0x1a08] sm:$0xff]
  %v886 = vld [vmem:[%s1 + $0x1a10] sm:$0xff]
  %v887 = vld [vmem:[%s1 + $0x1a18] sm:$0xff]
  %v888 = vld [vmem:[%s1 + $0x1a20] sm:$0xff]
  %v889 = vld [vmem:[%s1 + $0x1a28] sm:$0xff]
  %v890 = vld [vmem:[%s1 + $0x1a30] sm:$0xff]
  %v891 = vld [vmem:[%s1 + $0x1a38] sm:$0xff]
  %v892 = vld [vmem:[%s1 + $0x1a40] sm:$0xff]
  %v893 = vld [vmem:[%s1 + $0x1a48] sm:$0xff]
  %v894 = vld [vmem:[%s1 + $0x1a50] sm:$0xff]
  %v895 = vld [vmem:[%s1 + $0x1a58] sm:$0xff]
  %v896 = vld [vmem:[%s1 + $0x1a60] sm:$0xff]
  %v897 = vld [vmem:[%s1 + $0x1a68] sm:$0xff]
  %v898 = vld [vmem:[%s1 + $0x1a70] sm:$0xff]
  %v899 = vld [vmem:[%s1 + $0x1a78] sm:$0xff]
  %v900 = vld [vmem:[%s1 + $0x1a80] sm:$0xff]
  %v901 = vld [vmem:[%s1 + $0x1a88] sm:$0xff]
  %v902 = vld [vmem:[%s1 + $0x1a90] sm:$0xff]
  %v903 = vld [vmem:[%s1 + $0x1a98] sm:$0xff]
  %v904 = vld [vmem:[%s1 + $0x1aa0] sm:$0xff]
  %v905 = vld [vmem:[%s1 + $0x1aa8] sm:$0xff]
  %v906 = vld [vmem:[%s1 + $0x1ab0] sm:$0xff]
  %v907 = vld [vmem:[%s1 + $0x1ab8] sm:$0xff]
  %v908 = vld [vmem:[%s1 + $0x1ac0] sm:$0xff]
  %v909 = vld [vmem:[%s1 + $0x1ac8] sm:$0xff]
  %v910 = vld [vmem:[%s1 + $0x1ad0] sm:$0xff]
  %v911 = vld [vmem:[%s1 + $0x1ad8] sm:$0xff]
  %v912 = vld [vmem:[%s1 + $0x1ae0] sm:$0xff]
  %v913 = vld [vmem:[%s1 + $0x1ae8] sm:$0xff]
  %v914 = vld [vmem:[%s1 + $0x1af0] sm:$0xff]
  %v915 = vld [vmem:[%s1 + $0x1af8] sm:$0xff]
  %v916 = vld [vmem:[%s1 + $0x1b00] sm:$0xff]
  %v917 = vld [vmem:[%s1 + $0x1b08] sm:$0xff]
  %v918 = vld [vmem:[%s1 + $0x1b10] sm:$0xff]
  %v919 = vld [vmem:[%s1 + $0x1b18] sm:$0xff]
  %v920 = vld [vmem:[%s1 + $0x1b20] sm:$0xff]
  %v921 = vld [vmem:[%s1 + $0x1b28] sm:$0xff]
  %v922 = vld [vmem:[%s1 + $0x1b30] sm:$0xff]
  %v923 = vld [vmem:[%s1 + $0x1b38] sm:$0xff]
  %v924 = vld [vmem:[%s1 + $0x1b40] sm:$0xff]
  %v925 = vld [vmem:[%s1 + $0x1b48] sm:$0xff]
  %v926 = vld [vmem:[%s1 + $0x1b50] sm:$0xff]
  %v927 = vld [vmem:[%s1 + $0x1b58] sm:$0xff]
  %v928 = vld [vmem:[%s1 + $0x1b60] sm:$0xff]
  %v929 = vld [vmem:[%s1 + $0x1b68] sm:$0xff]
  %v930 = vld [vmem:[%s1 + $0x1b70] sm:$0xff]
  %v931 = vld [vmem:[%s1 + $0x1b78] sm:$0xff]
  %v932 = vld [vmem:[%s1 + $0x1b80] sm:$0xff]
  %v933 = vld [vmem:[%s1 + $0x1b88] sm:$0xff]
  %v934 = vld [vmem:[%s1 + $0x1b90] sm:$0xff]
  %v935 = vld [vmem:[%s1 + $0x1b98] sm:$0xff]
  %v936 = vld [vmem:[%s1 + $0x1ba0] sm:$0xff]
  %v937 = vld [vmem:[%s1 + $0x1ba8] sm:$0xff]
  %v938 = vld [vmem:[%s1 + $0x1bb0] sm:$0xff]
  %v939 = vld [vmem:[%s1 + $0x1bb8] sm:$0xff]
  %v940 = vld [vmem:[%s1 + $0x1bc0] sm:$0xff]
  %v941 = vld [vmem:[%s1 + $0x1bc8] sm:$0xff]
  %v942 = vld [vmem:[%s1 + $0x1bd0] sm:$0xff]
  %v943 = vld [vmem:[%s1 + $0x1bd8] sm:$0xff]
  %v944 = vld [vmem:[%s1 + $0x1be0] sm:$0xff]
  %v945 = vld [vmem:[%s1 + $0x1be8] sm:$0xff]
  %v946 = vld [vmem:[%s1 + $0x1bf0] sm:$0xff]
  %v947 = vld [vmem:[%s1 + $0x1bf8] sm:$0xff]
  %v948 = vld [vmem:[%s1 + $0x1c00] sm:$0xff]
  %v949 = vld [vmem:[%s1 + $0x1c08] sm:$0xff]
  %v950 = vld [vmem:[%s1 + $0x1c10] sm:$0xff]
  %v951 = vld [vmem:[%s1 + $0x1c18] sm:$0xff]
  %v952 = vld [vmem:[%s1 + $0x1c20] sm:$0xff]
  %v953 = vld [vmem:[%s1 + $0x1c28] sm:$0xff]
  %v954 = vld [vmem:[%s1 + $0x1c30] sm:$0xff]
  %v955 = vld [vmem:[%s1 + $0x1c38] sm:$0xff]
  %v956 = vld [vmem:[%s1 + $0x1c40] sm:$0xff]
  %v957 = vld [vmem:[%s1 + $0x1c48] sm:$0xff]
  %v958 = vld [vmem:[%s1 + $0x1c50] sm:$0xff]
  %v959 = vld [vmem:[%s1 + $0x1c58] sm:$0xff]
  %v960 = vld [vmem:[%s1 + $0x1c60] sm:$0xff]
  %v961 = vld [vmem:[%s1 + $0x1c68] sm:$0xff]
  %v962 = vld [vmem:[%s1 + $0x1c70] sm:$0xff]
  %v963 = vld [vmem:[%s1 + $0x1c78] sm:$0xff]
  %v964 = vld [vmem:[%s1 + $0x1c80] sm:$0xff]
  %v965 = vld [vmem:[%s1 + $0x1c88] sm:$0xff]
  %v966 = vld [vmem:[%s1 + $0x1c90] sm:$0xff]
  %v967 = vld [vmem:[%s1 + $0x1c98] sm:$0xff]
  %v968 = vld [vmem:[%s1 + $0x1ca0] sm:$0xff]
  %v969 = vld [vmem:[%s1 + $0x1ca8] sm:$0xff]
  %v970 = vld [vmem:[%s1 + $0x1cb0] sm:$0xff]
  %v971 = vld [vmem:[%s1 + $0x1cb8] sm:$0xff]
  %v972 = vld [vmem:[%s1 + $0x1cc0] sm:$0xff]
  %v973 = vld [vmem:[%s1 + $0x1cc8] sm:$0xff]
  %v974 = vld [vmem:[%s1 + $0x1cd0] sm:$0xff]
  %v975 = vld [vmem:[%s1 + $0x1cd8] sm:$0xff]
  %v976 = vld [vmem:[%s1 + $0x1ce0] sm:$0xff]
  %v977 = vld [vmem:[%s1 + $0x1ce8] sm:$0xff]
  %v978 = vld [vmem:[%s1 + $0x1cf0] sm:$0xff]
  %v979 = vld [vmem:[%s1 + $0x1cf8] sm:$0xff]
  %v980 = vld [vmem:[%s1 + $0x1d00] sm:$0xff]
  %v981 = vld [vmem:[%s1 + $0x1d08] sm:$0xff]
  %v982 = vld [vmem:[%s1 + $0x1d10] sm:$0xff]
  %v983 = vld [vmem:[%s1 + $0x1d18] sm:$0xff]
  %v984 = vld [vmem:[%s1 + $0x1d20] sm:$0xff]
  %v985 = vld [vmem:[%s1 + $0x1d28] sm:$0xff]
  %v986 = vld [vmem:[%s1 + $0x1d30] sm:$0xff]
  %v987 = vld [vmem:[%s1 + $0x1d38] sm:$0xff]
  %v988 = vld [vmem:[%s1 + $0x1d40] sm:$0xff]
  %v989 = vld [vmem:[%s1 + $0x1d48] sm:$0xff]
  %v990 = vld [vmem:[%s1 + $0x1d50] sm:$0xff]
  %v991 = vld [vmem:[%s1 + $0x1d58] sm:$0xff]
  %v992 = vld [vmem:[%s1 + $0x1d60] sm:$0xff]
  %v993 = vld [vmem:[%s1 + $0x1d68] sm:$0xff]
  %v994 = vld [vmem:[%s1 + $0x1d70] sm:$0xff]
  %v995 = vld [vmem:[%s1 + $0x1d78] sm:$0xff]
  %v996 = vld [vmem:[%s1 + $0x1d80] sm:$0xff]
  %v997 = vld [vmem:[%s1 + $0x1d88] sm:$0xff]
  %v998 = vld [vmem:[%s1 + $0x1d90] sm:$0xff]
  %v999 = vld [vmem:[%s1 + $0x1d98] sm:$0xff]
  %v1000 = vld [vmem:[%s1 + $0x1da0] sm:$0xff]
  %v1001 = vld [vmem:[%s1 + $0x1da8] sm:$0xff]
  %v1002 = vld [vmem:[%s1 + $0x1db0] sm:$0xff]
  %v1003 = vld [vmem:[%s1 + $0x1db8] sm:$0xff]
  %v1004 = vld [vmem:[%s1 + $0x1dc0] sm:$0xff]
  %v1005 = vld [vmem:[%s1 + $0x1dc8] sm:$0xff]
  %v1006 = vld [vmem:[%s1 + $0x1dd0] sm:$0xff]
  %v1007 = vld [vmem:[%s1 + $0x1dd8] sm:$0xff]
  %v1008 = vld [vmem:[%s1 + $0x1de0] sm:$0xff]
  %v1009 = vld [vmem:[%s1 + $0x1de8] sm:$0xff]
  %v1010 = vld [vmem:[%s1 + $0x1df0] sm:$0xff]
  %v1011 = vld [vmem:[%s1 + $0x1df8] sm:$0xff]
  %v1012 = vld [vmem:[%s1 + $0x1e00] sm:$0xff]
  %v1013 = vld [vmem:[%s1 + $0x1e08] sm:$0xff]
  %v1014 = vld [vmem:[%s1 + $0x1e10] sm:$0xff]
  %v1015 = vld [vmem:[%s1 + $0x1e18] sm:$0xff]
  %v1016 = vld [vmem:[%s1 + $0x1e20] sm:$0xff]
  %v1017 = vld [vmem:[%s1 + $0x1e28] sm:$0xff]
  %v1018 = vld [vmem:[%s1 + $0x1e30] sm:$0xff]
  %v1019 = vld [vmem:[%s1 + $0x1e38] sm:$0xff]
  %v1020 = vld [vmem:[%s1 + $0x1e40] sm:$0xff]
  %v1021 = vld [vmem:[%s1 + $0x1e48] sm:$0xff]
  %v1022 = vld [vmem:[%s1 + $0x1e50] sm:$0xff]
  %v1023 = vld [vmem:[%s1 + $0x1e58] sm:$0xff]
  %v1024 = vld [vmem:[%s1 + $0x1e60] sm:$0xff]
  %v1025 = vld [vmem:[%s1 + $0x1e68] sm:$0xff]
  %v1026 = vld [vmem:[%s1 + $0x1e70] sm:$0xff]
  %v1027 = vld [vmem:[%s1 + $0x1e78] sm:$0xff]
  %v1028 = vld [vmem:[%s1 + $0x1e80] sm:$0xff]
  %v1029 = vld [vmem:[%s1 + $0x1e88] sm:$0xff]
  %v1030 = vld [vmem:[%s1 + $0x1e90] sm:$0xff]
  %v1031 = vld [vmem:[%s1 + $0x1e98] sm:$0xff]
  %v1032 = vld [vmem:[%s1 + $0x1ea0] sm:$0xff]
  %v1033 = vld [vmem:[%s1 + $0x1ea8] sm:$0xff]
  %v1034 = vld [vmem:[%s1 + $0x1eb0] sm:$0xff]
  %v1035 = vld [vmem:[%s1 + $0x1eb8] sm:$0xff]
  %v1036 = vld [vmem:[%s1 + $0x1ec0] sm:$0xff]
  %v1037 = vld [vmem:[%s1 + $0x1ec8] sm:$0xff]
  %v1038 = vld [vmem:[%s1 + $0x1ed0] sm:$0xff]
  %v1039 = vld [vmem:[%s1 + $0x1ed8] sm:$0xff]
  %v1040 = vld [vmem:[%s1 + $0x1ee0] sm:$0xff]
  %v1041 = vld [vmem:[%s1 + $0x1ee8] sm:$0xff]
  %v1042 = vld [vmem:[%s1 + $0x1ef0] sm:$0xff]
  %v1043 = vld [vmem:[%s1 + $0x1ef8] sm:$0xff]
  %v1044 = vld [vmem:[%s1 + $0x1f00] sm:$0xff]
  %v1045 = vld [vmem:[%s1 + $0x1f08] sm:$0xff]
  %v1046 = vld [vmem:[%s1 + $0x1f10] sm:$0xff]
  %v1047 = vld [vmem:[%s1 + $0x1f18] sm:$0xff]
  %v1048 = vld [vmem:[%s1 + $0x1f20] sm:$0xff]
  %v1049 = vld [vmem:[%s1 + $0x1f28] sm:$0xff]
  %v1050 = vld [vmem:[%s1 + $0x1f30] sm:$0xff]
  %v1051 = vld [vmem:[%s1 + $0x1f38] sm:$0xff]
  %v1052 = vld [vmem:[%s1 + $0x1f40] sm:$0xff]
  %v1053 = vld [vmem:[%s1 + $0x1f48] sm:$0xff]
  %v1054 = vld [vmem:[%s1 + $0x1f50] sm:$0xff]
  %v1055 = vld [vmem:[%s1 + $0x1f58] sm:$0xff]
  %v1056 = vld [vmem:[%s1 + $0x1f60] sm:$0xff]
  %v1057 = vld [vmem:[%s1 + $0x1f68] sm:$0xff]
  %v1058 = vld [vmem:[%s1 + $0x1f70] sm:$0xff]
  %v1059 = vld [vmem:[%s1 + $0x1f78] sm:$0xff]
  %v1060 = vld [vmem:[%s1 + $0x1f80] sm:$0xff]
  %v1061 = vld [vmem:[%s1 + $0x1f88] sm:$0xff]
  %v1062 = vld [vmem:[%s1 + $0x1f90] sm:$0xff]
  %v1063 = vld [vmem:[%s1 + $0x1f98] sm:$0xff]
  %v1064 = vld [vmem:[%s1 + $0x1fa0] sm:$0xff]
  %v1065 = vld [vmem:[%s1 + $0x1fa8] sm:$0xff]
  %v1066 = vld [vmem:[%s1 + $0x1fb0] sm:$0xff]
  %v1067 = vld [vmem:[%s1 + $0x1fb8] sm:$0xff]
  %v1068 = vld [vmem:[%s1 + $0x1fc0] sm:$0xff]
  %v1069 = vld [vmem:[%s1 + $0x1fc8] sm:$0xff]
  %v1070 = vld [vmem:[%s1 + $0x1fd0] sm:$0xff]
  %v1071 = vld [vmem:[%s1 + $0x1fd8] sm:$0xff]
  %v1072 = vld [vmem:[%s1 + $0x1fe0] sm:$0xff]
  %v1073 = vld [vmem:[%s1 + $0x1fe8] sm:$0xff]
  %v1074 = vld [vmem:[%s1 + $0x1ff0] sm:$0xff]
  %v1075 = vld [vmem:[%s1 + $0x1ff8] sm:$0xff]
  %v1076 = vld [vmem:[%s2] sm:$0xf]
  %v1078 = vperm.slane %v1076, 0
  %v1079 = vperm.slane %v1076, 1
  %v1080 = vperm.slane %v1076, 2
  %v1081 = vperm.slane %v1076, 3
  %v1118 = vunpack.c.l.b16 %v20
  %v1119 = vunpack.c.h.b16 %v20
  %v1120 = vunpack.c.l.b16 %v21
  %v1121 = vunpack.c.h.b16 %v21
  %v1122 = vunpack.c.l.b16 %v22
  %v1123 = vunpack.c.h.b16 %v22
  %v1124 = vunpack.c.l.b16 %v23
  %v1125 = vunpack.c.h.b16 %v23
  %v1126 = vunpack.c.l.b16 %v24
  %v1127 = vunpack.c.h.b16 %v24
  %v1128 = vunpack.c.l.b16 %v25
  %v1129 = vunpack.c.h.b16 %v25
  %v1130 = vunpack.c.l.b16 %v26
  %v1131 = vunpack.c.h.b16 %v26
  %v1132 = vunpack.c.l.b16 %v27
  %v1133 = vunpack.c.h.b16 %v27
  %v1134 = vunpack.c.l.b16 %v28
  %v1135 = vunpack.c.h.b16 %v28
  %v1136 = vunpack.c.l.b16 %v29
  %v1137 = vunpack.c.h.b16 %v29
  %v1138 = vunpack.c.l.b16 %v30
  %v1139 = vunpack.c.h.b16 %v30
  %v1140 = vunpack.c.l.b16 %v31
  %v1141 = vunpack.c.h.b16 %v31
  %v1142 = vunpack.c.l.b16 %v32
  %v1143 = vunpack.c.h.b16 %v32
  %v1144 = vunpack.c.l.b16 %v33
  %v1145 = vunpack.c.h.b16 %v33
  %v1146 = vunpack.c.l.b16 %v34
  %v1147 = vunpack.c.h.b16 %v34
  %v1148 = vunpack.c.l.b16 %v35
  %v1149 = vunpack.c.h.b16 %v35
  %v1150 = vunpack.c.l.b16 %v36
  %v1151 = vunpack.c.h.b16 %v36
  %v1152 = vunpack.c.l.b16 %v37
  %v1153 = vunpack.c.h.b16 %v37
  %v1154 = vunpack.c.l.b16 %v38
  %v1155 = vunpack.c.h.b16 %v38
  %v1156 = vunpack.c.l.b16 %v39
  %v1157 = vunpack.c.h.b16 %v39
  %v1158 = vunpack.c.l.b16 %v40
  %v1159 = vunpack.c.h.b16 %v40
  %v1160 = vunpack.c.l.b16 %v41
  %v1161 = vunpack.c.h.b16 %v41
  %v1162 = vunpack.c.l.b16 %v42
  %v1163 = vunpack.c.h.b16 %v42
  %v1164 = vunpack.c.l.b16 %v43
  %v1165 = vunpack.c.h.b16 %v43
  %v1166 = vunpack.c.l.b16 %v44
  %v1167 = vunpack.c.h.b16 %v44
  %v1168 = vunpack.c.l.b16 %v45
  %v1169 = vunpack.c.h.b16 %v45
  %v1170 = vunpack.c.l.b16 %v46
  %v1171 = vunpack.c.h.b16 %v46
  %v1172 = vunpack.c.l.b16 %v47
  %v1173 = vunpack.c.h.b16 %v47
  %v1174 = vunpack.c.l.b16 %v48
  %v1175 = vunpack.c.h.b16 %v48
  %v1176 = vunpack.c.l.b16 %v49
  %v1177 = vunpack.c.h.b16 %v49
  %v1178 = vunpack.c.l.b16 %v50
  %v1179 = vunpack.c.h.b16 %v50
  %v1180 = vunpack.c.l.b16 %v51
  %v1181 = vunpack.c.h.b16 %v51
  %v1182 = vpack.c.b16 %v1150, %v1118
  %v1183 = vpack.c.b16 %v1151, %v1119
  %v1184 = vpack.c.b16 %v1152, %v1120
  %v1185 = vpack.c.b16 %v1153, %v1121
  %v1186 = vpack.c.b16 %v1154, %v1122
  %v1187 = vpack.c.b16 %v1155, %v1123
  %v1188 = vpack.c.b16 %v1156, %v1124
  %v1189 = vpack.c.b16 %v1157, %v1125
  %v1190 = vpack.c.b16 %v1158, %v1126
  %v1191 = vpack.c.b16 %v1159, %v1127
  %v1192 = vpack.c.b16 %v1160, %v1128
  %v1193 = vpack.c.b16 %v1161, %v1129
  %v1194 = vpack.c.b16 %v1162, %v1130
  %v1195 = vpack.c.b16 %v1163, %v1131
  %v1196 = vpack.c.b16 %v1164, %v1132
  %v1197 = vpack.c.b16 %v1165, %v1133
  %v1198 = vpack.c.b16 %v1166, %v1134
  %v1199 = vpack.c.b16 %v1167, %v1135
  %v1200 = vpack.c.b16 %v1168, %v1136
  %v1201 = vpack.c.b16 %v1169, %v1137
  %v1202 = vpack.c.b16 %v1170, %v1138
  %v1203 = vpack.c.b16 %v1171, %v1139
  %v1204 = vpack.c.b16 %v1172, %v1140
  %v1205 = vpack.c.b16 %v1173, %v1141
  %v1206 = vpack.c.b16 %v1174, %v1142
  %v1207 = vpack.c.b16 %v1175, %v1143
  %v1208 = vpack.c.b16 %v1176, %v1144
  %v1209 = vpack.c.b16 %v1177, %v1145
  %v1210 = vpack.c.b16 %v1178, %v1146
  %v1211 = vpack.c.b16 %v1179, %v1147
  %v1212 = vpack.c.b16 %v1180, %v1148
  %v1213 = vpack.c.b16 %v1181, %v1149
  %v2270 = vunpack.c.l.b16 %v52
  %v2271 = vunpack.c.h.b16 %v52
  %v2272 = vunpack.c.l.b16 %v53
  %v2273 = vunpack.c.h.b16 %v53
  %v2274 = vunpack.c.l.b16 %v54
  %v2275 = vunpack.c.h.b16 %v54
  %v2276 = vunpack.c.l.b16 %v55
  %v2277 = vunpack.c.h.b16 %v55
  %v2278 = vunpack.c.l.b16 %v56
  %v2279 = vunpack.c.h.b16 %v56
  %v2280 = vunpack.c.l.b16 %v57
  %v2281 = vunpack.c.h.b16 %v57
  %v2282 = vunpack.c.l.b16 %v58
  %v2283 = vunpack.c.h.b16 %v58
  %v2284 = vunpack.c.l.b16 %v59
  %v2285 = vunpack.c.h.b16 %v59
  %v2286 = vunpack.c.l.b16 %v60
  %v2287 = vunpack.c.h.b16 %v60
  %v2288 = vunpack.c.l.b16 %v61
  %v2289 = vunpack.c.h.b16 %v61
  %v2290 = vunpack.c.l.b16 %v62
  %v2291 = vunpack.c.h.b16 %v62
  %v2292 = vunpack.c.l.b16 %v63
  %v2293 = vunpack.c.h.b16 %v63
  %v2294 = vunpack.c.l.b16 %v64
  %v2295 = vunpack.c.h.b16 %v64
  %v2296 = vunpack.c.l.b16 %v65
  %v2297 = vunpack.c.h.b16 %v65
  %v2298 = vunpack.c.l.b16 %v66
  %v2299 = vunpack.c.h.b16 %v66
  %v2300 = vunpack.c.l.b16 %v67
  %v2301 = vunpack.c.h.b16 %v67
  %v2302 = vunpack.c.l.b16 %v68
  %v2303 = vunpack.c.h.b16 %v68
  %v2304 = vunpack.c.l.b16 %v69
  %v2305 = vunpack.c.h.b16 %v69
  %v2306 = vunpack.c.l.b16 %v70
  %v2307 = vunpack.c.h.b16 %v70
  %v2308 = vunpack.c.l.b16 %v71
  %v2309 = vunpack.c.h.b16 %v71
  %v2310 = vunpack.c.l.b16 %v72
  %v2311 = vunpack.c.h.b16 %v72
  %v2312 = vunpack.c.l.b16 %v73
  %v2313 = vunpack.c.h.b16 %v73
  %v2314 = vunpack.c.l.b16 %v74
  %v2315 = vunpack.c.h.b16 %v74
  %v2316 = vunpack.c.l.b16 %v75
  %v2317 = vunpack.c.h.b16 %v75
  %v2318 = vunpack.c.l.b16 %v76
  %v2319 = vunpack.c.h.b16 %v76
  %v2320 = vunpack.c.l.b16 %v77
  %v2321 = vunpack.c.h.b16 %v77
  %v2322 = vunpack.c.l.b16 %v78
  %v2323 = vunpack.c.h.b16 %v78
  %v2324 = vunpack.c.l.b16 %v79
  %v2325 = vunpack.c.h.b16 %v79
  %v2326 = vunpack.c.l.b16 %v80
  %v2327 = vunpack.c.h.b16 %v80
  %v2328 = vunpack.c.l.b16 %v81
  %v2329 = vunpack.c.h.b16 %v81
  %v2330 = vunpack.c.l.b16 %v82
  %v2331 = vunpack.c.h.b16 %v82
  %v2332 = vunpack.c.l.b16 %v83
  %v2333 = vunpack.c.h.b16 %v83
  %v2334 = vunpack.c.l.b16 %v84
  %v2335 = vunpack.c.h.b16 %v84
  %v2336 = vunpack.c.l.b16 %v85
  %v2337 = vunpack.c.h.b16 %v85
  %v2338 = vunpack.c.l.b16 %v86
  %v2339 = vunpack.c.h.b16 %v86
  %v2340 = vunpack.c.l.b16 %v87
  %v2341 = vunpack.c.h.b16 %v87
  %v2342 = vunpack.c.l.b16 %v88
  %v2343 = vunpack.c.h.b16 %v88
  %v2344 = vunpack.c.l.b16 %v89
  %v2345 = vunpack.c.h.b16 %v89
  %v2346 = vunpack.c.l.b16 %v90
  %v2347 = vunpack.c.h.b16 %v90
  %v2348 = vunpack.c.l.b16 %v91
  %v2349 = vunpack.c.h.b16 %v91
  %v2350 = vunpack.c.l.b16 %v92
  %v2351 = vunpack.c.h.b16 %v92
  %v2352 = vunpack.c.l.b16 %v93
  %v2353 = vunpack.c.h.b16 %v93
  %v2354 = vunpack.c.l.b16 %v94
  %v2355 = vunpack.c.h.b16 %v94
  %v2356 = vunpack.c.l.b16 %v95
  %v2357 = vunpack.c.h.b16 %v95
  %v2358 = vunpack.c.l.b16 %v96
  %v2359 = vunpack.c.h.b16 %v96
  %v2360 = vunpack.c.l.b16 %v97
  %v2361 = vunpack.c.h.b16 %v97
  %v2362 = vunpack.c.l.b16 %v98
  %v2363 = vunpack.c.h.b16 %v98
  %v2364 = vunpack.c.l.b16 %v99
  %v2365 = vunpack.c.h.b16 %v99
  %v2366 = vunpack.c.l.b16 %v100
  %v2367 = vunpack.c.h.b16 %v100
  %v2368 = vunpack.c.l.b16 %v101
  %v2369 = vunpack.c.h.b16 %v101
  %v2370 = vunpack.c.l.b16 %v102
  %v2371 = vunpack.c.h.b16 %v102
  %v2372 = vunpack.c.l.b16 %v103
  %v2373 = vunpack.c.h.b16 %v103
  %v2374 = vunpack.c.l.b16 %v104
  %v2375 = vunpack.c.h.b16 %v104
  %v2376 = vunpack.c.l.b16 %v105
  %v2377 = vunpack.c.h.b16 %v105
  %v2378 = vunpack.c.l.b16 %v106
  %v2379 = vunpack.c.h.b16 %v106
  %v2380 = vunpack.c.l.b16 %v107
  %v2381 = vunpack.c.h.b16 %v107
  %v2382 = vunpack.c.l.b16 %v108
  %v2383 = vunpack.c.h.b16 %v108
  %v2384 = vunpack.c.l.b16 %v109
  %v2385 = vunpack.c.h.b16 %v109
  %v2386 = vunpack.c.l.b16 %v110
  %v2387 = vunpack.c.h.b16 %v110
  %v2388 = vunpack.c.l.b16 %v111
  %v2389 = vunpack.c.h.b16 %v111
  %v2390 = vunpack.c.l.b16 %v112
  %v2391 = vunpack.c.h.b16 %v112
  %v2392 = vunpack.c.l.b16 %v113
  %v2393 = vunpack.c.h.b16 %v113
  %v2394 = vunpack.c.l.b16 %v114
  %v2395 = vunpack.c.h.b16 %v114
  %v2396 = vunpack.c.l.b16 %v115
  %v2397 = vunpack.c.h.b16 %v115
  %v2398 = vunpack.c.l.b16 %v116
  %v2399 = vunpack.c.h.b16 %v116
  %v2400 = vunpack.c.l.b16 %v117
  %v2401 = vunpack.c.h.b16 %v117
  %v2402 = vunpack.c.l.b16 %v118
  %v2403 = vunpack.c.h.b16 %v118
  %v2404 = vunpack.c.l.b16 %v119
  %v2405 = vunpack.c.h.b16 %v119
  %v2406 = vunpack.c.l.b16 %v120
  %v2407 = vunpack.c.h.b16 %v120
  %v2408 = vunpack.c.l.b16 %v121
  %v2409 = vunpack.c.h.b16 %v121
  %v2410 = vunpack.c.l.b16 %v122
  %v2411 = vunpack.c.h.b16 %v122
  %v2412 = vunpack.c.l.b16 %v123
  %v2413 = vunpack.c.h.b16 %v123
  %v2414 = vunpack.c.l.b16 %v124
  %v2415 = vunpack.c.h.b16 %v124
  %v2416 = vunpack.c.l.b16 %v125
  %v2417 = vunpack.c.h.b16 %v125
  %v2418 = vunpack.c.l.b16 %v126
  %v2419 = vunpack.c.h.b16 %v126
  %v2420 = vunpack.c.l.b16 %v127
  %v2421 = vunpack.c.h.b16 %v127
  %v2422 = vunpack.c.l.b16 %v128
  %v2423 = vunpack.c.h.b16 %v128
  %v2424 = vunpack.c.l.b16 %v129
  %v2425 = vunpack.c.h.b16 %v129
  %v2426 = vunpack.c.l.b16 %v130
  %v2427 = vunpack.c.h.b16 %v130
  %v2428 = vunpack.c.l.b16 %v131
  %v2429 = vunpack.c.h.b16 %v131
  %v2430 = vunpack.c.l.b16 %v132
  %v2431 = vunpack.c.h.b16 %v132
  %v2432 = vunpack.c.l.b16 %v133
  %v2433 = vunpack.c.h.b16 %v133
  %v2434 = vunpack.c.l.b16 %v134
  %v2435 = vunpack.c.h.b16 %v134
  %v2436 = vunpack.c.l.b16 %v135
  %v2437 = vunpack.c.h.b16 %v135
  %v2438 = vunpack.c.l.b16 %v136
  %v2439 = vunpack.c.h.b16 %v136
  %v2440 = vunpack.c.l.b16 %v137
  %v2441 = vunpack.c.h.b16 %v137
  %v2442 = vunpack.c.l.b16 %v138
  %v2443 = vunpack.c.h.b16 %v138
  %v2444 = vunpack.c.l.b16 %v139
  %v2445 = vunpack.c.h.b16 %v139
  %v2446 = vunpack.c.l.b16 %v140
  %v2447 = vunpack.c.h.b16 %v140
  %v2448 = vunpack.c.l.b16 %v141
  %v2449 = vunpack.c.h.b16 %v141
  %v2450 = vunpack.c.l.b16 %v142
  %v2451 = vunpack.c.h.b16 %v142
  %v2452 = vunpack.c.l.b16 %v143
  %v2453 = vunpack.c.h.b16 %v143
  %v2454 = vunpack.c.l.b16 %v144
  %v2455 = vunpack.c.h.b16 %v144
  %v2456 = vunpack.c.l.b16 %v145
  %v2457 = vunpack.c.h.b16 %v145
  %v2458 = vunpack.c.l.b16 %v146
  %v2459 = vunpack.c.h.b16 %v146
  %v2460 = vunpack.c.l.b16 %v147
  %v2461 = vunpack.c.h.b16 %v147
  %v2462 = vunpack.c.l.b16 %v148
  %v2463 = vunpack.c.h.b16 %v148
  %v2464 = vunpack.c.l.b16 %v149
  %v2465 = vunpack.c.h.b16 %v149
  %v2466 = vunpack.c.l.b16 %v150
  %v2467 = vunpack.c.h.b16 %v150
  %v2468 = vunpack.c.l.b16 %v151
  %v2469 = vunpack.c.h.b16 %v151
  %v2470 = vunpack.c.l.b16 %v152
  %v2471 = vunpack.c.h.b16 %v152
  %v2472 = vunpack.c.l.b16 %v153
  %v2473 = vunpack.c.h.b16 %v153
  %v2474 = vunpack.c.l.b16 %v154
  %v2475 = vunpack.c.h.b16 %v154
  %v2476 = vunpack.c.l.b16 %v155
  %v2477 = vunpack.c.h.b16 %v155
  %v2478 = vunpack.c.l.b16 %v156
  %v2479 = vunpack.c.h.b16 %v156
  %v2480 = vunpack.c.l.b16 %v157
  %v2481 = vunpack.c.h.b16 %v157
  %v2482 = vunpack.c.l.b16 %v158
  %v2483 = vunpack.c.h.b16 %v158
  %v2484 = vunpack.c.l.b16 %v159
  %v2485 = vunpack.c.h.b16 %v159
  %v2486 = vunpack.c.l.b16 %v160
  %v2487 = vunpack.c.h.b16 %v160
  %v2488 = vunpack.c.l.b16 %v161
  %v2489 = vunpack.c.h.b16 %v161
  %v2490 = vunpack.c.l.b16 %v162
  %v2491 = vunpack.c.h.b16 %v162
  %v2492 = vunpack.c.l.b16 %v163
  %v2493 = vunpack.c.h.b16 %v163
  %v2494 = vunpack.c.l.b16 %v164
  %v2495 = vunpack.c.h.b16 %v164
  %v2496 = vunpack.c.l.b16 %v165
  %v2497 = vunpack.c.h.b16 %v165
  %v2498 = vunpack.c.l.b16 %v166
  %v2499 = vunpack.c.h.b16 %v166
  %v2500 = vunpack.c.l.b16 %v167
  %v2501 = vunpack.c.h.b16 %v167
  %v2502 = vunpack.c.l.b16 %v168
  %v2503 = vunpack.c.h.b16 %v168
  %v2504 = vunpack.c.l.b16 %v169
  %v2505 = vunpack.c.h.b16 %v169
  %v2506 = vunpack.c.l.b16 %v170
  %v2507 = vunpack.c.h.b16 %v170
  %v2508 = vunpack.c.l.b16 %v171
  %v2509 = vunpack.c.h.b16 %v171
  %v2510 = vunpack.c.l.b16 %v172
  %v2511 = vunpack.c.h.b16 %v172
  %v2512 = vunpack.c.l.b16 %v173
  %v2513 = vunpack.c.h.b16 %v173
  %v2514 = vunpack.c.l.b16 %v174
  %v2515 = vunpack.c.h.b16 %v174
  %v2516 = vunpack.c.l.b16 %v175
  %v2517 = vunpack.c.h.b16 %v175
  %v2518 = vunpack.c.l.b16 %v176
  %v2519 = vunpack.c.h.b16 %v176
  %v2520 = vunpack.c.l.b16 %v177
  %v2521 = vunpack.c.h.b16 %v177
  %v2522 = vunpack.c.l.b16 %v178
  %v2523 = vunpack.c.h.b16 %v178
  %v2524 = vunpack.c.l.b16 %v179
  %v2525 = vunpack.c.h.b16 %v179
  %v2526 = vunpack.c.l.b16 %v180
  %v2527 = vunpack.c.h.b16 %v180
  %v2528 = vunpack.c.l.b16 %v181
  %v2529 = vunpack.c.h.b16 %v181
  %v2530 = vunpack.c.l.b16 %v182
  %v2531 = vunpack.c.h.b16 %v182
  %v2532 = vunpack.c.l.b16 %v183
  %v2533 = vunpack.c.h.b16 %v183
  %v2534 = vunpack.c.l.b16 %v184
  %v2535 = vunpack.c.h.b16 %v184
  %v2536 = vunpack.c.l.b16 %v185
  %v2537 = vunpack.c.h.b16 %v185
  %v2538 = vunpack.c.l.b16 %v186
  %v2539 = vunpack.c.h.b16 %v186
  %v2540 = vunpack.c.l.b16 %v187
  %v2541 = vunpack.c.h.b16 %v187
  %v2542 = vunpack.c.l.b16 %v188
  %v2543 = vunpack.c.h.b16 %v188
  %v2544 = vunpack.c.l.b16 %v189
  %v2545 = vunpack.c.h.b16 %v189
  %v2546 = vunpack.c.l.b16 %v190
  %v2547 = vunpack.c.h.b16 %v190
  %v2548 = vunpack.c.l.b16 %v191
  %v2549 = vunpack.c.h.b16 %v191
  %v2550 = vunpack.c.l.b16 %v192
  %v2551 = vunpack.c.h.b16 %v192
  %v2552 = vunpack.c.l.b16 %v193
  %v2553 = vunpack.c.h.b16 %v193
  %v2554 = vunpack.c.l.b16 %v194
  %v2555 = vunpack.c.h.b16 %v194
  %v2556 = vunpack.c.l.b16 %v195
  %v2557 = vunpack.c.h.b16 %v195
  %v2558 = vunpack.c.l.b16 %v196
  %v2559 = vunpack.c.h.b16 %v196
  %v2560 = vunpack.c.l.b16 %v197
  %v2561 = vunpack.c.h.b16 %v197
  %v2562 = vunpack.c.l.b16 %v198
  %v2563 = vunpack.c.h.b16 %v198
  %v2564 = vunpack.c.l.b16 %v199
  %v2565 = vunpack.c.h.b16 %v199
  %v2566 = vunpack.c.l.b16 %v200
  %v2567 = vunpack.c.h.b16 %v200
  %v2568 = vunpack.c.l.b16 %v201
  %v2569 = vunpack.c.h.b16 %v201
  %v2570 = vunpack.c.l.b16 %v202
  %v2571 = vunpack.c.h.b16 %v202
  %v2572 = vunpack.c.l.b16 %v203
  %v2573 = vunpack.c.h.b16 %v203
  %v2574 = vunpack.c.l.b16 %v204
  %v2575 = vunpack.c.h.b16 %v204
  %v2576 = vunpack.c.l.b16 %v205
  %v2577 = vunpack.c.h.b16 %v205
  %v2578 = vunpack.c.l.b16 %v206
  %v2579 = vunpack.c.h.b16 %v206
  %v2580 = vunpack.c.l.b16 %v207
  %v2581 = vunpack.c.h.b16 %v207
  %v2582 = vunpack.c.l.b16 %v208
  %v2583 = vunpack.c.h.b16 %v208
  %v2584 = vunpack.c.l.b16 %v209
  %v2585 = vunpack.c.h.b16 %v209
  %v2586 = vunpack.c.l.b16 %v210
  %v2587 = vunpack.c.h.b16 %v210
  %v2588 = vunpack.c.l.b16 %v211
  %v2589 = vunpack.c.h.b16 %v211
  %v2590 = vunpack.c.l.b16 %v212
  %v2591 = vunpack.c.h.b16 %v212
  %v2592 = vunpack.c.l.b16 %v213
  %v2593 = vunpack.c.h.b16 %v213
  %v2594 = vunpack.c.l.b16 %v214
  %v2595 = vunpack.c.h.b16 %v214
  %v2596 = vunpack.c.l.b16 %v215
  %v2597 = vunpack.c.h.b16 %v215
  %v2598 = vunpack.c.l.b16 %v216
  %v2599 = vunpack.c.h.b16 %v216
  %v2600 = vunpack.c.l.b16 %v217
  %v2601 = vunpack.c.h.b16 %v217
  %v2602 = vunpack.c.l.b16 %v218
  %v2603 = vunpack.c.h.b16 %v218
  %v2604 = vunpack.c.l.b16 %v219
  %v2605 = vunpack.c.h.b16 %v219
  %v2606 = vunpack.c.l.b16 %v220
  %v2607 = vunpack.c.h.b16 %v220
  %v2608 = vunpack.c.l.b16 %v221
  %v2609 = vunpack.c.h.b16 %v221
  %v2610 = vunpack.c.l.b16 %v222
  %v2611 = vunpack.c.h.b16 %v222
  %v2612 = vunpack.c.l.b16 %v223
  %v2613 = vunpack.c.h.b16 %v223
  %v2614 = vunpack.c.l.b16 %v224
  %v2615 = vunpack.c.h.b16 %v224
  %v2616 = vunpack.c.l.b16 %v225
  %v2617 = vunpack.c.h.b16 %v225
  %v2618 = vunpack.c.l.b16 %v226
  %v2619 = vunpack.c.h.b16 %v226
  %v2620 = vunpack.c.l.b16 %v227
  %v2621 = vunpack.c.h.b16 %v227
  %v2622 = vunpack.c.l.b16 %v228
  %v2623 = vunpack.c.h.b16 %v228
  %v2624 = vunpack.c.l.b16 %v229
  %v2625 = vunpack.c.h.b16 %v229
  %v2626 = vunpack.c.l.b16 %v230
  %v2627 = vunpack.c.h.b16 %v230
  %v2628 = vunpack.c.l.b16 %v231
  %v2629 = vunpack.c.h.b16 %v231
  %v2630 = vunpack.c.l.b16 %v232
  %v2631 = vunpack.c.h.b16 %v232
  %v2632 = vunpack.c.l.b16 %v233
  %v2633 = vunpack.c.h.b16 %v233
  %v2634 = vunpack.c.l.b16 %v234
  %v2635 = vunpack.c.h.b16 %v234
  %v2636 = vunpack.c.l.b16 %v235
  %v2637 = vunpack.c.h.b16 %v235
  %v2638 = vunpack.c.l.b16 %v236
  %v2639 = vunpack.c.h.b16 %v236
  %v2640 = vunpack.c.l.b16 %v237
  %v2641 = vunpack.c.h.b16 %v237
  %v2642 = vunpack.c.l.b16 %v238
  %v2643 = vunpack.c.h.b16 %v238
  %v2644 = vunpack.c.l.b16 %v239
  %v2645 = vunpack.c.h.b16 %v239
  %v2646 = vunpack.c.l.b16 %v240
  %v2647 = vunpack.c.h.b16 %v240
  %v2648 = vunpack.c.l.b16 %v241
  %v2649 = vunpack.c.h.b16 %v241
  %v2650 = vunpack.c.l.b16 %v242
  %v2651 = vunpack.c.h.b16 %v242
  %v2652 = vunpack.c.l.b16 %v243
  %v2653 = vunpack.c.h.b16 %v243
  %v2654 = vunpack.c.l.b16 %v244
  %v2655 = vunpack.c.h.b16 %v244
  %v2656 = vunpack.c.l.b16 %v245
  %v2657 = vunpack.c.h.b16 %v245
  %v2658 = vunpack.c.l.b16 %v246
  %v2659 = vunpack.c.h.b16 %v246
  %v2660 = vunpack.c.l.b16 %v247
  %v2661 = vunpack.c.h.b16 %v247
  %v2662 = vunpack.c.l.b16 %v248
  %v2663 = vunpack.c.h.b16 %v248
  %v2664 = vunpack.c.l.b16 %v249
  %v2665 = vunpack.c.h.b16 %v249
  %v2666 = vunpack.c.l.b16 %v250
  %v2667 = vunpack.c.h.b16 %v250
  %v2668 = vunpack.c.l.b16 %v251
  %v2669 = vunpack.c.h.b16 %v251
  %v2670 = vunpack.c.l.b16 %v252
  %v2671 = vunpack.c.h.b16 %v252
  %v2672 = vunpack.c.l.b16 %v253
  %v2673 = vunpack.c.h.b16 %v253
  %v2674 = vunpack.c.l.b16 %v254
  %v2675 = vunpack.c.h.b16 %v254
  %v2676 = vunpack.c.l.b16 %v255
  %v2677 = vunpack.c.h.b16 %v255
  %v2678 = vunpack.c.l.b16 %v256
  %v2679 = vunpack.c.h.b16 %v256
  %v2680 = vunpack.c.l.b16 %v257
  %v2681 = vunpack.c.h.b16 %v257
  %v2682 = vunpack.c.l.b16 %v258
  %v2683 = vunpack.c.h.b16 %v258
  %v2684 = vunpack.c.l.b16 %v259
  %v2685 = vunpack.c.h.b16 %v259
  %v2686 = vunpack.c.l.b16 %v260
  %v2687 = vunpack.c.h.b16 %v260
  %v2688 = vunpack.c.l.b16 %v261
  %v2689 = vunpack.c.h.b16 %v261
  %v2690 = vunpack.c.l.b16 %v262
  %v2691 = vunpack.c.h.b16 %v262
  %v2692 = vunpack.c.l.b16 %v263
  %v2693 = vunpack.c.h.b16 %v263
  %v2694 = vunpack.c.l.b16 %v264
  %v2695 = vunpack.c.h.b16 %v264
  %v2696 = vunpack.c.l.b16 %v265
  %v2697 = vunpack.c.h.b16 %v265
  %v2698 = vunpack.c.l.b16 %v266
  %v2699 = vunpack.c.h.b16 %v266
  %v2700 = vunpack.c.l.b16 %v267
  %v2701 = vunpack.c.h.b16 %v267
  %v2702 = vunpack.c.l.b16 %v268
  %v2703 = vunpack.c.h.b16 %v268
  %v2704 = vunpack.c.l.b16 %v269
  %v2705 = vunpack.c.h.b16 %v269
  %v2706 = vunpack.c.l.b16 %v270
  %v2707 = vunpack.c.h.b16 %v270
  %v2708 = vunpack.c.l.b16 %v271
  %v2709 = vunpack.c.h.b16 %v271
  %v2710 = vunpack.c.l.b16 %v272
  %v2711 = vunpack.c.h.b16 %v272
  %v2712 = vunpack.c.l.b16 %v273
  %v2713 = vunpack.c.h.b16 %v273
  %v2714 = vunpack.c.l.b16 %v274
  %v2715 = vunpack.c.h.b16 %v274
  %v2716 = vunpack.c.l.b16 %v275
  %v2717 = vunpack.c.h.b16 %v275
  %v2718 = vunpack.c.l.b16 %v276
  %v2719 = vunpack.c.h.b16 %v276
  %v2720 = vunpack.c.l.b16 %v277
  %v2721 = vunpack.c.h.b16 %v277
  %v2722 = vunpack.c.l.b16 %v278
  %v2723 = vunpack.c.h.b16 %v278
  %v2724 = vunpack.c.l.b16 %v279
  %v2725 = vunpack.c.h.b16 %v279
  %v2726 = vunpack.c.l.b16 %v280
  %v2727 = vunpack.c.h.b16 %v280
  %v2728 = vunpack.c.l.b16 %v281
  %v2729 = vunpack.c.h.b16 %v281
  %v2730 = vunpack.c.l.b16 %v282
  %v2731 = vunpack.c.h.b16 %v282
  %v2732 = vunpack.c.l.b16 %v283
  %v2733 = vunpack.c.h.b16 %v283
  %v2734 = vunpack.c.l.b16 %v284
  %v2735 = vunpack.c.h.b16 %v284
  %v2736 = vunpack.c.l.b16 %v285
  %v2737 = vunpack.c.h.b16 %v285
  %v2738 = vunpack.c.l.b16 %v286
  %v2739 = vunpack.c.h.b16 %v286
  %v2740 = vunpack.c.l.b16 %v287
  %v2741 = vunpack.c.h.b16 %v287
  %v2742 = vunpack.c.l.b16 %v288
  %v2743 = vunpack.c.h.b16 %v288
  %v2744 = vunpack.c.l.b16 %v289
  %v2745 = vunpack.c.h.b16 %v289
  %v2746 = vunpack.c.l.b16 %v290
  %v2747 = vunpack.c.h.b16 %v290
  %v2748 = vunpack.c.l.b16 %v291
  %v2749 = vunpack.c.h.b16 %v291
  %v2750 = vunpack.c.l.b16 %v292
  %v2751 = vunpack.c.h.b16 %v292
  %v2752 = vunpack.c.l.b16 %v293
  %v2753 = vunpack.c.h.b16 %v293
  %v2754 = vunpack.c.l.b16 %v294
  %v2755 = vunpack.c.h.b16 %v294
  %v2756 = vunpack.c.l.b16 %v295
  %v2757 = vunpack.c.h.b16 %v295
  %v2758 = vunpack.c.l.b16 %v296
  %v2759 = vunpack.c.h.b16 %v296
  %v2760 = vunpack.c.l.b16 %v297
  %v2761 = vunpack.c.h.b16 %v297
  %v2762 = vunpack.c.l.b16 %v298
  %v2763 = vunpack.c.h.b16 %v298
  %v2764 = vunpack.c.l.b16 %v299
  %v2765 = vunpack.c.h.b16 %v299
  %v2766 = vunpack.c.l.b16 %v300
  %v2767 = vunpack.c.h.b16 %v300
  %v2768 = vunpack.c.l.b16 %v301
  %v2769 = vunpack.c.h.b16 %v301
  %v2770 = vunpack.c.l.b16 %v302
  %v2771 = vunpack.c.h.b16 %v302
  %v2772 = vunpack.c.l.b16 %v303
  %v2773 = vunpack.c.h.b16 %v303
  %v2774 = vunpack.c.l.b16 %v304
  %v2775 = vunpack.c.h.b16 %v304
  %v2776 = vunpack.c.l.b16 %v305
  %v2777 = vunpack.c.h.b16 %v305
  %v2778 = vunpack.c.l.b16 %v306
  %v2779 = vunpack.c.h.b16 %v306
  %v2780 = vunpack.c.l.b16 %v307
  %v2781 = vunpack.c.h.b16 %v307
  %v2782 = vunpack.c.l.b16 %v308
  %v2783 = vunpack.c.h.b16 %v308
  %v2784 = vunpack.c.l.b16 %v309
  %v2785 = vunpack.c.h.b16 %v309
  %v2786 = vunpack.c.l.b16 %v310
  %v2787 = vunpack.c.h.b16 %v310
  %v2788 = vunpack.c.l.b16 %v311
  %v2789 = vunpack.c.h.b16 %v311
  %v2790 = vunpack.c.l.b16 %v312
  %v2791 = vunpack.c.h.b16 %v312
  %v2792 = vunpack.c.l.b16 %v313
  %v2793 = vunpack.c.h.b16 %v313
  %v2794 = vunpack.c.l.b16 %v314
  %v2795 = vunpack.c.h.b16 %v314
  %v2796 = vunpack.c.l.b16 %v315
  %v2797 = vunpack.c.h.b16 %v315
  %v2798 = vunpack.c.l.b16 %v316
  %v2799 = vunpack.c.h.b16 %v316
  %v2800 = vunpack.c.l.b16 %v317
  %v2801 = vunpack.c.h.b16 %v317
  %v2802 = vunpack.c.l.b16 %v318
  %v2803 = vunpack.c.h.b16 %v318
  %v2804 = vunpack.c.l.b16 %v319
  %v2805 = vunpack.c.h.b16 %v319
  %v2806 = vunpack.c.l.b16 %v320
  %v2807 = vunpack.c.h.b16 %v320
  %v2808 = vunpack.c.l.b16 %v321
  %v2809 = vunpack.c.h.b16 %v321
  %v2810 = vunpack.c.l.b16 %v322
  %v2811 = vunpack.c.h.b16 %v322
  %v2812 = vunpack.c.l.b16 %v323
  %v2813 = vunpack.c.h.b16 %v323
  %v2814 = vunpack.c.l.b16 %v324
  %v2815 = vunpack.c.h.b16 %v324
  %v2816 = vunpack.c.l.b16 %v325
  %v2817 = vunpack.c.h.b16 %v325
  %v2818 = vunpack.c.l.b16 %v326
  %v2819 = vunpack.c.h.b16 %v326
  %v2820 = vunpack.c.l.b16 %v327
  %v2821 = vunpack.c.h.b16 %v327
  %v2822 = vunpack.c.l.b16 %v328
  %v2823 = vunpack.c.h.b16 %v328
  %v2824 = vunpack.c.l.b16 %v329
  %v2825 = vunpack.c.h.b16 %v329
  %v2826 = vunpack.c.l.b16 %v330
  %v2827 = vunpack.c.h.b16 %v330
  %v2828 = vunpack.c.l.b16 %v331
  %v2829 = vunpack.c.h.b16 %v331
  %v2830 = vunpack.c.l.b16 %v332
  %v2831 = vunpack.c.h.b16 %v332
  %v2832 = vunpack.c.l.b16 %v333
  %v2833 = vunpack.c.h.b16 %v333
  %v2834 = vunpack.c.l.b16 %v334
  %v2835 = vunpack.c.h.b16 %v334
  %v2836 = vunpack.c.l.b16 %v335
  %v2837 = vunpack.c.h.b16 %v335
  %v2838 = vunpack.c.l.b16 %v336
  %v2839 = vunpack.c.h.b16 %v336
  %v2840 = vunpack.c.l.b16 %v337
  %v2841 = vunpack.c.h.b16 %v337
  %v2842 = vunpack.c.l.b16 %v338
  %v2843 = vunpack.c.h.b16 %v338
  %v2844 = vunpack.c.l.b16 %v339
  %v2845 = vunpack.c.h.b16 %v339
  %v2846 = vunpack.c.l.b16 %v340
  %v2847 = vunpack.c.h.b16 %v340
  %v2848 = vunpack.c.l.b16 %v341
  %v2849 = vunpack.c.h.b16 %v341
  %v2850 = vunpack.c.l.b16 %v342
  %v2851 = vunpack.c.h.b16 %v342
  %v2852 = vunpack.c.l.b16 %v343
  %v2853 = vunpack.c.h.b16 %v343
  %v2854 = vunpack.c.l.b16 %v344
  %v2855 = vunpack.c.h.b16 %v344
  %v2856 = vunpack.c.l.b16 %v345
  %v2857 = vunpack.c.h.b16 %v345
  %v2858 = vunpack.c.l.b16 %v346
  %v2859 = vunpack.c.h.b16 %v346
  %v2860 = vunpack.c.l.b16 %v347
  %v2861 = vunpack.c.h.b16 %v347
  %v2862 = vunpack.c.l.b16 %v348
  %v2863 = vunpack.c.h.b16 %v348
  %v2864 = vunpack.c.l.b16 %v349
  %v2865 = vunpack.c.h.b16 %v349
  %v2866 = vunpack.c.l.b16 %v350
  %v2867 = vunpack.c.h.b16 %v350
  %v2868 = vunpack.c.l.b16 %v351
  %v2869 = vunpack.c.h.b16 %v351
  %v2870 = vunpack.c.l.b16 %v352
  %v2871 = vunpack.c.h.b16 %v352
  %v2872 = vunpack.c.l.b16 %v353
  %v2873 = vunpack.c.h.b16 %v353
  %v2874 = vunpack.c.l.b16 %v354
  %v2875 = vunpack.c.h.b16 %v354
  %v2876 = vunpack.c.l.b16 %v355
  %v2877 = vunpack.c.h.b16 %v355
  %v2878 = vunpack.c.l.b16 %v356
  %v2879 = vunpack.c.h.b16 %v356
  %v2880 = vunpack.c.l.b16 %v357
  %v2881 = vunpack.c.h.b16 %v357
  %v2882 = vunpack.c.l.b16 %v358
  %v2883 = vunpack.c.h.b16 %v358
  %v2884 = vunpack.c.l.b16 %v359
  %v2885 = vunpack.c.h.b16 %v359
  %v2886 = vunpack.c.l.b16 %v360
  %v2887 = vunpack.c.h.b16 %v360
  %v2888 = vunpack.c.l.b16 %v361
  %v2889 = vunpack.c.h.b16 %v361
  %v2890 = vunpack.c.l.b16 %v362
  %v2891 = vunpack.c.h.b16 %v362
  %v2892 = vunpack.c.l.b16 %v363
  %v2893 = vunpack.c.h.b16 %v363
  %v2894 = vunpack.c.l.b16 %v364
  %v2895 = vunpack.c.h.b16 %v364
  %v2896 = vunpack.c.l.b16 %v365
  %v2897 = vunpack.c.h.b16 %v365
  %v2898 = vunpack.c.l.b16 %v366
  %v2899 = vunpack.c.h.b16 %v366
  %v2900 = vunpack.c.l.b16 %v367
  %v2901 = vunpack.c.h.b16 %v367
  %v2902 = vunpack.c.l.b16 %v368
  %v2903 = vunpack.c.h.b16 %v368
  %v2904 = vunpack.c.l.b16 %v369
  %v2905 = vunpack.c.h.b16 %v369
  %v2906 = vunpack.c.l.b16 %v370
  %v2907 = vunpack.c.h.b16 %v370
  %v2908 = vunpack.c.l.b16 %v371
  %v2909 = vunpack.c.h.b16 %v371
  %v2910 = vunpack.c.l.b16 %v372
  %v2911 = vunpack.c.h.b16 %v372
  %v2912 = vunpack.c.l.b16 %v373
  %v2913 = vunpack.c.h.b16 %v373
  %v2914 = vunpack.c.l.b16 %v374
  %v2915 = vunpack.c.h.b16 %v374
  %v2916 = vunpack.c.l.b16 %v375
  %v2917 = vunpack.c.h.b16 %v375
  %v2918 = vunpack.c.l.b16 %v376
  %v2919 = vunpack.c.h.b16 %v376
  %v2920 = vunpack.c.l.b16 %v377
  %v2921 = vunpack.c.h.b16 %v377
  %v2922 = vunpack.c.l.b16 %v378
  %v2923 = vunpack.c.h.b16 %v378
  %v2924 = vunpack.c.l.b16 %v379
  %v2925 = vunpack.c.h.b16 %v379
  %v2926 = vunpack.c.l.b16 %v380
  %v2927 = vunpack.c.h.b16 %v380
  %v2928 = vunpack.c.l.b16 %v381
  %v2929 = vunpack.c.h.b16 %v381
  %v2930 = vunpack.c.l.b16 %v382
  %v2931 = vunpack.c.h.b16 %v382
  %v2932 = vunpack.c.l.b16 %v383
  %v2933 = vunpack.c.h.b16 %v383
  %v2934 = vunpack.c.l.b16 %v384
  %v2935 = vunpack.c.h.b16 %v384
  %v2936 = vunpack.c.l.b16 %v385
  %v2937 = vunpack.c.h.b16 %v385
  %v2938 = vunpack.c.l.b16 %v386
  %v2939 = vunpack.c.h.b16 %v386
  %v2940 = vunpack.c.l.b16 %v387
  %v2941 = vunpack.c.h.b16 %v387
  %v2942 = vunpack.c.l.b16 %v388
  %v2943 = vunpack.c.h.b16 %v388
  %v2944 = vunpack.c.l.b16 %v389
  %v2945 = vunpack.c.h.b16 %v389
  %v2946 = vunpack.c.l.b16 %v390
  %v2947 = vunpack.c.h.b16 %v390
  %v2948 = vunpack.c.l.b16 %v391
  %v2949 = vunpack.c.h.b16 %v391
  %v2950 = vunpack.c.l.b16 %v392
  %v2951 = vunpack.c.h.b16 %v392
  %v2952 = vunpack.c.l.b16 %v393
  %v2953 = vunpack.c.h.b16 %v393
  %v2954 = vunpack.c.l.b16 %v394
  %v2955 = vunpack.c.h.b16 %v394
  %v2956 = vunpack.c.l.b16 %v395
  %v2957 = vunpack.c.h.b16 %v395
  %v2958 = vunpack.c.l.b16 %v396
  %v2959 = vunpack.c.h.b16 %v396
  %v2960 = vunpack.c.l.b16 %v397
  %v2961 = vunpack.c.h.b16 %v397
  %v2962 = vunpack.c.l.b16 %v398
  %v2963 = vunpack.c.h.b16 %v398
  %v2964 = vunpack.c.l.b16 %v399
  %v2965 = vunpack.c.h.b16 %v399
  %v2966 = vunpack.c.l.b16 %v400
  %v2967 = vunpack.c.h.b16 %v400
  %v2968 = vunpack.c.l.b16 %v401
  %v2969 = vunpack.c.h.b16 %v401
  %v2970 = vunpack.c.l.b16 %v402
  %v2971 = vunpack.c.h.b16 %v402
  %v2972 = vunpack.c.l.b16 %v403
  %v2973 = vunpack.c.h.b16 %v403
  %v2974 = vunpack.c.l.b16 %v404
  %v2975 = vunpack.c.h.b16 %v404
  %v2976 = vunpack.c.l.b16 %v405
  %v2977 = vunpack.c.h.b16 %v405
  %v2978 = vunpack.c.l.b16 %v406
  %v2979 = vunpack.c.h.b16 %v406
  %v2980 = vunpack.c.l.b16 %v407
  %v2981 = vunpack.c.h.b16 %v407
  %v2982 = vunpack.c.l.b16 %v408
  %v2983 = vunpack.c.h.b16 %v408
  %v2984 = vunpack.c.l.b16 %v409
  %v2985 = vunpack.c.h.b16 %v409
  %v2986 = vunpack.c.l.b16 %v410
  %v2987 = vunpack.c.h.b16 %v410
  %v2988 = vunpack.c.l.b16 %v411
  %v2989 = vunpack.c.h.b16 %v411
  %v2990 = vunpack.c.l.b16 %v412
  %v2991 = vunpack.c.h.b16 %v412
  %v2992 = vunpack.c.l.b16 %v413
  %v2993 = vunpack.c.h.b16 %v413
  %v2994 = vunpack.c.l.b16 %v414
  %v2995 = vunpack.c.h.b16 %v414
  %v2996 = vunpack.c.l.b16 %v415
  %v2997 = vunpack.c.h.b16 %v415
  %v2998 = vunpack.c.l.b16 %v416
  %v2999 = vunpack.c.h.b16 %v416
  %v3000 = vunpack.c.l.b16 %v417
  %v3001 = vunpack.c.h.b16 %v417
  %v3002 = vunpack.c.l.b16 %v418
  %v3003 = vunpack.c.h.b16 %v418
  %v3004 = vunpack.c.l.b16 %v419
  %v3005 = vunpack.c.h.b16 %v419
  %v3006 = vunpack.c.l.b16 %v420
  %v3007 = vunpack.c.h.b16 %v420
  %v3008 = vunpack.c.l.b16 %v421
  %v3009 = vunpack.c.h.b16 %v421
  %v3010 = vunpack.c.l.b16 %v422
  %v3011 = vunpack.c.h.b16 %v422
  %v3012 = vunpack.c.l.b16 %v423
  %v3013 = vunpack.c.h.b16 %v423
  %v3014 = vunpack.c.l.b16 %v424
  %v3015 = vunpack.c.h.b16 %v424
  %v3016 = vunpack.c.l.b16 %v425
  %v3017 = vunpack.c.h.b16 %v425
  %v3018 = vunpack.c.l.b16 %v426
  %v3019 = vunpack.c.h.b16 %v426
  %v3020 = vunpack.c.l.b16 %v427
  %v3021 = vunpack.c.h.b16 %v427
  %v3022 = vunpack.c.l.b16 %v428
  %v3023 = vunpack.c.h.b16 %v428
  %v3024 = vunpack.c.l.b16 %v429
  %v3025 = vunpack.c.h.b16 %v429
  %v3026 = vunpack.c.l.b16 %v430
  %v3027 = vunpack.c.h.b16 %v430
  %v3028 = vunpack.c.l.b16 %v431
  %v3029 = vunpack.c.h.b16 %v431
  %v3030 = vunpack.c.l.b16 %v432
  %v3031 = vunpack.c.h.b16 %v432
  %v3032 = vunpack.c.l.b16 %v433
  %v3033 = vunpack.c.h.b16 %v433
  %v3034 = vunpack.c.l.b16 %v434
  %v3035 = vunpack.c.h.b16 %v434
  %v3036 = vunpack.c.l.b16 %v435
  %v3037 = vunpack.c.h.b16 %v435
  %v3038 = vunpack.c.l.b16 %v436
  %v3039 = vunpack.c.h.b16 %v436
  %v3040 = vunpack.c.l.b16 %v437
  %v3041 = vunpack.c.h.b16 %v437
  %v3042 = vunpack.c.l.b16 %v438
  %v3043 = vunpack.c.h.b16 %v438
  %v3044 = vunpack.c.l.b16 %v439
  %v3045 = vunpack.c.h.b16 %v439
  %v3046 = vunpack.c.l.b16 %v440
  %v3047 = vunpack.c.h.b16 %v440
  %v3048 = vunpack.c.l.b16 %v441
  %v3049 = vunpack.c.h.b16 %v441
  %v3050 = vunpack.c.l.b16 %v442
  %v3051 = vunpack.c.h.b16 %v442
  %v3052 = vunpack.c.l.b16 %v443
  %v3053 = vunpack.c.h.b16 %v443
  %v3054 = vunpack.c.l.b16 %v444
  %v3055 = vunpack.c.h.b16 %v444
  %v3056 = vunpack.c.l.b16 %v445
  %v3057 = vunpack.c.h.b16 %v445
  %v3058 = vunpack.c.l.b16 %v446
  %v3059 = vunpack.c.h.b16 %v446
  %v3060 = vunpack.c.l.b16 %v447
  %v3061 = vunpack.c.h.b16 %v447
  %v3062 = vunpack.c.l.b16 %v448
  %v3063 = vunpack.c.h.b16 %v448
  %v3064 = vunpack.c.l.b16 %v449
  %v3065 = vunpack.c.h.b16 %v449
  %v3066 = vunpack.c.l.b16 %v450
  %v3067 = vunpack.c.h.b16 %v450
  %v3068 = vunpack.c.l.b16 %v451
  %v3069 = vunpack.c.h.b16 %v451
  %v3070 = vunpack.c.l.b16 %v452
  %v3071 = vunpack.c.h.b16 %v452
  %v3072 = vunpack.c.l.b16 %v453
  %v3073 = vunpack.c.h.b16 %v453
  %v3074 = vunpack.c.l.b16 %v454
  %v3075 = vunpack.c.h.b16 %v454
  %v3076 = vunpack.c.l.b16 %v455
  %v3077 = vunpack.c.h.b16 %v455
  %v3078 = vunpack.c.l.b16 %v456
  %v3079 = vunpack.c.h.b16 %v456
  %v3080 = vunpack.c.l.b16 %v457
  %v3081 = vunpack.c.h.b16 %v457
  %v3082 = vunpack.c.l.b16 %v458
  %v3083 = vunpack.c.h.b16 %v458
  %v3084 = vunpack.c.l.b16 %v459
  %v3085 = vunpack.c.h.b16 %v459
  %v3086 = vunpack.c.l.b16 %v460
  %v3087 = vunpack.c.h.b16 %v460
  %v3088 = vunpack.c.l.b16 %v461
  %v3089 = vunpack.c.h.b16 %v461
  %v3090 = vunpack.c.l.b16 %v462
  %v3091 = vunpack.c.h.b16 %v462
  %v3092 = vunpack.c.l.b16 %v463
  %v3093 = vunpack.c.h.b16 %v463
  %v3094 = vunpack.c.l.b16 %v464
  %v3095 = vunpack.c.h.b16 %v464
  %v3096 = vunpack.c.l.b16 %v465
  %v3097 = vunpack.c.h.b16 %v465
  %v3098 = vunpack.c.l.b16 %v466
  %v3099 = vunpack.c.h.b16 %v466
  %v3100 = vunpack.c.l.b16 %v467
  %v3101 = vunpack.c.h.b16 %v467
  %v3102 = vunpack.c.l.b16 %v468
  %v3103 = vunpack.c.h.b16 %v468
  %v3104 = vunpack.c.l.b16 %v469
  %v3105 = vunpack.c.h.b16 %v469
  %v3106 = vunpack.c.l.b16 %v470
  %v3107 = vunpack.c.h.b16 %v470
  %v3108 = vunpack.c.l.b16 %v471
  %v3109 = vunpack.c.h.b16 %v471
  %v3110 = vunpack.c.l.b16 %v472
  %v3111 = vunpack.c.h.b16 %v472
  %v3112 = vunpack.c.l.b16 %v473
  %v3113 = vunpack.c.h.b16 %v473
  %v3114 = vunpack.c.l.b16 %v474
  %v3115 = vunpack.c.h.b16 %v474
  %v3116 = vunpack.c.l.b16 %v475
  %v3117 = vunpack.c.h.b16 %v475
  %v3118 = vunpack.c.l.b16 %v476
  %v3119 = vunpack.c.h.b16 %v476
  %v3120 = vunpack.c.l.b16 %v477
  %v3121 = vunpack.c.h.b16 %v477
  %v3122 = vunpack.c.l.b16 %v478
  %v3123 = vunpack.c.h.b16 %v478
  %v3124 = vunpack.c.l.b16 %v479
  %v3125 = vunpack.c.h.b16 %v479
  %v3126 = vunpack.c.l.b16 %v480
  %v3127 = vunpack.c.h.b16 %v480
  %v3128 = vunpack.c.l.b16 %v481
  %v3129 = vunpack.c.h.b16 %v481
  %v3130 = vunpack.c.l.b16 %v482
  %v3131 = vunpack.c.h.b16 %v482
  %v3132 = vunpack.c.l.b16 %v483
  %v3133 = vunpack.c.h.b16 %v483
  %v3134 = vunpack.c.l.b16 %v484
  %v3135 = vunpack.c.h.b16 %v484
  %v3136 = vunpack.c.l.b16 %v485
  %v3137 = vunpack.c.h.b16 %v485
  %v3138 = vunpack.c.l.b16 %v486
  %v3139 = vunpack.c.h.b16 %v486
  %v3140 = vunpack.c.l.b16 %v487
  %v3141 = vunpack.c.h.b16 %v487
  %v3142 = vunpack.c.l.b16 %v488
  %v3143 = vunpack.c.h.b16 %v488
  %v3144 = vunpack.c.l.b16 %v489
  %v3145 = vunpack.c.h.b16 %v489
  %v3146 = vunpack.c.l.b16 %v490
  %v3147 = vunpack.c.h.b16 %v490
  %v3148 = vunpack.c.l.b16 %v491
  %v3149 = vunpack.c.h.b16 %v491
  %v3150 = vunpack.c.l.b16 %v492
  %v3151 = vunpack.c.h.b16 %v492
  %v3152 = vunpack.c.l.b16 %v493
  %v3153 = vunpack.c.h.b16 %v493
  %v3154 = vunpack.c.l.b16 %v494
  %v3155 = vunpack.c.h.b16 %v494
  %v3156 = vunpack.c.l.b16 %v495
  %v3157 = vunpack.c.h.b16 %v495
  %v3158 = vunpack.c.l.b16 %v496
  %v3159 = vunpack.c.h.b16 %v496
  %v3160 = vunpack.c.l.b16 %v497
  %v3161 = vunpack.c.h.b16 %v497
  %v3162 = vunpack.c.l.b16 %v498
  %v3163 = vunpack.c.h.b16 %v498
  %v3164 = vunpack.c.l.b16 %v499
  %v3165 = vunpack.c.h.b16 %v499
  %v3166 = vunpack.c.l.b16 %v500
  %v3167 = vunpack.c.h.b16 %v500
  %v3168 = vunpack.c.l.b16 %v501
  %v3169 = vunpack.c.h.b16 %v501
  %v3170 = vunpack.c.l.b16 %v502
  %v3171 = vunpack.c.h.b16 %v502
  %v3172 = vunpack.c.l.b16 %v503
  %v3173 = vunpack.c.h.b16 %v503
  %v3174 = vunpack.c.l.b16 %v504
  %v3175 = vunpack.c.h.b16 %v504
  %v3176 = vunpack.c.l.b16 %v505
  %v3177 = vunpack.c.h.b16 %v505
  %v3178 = vunpack.c.l.b16 %v506
  %v3179 = vunpack.c.h.b16 %v506
  %v3180 = vunpack.c.l.b16 %v507
  %v3181 = vunpack.c.h.b16 %v507
  %v3182 = vunpack.c.l.b16 %v508
  %v3183 = vunpack.c.h.b16 %v508
  %v3184 = vunpack.c.l.b16 %v509
  %v3185 = vunpack.c.h.b16 %v509
  %v3186 = vunpack.c.l.b16 %v510
  %v3187 = vunpack.c.h.b16 %v510
  %v3188 = vunpack.c.l.b16 %v511
  %v3189 = vunpack.c.h.b16 %v511
  %v3190 = vunpack.c.l.b16 %v512
  %v3191 = vunpack.c.h.b16 %v512
  %v3192 = vunpack.c.l.b16 %v513
  %v3193 = vunpack.c.h.b16 %v513
  %v3194 = vunpack.c.l.b16 %v514
  %v3195 = vunpack.c.h.b16 %v514
  %v3196 = vunpack.c.l.b16 %v515
  %v3197 = vunpack.c.h.b16 %v515
  %v3198 = vunpack.c.l.b16 %v516
  %v3199 = vunpack.c.h.b16 %v516
  %v3200 = vunpack.c.l.b16 %v517
  %v3201 = vunpack.c.h.b16 %v517
  %v3202 = vunpack.c.l.b16 %v518
  %v3203 = vunpack.c.h.b16 %v518
  %v3204 = vunpack.c.l.b16 %v519
  %v3205 = vunpack.c.h.b16 %v519
  %v3206 = vunpack.c.l.b16 %v520
  %v3207 = vunpack.c.h.b16 %v520
  %v3208 = vunpack.c.l.b16 %v521
  %v3209 = vunpack.c.h.b16 %v521
  %v3210 = vunpack.c.l.b16 %v522
  %v3211 = vunpack.c.h.b16 %v522
  %v3212 = vunpack.c.l.b16 %v523
  %v3213 = vunpack.c.h.b16 %v523
  %v3214 = vunpack.c.l.b16 %v524
  %v3215 = vunpack.c.h.b16 %v524
  %v3216 = vunpack.c.l.b16 %v525
  %v3217 = vunpack.c.h.b16 %v525
  %v3218 = vunpack.c.l.b16 %v526
  %v3219 = vunpack.c.h.b16 %v526
  %v3220 = vunpack.c.l.b16 %v527
  %v3221 = vunpack.c.h.b16 %v527
  %v3222 = vunpack.c.l.b16 %v528
  %v3223 = vunpack.c.h.b16 %v528
  %v3224 = vunpack.c.l.b16 %v529
  %v3225 = vunpack.c.h.b16 %v529
  %v3226 = vunpack.c.l.b16 %v530
  %v3227 = vunpack.c.h.b16 %v530
  %v3228 = vunpack.c.l.b16 %v531
  %v3229 = vunpack.c.h.b16 %v531
  %v3230 = vunpack.c.l.b16 %v532
  %v3231 = vunpack.c.h.b16 %v532
  %v3232 = vunpack.c.l.b16 %v533
  %v3233 = vunpack.c.h.b16 %v533
  %v3234 = vunpack.c.l.b16 %v534
  %v3235 = vunpack.c.h.b16 %v534
  %v3236 = vunpack.c.l.b16 %v535
  %v3237 = vunpack.c.h.b16 %v535
  %v3238 = vunpack.c.l.b16 %v536
  %v3239 = vunpack.c.h.b16 %v536
  %v3240 = vunpack.c.l.b16 %v537
  %v3241 = vunpack.c.h.b16 %v537
  %v3242 = vunpack.c.l.b16 %v538
  %v3243 = vunpack.c.h.b16 %v538
  %v3244 = vunpack.c.l.b16 %v539
  %v3245 = vunpack.c.h.b16 %v539
  %v3246 = vunpack.c.l.b16 %v540
  %v3247 = vunpack.c.h.b16 %v540
  %v3248 = vunpack.c.l.b16 %v541
  %v3249 = vunpack.c.h.b16 %v541
  %v3250 = vunpack.c.l.b16 %v542
  %v3251 = vunpack.c.h.b16 %v542
  %v3252 = vunpack.c.l.b16 %v543
  %v3253 = vunpack.c.h.b16 %v543
  %v3254 = vunpack.c.l.b16 %v544
  %v3255 = vunpack.c.h.b16 %v544
  %v3256 = vunpack.c.l.b16 %v545
  %v3257 = vunpack.c.h.b16 %v545
  %v3258 = vunpack.c.l.b16 %v546
  %v3259 = vunpack.c.h.b16 %v546
  %v3260 = vunpack.c.l.b16 %v547
  %v3261 = vunpack.c.h.b16 %v547
  %v3262 = vunpack.c.l.b16 %v548
  %v3263 = vunpack.c.h.b16 %v548
  %v3264 = vunpack.c.l.b16 %v549
  %v3265 = vunpack.c.h.b16 %v549
  %v3266 = vunpack.c.l.b16 %v550
  %v3267 = vunpack.c.h.b16 %v550
  %v3268 = vunpack.c.l.b16 %v551
  %v3269 = vunpack.c.h.b16 %v551
  %v3270 = vunpack.c.l.b16 %v552
  %v3271 = vunpack.c.h.b16 %v552
  %v3272 = vunpack.c.l.b16 %v553
  %v3273 = vunpack.c.h.b16 %v553
  %v3274 = vunpack.c.l.b16 %v554
  %v3275 = vunpack.c.h.b16 %v554
  %v3276 = vunpack.c.l.b16 %v555
  %v3277 = vunpack.c.h.b16 %v555
  %v3278 = vunpack.c.l.b16 %v556
  %v3279 = vunpack.c.h.b16 %v556
  %v3280 = vunpack.c.l.b16 %v557
  %v3281 = vunpack.c.h.b16 %v557
  %v3282 = vunpack.c.l.b16 %v558
  %v3283 = vunpack.c.h.b16 %v558
  %v3284 = vunpack.c.l.b16 %v559
  %v3285 = vunpack.c.h.b16 %v559
  %v3286 = vunpack.c.l.b16 %v560
  %v3287 = vunpack.c.h.b16 %v560
  %v3288 = vunpack.c.l.b16 %v561
  %v3289 = vunpack.c.h.b16 %v561
  %v3290 = vunpack.c.l.b16 %v562
  %v3291 = vunpack.c.h.b16 %v562
  %v3292 = vunpack.c.l.b16 %v563
  %v3293 = vunpack.c.h.b16 %v563
  %v3294 = vunpack.c.l.b16 %v564
  %v3295 = vunpack.c.h.b16 %v564
  %v3296 = vunpack.c.l.b16 %v565
  %v3297 = vunpack.c.h.b16 %v565
  %v3298 = vunpack.c.l.b16 %v566
  %v3299 = vunpack.c.h.b16 %v566
  %v3300 = vunpack.c.l.b16 %v567
  %v3301 = vunpack.c.h.b16 %v567
  %v3302 = vunpack.c.l.b16 %v568
  %v3303 = vunpack.c.h.b16 %v568
  %v3304 = vunpack.c.l.b16 %v569
  %v3305 = vunpack.c.h.b16 %v569
  %v3306 = vunpack.c.l.b16 %v570
  %v3307 = vunpack.c.h.b16 %v570
  %v3308 = vunpack.c.l.b16 %v571
  %v3309 = vunpack.c.h.b16 %v571
  %v3310 = vunpack.c.l.b16 %v572
  %v3311 = vunpack.c.h.b16 %v572
  %v3312 = vunpack.c.l.b16 %v573
  %v3313 = vunpack.c.h.b16 %v573
  %v3314 = vunpack.c.l.b16 %v574
  %v3315 = vunpack.c.h.b16 %v574
  %v3316 = vunpack.c.l.b16 %v575
  %v3317 = vunpack.c.h.b16 %v575
  %v3318 = vunpack.c.l.b16 %v576
  %v3319 = vunpack.c.h.b16 %v576
  %v3320 = vunpack.c.l.b16 %v577
  %v3321 = vunpack.c.h.b16 %v577
  %v3322 = vunpack.c.l.b16 %v578
  %v3323 = vunpack.c.h.b16 %v578
  %v3324 = vunpack.c.l.b16 %v579
  %v3325 = vunpack.c.h.b16 %v579
  %v3326 = vunpack.c.l.b16 %v580
  %v3327 = vunpack.c.h.b16 %v580
  %v3328 = vunpack.c.l.b16 %v581
  %v3329 = vunpack.c.h.b16 %v581
  %v3330 = vunpack.c.l.b16 %v582
  %v3331 = vunpack.c.h.b16 %v582
  %v3332 = vunpack.c.l.b16 %v583
  %v3333 = vunpack.c.h.b16 %v583
  %v3334 = vunpack.c.l.b16 %v584
  %v3335 = vunpack.c.h.b16 %v584
  %v3336 = vunpack.c.l.b16 %v585
  %v3337 = vunpack.c.h.b16 %v585
  %v3338 = vunpack.c.l.b16 %v586
  %v3339 = vunpack.c.h.b16 %v586
  %v3340 = vunpack.c.l.b16 %v587
  %v3341 = vunpack.c.h.b16 %v587
  %v3342 = vunpack.c.l.b16 %v588
  %v3343 = vunpack.c.h.b16 %v588
  %v3344 = vunpack.c.l.b16 %v589
  %v3345 = vunpack.c.h.b16 %v589
  %v3346 = vunpack.c.l.b16 %v590
  %v3347 = vunpack.c.h.b16 %v590
  %v3348 = vunpack.c.l.b16 %v591
  %v3349 = vunpack.c.h.b16 %v591
  %v3350 = vunpack.c.l.b16 %v592
  %v3351 = vunpack.c.h.b16 %v592
  %v3352 = vunpack.c.l.b16 %v593
  %v3353 = vunpack.c.h.b16 %v593
  %v3354 = vunpack.c.l.b16 %v594
  %v3355 = vunpack.c.h.b16 %v594
  %v3356 = vunpack.c.l.b16 %v595
  %v3357 = vunpack.c.h.b16 %v595
  %v3358 = vunpack.c.l.b16 %v596
  %v3359 = vunpack.c.h.b16 %v596
  %v3360 = vunpack.c.l.b16 %v597
  %v3361 = vunpack.c.h.b16 %v597
  %v3362 = vunpack.c.l.b16 %v598
  %v3363 = vunpack.c.h.b16 %v598
  %v3364 = vunpack.c.l.b16 %v599
  %v3365 = vunpack.c.h.b16 %v599
  %v3366 = vunpack.c.l.b16 %v600
  %v3367 = vunpack.c.h.b16 %v600
  %v3368 = vunpack.c.l.b16 %v601
  %v3369 = vunpack.c.h.b16 %v601
  %v3370 = vunpack.c.l.b16 %v602
  %v3371 = vunpack.c.h.b16 %v602
  %v3372 = vunpack.c.l.b16 %v603
  %v3373 = vunpack.c.h.b16 %v603
  %v3374 = vunpack.c.l.b16 %v604
  %v3375 = vunpack.c.h.b16 %v604
  %v3376 = vunpack.c.l.b16 %v605
  %v3377 = vunpack.c.h.b16 %v605
  %v3378 = vunpack.c.l.b16 %v606
  %v3379 = vunpack.c.h.b16 %v606
  %v3380 = vunpack.c.l.b16 %v607
  %v3381 = vunpack.c.h.b16 %v607
  %v3382 = vunpack.c.l.b16 %v608
  %v3383 = vunpack.c.h.b16 %v608
  %v3384 = vunpack.c.l.b16 %v609
  %v3385 = vunpack.c.h.b16 %v609
  %v3386 = vunpack.c.l.b16 %v610
  %v3387 = vunpack.c.h.b16 %v610
  %v3388 = vunpack.c.l.b16 %v611
  %v3389 = vunpack.c.h.b16 %v611
  %v3390 = vunpack.c.l.b16 %v612
  %v3391 = vunpack.c.h.b16 %v612
  %v3392 = vunpack.c.l.b16 %v613
  %v3393 = vunpack.c.h.b16 %v613
  %v3394 = vunpack.c.l.b16 %v614
  %v3395 = vunpack.c.h.b16 %v614
  %v3396 = vunpack.c.l.b16 %v615
  %v3397 = vunpack.c.h.b16 %v615
  %v3398 = vunpack.c.l.b16 %v616
  %v3399 = vunpack.c.h.b16 %v616
  %v3400 = vunpack.c.l.b16 %v617
  %v3401 = vunpack.c.h.b16 %v617
  %v3402 = vunpack.c.l.b16 %v618
  %v3403 = vunpack.c.h.b16 %v618
  %v3404 = vunpack.c.l.b16 %v619
  %v3405 = vunpack.c.h.b16 %v619
  %v3406 = vunpack.c.l.b16 %v620
  %v3407 = vunpack.c.h.b16 %v620
  %v3408 = vunpack.c.l.b16 %v621
  %v3409 = vunpack.c.h.b16 %v621
  %v3410 = vunpack.c.l.b16 %v622
  %v3411 = vunpack.c.h.b16 %v622
  %v3412 = vunpack.c.l.b16 %v623
  %v3413 = vunpack.c.h.b16 %v623
  %v3414 = vunpack.c.l.b16 %v624
  %v3415 = vunpack.c.h.b16 %v624
  %v3416 = vunpack.c.l.b16 %v625
  %v3417 = vunpack.c.h.b16 %v625
  %v3418 = vunpack.c.l.b16 %v626
  %v3419 = vunpack.c.h.b16 %v626
  %v3420 = vunpack.c.l.b16 %v627
  %v3421 = vunpack.c.h.b16 %v627
  %v3422 = vunpack.c.l.b16 %v628
  %v3423 = vunpack.c.h.b16 %v628
  %v3424 = vunpack.c.l.b16 %v629
  %v3425 = vunpack.c.h.b16 %v629
  %v3426 = vunpack.c.l.b16 %v630
  %v3427 = vunpack.c.h.b16 %v630
  %v3428 = vunpack.c.l.b16 %v631
  %v3429 = vunpack.c.h.b16 %v631
  %v3430 = vunpack.c.l.b16 %v632
  %v3431 = vunpack.c.h.b16 %v632
  %v3432 = vunpack.c.l.b16 %v633
  %v3433 = vunpack.c.h.b16 %v633
  %v3434 = vunpack.c.l.b16 %v634
  %v3435 = vunpack.c.h.b16 %v634
  %v3436 = vunpack.c.l.b16 %v635
  %v3437 = vunpack.c.h.b16 %v635
  %v3438 = vunpack.c.l.b16 %v636
  %v3439 = vunpack.c.h.b16 %v636
  %v3440 = vunpack.c.l.b16 %v637
  %v3441 = vunpack.c.h.b16 %v637
  %v3442 = vunpack.c.l.b16 %v638
  %v3443 = vunpack.c.h.b16 %v638
  %v3444 = vunpack.c.l.b16 %v639
  %v3445 = vunpack.c.h.b16 %v639
  %v3446 = vunpack.c.l.b16 %v640
  %v3447 = vunpack.c.h.b16 %v640
  %v3448 = vunpack.c.l.b16 %v641
  %v3449 = vunpack.c.h.b16 %v641
  %v3450 = vunpack.c.l.b16 %v642
  %v3451 = vunpack.c.h.b16 %v642
  %v3452 = vunpack.c.l.b16 %v643
  %v3453 = vunpack.c.h.b16 %v643
  %v3454 = vunpack.c.l.b16 %v644
  %v3455 = vunpack.c.h.b16 %v644
  %v3456 = vunpack.c.l.b16 %v645
  %v3457 = vunpack.c.h.b16 %v645
  %v3458 = vunpack.c.l.b16 %v646
  %v3459 = vunpack.c.h.b16 %v646
  %v3460 = vunpack.c.l.b16 %v647
  %v3461 = vunpack.c.h.b16 %v647
  %v3462 = vunpack.c.l.b16 %v648
  %v3463 = vunpack.c.h.b16 %v648
  %v3464 = vunpack.c.l.b16 %v649
  %v3465 = vunpack.c.h.b16 %v649
  %v3466 = vunpack.c.l.b16 %v650
  %v3467 = vunpack.c.h.b16 %v650
  %v3468 = vunpack.c.l.b16 %v651
  %v3469 = vunpack.c.h.b16 %v651
  %v3470 = vunpack.c.l.b16 %v652
  %v3471 = vunpack.c.h.b16 %v652
  %v3472 = vunpack.c.l.b16 %v653
  %v3473 = vunpack.c.h.b16 %v653
  %v3474 = vunpack.c.l.b16 %v654
  %v3475 = vunpack.c.h.b16 %v654
  %v3476 = vunpack.c.l.b16 %v655
  %v3477 = vunpack.c.h.b16 %v655
  %v3478 = vunpack.c.l.b16 %v656
  %v3479 = vunpack.c.h.b16 %v656
  %v3480 = vunpack.c.l.b16 %v657
  %v3481 = vunpack.c.h.b16 %v657
  %v3482 = vunpack.c.l.b16 %v658
  %v3483 = vunpack.c.h.b16 %v658
  %v3484 = vunpack.c.l.b16 %v659
  %v3485 = vunpack.c.h.b16 %v659
  %v3486 = vunpack.c.l.b16 %v660
  %v3487 = vunpack.c.h.b16 %v660
  %v3488 = vunpack.c.l.b16 %v661
  %v3489 = vunpack.c.h.b16 %v661
  %v3490 = vunpack.c.l.b16 %v662
  %v3491 = vunpack.c.h.b16 %v662
  %v3492 = vunpack.c.l.b16 %v663
  %v3493 = vunpack.c.h.b16 %v663
  %v3494 = vunpack.c.l.b16 %v664
  %v3495 = vunpack.c.h.b16 %v664
  %v3496 = vunpack.c.l.b16 %v665
  %v3497 = vunpack.c.h.b16 %v665
  %v3498 = vunpack.c.l.b16 %v666
  %v3499 = vunpack.c.h.b16 %v666
  %v3500 = vunpack.c.l.b16 %v667
  %v3501 = vunpack.c.h.b16 %v667
  %v3502 = vunpack.c.l.b16 %v668
  %v3503 = vunpack.c.h.b16 %v668
  %v3504 = vunpack.c.l.b16 %v669
  %v3505 = vunpack.c.h.b16 %v669
  %v3506 = vunpack.c.l.b16 %v670
  %v3507 = vunpack.c.h.b16 %v670
  %v3508 = vunpack.c.l.b16 %v671
  %v3509 = vunpack.c.h.b16 %v671
  %v3510 = vunpack.c.l.b16 %v672
  %v3511 = vunpack.c.h.b16 %v672
  %v3512 = vunpack.c.l.b16 %v673
  %v3513 = vunpack.c.h.b16 %v673
  %v3514 = vunpack.c.l.b16 %v674
  %v3515 = vunpack.c.h.b16 %v674
  %v3516 = vunpack.c.l.b16 %v675
  %v3517 = vunpack.c.h.b16 %v675
  %v3518 = vunpack.c.l.b16 %v676
  %v3519 = vunpack.c.h.b16 %v676
  %v3520 = vunpack.c.l.b16 %v677
  %v3521 = vunpack.c.h.b16 %v677
  %v3522 = vunpack.c.l.b16 %v678
  %v3523 = vunpack.c.h.b16 %v678
  %v3524 = vunpack.c.l.b16 %v679
  %v3525 = vunpack.c.h.b16 %v679
  %v3526 = vunpack.c.l.b16 %v680
  %v3527 = vunpack.c.h.b16 %v680
  %v3528 = vunpack.c.l.b16 %v681
  %v3529 = vunpack.c.h.b16 %v681
  %v3530 = vunpack.c.l.b16 %v682
  %v3531 = vunpack.c.h.b16 %v682
  %v3532 = vunpack.c.l.b16 %v683
  %v3533 = vunpack.c.h.b16 %v683
  %v3534 = vunpack.c.l.b16 %v684
  %v3535 = vunpack.c.h.b16 %v684
  %v3536 = vunpack.c.l.b16 %v685
  %v3537 = vunpack.c.h.b16 %v685
  %v3538 = vunpack.c.l.b16 %v686
  %v3539 = vunpack.c.h.b16 %v686
  %v3540 = vunpack.c.l.b16 %v687
  %v3541 = vunpack.c.h.b16 %v687
  %v3542 = vunpack.c.l.b16 %v688
  %v3543 = vunpack.c.h.b16 %v688
  %v3544 = vunpack.c.l.b16 %v689
  %v3545 = vunpack.c.h.b16 %v689
  %v3546 = vunpack.c.l.b16 %v690
  %v3547 = vunpack.c.h.b16 %v690
  %v3548 = vunpack.c.l.b16 %v691
  %v3549 = vunpack.c.h.b16 %v691
  %v3550 = vunpack.c.l.b16 %v692
  %v3551 = vunpack.c.h.b16 %v692
  %v3552 = vunpack.c.l.b16 %v693
  %v3553 = vunpack.c.h.b16 %v693
  %v3554 = vunpack.c.l.b16 %v694
  %v3555 = vunpack.c.h.b16 %v694
  %v3556 = vunpack.c.l.b16 %v695
  %v3557 = vunpack.c.h.b16 %v695
  %v3558 = vunpack.c.l.b16 %v696
  %v3559 = vunpack.c.h.b16 %v696
  %v3560 = vunpack.c.l.b16 %v697
  %v3561 = vunpack.c.h.b16 %v697
  %v3562 = vunpack.c.l.b16 %v698
  %v3563 = vunpack.c.h.b16 %v698
  %v3564 = vunpack.c.l.b16 %v699
  %v3565 = vunpack.c.h.b16 %v699
  %v3566 = vunpack.c.l.b16 %v700
  %v3567 = vunpack.c.h.b16 %v700
  %v3568 = vunpack.c.l.b16 %v701
  %v3569 = vunpack.c.h.b16 %v701
  %v3570 = vunpack.c.l.b16 %v702
  %v3571 = vunpack.c.h.b16 %v702
  %v3572 = vunpack.c.l.b16 %v703
  %v3573 = vunpack.c.h.b16 %v703
  %v3574 = vunpack.c.l.b16 %v704
  %v3575 = vunpack.c.h.b16 %v704
  %v3576 = vunpack.c.l.b16 %v705
  %v3577 = vunpack.c.h.b16 %v705
  %v3578 = vunpack.c.l.b16 %v706
  %v3579 = vunpack.c.h.b16 %v706
  %v3580 = vunpack.c.l.b16 %v707
  %v3581 = vunpack.c.h.b16 %v707
  %v3582 = vunpack.c.l.b16 %v708
  %v3583 = vunpack.c.h.b16 %v708
  %v3584 = vunpack.c.l.b16 %v709
  %v3585 = vunpack.c.h.b16 %v709
  %v3586 = vunpack.c.l.b16 %v710
  %v3587 = vunpack.c.h.b16 %v710
  %v3588 = vunpack.c.l.b16 %v711
  %v3589 = vunpack.c.h.b16 %v711
  %v3590 = vunpack.c.l.b16 %v712
  %v3591 = vunpack.c.h.b16 %v712
  %v3592 = vunpack.c.l.b16 %v713
  %v3593 = vunpack.c.h.b16 %v713
  %v3594 = vunpack.c.l.b16 %v714
  %v3595 = vunpack.c.h.b16 %v714
  %v3596 = vunpack.c.l.b16 %v715
  %v3597 = vunpack.c.h.b16 %v715
  %v3598 = vunpack.c.l.b16 %v716
  %v3599 = vunpack.c.h.b16 %v716
  %v3600 = vunpack.c.l.b16 %v717
  %v3601 = vunpack.c.h.b16 %v717
  %v3602 = vunpack.c.l.b16 %v718
  %v3603 = vunpack.c.h.b16 %v718
  %v3604 = vunpack.c.l.b16 %v719
  %v3605 = vunpack.c.h.b16 %v719
  %v3606 = vunpack.c.l.b16 %v720
  %v3607 = vunpack.c.h.b16 %v720
  %v3608 = vunpack.c.l.b16 %v721
  %v3609 = vunpack.c.h.b16 %v721
  %v3610 = vunpack.c.l.b16 %v722
  %v3611 = vunpack.c.h.b16 %v722
  %v3612 = vunpack.c.l.b16 %v723
  %v3613 = vunpack.c.h.b16 %v723
  %v3614 = vunpack.c.l.b16 %v724
  %v3615 = vunpack.c.h.b16 %v724
  %v3616 = vunpack.c.l.b16 %v725
  %v3617 = vunpack.c.h.b16 %v725
  %v3618 = vunpack.c.l.b16 %v726
  %v3619 = vunpack.c.h.b16 %v726
  %v3620 = vunpack.c.l.b16 %v727
  %v3621 = vunpack.c.h.b16 %v727
  %v3622 = vunpack.c.l.b16 %v728
  %v3623 = vunpack.c.h.b16 %v728
  %v3624 = vunpack.c.l.b16 %v729
  %v3625 = vunpack.c.h.b16 %v729
  %v3626 = vunpack.c.l.b16 %v730
  %v3627 = vunpack.c.h.b16 %v730
  %v3628 = vunpack.c.l.b16 %v731
  %v3629 = vunpack.c.h.b16 %v731
  %v3630 = vunpack.c.l.b16 %v732
  %v3631 = vunpack.c.h.b16 %v732
  %v3632 = vunpack.c.l.b16 %v733
  %v3633 = vunpack.c.h.b16 %v733
  %v3634 = vunpack.c.l.b16 %v734
  %v3635 = vunpack.c.h.b16 %v734
  %v3636 = vunpack.c.l.b16 %v735
  %v3637 = vunpack.c.h.b16 %v735
  %v3638 = vunpack.c.l.b16 %v736
  %v3639 = vunpack.c.h.b16 %v736
  %v3640 = vunpack.c.l.b16 %v737
  %v3641 = vunpack.c.h.b16 %v737
  %v3642 = vunpack.c.l.b16 %v738
  %v3643 = vunpack.c.h.b16 %v738
  %v3644 = vunpack.c.l.b16 %v739
  %v3645 = vunpack.c.h.b16 %v739
  %v3646 = vunpack.c.l.b16 %v740
  %v3647 = vunpack.c.h.b16 %v740
  %v3648 = vunpack.c.l.b16 %v741
  %v3649 = vunpack.c.h.b16 %v741
  %v3650 = vunpack.c.l.b16 %v742
  %v3651 = vunpack.c.h.b16 %v742
  %v3652 = vunpack.c.l.b16 %v743
  %v3653 = vunpack.c.h.b16 %v743
  %v3654 = vunpack.c.l.b16 %v744
  %v3655 = vunpack.c.h.b16 %v744
  %v3656 = vunpack.c.l.b16 %v745
  %v3657 = vunpack.c.h.b16 %v745
  %v3658 = vunpack.c.l.b16 %v746
  %v3659 = vunpack.c.h.b16 %v746
  %v3660 = vunpack.c.l.b16 %v747
  %v3661 = vunpack.c.h.b16 %v747
  %v3662 = vunpack.c.l.b16 %v748
  %v3663 = vunpack.c.h.b16 %v748
  %v3664 = vunpack.c.l.b16 %v749
  %v3665 = vunpack.c.h.b16 %v749
  %v3666 = vunpack.c.l.b16 %v750
  %v3667 = vunpack.c.h.b16 %v750
  %v3668 = vunpack.c.l.b16 %v751
  %v3669 = vunpack.c.h.b16 %v751
  %v3670 = vunpack.c.l.b16 %v752
  %v3671 = vunpack.c.h.b16 %v752
  %v3672 = vunpack.c.l.b16 %v753
  %v3673 = vunpack.c.h.b16 %v753
  %v3674 = vunpack.c.l.b16 %v754
  %v3675 = vunpack.c.h.b16 %v754
  %v3676 = vunpack.c.l.b16 %v755
  %v3677 = vunpack.c.h.b16 %v755
  %v3678 = vunpack.c.l.b16 %v756
  %v3679 = vunpack.c.h.b16 %v756
  %v3680 = vunpack.c.l.b16 %v757
  %v3681 = vunpack.c.h.b16 %v757
  %v3682 = vunpack.c.l.b16 %v758
  %v3683 = vunpack.c.h.b16 %v758
  %v3684 = vunpack.c.l.b16 %v759
  %v3685 = vunpack.c.h.b16 %v759
  %v3686 = vunpack.c.l.b16 %v760
  %v3687 = vunpack.c.h.b16 %v760
  %v3688 = vunpack.c.l.b16 %v761
  %v3689 = vunpack.c.h.b16 %v761
  %v3690 = vunpack.c.l.b16 %v762
  %v3691 = vunpack.c.h.b16 %v762
  %v3692 = vunpack.c.l.b16 %v763
  %v3693 = vunpack.c.h.b16 %v763
  %v3694 = vunpack.c.l.b16 %v764
  %v3695 = vunpack.c.h.b16 %v764
  %v3696 = vunpack.c.l.b16 %v765
  %v3697 = vunpack.c.h.b16 %v765
  %v3698 = vunpack.c.l.b16 %v766
  %v3699 = vunpack.c.h.b16 %v766
  %v3700 = vunpack.c.l.b16 %v767
  %v3701 = vunpack.c.h.b16 %v767
  %v3702 = vunpack.c.l.b16 %v768
  %v3703 = vunpack.c.h.b16 %v768
  %v3704 = vunpack.c.l.b16 %v769
  %v3705 = vunpack.c.h.b16 %v769
  %v3706 = vunpack.c.l.b16 %v770
  %v3707 = vunpack.c.h.b16 %v770
  %v3708 = vunpack.c.l.b16 %v771
  %v3709 = vunpack.c.h.b16 %v771
  %v3710 = vunpack.c.l.b16 %v772
  %v3711 = vunpack.c.h.b16 %v772
  %v3712 = vunpack.c.l.b16 %v773
  %v3713 = vunpack.c.h.b16 %v773
  %v3714 = vunpack.c.l.b16 %v774
  %v3715 = vunpack.c.h.b16 %v774
  %v3716 = vunpack.c.l.b16 %v775
  %v3717 = vunpack.c.h.b16 %v775
  %v3718 = vunpack.c.l.b16 %v776
  %v3719 = vunpack.c.h.b16 %v776
  %v3720 = vunpack.c.l.b16 %v777
  %v3721 = vunpack.c.h.b16 %v777
  %v3722 = vunpack.c.l.b16 %v778
  %v3723 = vunpack.c.h.b16 %v778
  %v3724 = vunpack.c.l.b16 %v779
  %v3725 = vunpack.c.h.b16 %v779
  %v3726 = vunpack.c.l.b16 %v780
  %v3727 = vunpack.c.h.b16 %v780
  %v3728 = vunpack.c.l.b16 %v781
  %v3729 = vunpack.c.h.b16 %v781
  %v3730 = vunpack.c.l.b16 %v782
  %v3731 = vunpack.c.h.b16 %v782
  %v3732 = vunpack.c.l.b16 %v783
  %v3733 = vunpack.c.h.b16 %v783
  %v3734 = vunpack.c.l.b16 %v784
  %v3735 = vunpack.c.h.b16 %v784
  %v3736 = vunpack.c.l.b16 %v785
  %v3737 = vunpack.c.h.b16 %v785
  %v3738 = vunpack.c.l.b16 %v786
  %v3739 = vunpack.c.h.b16 %v786
  %v3740 = vunpack.c.l.b16 %v787
  %v3741 = vunpack.c.h.b16 %v787
  %v3742 = vunpack.c.l.b16 %v788
  %v3743 = vunpack.c.h.b16 %v788
  %v3744 = vunpack.c.l.b16 %v789
  %v3745 = vunpack.c.h.b16 %v789
  %v3746 = vunpack.c.l.b16 %v790
  %v3747 = vunpack.c.h.b16 %v790
  %v3748 = vunpack.c.l.b16 %v791
  %v3749 = vunpack.c.h.b16 %v791
  %v3750 = vunpack.c.l.b16 %v792
  %v3751 = vunpack.c.h.b16 %v792
  %v3752 = vunpack.c.l.b16 %v793
  %v3753 = vunpack.c.h.b16 %v793
  %v3754 = vunpack.c.l.b16 %v794
  %v3755 = vunpack.c.h.b16 %v794
  %v3756 = vunpack.c.l.b16 %v795
  %v3757 = vunpack.c.h.b16 %v795
  %v3758 = vunpack.c.l.b16 %v796
  %v3759 = vunpack.c.h.b16 %v796
  %v3760 = vunpack.c.l.b16 %v797
  %v3761 = vunpack.c.h.b16 %v797
  %v3762 = vunpack.c.l.b16 %v798
  %v3763 = vunpack.c.h.b16 %v798
  %v3764 = vunpack.c.l.b16 %v799
  %v3765 = vunpack.c.h.b16 %v799
  %v3766 = vunpack.c.l.b16 %v800
  %v3767 = vunpack.c.h.b16 %v800
  %v3768 = vunpack.c.l.b16 %v801
  %v3769 = vunpack.c.h.b16 %v801
  %v3770 = vunpack.c.l.b16 %v802
  %v3771 = vunpack.c.h.b16 %v802
  %v3772 = vunpack.c.l.b16 %v803
  %v3773 = vunpack.c.h.b16 %v803
  %v3774 = vunpack.c.l.b16 %v804
  %v3775 = vunpack.c.h.b16 %v804
  %v3776 = vunpack.c.l.b16 %v805
  %v3777 = vunpack.c.h.b16 %v805
  %v3778 = vunpack.c.l.b16 %v806
  %v3779 = vunpack.c.h.b16 %v806
  %v3780 = vunpack.c.l.b16 %v807
  %v3781 = vunpack.c.h.b16 %v807
  %v3782 = vunpack.c.l.b16 %v808
  %v3783 = vunpack.c.h.b16 %v808
  %v3784 = vunpack.c.l.b16 %v809
  %v3785 = vunpack.c.h.b16 %v809
  %v3786 = vunpack.c.l.b16 %v810
  %v3787 = vunpack.c.h.b16 %v810
  %v3788 = vunpack.c.l.b16 %v811
  %v3789 = vunpack.c.h.b16 %v811
  %v3790 = vunpack.c.l.b16 %v812
  %v3791 = vunpack.c.h.b16 %v812
  %v3792 = vunpack.c.l.b16 %v813
  %v3793 = vunpack.c.h.b16 %v813
  %v3794 = vunpack.c.l.b16 %v814
  %v3795 = vunpack.c.h.b16 %v814
  %v3796 = vunpack.c.l.b16 %v815
  %v3797 = vunpack.c.h.b16 %v815
  %v3798 = vunpack.c.l.b16 %v816
  %v3799 = vunpack.c.h.b16 %v816
  %v3800 = vunpack.c.l.b16 %v817
  %v3801 = vunpack.c.h.b16 %v817
  %v3802 = vunpack.c.l.b16 %v818
  %v3803 = vunpack.c.h.b16 %v818
  %v3804 = vunpack.c.l.b16 %v819
  %v3805 = vunpack.c.h.b16 %v819
  %v3806 = vunpack.c.l.b16 %v820
  %v3807 = vunpack.c.h.b16 %v820
  %v3808 = vunpack.c.l.b16 %v821
  %v3809 = vunpack.c.h.b16 %v821
  %v3810 = vunpack.c.l.b16 %v822
  %v3811 = vunpack.c.h.b16 %v822
  %v3812 = vunpack.c.l.b16 %v823
  %v3813 = vunpack.c.h.b16 %v823
  %v3814 = vunpack.c.l.b16 %v824
  %v3815 = vunpack.c.h.b16 %v824
  %v3816 = vunpack.c.l.b16 %v825
  %v3817 = vunpack.c.h.b16 %v825
  %v3818 = vunpack.c.l.b16 %v826
  %v3819 = vunpack.c.h.b16 %v826
  %v3820 = vunpack.c.l.b16 %v827
  %v3821 = vunpack.c.h.b16 %v827
  %v3822 = vunpack.c.l.b16 %v828
  %v3823 = vunpack.c.h.b16 %v828
  %v3824 = vunpack.c.l.b16 %v829
  %v3825 = vunpack.c.h.b16 %v829
  %v3826 = vunpack.c.l.b16 %v830
  %v3827 = vunpack.c.h.b16 %v830
  %v3828 = vunpack.c.l.b16 %v831
  %v3829 = vunpack.c.h.b16 %v831
  %v3830 = vunpack.c.l.b16 %v832
  %v3831 = vunpack.c.h.b16 %v832
  %v3832 = vunpack.c.l.b16 %v833
  %v3833 = vunpack.c.h.b16 %v833
  %v3834 = vunpack.c.l.b16 %v834
  %v3835 = vunpack.c.h.b16 %v834
  %v3836 = vunpack.c.l.b16 %v835
  %v3837 = vunpack.c.h.b16 %v835
  %v3838 = vunpack.c.l.b16 %v836
  %v3839 = vunpack.c.h.b16 %v836
  %v3840 = vunpack.c.l.b16 %v837
  %v3841 = vunpack.c.h.b16 %v837
  %v3842 = vunpack.c.l.b16 %v838
  %v3843 = vunpack.c.h.b16 %v838
  %v3844 = vunpack.c.l.b16 %v839
  %v3845 = vunpack.c.h.b16 %v839
  %v3846 = vunpack.c.l.b16 %v840
  %v3847 = vunpack.c.h.b16 %v840
  %v3848 = vunpack.c.l.b16 %v841
  %v3849 = vunpack.c.h.b16 %v841
  %v3850 = vunpack.c.l.b16 %v842
  %v3851 = vunpack.c.h.b16 %v842
  %v3852 = vunpack.c.l.b16 %v843
  %v3853 = vunpack.c.h.b16 %v843
  %v3854 = vunpack.c.l.b16 %v844
  %v3855 = vunpack.c.h.b16 %v844
  %v3856 = vunpack.c.l.b16 %v845
  %v3857 = vunpack.c.h.b16 %v845
  %v3858 = vunpack.c.l.b16 %v846
  %v3859 = vunpack.c.h.b16 %v846
  %v3860 = vunpack.c.l.b16 %v847
  %v3861 = vunpack.c.h.b16 %v847
  %v3862 = vunpack.c.l.b16 %v848
  %v3863 = vunpack.c.h.b16 %v848
  %v3864 = vunpack.c.l.b16 %v849
  %v3865 = vunpack.c.h.b16 %v849
  %v3866 = vunpack.c.l.b16 %v850
  %v3867 = vunpack.c.h.b16 %v850
  %v3868 = vunpack.c.l.b16 %v851
  %v3869 = vunpack.c.h.b16 %v851
  %v3870 = vunpack.c.l.b16 %v852
  %v3871 = vunpack.c.h.b16 %v852
  %v3872 = vunpack.c.l.b16 %v853
  %v3873 = vunpack.c.h.b16 %v853
  %v3874 = vunpack.c.l.b16 %v854
  %v3875 = vunpack.c.h.b16 %v854
  %v3876 = vunpack.c.l.b16 %v855
  %v3877 = vunpack.c.h.b16 %v855
  %v3878 = vunpack.c.l.b16 %v856
  %v3879 = vunpack.c.h.b16 %v856
  %v3880 = vunpack.c.l.b16 %v857
  %v3881 = vunpack.c.h.b16 %v857
  %v3882 = vunpack.c.l.b16 %v858
  %v3883 = vunpack.c.h.b16 %v858
  %v3884 = vunpack.c.l.b16 %v859
  %v3885 = vunpack.c.h.b16 %v859
  %v3886 = vunpack.c.l.b16 %v860
  %v3887 = vunpack.c.h.b16 %v860
  %v3888 = vunpack.c.l.b16 %v861
  %v3889 = vunpack.c.h.b16 %v861
  %v3890 = vunpack.c.l.b16 %v862
  %v3891 = vunpack.c.h.b16 %v862
  %v3892 = vunpack.c.l.b16 %v863
  %v3893 = vunpack.c.h.b16 %v863
  %v3894 = vunpack.c.l.b16 %v864
  %v3895 = vunpack.c.h.b16 %v864
  %v3896 = vunpack.c.l.b16 %v865
  %v3897 = vunpack.c.h.b16 %v865
  %v3898 = vunpack.c.l.b16 %v866
  %v3899 = vunpack.c.h.b16 %v866
  %v3900 = vunpack.c.l.b16 %v867
  %v3901 = vunpack.c.h.b16 %v867
  %v3902 = vunpack.c.l.b16 %v868
  %v3903 = vunpack.c.h.b16 %v868
  %v3904 = vunpack.c.l.b16 %v869
  %v3905 = vunpack.c.h.b16 %v869
  %v3906 = vunpack.c.l.b16 %v870
  %v3907 = vunpack.c.h.b16 %v870
  %v3908 = vunpack.c.l.b16 %v871
  %v3909 = vunpack.c.h.b16 %v871
  %v3910 = vunpack.c.l.b16 %v872
  %v3911 = vunpack.c.h.b16 %v872
  %v3912 = vunpack.c.l.b16 %v873
  %v3913 = vunpack.c.h.b16 %v873
  %v3914 = vunpack.c.l.b16 %v874
  %v3915 = vunpack.c.h.b16 %v874
  %v3916 = vunpack.c.l.b16 %v875
  %v3917 = vunpack.c.h.b16 %v875
  %v3918 = vunpack.c.l.b16 %v876
  %v3919 = vunpack.c.h.b16 %v876
  %v3920 = vunpack.c.l.b16 %v877
  %v3921 = vunpack.c.h.b16 %v877
  %v3922 = vunpack.c.l.b16 %v878
  %v3923 = vunpack.c.h.b16 %v878
  %v3924 = vunpack.c.l.b16 %v879
  %v3925 = vunpack.c.h.b16 %v879
  %v3926 = vunpack.c.l.b16 %v880
  %v3927 = vunpack.c.h.b16 %v880
  %v3928 = vunpack.c.l.b16 %v881
  %v3929 = vunpack.c.h.b16 %v881
  %v3930 = vunpack.c.l.b16 %v882
  %v3931 = vunpack.c.h.b16 %v882
  %v3932 = vunpack.c.l.b16 %v883
  %v3933 = vunpack.c.h.b16 %v883
  %v3934 = vunpack.c.l.b16 %v884
  %v3935 = vunpack.c.h.b16 %v884
  %v3936 = vunpack.c.l.b16 %v885
  %v3937 = vunpack.c.h.b16 %v885
  %v3938 = vunpack.c.l.b16 %v886
  %v3939 = vunpack.c.h.b16 %v886
  %v3940 = vunpack.c.l.b16 %v887
  %v3941 = vunpack.c.h.b16 %v887
  %v3942 = vunpack.c.l.b16 %v888
  %v3943 = vunpack.c.h.b16 %v888
  %v3944 = vunpack.c.l.b16 %v889
  %v3945 = vunpack.c.h.b16 %v889
  %v3946 = vunpack.c.l.b16 %v890
  %v3947 = vunpack.c.h.b16 %v890
  %v3948 = vunpack.c.l.b16 %v891
  %v3949 = vunpack.c.h.b16 %v891
  %v3950 = vunpack.c.l.b16 %v892
  %v3951 = vunpack.c.h.b16 %v892
  %v3952 = vunpack.c.l.b16 %v893
  %v3953 = vunpack.c.h.b16 %v893
  %v3954 = vunpack.c.l.b16 %v894
  %v3955 = vunpack.c.h.b16 %v894
  %v3956 = vunpack.c.l.b16 %v895
  %v3957 = vunpack.c.h.b16 %v895
  %v3958 = vunpack.c.l.b16 %v896
  %v3959 = vunpack.c.h.b16 %v896
  %v3960 = vunpack.c.l.b16 %v897
  %v3961 = vunpack.c.h.b16 %v897
  %v3962 = vunpack.c.l.b16 %v898
  %v3963 = vunpack.c.h.b16 %v898
  %v3964 = vunpack.c.l.b16 %v899
  %v3965 = vunpack.c.h.b16 %v899
  %v3966 = vunpack.c.l.b16 %v900
  %v3967 = vunpack.c.h.b16 %v900
  %v3968 = vunpack.c.l.b16 %v901
  %v3969 = vunpack.c.h.b16 %v901
  %v3970 = vunpack.c.l.b16 %v902
  %v3971 = vunpack.c.h.b16 %v902
  %v3972 = vunpack.c.l.b16 %v903
  %v3973 = vunpack.c.h.b16 %v903
  %v3974 = vunpack.c.l.b16 %v904
  %v3975 = vunpack.c.h.b16 %v904
  %v3976 = vunpack.c.l.b16 %v905
  %v3977 = vunpack.c.h.b16 %v905
  %v3978 = vunpack.c.l.b16 %v906
  %v3979 = vunpack.c.h.b16 %v906
  %v3980 = vunpack.c.l.b16 %v907
  %v3981 = vunpack.c.h.b16 %v907
  %v3982 = vunpack.c.l.b16 %v908
  %v3983 = vunpack.c.h.b16 %v908
  %v3984 = vunpack.c.l.b16 %v909
  %v3985 = vunpack.c.h.b16 %v909
  %v3986 = vunpack.c.l.b16 %v910
  %v3987 = vunpack.c.h.b16 %v910
  %v3988 = vunpack.c.l.b16 %v911
  %v3989 = vunpack.c.h.b16 %v911
  %v3990 = vunpack.c.l.b16 %v912
  %v3991 = vunpack.c.h.b16 %v912
  %v3992 = vunpack.c.l.b16 %v913
  %v3993 = vunpack.c.h.b16 %v913
  %v3994 = vunpack.c.l.b16 %v914
  %v3995 = vunpack.c.h.b16 %v914
  %v3996 = vunpack.c.l.b16 %v915
  %v3997 = vunpack.c.h.b16 %v915
  %v3998 = vunpack.c.l.b16 %v916
  %v3999 = vunpack.c.h.b16 %v916
  %v4000 = vunpack.c.l.b16 %v917
  %v4001 = vunpack.c.h.b16 %v917
  %v4002 = vunpack.c.l.b16 %v918
  %v4003 = vunpack.c.h.b16 %v918
  %v4004 = vunpack.c.l.b16 %v919
  %v4005 = vunpack.c.h.b16 %v919
  %v4006 = vunpack.c.l.b16 %v920
  %v4007 = vunpack.c.h.b16 %v920
  %v4008 = vunpack.c.l.b16 %v921
  %v4009 = vunpack.c.h.b16 %v921
  %v4010 = vunpack.c.l.b16 %v922
  %v4011 = vunpack.c.h.b16 %v922
  %v4012 = vunpack.c.l.b16 %v923
  %v4013 = vunpack.c.h.b16 %v923
  %v4014 = vunpack.c.l.b16 %v924
  %v4015 = vunpack.c.h.b16 %v924
  %v4016 = vunpack.c.l.b16 %v925
  %v4017 = vunpack.c.h.b16 %v925
  %v4018 = vunpack.c.l.b16 %v926
  %v4019 = vunpack.c.h.b16 %v926
  %v4020 = vunpack.c.l.b16 %v927
  %v4021 = vunpack.c.h.b16 %v927
  %v4022 = vunpack.c.l.b16 %v928
  %v4023 = vunpack.c.h.b16 %v928
  %v4024 = vunpack.c.l.b16 %v929
  %v4025 = vunpack.c.h.b16 %v929
  %v4026 = vunpack.c.l.b16 %v930
  %v4027 = vunpack.c.h.b16 %v930
  %v4028 = vunpack.c.l.b16 %v931
  %v4029 = vunpack.c.h.b16 %v931
  %v4030 = vunpack.c.l.b16 %v932
  %v4031 = vunpack.c.h.b16 %v932
  %v4032 = vunpack.c.l.b16 %v933
  %v4033 = vunpack.c.h.b16 %v933
  %v4034 = vunpack.c.l.b16 %v934
  %v4035 = vunpack.c.h.b16 %v934
  %v4036 = vunpack.c.l.b16 %v935
  %v4037 = vunpack.c.h.b16 %v935
  %v4038 = vunpack.c.l.b16 %v936
  %v4039 = vunpack.c.h.b16 %v936
  %v4040 = vunpack.c.l.b16 %v937
  %v4041 = vunpack.c.h.b16 %v937
  %v4042 = vunpack.c.l.b16 %v938
  %v4043 = vunpack.c.h.b16 %v938
  %v4044 = vunpack.c.l.b16 %v939
  %v4045 = vunpack.c.h.b16 %v939
  %v4046 = vunpack.c.l.b16 %v940
  %v4047 = vunpack.c.h.b16 %v940
  %v4048 = vunpack.c.l.b16 %v941
  %v4049 = vunpack.c.h.b16 %v941
  %v4050 = vunpack.c.l.b16 %v942
  %v4051 = vunpack.c.h.b16 %v942
  %v4052 = vunpack.c.l.b16 %v943
  %v4053 = vunpack.c.h.b16 %v943
  %v4054 = vunpack.c.l.b16 %v944
  %v4055 = vunpack.c.h.b16 %v944
  %v4056 = vunpack.c.l.b16 %v945
  %v4057 = vunpack.c.h.b16 %v945
  %v4058 = vunpack.c.l.b16 %v946
  %v4059 = vunpack.c.h.b16 %v946
  %v4060 = vunpack.c.l.b16 %v947
  %v4061 = vunpack.c.h.b16 %v947
  %v4062 = vunpack.c.l.b16 %v948
  %v4063 = vunpack.c.h.b16 %v948
  %v4064 = vunpack.c.l.b16 %v949
  %v4065 = vunpack.c.h.b16 %v949
  %v4066 = vunpack.c.l.b16 %v950
  %v4067 = vunpack.c.h.b16 %v950
  %v4068 = vunpack.c.l.b16 %v951
  %v4069 = vunpack.c.h.b16 %v951
  %v4070 = vunpack.c.l.b16 %v952
  %v4071 = vunpack.c.h.b16 %v952
  %v4072 = vunpack.c.l.b16 %v953
  %v4073 = vunpack.c.h.b16 %v953
  %v4074 = vunpack.c.l.b16 %v954
  %v4075 = vunpack.c.h.b16 %v954
  %v4076 = vunpack.c.l.b16 %v955
  %v4077 = vunpack.c.h.b16 %v955
  %v4078 = vunpack.c.l.b16 %v956
  %v4079 = vunpack.c.h.b16 %v956
  %v4080 = vunpack.c.l.b16 %v957
  %v4081 = vunpack.c.h.b16 %v957
  %v4082 = vunpack.c.l.b16 %v958
  %v4083 = vunpack.c.h.b16 %v958
  %v4084 = vunpack.c.l.b16 %v959
  %v4085 = vunpack.c.h.b16 %v959
  %v4086 = vunpack.c.l.b16 %v960
  %v4087 = vunpack.c.h.b16 %v960
  %v4088 = vunpack.c.l.b16 %v961
  %v4089 = vunpack.c.h.b16 %v961
  %v4090 = vunpack.c.l.b16 %v962
  %v4091 = vunpack.c.h.b16 %v962
  %v4092 = vunpack.c.l.b16 %v963
  %v4093 = vunpack.c.h.b16 %v963
  %v4094 = vunpack.c.l.b16 %v964
  %v4095 = vunpack.c.h.b16 %v964
  %v4096 = vunpack.c.l.b16 %v965
  %v4097 = vunpack.c.h.b16 %v965
  %v4098 = vunpack.c.l.b16 %v966
  %v4099 = vunpack.c.h.b16 %v966
  %v4100 = vunpack.c.l.b16 %v967
  %v4101 = vunpack.c.h.b16 %v967
  %v4102 = vunpack.c.l.b16 %v968
  %v4103 = vunpack.c.h.b16 %v968
  %v4104 = vunpack.c.l.b16 %v969
  %v4105 = vunpack.c.h.b16 %v969
  %v4106 = vunpack.c.l.b16 %v970
  %v4107 = vunpack.c.h.b16 %v970
  %v4108 = vunpack.c.l.b16 %v971
  %v4109 = vunpack.c.h.b16 %v971
  %v4110 = vunpack.c.l.b16 %v972
  %v4111 = vunpack.c.h.b16 %v972
  %v4112 = vunpack.c.l.b16 %v973
  %v4113 = vunpack.c.h.b16 %v973
  %v4114 = vunpack.c.l.b16 %v974
  %v4115 = vunpack.c.h.b16 %v974
  %v4116 = vunpack.c.l.b16 %v975
  %v4117 = vunpack.c.h.b16 %v975
  %v4118 = vunpack.c.l.b16 %v976
  %v4119 = vunpack.c.h.b16 %v976
  %v4120 = vunpack.c.l.b16 %v977
  %v4121 = vunpack.c.h.b16 %v977
  %v4122 = vunpack.c.l.b16 %v978
  %v4123 = vunpack.c.h.b16 %v978
  %v4124 = vunpack.c.l.b16 %v979
  %v4125 = vunpack.c.h.b16 %v979
  %v4126 = vunpack.c.l.b16 %v980
  %v4127 = vunpack.c.h.b16 %v980
  %v4128 = vunpack.c.l.b16 %v981
  %v4129 = vunpack.c.h.b16 %v981
  %v4130 = vunpack.c.l.b16 %v982
  %v4131 = vunpack.c.h.b16 %v982
  %v4132 = vunpack.c.l.b16 %v983
  %v4133 = vunpack.c.h.b16 %v983
  %v4134 = vunpack.c.l.b16 %v984
  %v4135 = vunpack.c.h.b16 %v984
  %v4136 = vunpack.c.l.b16 %v985
  %v4137 = vunpack.c.h.b16 %v985
  %v4138 = vunpack.c.l.b16 %v986
  %v4139 = vunpack.c.h.b16 %v986
  %v4140 = vunpack.c.l.b16 %v987
  %v4141 = vunpack.c.h.b16 %v987
  %v4142 = vunpack.c.l.b16 %v988
  %v4143 = vunpack.c.h.b16 %v988
  %v4144 = vunpack.c.l.b16 %v989
  %v4145 = vunpack.c.h.b16 %v989
  %v4146 = vunpack.c.l.b16 %v990
  %v4147 = vunpack.c.h.b16 %v990
  %v4148 = vunpack.c.l.b16 %v991
  %v4149 = vunpack.c.h.b16 %v991
  %v4150 = vunpack.c.l.b16 %v992
  %v4151 = vunpack.c.h.b16 %v992
  %v4152 = vunpack.c.l.b16 %v993
  %v4153 = vunpack.c.h.b16 %v993
  %v4154 = vunpack.c.l.b16 %v994
  %v4155 = vunpack.c.h.b16 %v994
  %v4156 = vunpack.c.l.b16 %v995
  %v4157 = vunpack.c.h.b16 %v995
  %v4158 = vunpack.c.l.b16 %v996
  %v4159 = vunpack.c.h.b16 %v996
  %v4160 = vunpack.c.l.b16 %v997
  %v4161 = vunpack.c.h.b16 %v997
  %v4162 = vunpack.c.l.b16 %v998
  %v4163 = vunpack.c.h.b16 %v998
  %v4164 = vunpack.c.l.b16 %v999
  %v4165 = vunpack.c.h.b16 %v999
  %v4166 = vunpack.c.l.b16 %v1000
  %v4167 = vunpack.c.h.b16 %v1000
  %v4168 = vunpack.c.l.b16 %v1001
  %v4169 = vunpack.c.h.b16 %v1001
  %v4170 = vunpack.c.l.b16 %v1002
  %v4171 = vunpack.c.h.b16 %v1002
  %v4172 = vunpack.c.l.b16 %v1003
  %v4173 = vunpack.c.h.b16 %v1003
  %v4174 = vunpack.c.l.b16 %v1004
  %v4175 = vunpack.c.h.b16 %v1004
  %v4176 = vunpack.c.l.b16 %v1005
  %v4177 = vunpack.c.h.b16 %v1005
  %v4178 = vunpack.c.l.b16 %v1006
  %v4179 = vunpack.c.h.b16 %v1006
  %v4180 = vunpack.c.l.b16 %v1007
  %v4181 = vunpack.c.h.b16 %v1007
  %v4182 = vunpack.c.l.b16 %v1008
  %v4183 = vunpack.c.h.b16 %v1008
  %v4184 = vunpack.c.l.b16 %v1009
  %v4185 = vunpack.c.h.b16 %v1009
  %v4186 = vunpack.c.l.b16 %v1010
  %v4187 = vunpack.c.h.b16 %v1010
  %v4188 = vunpack.c.l.b16 %v1011
  %v4189 = vunpack.c.h.b16 %v1011
  %v4190 = vunpack.c.l.b16 %v1012
  %v4191 = vunpack.c.h.b16 %v1012
  %v4192 = vunpack.c.l.b16 %v1013
  %v4193 = vunpack.c.h.b16 %v1013
  %v4194 = vunpack.c.l.b16 %v1014
  %v4195 = vunpack.c.h.b16 %v1014
  %v4196 = vunpack.c.l.b16 %v1015
  %v4197 = vunpack.c.h.b16 %v1015
  %v4198 = vunpack.c.l.b16 %v1016
  %v4199 = vunpack.c.h.b16 %v1016
  %v4200 = vunpack.c.l.b16 %v1017
  %v4201 = vunpack.c.h.b16 %v1017
  %v4202 = vunpack.c.l.b16 %v1018
  %v4203 = vunpack.c.h.b16 %v1018
  %v4204 = vunpack.c.l.b16 %v1019
  %v4205 = vunpack.c.h.b16 %v1019
  %v4206 = vunpack.c.l.b16 %v1020
  %v4207 = vunpack.c.h.b16 %v1020
  %v4208 = vunpack.c.l.b16 %v1021
  %v4209 = vunpack.c.h.b16 %v1021
  %v4210 = vunpack.c.l.b16 %v1022
  %v4211 = vunpack.c.h.b16 %v1022
  %v4212 = vunpack.c.l.b16 %v1023
  %v4213 = vunpack.c.h.b16 %v1023
  %v4214 = vunpack.c.l.b16 %v1024
  %v4215 = vunpack.c.h.b16 %v1024
  %v4216 = vunpack.c.l.b16 %v1025
  %v4217 = vunpack.c.h.b16 %v1025
  %v4218 = vunpack.c.l.b16 %v1026
  %v4219 = vunpack.c.h.b16 %v1026
  %v4220 = vunpack.c.l.b16 %v1027
  %v4221 = vunpack.c.h.b16 %v1027
  %v4222 = vunpack.c.l.b16 %v1028
  %v4223 = vunpack.c.h.b16 %v1028
  %v4224 = vunpack.c.l.b16 %v1029
  %v4225 = vunpack.c.h.b16 %v1029
  %v4226 = vunpack.c.l.b16 %v1030
  %v4227 = vunpack.c.h.b16 %v1030
  %v4228 = vunpack.c.l.b16 %v1031
  %v4229 = vunpack.c.h.b16 %v1031
  %v4230 = vunpack.c.l.b16 %v1032
  %v4231 = vunpack.c.h.b16 %v1032
  %v4232 = vunpack.c.l.b16 %v1033
  %v4233 = vunpack.c.h.b16 %v1033
  %v4234 = vunpack.c.l.b16 %v1034
  %v4235 = vunpack.c.h.b16 %v1034
  %v4236 = vunpack.c.l.b16 %v1035
  %v4237 = vunpack.c.h.b16 %v1035
  %v4238 = vunpack.c.l.b16 %v1036
  %v4239 = vunpack.c.h.b16 %v1036
  %v4240 = vunpack.c.l.b16 %v1037
  %v4241 = vunpack.c.h.b16 %v1037
  %v4242 = vunpack.c.l.b16 %v1038
  %v4243 = vunpack.c.h.b16 %v1038
  %v4244 = vunpack.c.l.b16 %v1039
  %v4245 = vunpack.c.h.b16 %v1039
  %v4246 = vunpack.c.l.b16 %v1040
  %v4247 = vunpack.c.h.b16 %v1040
  %v4248 = vunpack.c.l.b16 %v1041
  %v4249 = vunpack.c.h.b16 %v1041
  %v4250 = vunpack.c.l.b16 %v1042
  %v4251 = vunpack.c.h.b16 %v1042
  %v4252 = vunpack.c.l.b16 %v1043
  %v4253 = vunpack.c.h.b16 %v1043
  %v4254 = vunpack.c.l.b16 %v1044
  %v4255 = vunpack.c.h.b16 %v1044
  %v4256 = vunpack.c.l.b16 %v1045
  %v4257 = vunpack.c.h.b16 %v1045
  %v4258 = vunpack.c.l.b16 %v1046
  %v4259 = vunpack.c.h.b16 %v1046
  %v4260 = vunpack.c.l.b16 %v1047
  %v4261 = vunpack.c.h.b16 %v1047
  %v4262 = vunpack.c.l.b16 %v1048
  %v4263 = vunpack.c.h.b16 %v1048
  %v4264 = vunpack.c.l.b16 %v1049
  %v4265 = vunpack.c.h.b16 %v1049
  %v4266 = vunpack.c.l.b16 %v1050
  %v4267 = vunpack.c.h.b16 %v1050
  %v4268 = vunpack.c.l.b16 %v1051
  %v4269 = vunpack.c.h.b16 %v1051
  %v4270 = vunpack.c.l.b16 %v1052
  %v4271 = vunpack.c.h.b16 %v1052
  %v4272 = vunpack.c.l.b16 %v1053
  %v4273 = vunpack.c.h.b16 %v1053
  %v4274 = vunpack.c.l.b16 %v1054
  %v4275 = vunpack.c.h.b16 %v1054
  %v4276 = vunpack.c.l.b16 %v1055
  %v4277 = vunpack.c.h.b16 %v1055
  %v4278 = vunpack.c.l.b16 %v1056
  %v4279 = vunpack.c.h.b16 %v1056
  %v4280 = vunpack.c.l.b16 %v1057
  %v4281 = vunpack.c.h.b16 %v1057
  %v4282 = vunpack.c.l.b16 %v1058
  %v4283 = vunpack.c.h.b16 %v1058
  %v4284 = vunpack.c.l.b16 %v1059
  %v4285 = vunpack.c.h.b16 %v1059
  %v4286 = vunpack.c.l.b16 %v1060
  %v4287 = vunpack.c.h.b16 %v1060
  %v4288 = vunpack.c.l.b16 %v1061
  %v4289 = vunpack.c.h.b16 %v1061
  %v4290 = vunpack.c.l.b16 %v1062
  %v4291 = vunpack.c.h.b16 %v1062
  %v4292 = vunpack.c.l.b16 %v1063
  %v4293 = vunpack.c.h.b16 %v1063
  %v4294 = vunpack.c.l.b16 %v1064
  %v4295 = vunpack.c.h.b16 %v1064
  %v4296 = vunpack.c.l.b16 %v1065
  %v4297 = vunpack.c.h.b16 %v1065
  %v4298 = vunpack.c.l.b16 %v1066
  %v4299 = vunpack.c.h.b16 %v1066
  %v4300 = vunpack.c.l.b16 %v1067
  %v4301 = vunpack.c.h.b16 %v1067
  %v4302 = vunpack.c.l.b16 %v1068
  %v4303 = vunpack.c.h.b16 %v1068
  %v4304 = vunpack.c.l.b16 %v1069
  %v4305 = vunpack.c.h.b16 %v1069
  %v4306 = vunpack.c.l.b16 %v1070
  %v4307 = vunpack.c.h.b16 %v1070
  %v4308 = vunpack.c.l.b16 %v1071
  %v4309 = vunpack.c.h.b16 %v1071
  %v4310 = vunpack.c.l.b16 %v1072
  %v4311 = vunpack.c.h.b16 %v1072
  %v4312 = vunpack.c.l.b16 %v1073
  %v4313 = vunpack.c.h.b16 %v1073
  %v4314 = vunpack.c.l.b16 %v1074
  %v4315 = vunpack.c.h.b16 %v1074
  %v4316 = vunpack.c.l.b16 %v1075
  %v4317 = vunpack.c.h.b16 %v1075
  %v4318 = vpack.c.b16 %v2274, %v2270
  %v4319 = vpack.c.b16 %v2275, %v2271
  %v4320 = vpack.c.b16 %v2276, %v2272
  %v4321 = vpack.c.b16 %v2277, %v2273
  %v4322 = vpack.c.b16 %v2282, %v2278
  %v4323 = vpack.c.b16 %v2283, %v2279
  %v4324 = vpack.c.b16 %v2284, %v2280
  %v4325 = vpack.c.b16 %v2285, %v2281
  %v4326 = vpack.c.b16 %v2290, %v2286
  %v4327 = vpack.c.b16 %v2291, %v2287
  %v4328 = vpack.c.b16 %v2292, %v2288
  %v4329 = vpack.c.b16 %v2293, %v2289
  %v4330 = vpack.c.b16 %v2298, %v2294
  %v4331 = vpack.c.b16 %v2299, %v2295
  %v4332 = vpack.c.b16 %v2300, %v2296
  %v4333 = vpack.c.b16 %v2301, %v2297
  %v4334 = vpack.c.b16 %v2306, %v2302
  %v4335 = vpack.c.b16 %v2307, %v2303
  %v4336 = vpack.c.b16 %v2308, %v2304
  %v4337 = vpack.c.b16 %v2309, %v2305
  %v4338 = vpack.c.b16 %v2314, %v2310
  %v4339 = vpack.c.b16 %v2315, %v2311
  %v4340 = vpack.c.b16 %v2316, %v2312
  %v4341 = vpack.c.b16 %v2317, %v2313
  %v4342 = vpack.c.b16 %v2322, %v2318
  %v4343 = vpack.c.b16 %v2323, %v2319
  %v4344 = vpack.c.b16 %v2324, %v2320
  %v4345 = vpack.c.b16 %v2325, %v2321
  %v4346 = vpack.c.b16 %v2330, %v2326
  %v4347 = vpack.c.b16 %v2331, %v2327
  %v4348 = vpack.c.b16 %v2332, %v2328
  %v4349 = vpack.c.b16 %v2333, %v2329
  %v4350 = vpack.c.b16 %v2338, %v2334
  %v4351 = vpack.c.b16 %v2339, %v2335
  %v4352 = vpack.c.b16 %v2340, %v2336
  %v4353 = vpack.c.b16 %v2341, %v2337
  %v4354 = vpack.c.b16 %v2346, %v2342
  %v4355 = vpack.c.b16 %v2347, %v2343
  %v4356 = vpack.c.b16 %v2348, %v2344
  %v4357 = vpack.c.b16 %v2349, %v2345
  %v4358 = vpack.c.b16 %v2354, %v2350
  %v4359 = vpack.c.b16 %v2355, %v2351
  %v4360 = vpack.c.b16 %v2356, %v2352
  %v4361 = vpack.c.b16 %v2357, %v2353
  %v4362 = vpack.c.b16 %v2362, %v2358
  %v4363 = vpack.c.b16 %v2363, %v2359
  %v4364 = vpack.c.b16 %v2364, %v2360
  %v4365 = vpack.c.b16 %v2365, %v2361
  %v4366 = vpack.c.b16 %v2370, %v2366
  %v4367 = vpack.c.b16 %v2371, %v2367
  %v4368 = vpack.c.b16 %v2372, %v2368
  %v4369 = vpack.c.b16 %v2373, %v2369
  %v4370 = vpack.c.b16 %v2378, %v2374
  %v4371 = vpack.c.b16 %v2379, %v2375
  %v4372 = vpack.c.b16 %v2380, %v2376
  %v4373 = vpack.c.b16 %v2381, %v2377
  %v4374 = vpack.c.b16 %v2386, %v2382
  %v4375 = vpack.c.b16 %v2387, %v2383
  %v4376 = vpack.c.b16 %v2388, %v2384
  %v4377 = vpack.c.b16 %v2389, %v2385
  %v4378 = vpack.c.b16 %v2394, %v2390
  %v4379 = vpack.c.b16 %v2395, %v2391
  %v4380 = vpack.c.b16 %v2396, %v2392
  %v4381 = vpack.c.b16 %v2397, %v2393
  %v4382 = vpack.c.b16 %v2402, %v2398
  %v4383 = vpack.c.b16 %v2403, %v2399
  %v4384 = vpack.c.b16 %v2404, %v2400
  %v4385 = vpack.c.b16 %v2405, %v2401
  %v4386 = vpack.c.b16 %v2410, %v2406
  %v4387 = vpack.c.b16 %v2411, %v2407
  %v4388 = vpack.c.b16 %v2412, %v2408
  %v4389 = vpack.c.b16 %v2413, %v2409
  %v4390 = vpack.c.b16 %v2418, %v2414
  %v4391 = vpack.c.b16 %v2419, %v2415
  %v4392 = vpack.c.b16 %v2420, %v2416
  %v4393 = vpack.c.b16 %v2421, %v2417
  %v4394 = vpack.c.b16 %v2426, %v2422
  %v4395 = vpack.c.b16 %v2427, %v2423
  %v4396 = vpack.c.b16 %v2428, %v2424
  %v4397 = vpack.c.b16 %v2429, %v2425
  %v4398 = vpack.c.b16 %v2434, %v2430
  %v4399 = vpack.c.b16 %v2435, %v2431
  %v4400 = vpack.c.b16 %v2436, %v2432
  %v4401 = vpack.c.b16 %v2437, %v2433
  %v4402 = vpack.c.b16 %v2442, %v2438
  %v4403 = vpack.c.b16 %v2443, %v2439
  %v4404 = vpack.c.b16 %v2444, %v2440
  %v4405 = vpack.c.b16 %v2445, %v2441
  %v4406 = vpack.c.b16 %v2450, %v2446
  %v4407 = vpack.c.b16 %v2451, %v2447
  %v4408 = vpack.c.b16 %v2452, %v2448
  %v4409 = vpack.c.b16 %v2453, %v2449
  %v4410 = vpack.c.b16 %v2458, %v2454
  %v4411 = vpack.c.b16 %v2459, %v2455
  %v4412 = vpack.c.b16 %v2460, %v2456
  %v4413 = vpack.c.b16 %v2461, %v2457
  %v4414 = vpack.c.b16 %v2466, %v2462
  %v4415 = vpack.c.b16 %v2467, %v2463
  %v4416 = vpack.c.b16 %v2468, %v2464
  %v4417 = vpack.c.b16 %v2469, %v2465
  %v4418 = vpack.c.b16 %v2474, %v2470
  %v4419 = vpack.c.b16 %v2475, %v2471
  %v4420 = vpack.c.b16 %v2476, %v2472
  %v4421 = vpack.c.b16 %v2477, %v2473
  %v4422 = vpack.c.b16 %v2482, %v2478
  %v4423 = vpack.c.b16 %v2483, %v2479
  %v4424 = vpack.c.b16 %v2484, %v2480
  %v4425 = vpack.c.b16 %v2485, %v2481
  %v4426 = vpack.c.b16 %v2490, %v2486
  %v4427 = vpack.c.b16 %v2491, %v2487
  %v4428 = vpack.c.b16 %v2492, %v2488
  %v4429 = vpack.c.b16 %v2493, %v2489
  %v4430 = vpack.c.b16 %v2498, %v2494
  %v4431 = vpack.c.b16 %v2499, %v2495
  %v4432 = vpack.c.b16 %v2500, %v2496
  %v4433 = vpack.c.b16 %v2501, %v2497
  %v4434 = vpack.c.b16 %v2506, %v2502
  %v4435 = vpack.c.b16 %v2507, %v2503
  %v4436 = vpack.c.b16 %v2508, %v2504
  %v4437 = vpack.c.b16 %v2509, %v2505
  %v4438 = vpack.c.b16 %v2514, %v2510
  %v4439 = vpack.c.b16 %v2515, %v2511
  %v4440 = vpack.c.b16 %v2516, %v2512
  %v4441 = vpack.c.b16 %v2517, %v2513
  %v4442 = vpack.c.b16 %v2522, %v2518
  %v4443 = vpack.c.b16 %v2523, %v2519
  %v4444 = vpack.c.b16 %v2524, %v2520
  %v4445 = vpack.c.b16 %v2525, %v2521
  %v4446 = vpack.c.b16 %v2530, %v2526
  %v4447 = vpack.c.b16 %v2531, %v2527
  %v4448 = vpack.c.b16 %v2532, %v2528
  %v4449 = vpack.c.b16 %v2533, %v2529
  %v4450 = vpack.c.b16 %v2538, %v2534
  %v4451 = vpack.c.b16 %v2539, %v2535
  %v4452 = vpack.c.b16 %v2540, %v2536
  %v4453 = vpack.c.b16 %v2541, %v2537
  %v4454 = vpack.c.b16 %v2546, %v2542
  %v4455 = vpack.c.b16 %v2547, %v2543
  %v4456 = vpack.c.b16 %v2548, %v2544
  %v4457 = vpack.c.b16 %v2549, %v2545
  %v4458 = vpack.c.b16 %v2554, %v2550
  %v4459 = vpack.c.b16 %v2555, %v2551
  %v4460 = vpack.c.b16 %v2556, %v2552
  %v4461 = vpack.c.b16 %v2557, %v2553
  %v4462 = vpack.c.b16 %v2562, %v2558
  %v4463 = vpack.c.b16 %v2563, %v2559
  %v4464 = vpack.c.b16 %v2564, %v2560
  %v4465 = vpack.c.b16 %v2565, %v2561
  %v4466 = vpack.c.b16 %v2570, %v2566
  %v4467 = vpack.c.b16 %v2571, %v2567
  %v4468 = vpack.c.b16 %v2572, %v2568
  %v4469 = vpack.c.b16 %v2573, %v2569
  %v4470 = vpack.c.b16 %v2578, %v2574
  %v4471 = vpack.c.b16 %v2579, %v2575
  %v4472 = vpack.c.b16 %v2580, %v2576
  %v4473 = vpack.c.b16 %v2581, %v2577
  %v4474 = vpack.c.b16 %v2586, %v2582
  %v4475 = vpack.c.b16 %v2587, %v2583
  %v4476 = vpack.c.b16 %v2588, %v2584
  %v4477 = vpack.c.b16 %v2589, %v2585
  %v4478 = vpack.c.b16 %v2594, %v2590
  %v4479 = vpack.c.b16 %v2595, %v2591
  %v4480 = vpack.c.b16 %v2596, %v2592
  %v4481 = vpack.c.b16 %v2597, %v2593
  %v4482 = vpack.c.b16 %v2602, %v2598
  %v4483 = vpack.c.b16 %v2603, %v2599
  %v4484 = vpack.c.b16 %v2604, %v2600
  %v4485 = vpack.c.b16 %v2605, %v2601
  %v4486 = vpack.c.b16 %v2610, %v2606
  %v4487 = vpack.c.b16 %v2611, %v2607
  %v4488 = vpack.c.b16 %v2612, %v2608
  %v4489 = vpack.c.b16 %v2613, %v2609
  %v4490 = vpack.c.b16 %v2618, %v2614
  %v4491 = vpack.c.b16 %v2619, %v2615
  %v4492 = vpack.c.b16 %v2620, %v2616
  %v4493 = vpack.c.b16 %v2621, %v2617
  %v4494 = vpack.c.b16 %v2626, %v2622
  %v4495 = vpack.c.b16 %v2627, %v2623
  %v4496 = vpack.c.b16 %v2628, %v2624
  %v4497 = vpack.c.b16 %v2629, %v2625
  %v4498 = vpack.c.b16 %v2634, %v2630
  %v4499 = vpack.c.b16 %v2635, %v2631
  %v4500 = vpack.c.b16 %v2636, %v2632
  %v4501 = vpack.c.b16 %v2637, %v2633
  %v4502 = vpack.c.b16 %v2642, %v2638
  %v4503 = vpack.c.b16 %v2643, %v2639
  %v4504 = vpack.c.b16 %v2644, %v2640
  %v4505 = vpack.c.b16 %v2645, %v2641
  %v4506 = vpack.c.b16 %v2650, %v2646
  %v4507 = vpack.c.b16 %v2651, %v2647
  %v4508 = vpack.c.b16 %v2652, %v2648
  %v4509 = vpack.c.b16 %v2653, %v2649
  %v4510 = vpack.c.b16 %v2658, %v2654
  %v4511 = vpack.c.b16 %v2659, %v2655
  %v4512 = vpack.c.b16 %v2660, %v2656
  %v4513 = vpack.c.b16 %v2661, %v2657
  %v4514 = vpack.c.b16 %v2666, %v2662
  %v4515 = vpack.c.b16 %v2667, %v2663
  %v4516 = vpack.c.b16 %v2668, %v2664
  %v4517 = vpack.c.b16 %v2669, %v2665
  %v4518 = vpack.c.b16 %v2674, %v2670
  %v4519 = vpack.c.b16 %v2675, %v2671
  %v4520 = vpack.c.b16 %v2676, %v2672
  %v4521 = vpack.c.b16 %v2677, %v2673
  %v4522 = vpack.c.b16 %v2682, %v2678
  %v4523 = vpack.c.b16 %v2683, %v2679
  %v4524 = vpack.c.b16 %v2684, %v2680
  %v4525 = vpack.c.b16 %v2685, %v2681
  %v4526 = vpack.c.b16 %v2690, %v2686
  %v4527 = vpack.c.b16 %v2691, %v2687
  %v4528 = vpack.c.b16 %v2692, %v2688
  %v4529 = vpack.c.b16 %v2693, %v2689
  %v4530 = vpack.c.b16 %v2698, %v2694
  %v4531 = vpack.c.b16 %v2699, %v2695
  %v4532 = vpack.c.b16 %v2700, %v2696
  %v4533 = vpack.c.b16 %v2701, %v2697
  %v4534 = vpack.c.b16 %v2706, %v2702
  %v4535 = vpack.c.b16 %v2707, %v2703
  %v4536 = vpack.c.b16 %v2708, %v2704
  %v4537 = vpack.c.b16 %v2709, %v2705
  %v4538 = vpack.c.b16 %v2714, %v2710
  %v4539 = vpack.c.b16 %v2715, %v2711
  %v4540 = vpack.c.b16 %v2716, %v2712
  %v4541 = vpack.c.b16 %v2717, %v2713
  %v4542 = vpack.c.b16 %v2722, %v2718
  %v4543 = vpack.c.b16 %v2723, %v2719
  %v4544 = vpack.c.b16 %v2724, %v2720
  %v4545 = vpack.c.b16 %v2725, %v2721
  %v4546 = vpack.c.b16 %v2730, %v2726
  %v4547 = vpack.c.b16 %v2731, %v2727
  %v4548 = vpack.c.b16 %v2732, %v2728
  %v4549 = vpack.c.b16 %v2733, %v2729
  %v4550 = vpack.c.b16 %v2738, %v2734
  %v4551 = vpack.c.b16 %v2739, %v2735
  %v4552 = vpack.c.b16 %v2740, %v2736
  %v4553 = vpack.c.b16 %v2741, %v2737
  %v4554 = vpack.c.b16 %v2746, %v2742
  %v4555 = vpack.c.b16 %v2747, %v2743
  %v4556 = vpack.c.b16 %v2748, %v2744
  %v4557 = vpack.c.b16 %v2749, %v2745
  %v4558 = vpack.c.b16 %v2754, %v2750
  %v4559 = vpack.c.b16 %v2755, %v2751
  %v4560 = vpack.c.b16 %v2756, %v2752
  %v4561 = vpack.c.b16 %v2757, %v2753
  %v4562 = vpack.c.b16 %v2762, %v2758
  %v4563 = vpack.c.b16 %v2763, %v2759
  %v4564 = vpack.c.b16 %v2764, %v2760
  %v4565 = vpack.c.b16 %v2765, %v2761
  %v4566 = vpack.c.b16 %v2770, %v2766
  %v4567 = vpack.c.b16 %v2771, %v2767
  %v4568 = vpack.c.b16 %v2772, %v2768
  %v4569 = vpack.c.b16 %v2773, %v2769
  %v4570 = vpack.c.b16 %v2778, %v2774
  %v4571 = vpack.c.b16 %v2779, %v2775
  %v4572 = vpack.c.b16 %v2780, %v2776
  %v4573 = vpack.c.b16 %v2781, %v2777
  %v4574 = vpack.c.b16 %v2786, %v2782
  %v4575 = vpack.c.b16 %v2787, %v2783
  %v4576 = vpack.c.b16 %v2788, %v2784
  %v4577 = vpack.c.b16 %v2789, %v2785
  %v4578 = vpack.c.b16 %v2794, %v2790
  %v4579 = vpack.c.b16 %v2795, %v2791
  %v4580 = vpack.c.b16 %v2796, %v2792
  %v4581 = vpack.c.b16 %v2797, %v2793
  %v4582 = vpack.c.b16 %v2802, %v2798
  %v4583 = vpack.c.b16 %v2803, %v2799
  %v4584 = vpack.c.b16 %v2804, %v2800
  %v4585 = vpack.c.b16 %v2805, %v2801
  %v4586 = vpack.c.b16 %v2810, %v2806
  %v4587 = vpack.c.b16 %v2811, %v2807
  %v4588 = vpack.c.b16 %v2812, %v2808
  %v4589 = vpack.c.b16 %v2813, %v2809
  %v4590 = vpack.c.b16 %v2818, %v2814
  %v4591 = vpack.c.b16 %v2819, %v2815
  %v4592 = vpack.c.b16 %v2820, %v2816
  %v4593 = vpack.c.b16 %v2821, %v2817
  %v4594 = vpack.c.b16 %v2826, %v2822
  %v4595 = vpack.c.b16 %v2827, %v2823
  %v4596 = vpack.c.b16 %v2828, %v2824
  %v4597 = vpack.c.b16 %v2829, %v2825
  %v4598 = vpack.c.b16 %v2834, %v2830
  %v4599 = vpack.c.b16 %v2835, %v2831
  %v4600 = vpack.c.b16 %v2836, %v2832
  %v4601 = vpack.c.b16 %v2837, %v2833
  %v4602 = vpack.c.b16 %v2842, %v2838
  %v4603 = vpack.c.b16 %v2843, %v2839
  %v4604 = vpack.c.b16 %v2844, %v2840
  %v4605 = vpack.c.b16 %v2845, %v2841
  %v4606 = vpack.c.b16 %v2850, %v2846
  %v4607 = vpack.c.b16 %v2851, %v2847
  %v4608 = vpack.c.b16 %v2852, %v2848
  %v4609 = vpack.c.b16 %v2853, %v2849
  %v4610 = vpack.c.b16 %v2858, %v2854
  %v4611 = vpack.c.b16 %v2859, %v2855
  %v4612 = vpack.c.b16 %v2860, %v2856
  %v4613 = vpack.c.b16 %v2861, %v2857
  %v4614 = vpack.c.b16 %v2866, %v2862
  %v4615 = vpack.c.b16 %v2867, %v2863
  %v4616 = vpack.c.b16 %v2868, %v2864
  %v4617 = vpack.c.b16 %v2869, %v2865
  %v4618 = vpack.c.b16 %v2874, %v2870
  %v4619 = vpack.c.b16 %v2875, %v2871
  %v4620 = vpack.c.b16 %v2876, %v2872
  %v4621 = vpack.c.b16 %v2877, %v2873
  %v4622 = vpack.c.b16 %v2882, %v2878
  %v4623 = vpack.c.b16 %v2883, %v2879
  %v4624 = vpack.c.b16 %v2884, %v2880
  %v4625 = vpack.c.b16 %v2885, %v2881
  %v4626 = vpack.c.b16 %v2890, %v2886
  %v4627 = vpack.c.b16 %v2891, %v2887
  %v4628 = vpack.c.b16 %v2892, %v2888
  %v4629 = vpack.c.b16 %v2893, %v2889
  %v4630 = vpack.c.b16 %v2898, %v2894
  %v4631 = vpack.c.b16 %v2899, %v2895
  %v4632 = vpack.c.b16 %v2900, %v2896
  %v4633 = vpack.c.b16 %v2901, %v2897
  %v4634 = vpack.c.b16 %v2906, %v2902
  %v4635 = vpack.c.b16 %v2907, %v2903
  %v4636 = vpack.c.b16 %v2908, %v2904
  %v4637 = vpack.c.b16 %v2909, %v2905
  %v4638 = vpack.c.b16 %v2914, %v2910
  %v4639 = vpack.c.b16 %v2915, %v2911
  %v4640 = vpack.c.b16 %v2916, %v2912
  %v4641 = vpack.c.b16 %v2917, %v2913
  %v4642 = vpack.c.b16 %v2922, %v2918
  %v4643 = vpack.c.b16 %v2923, %v2919
  %v4644 = vpack.c.b16 %v2924, %v2920
  %v4645 = vpack.c.b16 %v2925, %v2921
  %v4646 = vpack.c.b16 %v2930, %v2926
  %v4647 = vpack.c.b16 %v2931, %v2927
  %v4648 = vpack.c.b16 %v2932, %v2928
  %v4649 = vpack.c.b16 %v2933, %v2929
  %v4650 = vpack.c.b16 %v2938, %v2934
  %v4651 = vpack.c.b16 %v2939, %v2935
  %v4652 = vpack.c.b16 %v2940, %v2936
  %v4653 = vpack.c.b16 %v2941, %v2937
  %v4654 = vpack.c.b16 %v2946, %v2942
  %v4655 = vpack.c.b16 %v2947, %v2943
  %v4656 = vpack.c.b16 %v2948, %v2944
  %v4657 = vpack.c.b16 %v2949, %v2945
  %v4658 = vpack.c.b16 %v2954, %v2950
  %v4659 = vpack.c.b16 %v2955, %v2951
  %v4660 = vpack.c.b16 %v2956, %v2952
  %v4661 = vpack.c.b16 %v2957, %v2953
  %v4662 = vpack.c.b16 %v2962, %v2958
  %v4663 = vpack.c.b16 %v2963, %v2959
  %v4664 = vpack.c.b16 %v2964, %v2960
  %v4665 = vpack.c.b16 %v2965, %v2961
  %v4666 = vpack.c.b16 %v2970, %v2966
  %v4667 = vpack.c.b16 %v2971, %v2967
  %v4668 = vpack.c.b16 %v2972, %v2968
  %v4669 = vpack.c.b16 %v2973, %v2969
  %v4670 = vpack.c.b16 %v2978, %v2974
  %v4671 = vpack.c.b16 %v2979, %v2975
  %v4672 = vpack.c.b16 %v2980, %v2976
  %v4673 = vpack.c.b16 %v2981, %v2977
  %v4674 = vpack.c.b16 %v2986, %v2982
  %v4675 = vpack.c.b16 %v2987, %v2983
  %v4676 = vpack.c.b16 %v2988, %v2984
  %v4677 = vpack.c.b16 %v2989, %v2985
  %v4678 = vpack.c.b16 %v2994, %v2990
  %v4679 = vpack.c.b16 %v2995, %v2991
  %v4680 = vpack.c.b16 %v2996, %v2992
  %v4681 = vpack.c.b16 %v2997, %v2993
  %v4682 = vpack.c.b16 %v3002, %v2998
  %v4683 = vpack.c.b16 %v3003, %v2999
  %v4684 = vpack.c.b16 %v3004, %v3000
  %v4685 = vpack.c.b16 %v3005, %v3001
  %v4686 = vpack.c.b16 %v3010, %v3006
  %v4687 = vpack.c.b16 %v3011, %v3007
  %v4688 = vpack.c.b16 %v3012, %v3008
  %v4689 = vpack.c.b16 %v3013, %v3009
  %v4690 = vpack.c.b16 %v3018, %v3014
  %v4691 = vpack.c.b16 %v3019, %v3015
  %v4692 = vpack.c.b16 %v3020, %v3016
  %v4693 = vpack.c.b16 %v3021, %v3017
  %v4694 = vpack.c.b16 %v3026, %v3022
  %v4695 = vpack.c.b16 %v3027, %v3023
  %v4696 = vpack.c.b16 %v3028, %v3024
  %v4697 = vpack.c.b16 %v3029, %v3025
  %v4698 = vpack.c.b16 %v3034, %v3030
  %v4699 = vpack.c.b16 %v3035, %v3031
  %v4700 = vpack.c.b16 %v3036, %v3032
  %v4701 = vpack.c.b16 %v3037, %v3033
  %v4702 = vpack.c.b16 %v3042, %v3038
  %v4703 = vpack.c.b16 %v3043, %v3039
  %v4704 = vpack.c.b16 %v3044, %v3040
  %v4705 = vpack.c.b16 %v3045, %v3041
  %v4706 = vpack.c.b16 %v3050, %v3046
  %v4707 = vpack.c.b16 %v3051, %v3047
  %v4708 = vpack.c.b16 %v3052, %v3048
  %v4709 = vpack.c.b16 %v3053, %v3049
  %v4710 = vpack.c.b16 %v3058, %v3054
  %v4711 = vpack.c.b16 %v3059, %v3055
  %v4712 = vpack.c.b16 %v3060, %v3056
  %v4713 = vpack.c.b16 %v3061, %v3057
  %v4714 = vpack.c.b16 %v3066, %v3062
  %v4715 = vpack.c.b16 %v3067, %v3063
  %v4716 = vpack.c.b16 %v3068, %v3064
  %v4717 = vpack.c.b16 %v3069, %v3065
  %v4718 = vpack.c.b16 %v3074, %v3070
  %v4719 = vpack.c.b16 %v3075, %v3071
  %v4720 = vpack.c.b16 %v3076, %v3072
  %v4721 = vpack.c.b16 %v3077, %v3073
  %v4722 = vpack.c.b16 %v3082, %v3078
  %v4723 = vpack.c.b16 %v3083, %v3079
  %v4724 = vpack.c.b16 %v3084, %v3080
  %v4725 = vpack.c.b16 %v3085, %v3081
  %v4726 = vpack.c.b16 %v3090, %v3086
  %v4727 = vpack.c.b16 %v3091, %v3087
  %v4728 = vpack.c.b16 %v3092, %v3088
  %v4729 = vpack.c.b16 %v3093, %v3089
  %v4730 = vpack.c.b16 %v3098, %v3094
  %v4731 = vpack.c.b16 %v3099, %v3095
  %v4732 = vpack.c.b16 %v3100, %v3096
  %v4733 = vpack.c.b16 %v3101, %v3097
  %v4734 = vpack.c.b16 %v3106, %v3102
  %v4735 = vpack.c.b16 %v3107, %v3103
  %v4736 = vpack.c.b16 %v3108, %v3104
  %v4737 = vpack.c.b16 %v3109, %v3105
  %v4738 = vpack.c.b16 %v3114, %v3110
  %v4739 = vpack.c.b16 %v3115, %v3111
  %v4740 = vpack.c.b16 %v3116, %v3112
  %v4741 = vpack.c.b16 %v3117, %v3113
  %v4742 = vpack.c.b16 %v3122, %v3118
  %v4743 = vpack.c.b16 %v3123, %v3119
  %v4744 = vpack.c.b16 %v3124, %v3120
  %v4745 = vpack.c.b16 %v3125, %v3121
  %v4746 = vpack.c.b16 %v3130, %v3126
  %v4747 = vpack.c.b16 %v3131, %v3127
  %v4748 = vpack.c.b16 %v3132, %v3128
  %v4749 = vpack.c.b16 %v3133, %v3129
  %v4750 = vpack.c.b16 %v3138, %v3134
  %v4751 = vpack.c.b16 %v3139, %v3135
  %v4752 = vpack.c.b16 %v3140, %v3136
  %v4753 = vpack.c.b16 %v3141, %v3137
  %v4754 = vpack.c.b16 %v3146, %v3142
  %v4755 = vpack.c.b16 %v3147, %v3143
  %v4756 = vpack.c.b16 %v3148, %v3144
  %v4757 = vpack.c.b16 %v3149, %v3145
  %v4758 = vpack.c.b16 %v3154, %v3150
  %v4759 = vpack.c.b16 %v3155, %v3151
  %v4760 = vpack.c.b16 %v3156, %v3152
  %v4761 = vpack.c.b16 %v3157, %v3153
  %v4762 = vpack.c.b16 %v3162, %v3158
  %v4763 = vpack.c.b16 %v3163, %v3159
  %v4764 = vpack.c.b16 %v3164, %v3160
  %v4765 = vpack.c.b16 %v3165, %v3161
  %v4766 = vpack.c.b16 %v3170, %v3166
  %v4767 = vpack.c.b16 %v3171, %v3167
  %v4768 = vpack.c.b16 %v3172, %v3168
  %v4769 = vpack.c.b16 %v3173, %v3169
  %v4770 = vpack.c.b16 %v3178, %v3174
  %v4771 = vpack.c.b16 %v3179, %v3175
  %v4772 = vpack.c.b16 %v3180, %v3176
  %v4773 = vpack.c.b16 %v3181, %v3177
  %v4774 = vpack.c.b16 %v3186, %v3182
  %v4775 = vpack.c.b16 %v3187, %v3183
  %v4776 = vpack.c.b16 %v3188, %v3184
  %v4777 = vpack.c.b16 %v3189, %v3185
  %v4778 = vpack.c.b16 %v3194, %v3190
  %v4779 = vpack.c.b16 %v3195, %v3191
  %v4780 = vpack.c.b16 %v3196, %v3192
  %v4781 = vpack.c.b16 %v3197, %v3193
  %v4782 = vpack.c.b16 %v3202, %v3198
  %v4783 = vpack.c.b16 %v3203, %v3199
  %v4784 = vpack.c.b16 %v3204, %v3200
  %v4785 = vpack.c.b16 %v3205, %v3201
  %v4786 = vpack.c.b16 %v3210, %v3206
  %v4787 = vpack.c.b16 %v3211, %v3207
  %v4788 = vpack.c.b16 %v3212, %v3208
  %v4789 = vpack.c.b16 %v3213, %v3209
  %v4790 = vpack.c.b16 %v3218, %v3214
  %v4791 = vpack.c.b16 %v3219, %v3215
  %v4792 = vpack.c.b16 %v3220, %v3216
  %v4793 = vpack.c.b16 %v3221, %v3217
  %v4794 = vpack.c.b16 %v3226, %v3222
  %v4795 = vpack.c.b16 %v3227, %v3223
  %v4796 = vpack.c.b16 %v3228, %v3224
  %v4797 = vpack.c.b16 %v3229, %v3225
  %v4798 = vpack.c.b16 %v3234, %v3230
  %v4799 = vpack.c.b16 %v3235, %v3231
  %v4800 = vpack.c.b16 %v3236, %v3232
  %v4801 = vpack.c.b16 %v3237, %v3233
  %v4802 = vpack.c.b16 %v3242, %v3238
  %v4803 = vpack.c.b16 %v3243, %v3239
  %v4804 = vpack.c.b16 %v3244, %v3240
  %v4805 = vpack.c.b16 %v3245, %v3241
  %v4806 = vpack.c.b16 %v3250, %v3246
  %v4807 = vpack.c.b16 %v3251, %v3247
  %v4808 = vpack.c.b16 %v3252, %v3248
  %v4809 = vpack.c.b16 %v3253, %v3249
  %v4810 = vpack.c.b16 %v3258, %v3254
  %v4811 = vpack.c.b16 %v3259, %v3255
  %v4812 = vpack.c.b16 %v3260, %v3256
  %v4813 = vpack.c.b16 %v3261, %v3257
  %v4814 = vpack.c.b16 %v3266, %v3262
  %v4815 = vpack.c.b16 %v3267, %v3263
  %v4816 = vpack.c.b16 %v3268, %v3264
  %v4817 = vpack.c.b16 %v3269, %v3265
  %v4818 = vpack.c.b16 %v3274, %v3270
  %v4819 = vpack.c.b16 %v3275, %v3271
  %v4820 = vpack.c.b16 %v3276, %v3272
  %v4821 = vpack.c.b16 %v3277, %v3273
  %v4822 = vpack.c.b16 %v3282, %v3278
  %v4823 = vpack.c.b16 %v3283, %v3279
  %v4824 = vpack.c.b16 %v3284, %v3280
  %v4825 = vpack.c.b16 %v3285, %v3281
  %v4826 = vpack.c.b16 %v3290, %v3286
  %v4827 = vpack.c.b16 %v3291, %v3287
  %v4828 = vpack.c.b16 %v3292, %v3288
  %v4829 = vpack.c.b16 %v3293, %v3289
  %v4830 = vpack.c.b16 %v3298, %v3294
  %v4831 = vpack.c.b16 %v3299, %v3295
  %v4832 = vpack.c.b16 %v3300, %v3296
  %v4833 = vpack.c.b16 %v3301, %v3297
  %v4834 = vpack.c.b16 %v3306, %v3302
  %v4835 = vpack.c.b16 %v3307, %v3303
  %v4836 = vpack.c.b16 %v3308, %v3304
  %v4837 = vpack.c.b16 %v3309, %v3305
  %v4838 = vpack.c.b16 %v3314, %v3310
  %v4839 = vpack.c.b16 %v3315, %v3311
  %v4840 = vpack.c.b16 %v3316, %v3312
  %v4841 = vpack.c.b16 %v3317, %v3313
  %v4842 = vpack.c.b16 %v3322, %v3318
  %v4843 = vpack.c.b16 %v3323, %v3319
  %v4844 = vpack.c.b16 %v3324, %v3320
  %v4845 = vpack.c.b16 %v3325, %v3321
  %v4846 = vpack.c.b16 %v3330, %v3326
  %v4847 = vpack.c.b16 %v3331, %v3327
  %v4848 = vpack.c.b16 %v3332, %v3328
  %v4849 = vpack.c.b16 %v3333, %v3329
  %v4850 = vpack.c.b16 %v3338, %v3334
  %v4851 = vpack.c.b16 %v3339, %v3335
  %v4852 = vpack.c.b16 %v3340, %v3336
  %v4853 = vpack.c.b16 %v3341, %v3337
  %v4854 = vpack.c.b16 %v3346, %v3342
  %v4855 = vpack.c.b16 %v3347, %v3343
  %v4856 = vpack.c.b16 %v3348, %v3344
  %v4857 = vpack.c.b16 %v3349, %v3345
  %v4858 = vpack.c.b16 %v3354, %v3350
  %v4859 = vpack.c.b16 %v3355, %v3351
  %v4860 = vpack.c.b16 %v3356, %v3352
  %v4861 = vpack.c.b16 %v3357, %v3353
  %v4862 = vpack.c.b16 %v3362, %v3358
  %v4863 = vpack.c.b16 %v3363, %v3359
  %v4864 = vpack.c.b16 %v3364, %v3360
  %v4865 = vpack.c.b16 %v3365, %v3361
  %v4866 = vpack.c.b16 %v3370, %v3366
  %v4867 = vpack.c.b16 %v3371, %v3367
  %v4868 = vpack.c.b16 %v3372, %v3368
  %v4869 = vpack.c.b16 %v3373, %v3369
  %v4870 = vpack.c.b16 %v3378, %v3374
  %v4871 = vpack.c.b16 %v3379, %v3375
  %v4872 = vpack.c.b16 %v3380, %v3376
  %v4873 = vpack.c.b16 %v3381, %v3377
  %v4874 = vpack.c.b16 %v3386, %v3382
  %v4875 = vpack.c.b16 %v3387, %v3383
  %v4876 = vpack.c.b16 %v3388, %v3384
  %v4877 = vpack.c.b16 %v3389, %v3385
  %v4878 = vpack.c.b16 %v3394, %v3390
  %v4879 = vpack.c.b16 %v3395, %v3391
  %v4880 = vpack.c.b16 %v3396, %v3392
  %v4881 = vpack.c.b16 %v3397, %v3393
  %v4882 = vpack.c.b16 %v3402, %v3398
  %v4883 = vpack.c.b16 %v3403, %v3399
  %v4884 = vpack.c.b16 %v3404, %v3400
  %v4885 = vpack.c.b16 %v3405, %v3401
  %v4886 = vpack.c.b16 %v3410, %v3406
  %v4887 = vpack.c.b16 %v3411, %v3407
  %v4888 = vpack.c.b16 %v3412, %v3408
  %v4889 = vpack.c.b16 %v3413, %v3409
  %v4890 = vpack.c.b16 %v3418, %v3414
  %v4891 = vpack.c.b16 %v3419, %v3415
  %v4892 = vpack.c.b16 %v3420, %v3416
  %v4893 = vpack.c.b16 %v3421, %v3417
  %v4894 = vpack.c.b16 %v3426, %v3422
  %v4895 = vpack.c.b16 %v3427, %v3423
  %v4896 = vpack.c.b16 %v3428, %v3424
  %v4897 = vpack.c.b16 %v3429, %v3425
  %v4898 = vpack.c.b16 %v3434, %v3430
  %v4899 = vpack.c.b16 %v3435, %v3431
  %v4900 = vpack.c.b16 %v3436, %v3432
  %v4901 = vpack.c.b16 %v3437, %v3433
  %v4902 = vpack.c.b16 %v3442, %v3438
  %v4903 = vpack.c.b16 %v3443, %v3439
  %v4904 = vpack.c.b16 %v3444, %v3440
  %v4905 = vpack.c.b16 %v3445, %v3441
  %v4906 = vpack.c.b16 %v3450, %v3446
  %v4907 = vpack.c.b16 %v3451, %v3447
  %v4908 = vpack.c.b16 %v3452, %v3448
  %v4909 = vpack.c.b16 %v3453, %v3449
  %v4910 = vpack.c.b16 %v3458, %v3454
  %v4911 = vpack.c.b16 %v3459, %v3455
  %v4912 = vpack.c.b16 %v3460, %v3456
  %v4913 = vpack.c.b16 %v3461, %v3457
  %v4914 = vpack.c.b16 %v3466, %v3462
  %v4915 = vpack.c.b16 %v3467, %v3463
  %v4916 = vpack.c.b16 %v3468, %v3464
  %v4917 = vpack.c.b16 %v3469, %v3465
  %v4918 = vpack.c.b16 %v3474, %v3470
  %v4919 = vpack.c.b16 %v3475, %v3471
  %v4920 = vpack.c.b16 %v3476, %v3472
  %v4921 = vpack.c.b16 %v3477, %v3473
  %v4922 = vpack.c.b16 %v3482, %v3478
  %v4923 = vpack.c.b16 %v3483, %v3479
  %v4924 = vpack.c.b16 %v3484, %v3480
  %v4925 = vpack.c.b16 %v3485, %v3481
  %v4926 = vpack.c.b16 %v3490, %v3486
  %v4927 = vpack.c.b16 %v3491, %v3487
  %v4928 = vpack.c.b16 %v3492, %v3488
  %v4929 = vpack.c.b16 %v3493, %v3489
  %v4930 = vpack.c.b16 %v3498, %v3494
  %v4931 = vpack.c.b16 %v3499, %v3495
  %v4932 = vpack.c.b16 %v3500, %v3496
  %v4933 = vpack.c.b16 %v3501, %v3497
  %v4934 = vpack.c.b16 %v3506, %v3502
  %v4935 = vpack.c.b16 %v3507, %v3503
  %v4936 = vpack.c.b16 %v3508, %v3504
  %v4937 = vpack.c.b16 %v3509, %v3505
  %v4938 = vpack.c.b16 %v3514, %v3510
  %v4939 = vpack.c.b16 %v3515, %v3511
  %v4940 = vpack.c.b16 %v3516, %v3512
  %v4941 = vpack.c.b16 %v3517, %v3513
  %v4942 = vpack.c.b16 %v3522, %v3518
  %v4943 = vpack.c.b16 %v3523, %v3519
  %v4944 = vpack.c.b16 %v3524, %v3520
  %v4945 = vpack.c.b16 %v3525, %v3521
  %v4946 = vpack.c.b16 %v3530, %v3526
  %v4947 = vpack.c.b16 %v3531, %v3527
  %v4948 = vpack.c.b16 %v3532, %v3528
  %v4949 = vpack.c.b16 %v3533, %v3529
  %v4950 = vpack.c.b16 %v3538, %v3534
  %v4951 = vpack.c.b16 %v3539, %v3535
  %v4952 = vpack.c.b16 %v3540, %v3536
  %v4953 = vpack.c.b16 %v3541, %v3537
  %v4954 = vpack.c.b16 %v3546, %v3542
  %v4955 = vpack.c.b16 %v3547, %v3543
  %v4956 = vpack.c.b16 %v3548, %v3544
  %v4957 = vpack.c.b16 %v3549, %v3545
  %v4958 = vpack.c.b16 %v3554, %v3550
  %v4959 = vpack.c.b16 %v3555, %v3551
  %v4960 = vpack.c.b16 %v3556, %v3552
  %v4961 = vpack.c.b16 %v3557, %v3553
  %v4962 = vpack.c.b16 %v3562, %v3558
  %v4963 = vpack.c.b16 %v3563, %v3559
  %v4964 = vpack.c.b16 %v3564, %v3560
  %v4965 = vpack.c.b16 %v3565, %v3561
  %v4966 = vpack.c.b16 %v3570, %v3566
  %v4967 = vpack.c.b16 %v3571, %v3567
  %v4968 = vpack.c.b16 %v3572, %v3568
  %v4969 = vpack.c.b16 %v3573, %v3569
  %v4970 = vpack.c.b16 %v3578, %v3574
  %v4971 = vpack.c.b16 %v3579, %v3575
  %v4972 = vpack.c.b16 %v3580, %v3576
  %v4973 = vpack.c.b16 %v3581, %v3577
  %v4974 = vpack.c.b16 %v3586, %v3582
  %v4975 = vpack.c.b16 %v3587, %v3583
  %v4976 = vpack.c.b16 %v3588, %v3584
  %v4977 = vpack.c.b16 %v3589, %v3585
  %v4978 = vpack.c.b16 %v3594, %v3590
  %v4979 = vpack.c.b16 %v3595, %v3591
  %v4980 = vpack.c.b16 %v3596, %v3592
  %v4981 = vpack.c.b16 %v3597, %v3593
  %v4982 = vpack.c.b16 %v3602, %v3598
  %v4983 = vpack.c.b16 %v3603, %v3599
  %v4984 = vpack.c.b16 %v3604, %v3600
  %v4985 = vpack.c.b16 %v3605, %v3601
  %v4986 = vpack.c.b16 %v3610, %v3606
  %v4987 = vpack.c.b16 %v3611, %v3607
  %v4988 = vpack.c.b16 %v3612, %v3608
  %v4989 = vpack.c.b16 %v3613, %v3609
  %v4990 = vpack.c.b16 %v3618, %v3614
  %v4991 = vpack.c.b16 %v3619, %v3615
  %v4992 = vpack.c.b16 %v3620, %v3616
  %v4993 = vpack.c.b16 %v3621, %v3617
  %v4994 = vpack.c.b16 %v3626, %v3622
  %v4995 = vpack.c.b16 %v3627, %v3623
  %v4996 = vpack.c.b16 %v3628, %v3624
  %v4997 = vpack.c.b16 %v3629, %v3625
  %v4998 = vpack.c.b16 %v3634, %v3630
  %v4999 = vpack.c.b16 %v3635, %v3631
  %v5000 = vpack.c.b16 %v3636, %v3632
  %v5001 = vpack.c.b16 %v3637, %v3633
  %v5002 = vpack.c.b16 %v3642, %v3638
  %v5003 = vpack.c.b16 %v3643, %v3639
  %v5004 = vpack.c.b16 %v3644, %v3640
  %v5005 = vpack.c.b16 %v3645, %v3641
  %v5006 = vpack.c.b16 %v3650, %v3646
  %v5007 = vpack.c.b16 %v3651, %v3647
  %v5008 = vpack.c.b16 %v3652, %v3648
  %v5009 = vpack.c.b16 %v3653, %v3649
  %v5010 = vpack.c.b16 %v3658, %v3654
  %v5011 = vpack.c.b16 %v3659, %v3655
  %v5012 = vpack.c.b16 %v3660, %v3656
  %v5013 = vpack.c.b16 %v3661, %v3657
  %v5014 = vpack.c.b16 %v3666, %v3662
  %v5015 = vpack.c.b16 %v3667, %v3663
  %v5016 = vpack.c.b16 %v3668, %v3664
  %v5017 = vpack.c.b16 %v3669, %v3665
  %v5018 = vpack.c.b16 %v3674, %v3670
  %v5019 = vpack.c.b16 %v3675, %v3671
  %v5020 = vpack.c.b16 %v3676, %v3672
  %v5021 = vpack.c.b16 %v3677, %v3673
  %v5022 = vpack.c.b16 %v3682, %v3678
  %v5023 = vpack.c.b16 %v3683, %v3679
  %v5024 = vpack.c.b16 %v3684, %v3680
  %v5025 = vpack.c.b16 %v3685, %v3681
  %v5026 = vpack.c.b16 %v3690, %v3686
  %v5027 = vpack.c.b16 %v3691, %v3687
  %v5028 = vpack.c.b16 %v3692, %v3688
  %v5029 = vpack.c.b16 %v3693, %v3689
  %v5030 = vpack.c.b16 %v3698, %v3694
  %v5031 = vpack.c.b16 %v3699, %v3695
  %v5032 = vpack.c.b16 %v3700, %v3696
  %v5033 = vpack.c.b16 %v3701, %v3697
  %v5034 = vpack.c.b16 %v3706, %v3702
  %v5035 = vpack.c.b16 %v3707, %v3703
  %v5036 = vpack.c.b16 %v3708, %v3704
  %v5037 = vpack.c.b16 %v3709, %v3705
  %v5038 = vpack.c.b16 %v3714, %v3710
  %v5039 = vpack.c.b16 %v3715, %v3711
  %v5040 = vpack.c.b16 %v3716, %v3712
  %v5041 = vpack.c.b16 %v3717, %v3713
  %v5042 = vpack.c.b16 %v3722, %v3718
  %v5043 = vpack.c.b16 %v3723, %v3719
  %v5044 = vpack.c.b16 %v3724, %v3720
  %v5045 = vpack.c.b16 %v3725, %v3721
  %v5046 = vpack.c.b16 %v3730, %v3726
  %v5047 = vpack.c.b16 %v3731, %v3727
  %v5048 = vpack.c.b16 %v3732, %v3728
  %v5049 = vpack.c.b16 %v3733, %v3729
  %v5050 = vpack.c.b16 %v3738, %v3734
  %v5051 = vpack.c.b16 %v3739, %v3735
  %v5052 = vpack.c.b16 %v3740, %v3736
  %v5053 = vpack.c.b16 %v3741, %v3737
  %v5054 = vpack.c.b16 %v3746, %v3742
  %v5055 = vpack.c.b16 %v3747, %v3743
  %v5056 = vpack.c.b16 %v3748, %v3744
  %v5057 = vpack.c.b16 %v3749, %v3745
  %v5058 = vpack.c.b16 %v3754, %v3750
  %v5059 = vpack.c.b16 %v3755, %v3751
  %v5060 = vpack.c.b16 %v3756, %v3752
  %v5061 = vpack.c.b16 %v3757, %v3753
  %v5062 = vpack.c.b16 %v3762, %v3758
  %v5063 = vpack.c.b16 %v3763, %v3759
  %v5064 = vpack.c.b16 %v3764, %v3760
  %v5065 = vpack.c.b16 %v3765, %v3761
  %v5066 = vpack.c.b16 %v3770, %v3766
  %v5067 = vpack.c.b16 %v3771, %v3767
  %v5068 = vpack.c.b16 %v3772, %v3768
  %v5069 = vpack.c.b16 %v3773, %v3769
  %v5070 = vpack.c.b16 %v3778, %v3774
  %v5071 = vpack.c.b16 %v3779, %v3775
  %v5072 = vpack.c.b16 %v3780, %v3776
  %v5073 = vpack.c.b16 %v3781, %v3777
  %v5074 = vpack.c.b16 %v3786, %v3782
  %v5075 = vpack.c.b16 %v3787, %v3783
  %v5076 = vpack.c.b16 %v3788, %v3784
  %v5077 = vpack.c.b16 %v3789, %v3785
  %v5078 = vpack.c.b16 %v3794, %v3790
  %v5079 = vpack.c.b16 %v3795, %v3791
  %v5080 = vpack.c.b16 %v3796, %v3792
  %v5081 = vpack.c.b16 %v3797, %v3793
  %v5082 = vpack.c.b16 %v3802, %v3798
  %v5083 = vpack.c.b16 %v3803, %v3799
  %v5084 = vpack.c.b16 %v3804, %v3800
  %v5085 = vpack.c.b16 %v3805, %v3801
  %v5086 = vpack.c.b16 %v3810, %v3806
  %v5087 = vpack.c.b16 %v3811, %v3807
  %v5088 = vpack.c.b16 %v3812, %v3808
  %v5089 = vpack.c.b16 %v3813, %v3809
  %v5090 = vpack.c.b16 %v3818, %v3814
  %v5091 = vpack.c.b16 %v3819, %v3815
  %v5092 = vpack.c.b16 %v3820, %v3816
  %v5093 = vpack.c.b16 %v3821, %v3817
  %v5094 = vpack.c.b16 %v3826, %v3822
  %v5095 = vpack.c.b16 %v3827, %v3823
  %v5096 = vpack.c.b16 %v3828, %v3824
  %v5097 = vpack.c.b16 %v3829, %v3825
  %v5098 = vpack.c.b16 %v3834, %v3830
  %v5099 = vpack.c.b16 %v3835, %v3831
  %v5100 = vpack.c.b16 %v3836, %v3832
  %v5101 = vpack.c.b16 %v3837, %v3833
  %v5102 = vpack.c.b16 %v3842, %v3838
  %v5103 = vpack.c.b16 %v3843, %v3839
  %v5104 = vpack.c.b16 %v3844, %v3840
  %v5105 = vpack.c.b16 %v3845, %v3841
  %v5106 = vpack.c.b16 %v3850, %v3846
  %v5107 = vpack.c.b16 %v3851, %v3847
  %v5108 = vpack.c.b16 %v3852, %v3848
  %v5109 = vpack.c.b16 %v3853, %v3849
  %v5110 = vpack.c.b16 %v3858, %v3854
  %v5111 = vpack.c.b16 %v3859, %v3855
  %v5112 = vpack.c.b16 %v3860, %v3856
  %v5113 = vpack.c.b16 %v3861, %v3857
  %v5114 = vpack.c.b16 %v3866, %v3862
  %v5115 = vpack.c.b16 %v3867, %v3863
  %v5116 = vpack.c.b16 %v3868, %v3864
  %v5117 = vpack.c.b16 %v3869, %v3865
  %v5118 = vpack.c.b16 %v3874, %v3870
  %v5119 = vpack.c.b16 %v3875, %v3871
  %v5120 = vpack.c.b16 %v3876, %v3872
  %v5121 = vpack.c.b16 %v3877, %v3873
  %v5122 = vpack.c.b16 %v3882, %v3878
  %v5123 = vpack.c.b16 %v3883, %v3879
  %v5124 = vpack.c.b16 %v3884, %v3880
  %v5125 = vpack.c.b16 %v3885, %v3881
  %v5126 = vpack.c.b16 %v3890, %v3886
  %v5127 = vpack.c.b16 %v3891, %v3887
  %v5128 = vpack.c.b16 %v3892, %v3888
  %v5129 = vpack.c.b16 %v3893, %v3889
  %v5130 = vpack.c.b16 %v3898, %v3894
  %v5131 = vpack.c.b16 %v3899, %v3895
  %v5132 = vpack.c.b16 %v3900, %v3896
  %v5133 = vpack.c.b16 %v3901, %v3897
  %v5134 = vpack.c.b16 %v3906, %v3902
  %v5135 = vpack.c.b16 %v3907, %v3903
  %v5136 = vpack.c.b16 %v3908, %v3904
  %v5137 = vpack.c.b16 %v3909, %v3905
  %v5138 = vpack.c.b16 %v3914, %v3910
  %v5139 = vpack.c.b16 %v3915, %v3911
  %v5140 = vpack.c.b16 %v3916, %v3912
  %v5141 = vpack.c.b16 %v3917, %v3913
  %v5142 = vpack.c.b16 %v3922, %v3918
  %v5143 = vpack.c.b16 %v3923, %v3919
  %v5144 = vpack.c.b16 %v3924, %v3920
  %v5145 = vpack.c.b16 %v3925, %v3921
  %v5146 = vpack.c.b16 %v3930, %v3926
  %v5147 = vpack.c.b16 %v3931, %v3927
  %v5148 = vpack.c.b16 %v3932, %v3928
  %v5149 = vpack.c.b16 %v3933, %v3929
  %v5150 = vpack.c.b16 %v3938, %v3934
  %v5151 = vpack.c.b16 %v3939, %v3935
  %v5152 = vpack.c.b16 %v3940, %v3936
  %v5153 = vpack.c.b16 %v3941, %v3937
  %v5154 = vpack.c.b16 %v3946, %v3942
  %v5155 = vpack.c.b16 %v3947, %v3943
  %v5156 = vpack.c.b16 %v3948, %v3944
  %v5157 = vpack.c.b16 %v3949, %v3945
  %v5158 = vpack.c.b16 %v3954, %v3950
  %v5159 = vpack.c.b16 %v3955, %v3951
  %v5160 = vpack.c.b16 %v3956, %v3952
  %v5161 = vpack.c.b16 %v3957, %v3953
  %v5162 = vpack.c.b16 %v3962, %v3958
  %v5163 = vpack.c.b16 %v3963, %v3959
  %v5164 = vpack.c.b16 %v3964, %v3960
  %v5165 = vpack.c.b16 %v3965, %v3961
  %v5166 = vpack.c.b16 %v3970, %v3966
  %v5167 = vpack.c.b16 %v3971, %v3967
  %v5168 = vpack.c.b16 %v3972, %v3968
  %v5169 = vpack.c.b16 %v3973, %v3969
  %v5170 = vpack.c.b16 %v3978, %v3974
  %v5171 = vpack.c.b16 %v3979, %v3975
  %v5172 = vpack.c.b16 %v3980, %v3976
  %v5173 = vpack.c.b16 %v3981, %v3977
  %v5174 = vpack.c.b16 %v3986, %v3982
  %v5175 = vpack.c.b16 %v3987, %v3983
  %v5176 = vpack.c.b16 %v3988, %v3984
  %v5177 = vpack.c.b16 %v3989, %v3985
  %v5178 = vpack.c.b16 %v3994, %v3990
  %v5179 = vpack.c.b16 %v3995, %v3991
  %v5180 = vpack.c.b16 %v3996, %v3992
  %v5181 = vpack.c.b16 %v3997, %v3993
  %v5182 = vpack.c.b16 %v4002, %v3998
  %v5183 = vpack.c.b16 %v4003, %v3999
  %v5184 = vpack.c.b16 %v4004, %v4000
  %v5185 = vpack.c.b16 %v4005, %v4001
  %v5186 = vpack.c.b16 %v4010, %v4006
  %v5187 = vpack.c.b16 %v4011, %v4007
  %v5188 = vpack.c.b16 %v4012, %v4008
  %v5189 = vpack.c.b16 %v4013, %v4009
  %v5190 = vpack.c.b16 %v4018, %v4014
  %v5191 = vpack.c.b16 %v4019, %v4015
  %v5192 = vpack.c.b16 %v4020, %v4016
  %v5193 = vpack.c.b16 %v4021, %v4017
  %v5194 = vpack.c.b16 %v4026, %v4022
  %v5195 = vpack.c.b16 %v4027, %v4023
  %v5196 = vpack.c.b16 %v4028, %v4024
  %v5197 = vpack.c.b16 %v4029, %v4025
  %v5198 = vpack.c.b16 %v4034, %v4030
  %v5199 = vpack.c.b16 %v4035, %v4031
  %v5200 = vpack.c.b16 %v4036, %v4032
  %v5201 = vpack.c.b16 %v4037, %v4033
  %v5202 = vpack.c.b16 %v4042, %v4038
  %v5203 = vpack.c.b16 %v4043, %v4039
  %v5204 = vpack.c.b16 %v4044, %v4040
  %v5205 = vpack.c.b16 %v4045, %v4041
  %v5206 = vpack.c.b16 %v4050, %v4046
  %v5207 = vpack.c.b16 %v4051, %v4047
  %v5208 = vpack.c.b16 %v4052, %v4048
  %v5209 = vpack.c.b16 %v4053, %v4049
  %v5210 = vpack.c.b16 %v4058, %v4054
  %v5211 = vpack.c.b16 %v4059, %v4055
  %v5212 = vpack.c.b16 %v4060, %v4056
  %v5213 = vpack.c.b16 %v4061, %v4057
  %v5214 = vpack.c.b16 %v4066, %v4062
  %v5215 = vpack.c.b16 %v4067, %v4063
  %v5216 = vpack.c.b16 %v4068, %v4064
  %v5217 = vpack.c.b16 %v4069, %v4065
  %v5218 = vpack.c.b16 %v4074, %v4070
  %v5219 = vpack.c.b16 %v4075, %v4071
  %v5220 = vpack.c.b16 %v4076, %v4072
  %v5221 = vpack.c.b16 %v4077, %v4073
  %v5222 = vpack.c.b16 %v4082, %v4078
  %v5223 = vpack.c.b16 %v4083, %v4079
  %v5224 = vpack.c.b16 %v4084, %v4080
  %v5225 = vpack.c.b16 %v4085, %v4081
  %v5226 = vpack.c.b16 %v4090, %v4086
  %v5227 = vpack.c.b16 %v4091, %v4087
  %v5228 = vpack.c.b16 %v4092, %v4088
  %v5229 = vpack.c.b16 %v4093, %v4089
  %v5230 = vpack.c.b16 %v4098, %v4094
  %v5231 = vpack.c.b16 %v4099, %v4095
  %v5232 = vpack.c.b16 %v4100, %v4096
  %v5233 = vpack.c.b16 %v4101, %v4097
  %v5234 = vpack.c.b16 %v4106, %v4102
  %v5235 = vpack.c.b16 %v4107, %v4103
  %v5236 = vpack.c.b16 %v4108, %v4104
  %v5237 = vpack.c.b16 %v4109, %v4105
  %v5238 = vpack.c.b16 %v4114, %v4110
  %v5239 = vpack.c.b16 %v4115, %v4111
  %v5240 = vpack.c.b16 %v4116, %v4112
  %v5241 = vpack.c.b16 %v4117, %v4113
  %v5242 = vpack.c.b16 %v4122, %v4118
  %v5243 = vpack.c.b16 %v4123, %v4119
  %v5244 = vpack.c.b16 %v4124, %v4120
  %v5245 = vpack.c.b16 %v4125, %v4121
  %v5246 = vpack.c.b16 %v4130, %v4126
  %v5247 = vpack.c.b16 %v4131, %v4127
  %v5248 = vpack.c.b16 %v4132, %v4128
  %v5249 = vpack.c.b16 %v4133, %v4129
  %v5250 = vpack.c.b16 %v4138, %v4134
  %v5251 = vpack.c.b16 %v4139, %v4135
  %v5252 = vpack.c.b16 %v4140, %v4136
  %v5253 = vpack.c.b16 %v4141, %v4137
  %v5254 = vpack.c.b16 %v4146, %v4142
  %v5255 = vpack.c.b16 %v4147, %v4143
  %v5256 = vpack.c.b16 %v4148, %v4144
  %v5257 = vpack.c.b16 %v4149, %v4145
  %v5258 = vpack.c.b16 %v4154, %v4150
  %v5259 = vpack.c.b16 %v4155, %v4151
  %v5260 = vpack.c.b16 %v4156, %v4152
  %v5261 = vpack.c.b16 %v4157, %v4153
  %v5262 = vpack.c.b16 %v4162, %v4158
  %v5263 = vpack.c.b16 %v4163, %v4159
  %v5264 = vpack.c.b16 %v4164, %v4160
  %v5265 = vpack.c.b16 %v4165, %v4161
  %v5266 = vpack.c.b16 %v4170, %v4166
  %v5267 = vpack.c.b16 %v4171, %v4167
  %v5268 = vpack.c.b16 %v4172, %v4168
  %v5269 = vpack.c.b16 %v4173, %v4169
  %v5270 = vpack.c.b16 %v4178, %v4174
  %v5271 = vpack.c.b16 %v4179, %v4175
  %v5272 = vpack.c.b16 %v4180, %v4176
  %v5273 = vpack.c.b16 %v4181, %v4177
  %v5274 = vpack.c.b16 %v4186, %v4182
  %v5275 = vpack.c.b16 %v4187, %v4183
  %v5276 = vpack.c.b16 %v4188, %v4184
  %v5277 = vpack.c.b16 %v4189, %v4185
  %v5278 = vpack.c.b16 %v4194, %v4190
  %v5279 = vpack.c.b16 %v4195, %v4191
  %v5280 = vpack.c.b16 %v4196, %v4192
  %v5281 = vpack.c.b16 %v4197, %v4193
  %v5282 = vpack.c.b16 %v4202, %v4198
  %v5283 = vpack.c.b16 %v4203, %v4199
  %v5284 = vpack.c.b16 %v4204, %v4200
  %v5285 = vpack.c.b16 %v4205, %v4201
  %v5286 = vpack.c.b16 %v4210, %v4206
  %v5287 = vpack.c.b16 %v4211, %v4207
  %v5288 = vpack.c.b16 %v4212, %v4208
  %v5289 = vpack.c.b16 %v4213, %v4209
  %v5290 = vpack.c.b16 %v4218, %v4214
  %v5291 = vpack.c.b16 %v4219, %v4215
  %v5292 = vpack.c.b16 %v4220, %v4216
  %v5293 = vpack.c.b16 %v4221, %v4217
  %v5294 = vpack.c.b16 %v4226, %v4222
  %v5295 = vpack.c.b16 %v4227, %v4223
  %v5296 = vpack.c.b16 %v4228, %v4224
  %v5297 = vpack.c.b16 %v4229, %v4225
  %v5298 = vpack.c.b16 %v4234, %v4230
  %v5299 = vpack.c.b16 %v4235, %v4231
  %v5300 = vpack.c.b16 %v4236, %v4232
  %v5301 = vpack.c.b16 %v4237, %v4233
  %v5302 = vpack.c.b16 %v4242, %v4238
  %v5303 = vpack.c.b16 %v4243, %v4239
  %v5304 = vpack.c.b16 %v4244, %v4240
  %v5305 = vpack.c.b16 %v4245, %v4241
  %v5306 = vpack.c.b16 %v4250, %v4246
  %v5307 = vpack.c.b16 %v4251, %v4247
  %v5308 = vpack.c.b16 %v4252, %v4248
  %v5309 = vpack.c.b16 %v4253, %v4249
  %v5310 = vpack.c.b16 %v4258, %v4254
  %v5311 = vpack.c.b16 %v4259, %v4255
  %v5312 = vpack.c.b16 %v4260, %v4256
  %v5313 = vpack.c.b16 %v4261, %v4257
  %v5314 = vpack.c.b16 %v4266, %v4262
  %v5315 = vpack.c.b16 %v4267, %v4263
  %v5316 = vpack.c.b16 %v4268, %v4264
  %v5317 = vpack.c.b16 %v4269, %v4265
  %v5318 = vpack.c.b16 %v4274, %v4270
  %v5319 = vpack.c.b16 %v4275, %v4271
  %v5320 = vpack.c.b16 %v4276, %v4272
  %v5321 = vpack.c.b16 %v4277, %v4273
  %v5322 = vpack.c.b16 %v4282, %v4278
  %v5323 = vpack.c.b16 %v4283, %v4279
  %v5324 = vpack.c.b16 %v4284, %v4280
  %v5325 = vpack.c.b16 %v4285, %v4281
  %v5326 = vpack.c.b16 %v4290, %v4286
  %v5327 = vpack.c.b16 %v4291, %v4287
  %v5328 = vpack.c.b16 %v4292, %v4288
  %v5329 = vpack.c.b16 %v4293, %v4289
  %v5330 = vpack.c.b16 %v4298, %v4294
  %v5331 = vpack.c.b16 %v4299, %v4295
  %v5332 = vpack.c.b16 %v4300, %v4296
  %v5333 = vpack.c.b16 %v4301, %v4297
  %v5334 = vpack.c.b16 %v4306, %v4302
  %v5335 = vpack.c.b16 %v4307, %v4303
  %v5336 = vpack.c.b16 %v4308, %v4304
  %v5337 = vpack.c.b16 %v4309, %v4305
  %v5338 = vpack.c.b16 %v4314, %v4310
  %v5339 = vpack.c.b16 %v4315, %v4311
  %v5340 = vpack.c.b16 %v4316, %v4312
  %v5341 = vpack.c.b16 %v4317, %v4313
  %6366 = vmatpush.bf16.msra.mxu0 %v4346
  %6367 = vmatpush.bf16.msra.mxu0 %v4342
  %6368 = vmatpush.bf16.msra.mxu0 %v4338
  %6369 = vmatpush.bf16.msra.mxu0 %v4334
  %6370 = vmatpush.bf16.msra.mxu0 %v4330
  %6371 = vmatpush.bf16.msra.mxu0 %v4326
  %6372 = vmatpush.bf16.msra.mxu0 %v4322
  %6373 = vmatpush.bf16.msra.mxu0 %v4318
  %6374 = vmatmul.bf16.gmra.mxu0 %v1182
  %v6375 = vpop.f32.mrf.mxu0
  %v6376 = vadd.f32 %v1078, %v6375
  %v6377 = vpop.f32.mrf.mxu0
  %v6378 = vadd.f32 %v1078, %v6377
  %6379 = vdwg.mxu0
  %6380 = vmatpush.bf16.msra.mxu0 %v4378
  %6381 = vmatpush.bf16.msra.mxu0 %v4374
  %6382 = vmatpush.bf16.msra.mxu0 %v4370
  %6383 = vmatpush.bf16.msra.mxu0 %v4366
  %6384 = vmatpush.bf16.msra.mxu0 %v4362
  %6385 = vmatpush.bf16.msra.mxu0 %v4358
  %6386 = vmatpush.bf16.msra.mxu0 %v4354
  %6387 = vmatpush.bf16.msra.mxu0 %v4350
  %6388 = vmatmul.bf16.gmra.mxu0 %v1183
  %v6389 = vpop.f32.mrf.mxu0
  %v6390 = vadd.f32 %v6376, %v6389
  %v6391 = vpop.f32.mrf.mxu0
  %v6392 = vadd.f32 %v6378, %v6391
  %6393 = vdwg.mxu0
  %6394 = vmatpush.bf16.msra.mxu0 %v4410
  %6395 = vmatpush.bf16.msra.mxu0 %v4406
  %6396 = vmatpush.bf16.msra.mxu0 %v4402
  %6397 = vmatpush.bf16.msra.mxu0 %v4398
  %6398 = vmatpush.bf16.msra.mxu0 %v4394
  %6399 = vmatpush.bf16.msra.mxu0 %v4390
  %6400 = vmatpush.bf16.msra.mxu0 %v4386
  %6401 = vmatpush.bf16.msra.mxu0 %v4382
  %6402 = vmatmul.bf16.gmra.mxu0 %v1184
  %v6403 = vpop.f32.mrf.mxu0
  %v6404 = vadd.f32 %v6390, %v6403
  %v6405 = vpop.f32.mrf.mxu0
  %v6406 = vadd.f32 %v6392, %v6405
  %6407 = vdwg.mxu0
  %6408 = vmatpush.bf16.msra.mxu0 %v4442
  %6409 = vmatpush.bf16.msra.mxu0 %v4438
  %6410 = vmatpush.bf16.msra.mxu0 %v4434
  %6411 = vmatpush.bf16.msra.mxu0 %v4430
  %6412 = vmatpush.bf16.msra.mxu0 %v4426
  %6413 = vmatpush.bf16.msra.mxu0 %v4422
  %6414 = vmatpush.bf16.msra.mxu0 %v4418
  %6415 = vmatpush.bf16.msra.mxu0 %v4414
  %6416 = vmatmul.bf16.gmra.mxu0 %v1185
  %v6417 = vpop.f32.mrf.mxu0
  %v6418 = vadd.f32 %v6404, %v6417
  %v6419 = vpop.f32.mrf.mxu0
  %v6420 = vadd.f32 %v6406, %v6419
  %6421 = vdwg.mxu0
  %6422 = vmatpush.bf16.msra.mxu0 %v4474
  %6423 = vmatpush.bf16.msra.mxu0 %v4470
  %6424 = vmatpush.bf16.msra.mxu0 %v4466
  %6425 = vmatpush.bf16.msra.mxu0 %v4462
  %6426 = vmatpush.bf16.msra.mxu0 %v4458
  %6427 = vmatpush.bf16.msra.mxu0 %v4454
  %6428 = vmatpush.bf16.msra.mxu0 %v4450
  %6429 = vmatpush.bf16.msra.mxu0 %v4446
  %6430 = vmatmul.bf16.gmra.mxu0 %v1186
  %v6431 = vpop.f32.mrf.mxu0
  %v6432 = vadd.f32 %v6418, %v6431
  %v6433 = vpop.f32.mrf.mxu0
  %v6434 = vadd.f32 %v6420, %v6433
  %6435 = vdwg.mxu0
  %6436 = vmatpush.bf16.msra.mxu0 %v4506
  %6437 = vmatpush.bf16.msra.mxu0 %v4502
  %6438 = vmatpush.bf16.msra.mxu0 %v4498
  %6439 = vmatpush.bf16.msra.mxu0 %v4494
  %6440 = vmatpush.bf16.msra.mxu0 %v4490
  %6441 = vmatpush.bf16.msra.mxu0 %v4486
  %6442 = vmatpush.bf16.msra.mxu0 %v4482
  %6443 = vmatpush.bf16.msra.mxu0 %v4478
  %6444 = vmatmul.bf16.gmra.mxu0 %v1187
  %v6445 = vpop.f32.mrf.mxu0
  %v6446 = vadd.f32 %v6432, %v6445
  %v6447 = vpop.f32.mrf.mxu0
  %v6448 = vadd.f32 %v6434, %v6447
  %6449 = vdwg.mxu0
  %6450 = vmatpush.bf16.msra.mxu0 %v4538
  %6451 = vmatpush.bf16.msra.mxu0 %v4534
  %6452 = vmatpush.bf16.msra.mxu0 %v4530
  %6453 = vmatpush.bf16.msra.mxu0 %v4526
  %6454 = vmatpush.bf16.msra.mxu0 %v4522
  %6455 = vmatpush.bf16.msra.mxu0 %v4518
  %6456 = vmatpush.bf16.msra.mxu0 %v4514
  %6457 = vmatpush.bf16.msra.mxu0 %v4510
  %6458 = vmatmul.bf16.gmra.mxu0 %v1188
  %v6459 = vpop.f32.mrf.mxu0
  %v6460 = vadd.f32 %v6446, %v6459
  %v6461 = vpop.f32.mrf.mxu0
  %v6462 = vadd.f32 %v6448, %v6461
  %6463 = vdwg.mxu0
  %6464 = vmatpush.bf16.msra.mxu0 %v4570
  %6465 = vmatpush.bf16.msra.mxu0 %v4566
  %6466 = vmatpush.bf16.msra.mxu0 %v4562
  %6467 = vmatpush.bf16.msra.mxu0 %v4558
  %6468 = vmatpush.bf16.msra.mxu0 %v4554
  %6469 = vmatpush.bf16.msra.mxu0 %v4550
  %6470 = vmatpush.bf16.msra.mxu0 %v4546
  %6471 = vmatpush.bf16.msra.mxu0 %v4542
  %6472 = vmatmul.bf16.gmra.mxu0 %v1189
  %v6473 = vpop.f32.mrf.mxu0
  %v6474 = vadd.f32 %v6460, %v6473
  %v6475 = vpop.f32.mrf.mxu0
  %v6476 = vadd.f32 %v6462, %v6475
  %6477 = vdwg.mxu0
  %6478 = vmatpush.bf16.msra.mxu0 %v4602
  %6479 = vmatpush.bf16.msra.mxu0 %v4598
  %6480 = vmatpush.bf16.msra.mxu0 %v4594
  %6481 = vmatpush.bf16.msra.mxu0 %v4590
  %6482 = vmatpush.bf16.msra.mxu0 %v4586
  %6483 = vmatpush.bf16.msra.mxu0 %v4582
  %6484 = vmatpush.bf16.msra.mxu0 %v4578
  %6485 = vmatpush.bf16.msra.mxu0 %v4574
  %6486 = vmatmul.bf16.gmra.mxu0 %v1190
  %v6487 = vpop.f32.mrf.mxu0
  %v6488 = vadd.f32 %v6474, %v6487
  %v6489 = vpop.f32.mrf.mxu0
  %v6490 = vadd.f32 %v6476, %v6489
  %6491 = vdwg.mxu0
  %6492 = vmatpush.bf16.msra.mxu0 %v4634
  %6493 = vmatpush.bf16.msra.mxu0 %v4630
  %6494 = vmatpush.bf16.msra.mxu0 %v4626
  %6495 = vmatpush.bf16.msra.mxu0 %v4622
  %6496 = vmatpush.bf16.msra.mxu0 %v4618
  %6497 = vmatpush.bf16.msra.mxu0 %v4614
  %6498 = vmatpush.bf16.msra.mxu0 %v4610
  %6499 = vmatpush.bf16.msra.mxu0 %v4606
  %6500 = vmatmul.bf16.gmra.mxu0 %v1191
  %v6501 = vpop.f32.mrf.mxu0
  %v6502 = vadd.f32 %v6488, %v6501
  %v6503 = vpop.f32.mrf.mxu0
  %v6504 = vadd.f32 %v6490, %v6503
  %6505 = vdwg.mxu0
  %6506 = vmatpush.bf16.msra.mxu0 %v4666
  %6507 = vmatpush.bf16.msra.mxu0 %v4662
  %6508 = vmatpush.bf16.msra.mxu0 %v4658
  %6509 = vmatpush.bf16.msra.mxu0 %v4654
  %6510 = vmatpush.bf16.msra.mxu0 %v4650
  %6511 = vmatpush.bf16.msra.mxu0 %v4646
  %6512 = vmatpush.bf16.msra.mxu0 %v4642
  %6513 = vmatpush.bf16.msra.mxu0 %v4638
  %6514 = vmatmul.bf16.gmra.mxu0 %v1192
  %v6515 = vpop.f32.mrf.mxu0
  %v6516 = vadd.f32 %v6502, %v6515
  %v6517 = vpop.f32.mrf.mxu0
  %v6518 = vadd.f32 %v6504, %v6517
  %6519 = vdwg.mxu0
  %6520 = vmatpush.bf16.msra.mxu0 %v4698
  %6521 = vmatpush.bf16.msra.mxu0 %v4694
  %6522 = vmatpush.bf16.msra.mxu0 %v4690
  %6523 = vmatpush.bf16.msra.mxu0 %v4686
  %6524 = vmatpush.bf16.msra.mxu0 %v4682
  %6525 = vmatpush.bf16.msra.mxu0 %v4678
  %6526 = vmatpush.bf16.msra.mxu0 %v4674
  %6527 = vmatpush.bf16.msra.mxu0 %v4670
  %6528 = vmatmul.bf16.gmra.mxu0 %v1193
  %v6529 = vpop.f32.mrf.mxu0
  %v6530 = vadd.f32 %v6516, %v6529
  %v6531 = vpop.f32.mrf.mxu0
  %v6532 = vadd.f32 %v6518, %v6531
  %6533 = vdwg.mxu0
  %6534 = vmatpush.bf16.msra.mxu0 %v4730
  %6535 = vmatpush.bf16.msra.mxu0 %v4726
  %6536 = vmatpush.bf16.msra.mxu0 %v4722
  %6537 = vmatpush.bf16.msra.mxu0 %v4718
  %6538 = vmatpush.bf16.msra.mxu0 %v4714
  %6539 = vmatpush.bf16.msra.mxu0 %v4710
  %6540 = vmatpush.bf16.msra.mxu0 %v4706
  %6541 = vmatpush.bf16.msra.mxu0 %v4702
  %6542 = vmatmul.bf16.gmra.mxu0 %v1194
  %v6543 = vpop.f32.mrf.mxu0
  %v6544 = vadd.f32 %v6530, %v6543
  %v6545 = vpop.f32.mrf.mxu0
  %v6546 = vadd.f32 %v6532, %v6545
  %6547 = vdwg.mxu0
  %6548 = vmatpush.bf16.msra.mxu0 %v4762
  %6549 = vmatpush.bf16.msra.mxu0 %v4758
  %6550 = vmatpush.bf16.msra.mxu0 %v4754
  %6551 = vmatpush.bf16.msra.mxu0 %v4750
  %6552 = vmatpush.bf16.msra.mxu0 %v4746
  %6553 = vmatpush.bf16.msra.mxu0 %v4742
  %6554 = vmatpush.bf16.msra.mxu0 %v4738
  %6555 = vmatpush.bf16.msra.mxu0 %v4734
  %6556 = vmatmul.bf16.gmra.mxu0 %v1195
  %v6557 = vpop.f32.mrf.mxu0
  %v6558 = vadd.f32 %v6544, %v6557
  %v6559 = vpop.f32.mrf.mxu0
  %v6560 = vadd.f32 %v6546, %v6559
  %6561 = vdwg.mxu0
  %6562 = vmatpush.bf16.msra.mxu0 %v4794
  %6563 = vmatpush.bf16.msra.mxu0 %v4790
  %6564 = vmatpush.bf16.msra.mxu0 %v4786
  %6565 = vmatpush.bf16.msra.mxu0 %v4782
  %6566 = vmatpush.bf16.msra.mxu0 %v4778
  %6567 = vmatpush.bf16.msra.mxu0 %v4774
  %6568 = vmatpush.bf16.msra.mxu0 %v4770
  %6569 = vmatpush.bf16.msra.mxu0 %v4766
  %6570 = vmatmul.bf16.gmra.mxu0 %v1196
  %v6571 = vpop.f32.mrf.mxu0
  %v6572 = vadd.f32 %v6558, %v6571
  %v6573 = vpop.f32.mrf.mxu0
  %v6574 = vadd.f32 %v6560, %v6573
  %6575 = vdwg.mxu0
  %6576 = vmatpush.bf16.msra.mxu0 %v4826
  %6577 = vmatpush.bf16.msra.mxu0 %v4822
  %6578 = vmatpush.bf16.msra.mxu0 %v4818
  %6579 = vmatpush.bf16.msra.mxu0 %v4814
  %6580 = vmatpush.bf16.msra.mxu0 %v4810
  %6581 = vmatpush.bf16.msra.mxu0 %v4806
  %6582 = vmatpush.bf16.msra.mxu0 %v4802
  %6583 = vmatpush.bf16.msra.mxu0 %v4798
  %6584 = vmatmul.bf16.gmra.mxu0 %v1197
  %v6585 = vpop.f32.mrf.mxu0
  %v6586 = vadd.f32 %v6572, %v6585
  %v6587 = vpop.f32.mrf.mxu0
  %v6588 = vadd.f32 %v6574, %v6587
  %6589 = vdwg.mxu0
  %6590 = vmatpush.bf16.msra.mxu0 %v4858
  %6591 = vmatpush.bf16.msra.mxu0 %v4854
  %6592 = vmatpush.bf16.msra.mxu0 %v4850
  %6593 = vmatpush.bf16.msra.mxu0 %v4846
  %6594 = vmatpush.bf16.msra.mxu0 %v4842
  %6595 = vmatpush.bf16.msra.mxu0 %v4838
  %6596 = vmatpush.bf16.msra.mxu0 %v4834
  %6597 = vmatpush.bf16.msra.mxu0 %v4830
  %6598 = vmatmul.bf16.gmra.mxu0 %v1198
  %v6599 = vpop.f32.mrf.mxu0
  %v6600 = vadd.f32 %v6586, %v6599
  %v6601 = vpop.f32.mrf.mxu0
  %v6602 = vadd.f32 %v6588, %v6601
  %6603 = vdwg.mxu0
  %6604 = vmatpush.bf16.msra.mxu0 %v4890
  %6605 = vmatpush.bf16.msra.mxu0 %v4886
  %6606 = vmatpush.bf16.msra.mxu0 %v4882
  %6607 = vmatpush.bf16.msra.mxu0 %v4878
  %6608 = vmatpush.bf16.msra.mxu0 %v4874
  %6609 = vmatpush.bf16.msra.mxu0 %v4870
  %6610 = vmatpush.bf16.msra.mxu0 %v4866
  %6611 = vmatpush.bf16.msra.mxu0 %v4862
  %6612 = vmatmul.bf16.gmra.mxu0 %v1199
  %v6613 = vpop.f32.mrf.mxu0
  %v6614 = vadd.f32 %v6600, %v6613
  %v6615 = vpop.f32.mrf.mxu0
  %v6616 = vadd.f32 %v6602, %v6615
  %6617 = vdwg.mxu0
  %6618 = vmatpush.bf16.msra.mxu0 %v4922
  %6619 = vmatpush.bf16.msra.mxu0 %v4918
  %6620 = vmatpush.bf16.msra.mxu0 %v4914
  %6621 = vmatpush.bf16.msra.mxu0 %v4910
  %6622 = vmatpush.bf16.msra.mxu0 %v4906
  %6623 = vmatpush.bf16.msra.mxu0 %v4902
  %6624 = vmatpush.bf16.msra.mxu0 %v4898
  %6625 = vmatpush.bf16.msra.mxu0 %v4894
  %6626 = vmatmul.bf16.gmra.mxu0 %v1200
  %v6627 = vpop.f32.mrf.mxu0
  %v6628 = vadd.f32 %v6614, %v6627
  %v6629 = vpop.f32.mrf.mxu0
  %v6630 = vadd.f32 %v6616, %v6629
  %6631 = vdwg.mxu0
  %6632 = vmatpush.bf16.msra.mxu0 %v4954
  %6633 = vmatpush.bf16.msra.mxu0 %v4950
  %6634 = vmatpush.bf16.msra.mxu0 %v4946
  %6635 = vmatpush.bf16.msra.mxu0 %v4942
  %6636 = vmatpush.bf16.msra.mxu0 %v4938
  %6637 = vmatpush.bf16.msra.mxu0 %v4934
  %6638 = vmatpush.bf16.msra.mxu0 %v4930
  %6639 = vmatpush.bf16.msra.mxu0 %v4926
  %6640 = vmatmul.bf16.gmra.mxu0 %v1201
  %v6641 = vpop.f32.mrf.mxu0
  %v6642 = vadd.f32 %v6628, %v6641
  %v6643 = vpop.f32.mrf.mxu0
  %v6644 = vadd.f32 %v6630, %v6643
  %6645 = vdwg.mxu0
  %6646 = vmatpush.bf16.msra.mxu0 %v4986
  %6647 = vmatpush.bf16.msra.mxu0 %v4982
  %6648 = vmatpush.bf16.msra.mxu0 %v4978
  %6649 = vmatpush.bf16.msra.mxu0 %v4974
  %6650 = vmatpush.bf16.msra.mxu0 %v4970
  %6651 = vmatpush.bf16.msra.mxu0 %v4966
  %6652 = vmatpush.bf16.msra.mxu0 %v4962
  %6653 = vmatpush.bf16.msra.mxu0 %v4958
  %6654 = vmatmul.bf16.gmra.mxu0 %v1202
  %v6655 = vpop.f32.mrf.mxu0
  %v6656 = vadd.f32 %v6642, %v6655
  %v6657 = vpop.f32.mrf.mxu0
  %v6658 = vadd.f32 %v6644, %v6657
  %6659 = vdwg.mxu0
  %6660 = vmatpush.bf16.msra.mxu0 %v5018
  %6661 = vmatpush.bf16.msra.mxu0 %v5014
  %6662 = vmatpush.bf16.msra.mxu0 %v5010
  %6663 = vmatpush.bf16.msra.mxu0 %v5006
  %6664 = vmatpush.bf16.msra.mxu0 %v5002
  %6665 = vmatpush.bf16.msra.mxu0 %v4998
  %6666 = vmatpush.bf16.msra.mxu0 %v4994
  %6667 = vmatpush.bf16.msra.mxu0 %v4990
  %6668 = vmatmul.bf16.gmra.mxu0 %v1203
  %v6669 = vpop.f32.mrf.mxu0
  %v6670 = vadd.f32 %v6656, %v6669
  %v6671 = vpop.f32.mrf.mxu0
  %v6672 = vadd.f32 %v6658, %v6671
  %6673 = vdwg.mxu0
  %6674 = vmatpush.bf16.msra.mxu0 %v5050
  %6675 = vmatpush.bf16.msra.mxu0 %v5046
  %6676 = vmatpush.bf16.msra.mxu0 %v5042
  %6677 = vmatpush.bf16.msra.mxu0 %v5038
  %6678 = vmatpush.bf16.msra.mxu0 %v5034
  %6679 = vmatpush.bf16.msra.mxu0 %v5030
  %6680 = vmatpush.bf16.msra.mxu0 %v5026
  %6681 = vmatpush.bf16.msra.mxu0 %v5022
  %6682 = vmatmul.bf16.gmra.mxu0 %v1204
  %v6683 = vpop.f32.mrf.mxu0
  %v6684 = vadd.f32 %v6670, %v6683
  %v6685 = vpop.f32.mrf.mxu0
  %v6686 = vadd.f32 %v6672, %v6685
  %6687 = vdwg.mxu0
  %6688 = vmatpush.bf16.msra.mxu0 %v5082
  %6689 = vmatpush.bf16.msra.mxu0 %v5078
  %6690 = vmatpush.bf16.msra.mxu0 %v5074
  %6691 = vmatpush.bf16.msra.mxu0 %v5070
  %6692 = vmatpush.bf16.msra.mxu0 %v5066
  %6693 = vmatpush.bf16.msra.mxu0 %v5062
  %6694 = vmatpush.bf16.msra.mxu0 %v5058
  %6695 = vmatpush.bf16.msra.mxu0 %v5054
  %6696 = vmatmul.bf16.gmra.mxu0 %v1205
  %v6697 = vpop.f32.mrf.mxu0
  %v6698 = vadd.f32 %v6684, %v6697
  %v6699 = vpop.f32.mrf.mxu0
  %v6700 = vadd.f32 %v6686, %v6699
  %6701 = vdwg.mxu0
  %6702 = vmatpush.bf16.msra.mxu0 %v5114
  %6703 = vmatpush.bf16.msra.mxu0 %v5110
  %6704 = vmatpush.bf16.msra.mxu0 %v5106
  %6705 = vmatpush.bf16.msra.mxu0 %v5102
  %6706 = vmatpush.bf16.msra.mxu0 %v5098
  %6707 = vmatpush.bf16.msra.mxu0 %v5094
  %6708 = vmatpush.bf16.msra.mxu0 %v5090
  %6709 = vmatpush.bf16.msra.mxu0 %v5086
  %6710 = vmatmul.bf16.gmra.mxu0 %v1206
  %v6711 = vpop.f32.mrf.mxu0
  %v6712 = vadd.f32 %v6698, %v6711
  %v6713 = vpop.f32.mrf.mxu0
  %v6714 = vadd.f32 %v6700, %v6713
  %6715 = vdwg.mxu0
  %6716 = vmatpush.bf16.msra.mxu0 %v5146
  %6717 = vmatpush.bf16.msra.mxu0 %v5142
  %6718 = vmatpush.bf16.msra.mxu0 %v5138
  %6719 = vmatpush.bf16.msra.mxu0 %v5134
  %6720 = vmatpush.bf16.msra.mxu0 %v5130
  %6721 = vmatpush.bf16.msra.mxu0 %v5126
  %6722 = vmatpush.bf16.msra.mxu0 %v5122
  %6723 = vmatpush.bf16.msra.mxu0 %v5118
  %6724 = vmatmul.bf16.gmra.mxu0 %v1207
  %v6725 = vpop.f32.mrf.mxu0
  %v6726 = vadd.f32 %v6712, %v6725
  %v6727 = vpop.f32.mrf.mxu0
  %v6728 = vadd.f32 %v6714, %v6727
  %6729 = vdwg.mxu0
  %6730 = vmatpush.bf16.msra.mxu0 %v5178
  %6731 = vmatpush.bf16.msra.mxu0 %v5174
  %6732 = vmatpush.bf16.msra.mxu0 %v5170
  %6733 = vmatpush.bf16.msra.mxu0 %v5166
  %6734 = vmatpush.bf16.msra.mxu0 %v5162
  %6735 = vmatpush.bf16.msra.mxu0 %v5158
  %6736 = vmatpush.bf16.msra.mxu0 %v5154
  %6737 = vmatpush.bf16.msra.mxu0 %v5150
  %6738 = vmatmul.bf16.gmra.mxu0 %v1208
  %v6739 = vpop.f32.mrf.mxu0
  %v6740 = vadd.f32 %v6726, %v6739
  %v6741 = vpop.f32.mrf.mxu0
  %v6742 = vadd.f32 %v6728, %v6741
  %6743 = vdwg.mxu0
  %6744 = vmatpush.bf16.msra.mxu0 %v5210
  %6745 = vmatpush.bf16.msra.mxu0 %v5206
  %6746 = vmatpush.bf16.msra.mxu0 %v5202
  %6747 = vmatpush.bf16.msra.mxu0 %v5198
  %6748 = vmatpush.bf16.msra.mxu0 %v5194
  %6749 = vmatpush.bf16.msra.mxu0 %v5190
  %6750 = vmatpush.bf16.msra.mxu0 %v5186
  %6751 = vmatpush.bf16.msra.mxu0 %v5182
  %6752 = vmatmul.bf16.gmra.mxu0 %v1209
  %v6753 = vpop.f32.mrf.mxu0
  %v6754 = vadd.f32 %v6740, %v6753
  %v6755 = vpop.f32.mrf.mxu0
  %v6756 = vadd.f32 %v6742, %v6755
  %6757 = vdwg.mxu0
  %6758 = vmatpush.bf16.msra.mxu0 %v5242
  %6759 = vmatpush.bf16.msra.mxu0 %v5238
  %6760 = vmatpush.bf16.msra.mxu0 %v5234
  %6761 = vmatpush.bf16.msra.mxu0 %v5230
  %6762 = vmatpush.bf16.msra.mxu0 %v5226
  %6763 = vmatpush.bf16.msra.mxu0 %v5222
  %6764 = vmatpush.bf16.msra.mxu0 %v5218
  %6765 = vmatpush.bf16.msra.mxu0 %v5214
  %6766 = vmatmul.bf16.gmra.mxu0 %v1210
  %v6767 = vpop.f32.mrf.mxu0
  %v6768 = vadd.f32 %v6754, %v6767
  %v6769 = vpop.f32.mrf.mxu0
  %v6770 = vadd.f32 %v6756, %v6769
  %6771 = vdwg.mxu0
  %6772 = vmatpush.bf16.msra.mxu0 %v5274
  %6773 = vmatpush.bf16.msra.mxu0 %v5270
  %6774 = vmatpush.bf16.msra.mxu0 %v5266
  %6775 = vmatpush.bf16.msra.mxu0 %v5262
  %6776 = vmatpush.bf16.msra.mxu0 %v5258
  %6777 = vmatpush.bf16.msra.mxu0 %v5254
  %6778 = vmatpush.bf16.msra.mxu0 %v5250
  %6779 = vmatpush.bf16.msra.mxu0 %v5246
  %6780 = vmatmul.bf16.gmra.mxu0 %v1211
  %v6781 = vpop.f32.mrf.mxu0
  %v6782 = vadd.f32 %v6768, %v6781
  %v6783 = vpop.f32.mrf.mxu0
  %v6784 = vadd.f32 %v6770, %v6783
  %6785 = vdwg.mxu0
  %6786 = vmatpush.bf16.msra.mxu0 %v5306
  %6787 = vmatpush.bf16.msra.mxu0 %v5302
  %6788 = vmatpush.bf16.msra.mxu0 %v5298
  %6789 = vmatpush.bf16.msra.mxu0 %v5294
  %6790 = vmatpush.bf16.msra.mxu0 %v5290
  %6791 = vmatpush.bf16.msra.mxu0 %v5286
  %6792 = vmatpush.bf16.msra.mxu0 %v5282
  %6793 = vmatpush.bf16.msra.mxu0 %v5278
  %6794 = vmatmul.bf16.gmra.mxu0 %v1212
  %v6795 = vpop.f32.mrf.mxu0
  %v6796 = vadd.f32 %v6782, %v6795
  %v6797 = vpop.f32.mrf.mxu0
  %v6798 = vadd.f32 %v6784, %v6797
  %6799 = vdwg.mxu0
  %6800 = vmatpush.bf16.msra.mxu0 %v5338
  %6801 = vmatpush.bf16.msra.mxu0 %v5334
  %6802 = vmatpush.bf16.msra.mxu0 %v5330
  %6803 = vmatpush.bf16.msra.mxu0 %v5326
  %6804 = vmatpush.bf16.msra.mxu0 %v5322
  %6805 = vmatpush.bf16.msra.mxu0 %v5318
  %6806 = vmatpush.bf16.msra.mxu0 %v5314
  %6807 = vmatpush.bf16.msra.mxu0 %v5310
  %6808 = vmatmul.bf16.gmra.mxu0 %v1213
  %v6809 = vpop.f32.mrf.mxu0
  %v6810 = vadd.f32 %v6796, %v6809
  %v6811 = vpop.f32.mrf.mxu0
  %v6812 = vadd.f32 %v6798, %v6811
  %6813 = vdwg.mxu0
  %6814 = vmatpush.bf16.msra.mxu0 %v4347
  %6815 = vmatpush.bf16.msra.mxu0 %v4343
  %6816 = vmatpush.bf16.msra.mxu0 %v4339
  %6817 = vmatpush.bf16.msra.mxu0 %v4335
  %6818 = vmatpush.bf16.msra.mxu0 %v4331
  %6819 = vmatpush.bf16.msra.mxu0 %v4327
  %6820 = vmatpush.bf16.msra.mxu0 %v4323
  %6821 = vmatpush.bf16.msra.mxu0 %v4319
  %6822 = vmatmul.bf16.gmra.mxu0 %v1182
  %v6823 = vpop.f32.mrf.mxu0
  %v6824 = vadd.f32 %v1079, %v6823
  %v6825 = vpop.f32.mrf.mxu0
  %v6826 = vadd.f32 %v1079, %v6825
  %6827 = vdwg.mxu0
  %6828 = vmatpush.bf16.msra.mxu0 %v4379
  %6829 = vmatpush.bf16.msra.mxu0 %v4375
  %6830 = vmatpush.bf16.msra.mxu0 %v4371
  %6831 = vmatpush.bf16.msra.mxu0 %v4367
  %6832 = vmatpush.bf16.msra.mxu0 %v4363
  %6833 = vmatpush.bf16.msra.mxu0 %v4359
  %6834 = vmatpush.bf16.msra.mxu0 %v4355
  %6835 = vmatpush.bf16.msra.mxu0 %v4351
  %6836 = vmatmul.bf16.gmra.mxu0 %v1183
  %v6837 = vpop.f32.mrf.mxu0
  %v6838 = vadd.f32 %v6824, %v6837
  %v6839 = vpop.f32.mrf.mxu0
  %v6840 = vadd.f32 %v6826, %v6839
  %6841 = vdwg.mxu0
  %6842 = vmatpush.bf16.msra.mxu0 %v4411
  %6843 = vmatpush.bf16.msra.mxu0 %v4407
  %6844 = vmatpush.bf16.msra.mxu0 %v4403
  %6845 = vmatpush.bf16.msra.mxu0 %v4399
  %6846 = vmatpush.bf16.msra.mxu0 %v4395
  %6847 = vmatpush.bf16.msra.mxu0 %v4391
  %6848 = vmatpush.bf16.msra.mxu0 %v4387
  %6849 = vmatpush.bf16.msra.mxu0 %v4383
  %6850 = vmatmul.bf16.gmra.mxu0 %v1184
  %v6851 = vpop.f32.mrf.mxu0
  %v6852 = vadd.f32 %v6838, %v6851
  %v6853 = vpop.f32.mrf.mxu0
  %v6854 = vadd.f32 %v6840, %v6853
  %6855 = vdwg.mxu0
  %6856 = vmatpush.bf16.msra.mxu0 %v4443
  %6857 = vmatpush.bf16.msra.mxu0 %v4439
  %6858 = vmatpush.bf16.msra.mxu0 %v4435
  %6859 = vmatpush.bf16.msra.mxu0 %v4431
  %6860 = vmatpush.bf16.msra.mxu0 %v4427
  %6861 = vmatpush.bf16.msra.mxu0 %v4423
  %6862 = vmatpush.bf16.msra.mxu0 %v4419
  %6863 = vmatpush.bf16.msra.mxu0 %v4415
  %6864 = vmatmul.bf16.gmra.mxu0 %v1185
  %v6865 = vpop.f32.mrf.mxu0
  %v6866 = vadd.f32 %v6852, %v6865
  %v6867 = vpop.f32.mrf.mxu0
  %v6868 = vadd.f32 %v6854, %v6867
  %6869 = vdwg.mxu0
  %6870 = vmatpush.bf16.msra.mxu0 %v4475
  %6871 = vmatpush.bf16.msra.mxu0 %v4471
  %6872 = vmatpush.bf16.msra.mxu0 %v4467
  %6873 = vmatpush.bf16.msra.mxu0 %v4463
  %6874 = vmatpush.bf16.msra.mxu0 %v4459
  %6875 = vmatpush.bf16.msra.mxu0 %v4455
  %6876 = vmatpush.bf16.msra.mxu0 %v4451
  %6877 = vmatpush.bf16.msra.mxu0 %v4447
  %6878 = vmatmul.bf16.gmra.mxu0 %v1186
  %v6879 = vpop.f32.mrf.mxu0
  %v6880 = vadd.f32 %v6866, %v6879
  %v6881 = vpop.f32.mrf.mxu0
  %v6882 = vadd.f32 %v6868, %v6881
  %6883 = vdwg.mxu0
  %6884 = vmatpush.bf16.msra.mxu0 %v4507
  %6885 = vmatpush.bf16.msra.mxu0 %v4503
  %6886 = vmatpush.bf16.msra.mxu0 %v4499
  %6887 = vmatpush.bf16.msra.mxu0 %v4495
  %6888 = vmatpush.bf16.msra.mxu0 %v4491
  %6889 = vmatpush.bf16.msra.mxu0 %v4487
  %6890 = vmatpush.bf16.msra.mxu0 %v4483
  %6891 = vmatpush.bf16.msra.mxu0 %v4479
  %6892 = vmatmul.bf16.gmra.mxu0 %v1187
  %v6893 = vpop.f32.mrf.mxu0
  %v6894 = vadd.f32 %v6880, %v6893
  %v6895 = vpop.f32.mrf.mxu0
  %v6896 = vadd.f32 %v6882, %v6895
  %6897 = vdwg.mxu0
  %6898 = vmatpush.bf16.msra.mxu0 %v4539
  %6899 = vmatpush.bf16.msra.mxu0 %v4535
  %6900 = vmatpush.bf16.msra.mxu0 %v4531
  %6901 = vmatpush.bf16.msra.mxu0 %v4527
  %6902 = vmatpush.bf16.msra.mxu0 %v4523
  %6903 = vmatpush.bf16.msra.mxu0 %v4519
  %6904 = vmatpush.bf16.msra.mxu0 %v4515
  %6905 = vmatpush.bf16.msra.mxu0 %v4511
  %6906 = vmatmul.bf16.gmra.mxu0 %v1188
  %v6907 = vpop.f32.mrf.mxu0
  %v6908 = vadd.f32 %v6894, %v6907
  %v6909 = vpop.f32.mrf.mxu0
  %v6910 = vadd.f32 %v6896, %v6909
  %6911 = vdwg.mxu0
  %6912 = vmatpush.bf16.msra.mxu0 %v4571
  %6913 = vmatpush.bf16.msra.mxu0 %v4567
  %6914 = vmatpush.bf16.msra.mxu0 %v4563
  %6915 = vmatpush.bf16.msra.mxu0 %v4559
  %6916 = vmatpush.bf16.msra.mxu0 %v4555
  %6917 = vmatpush.bf16.msra.mxu0 %v4551
  %6918 = vmatpush.bf16.msra.mxu0 %v4547
  %6919 = vmatpush.bf16.msra.mxu0 %v4543
  %6920 = vmatmul.bf16.gmra.mxu0 %v1189
  %v6921 = vpop.f32.mrf.mxu0
  %v6922 = vadd.f32 %v6908, %v6921
  %v6923 = vpop.f32.mrf.mxu0
  %v6924 = vadd.f32 %v6910, %v6923
  %6925 = vdwg.mxu0
  %6926 = vmatpush.bf16.msra.mxu0 %v4603
  %6927 = vmatpush.bf16.msra.mxu0 %v4599
  %6928 = vmatpush.bf16.msra.mxu0 %v4595
  %6929 = vmatpush.bf16.msra.mxu0 %v4591
  %6930 = vmatpush.bf16.msra.mxu0 %v4587
  %6931 = vmatpush.bf16.msra.mxu0 %v4583
  %6932 = vmatpush.bf16.msra.mxu0 %v4579
  %6933 = vmatpush.bf16.msra.mxu0 %v4575
  %6934 = vmatmul.bf16.gmra.mxu0 %v1190
  %v6935 = vpop.f32.mrf.mxu0
  %v6936 = vadd.f32 %v6922, %v6935
  %v6937 = vpop.f32.mrf.mxu0
  %v6938 = vadd.f32 %v6924, %v6937
  %6939 = vdwg.mxu0
  %6940 = vmatpush.bf16.msra.mxu0 %v4635
  %6941 = vmatpush.bf16.msra.mxu0 %v4631
  %6942 = vmatpush.bf16.msra.mxu0 %v4627
  %6943 = vmatpush.bf16.msra.mxu0 %v4623
  %6944 = vmatpush.bf16.msra.mxu0 %v4619
  %6945 = vmatpush.bf16.msra.mxu0 %v4615
  %6946 = vmatpush.bf16.msra.mxu0 %v4611
  %6947 = vmatpush.bf16.msra.mxu0 %v4607
  %6948 = vmatmul.bf16.gmra.mxu0 %v1191
  %v6949 = vpop.f32.mrf.mxu0
  %v6950 = vadd.f32 %v6936, %v6949
  %v6951 = vpop.f32.mrf.mxu0
  %v6952 = vadd.f32 %v6938, %v6951
  %6953 = vdwg.mxu0
  %6954 = vmatpush.bf16.msra.mxu0 %v4667
  %6955 = vmatpush.bf16.msra.mxu0 %v4663
  %6956 = vmatpush.bf16.msra.mxu0 %v4659
  %6957 = vmatpush.bf16.msra.mxu0 %v4655
  %6958 = vmatpush.bf16.msra.mxu0 %v4651
  %6959 = vmatpush.bf16.msra.mxu0 %v4647
  %6960 = vmatpush.bf16.msra.mxu0 %v4643
  %6961 = vmatpush.bf16.msra.mxu0 %v4639
  %6962 = vmatmul.bf16.gmra.mxu0 %v1192
  %v6963 = vpop.f32.mrf.mxu0
  %v6964 = vadd.f32 %v6950, %v6963
  %v6965 = vpop.f32.mrf.mxu0
  %v6966 = vadd.f32 %v6952, %v6965
  %6967 = vdwg.mxu0
  %6968 = vmatpush.bf16.msra.mxu0 %v4699
  %6969 = vmatpush.bf16.msra.mxu0 %v4695
  %6970 = vmatpush.bf16.msra.mxu0 %v4691
  %6971 = vmatpush.bf16.msra.mxu0 %v4687
  %6972 = vmatpush.bf16.msra.mxu0 %v4683
  %6973 = vmatpush.bf16.msra.mxu0 %v4679
  %6974 = vmatpush.bf16.msra.mxu0 %v4675
  %6975 = vmatpush.bf16.msra.mxu0 %v4671
  %6976 = vmatmul.bf16.gmra.mxu0 %v1193
  %v6977 = vpop.f32.mrf.mxu0
  %v6978 = vadd.f32 %v6964, %v6977
  %v6979 = vpop.f32.mrf.mxu0
  %v6980 = vadd.f32 %v6966, %v6979
  %6981 = vdwg.mxu0
  %6982 = vmatpush.bf16.msra.mxu0 %v4731
  %6983 = vmatpush.bf16.msra.mxu0 %v4727
  %6984 = vmatpush.bf16.msra.mxu0 %v4723
  %6985 = vmatpush.bf16.msra.mxu0 %v4719
  %6986 = vmatpush.bf16.msra.mxu0 %v4715
  %6987 = vmatpush.bf16.msra.mxu0 %v4711
  %6988 = vmatpush.bf16.msra.mxu0 %v4707
  %6989 = vmatpush.bf16.msra.mxu0 %v4703
  %6990 = vmatmul.bf16.gmra.mxu0 %v1194
  %v6991 = vpop.f32.mrf.mxu0
  %v6992 = vadd.f32 %v6978, %v6991
  %v6993 = vpop.f32.mrf.mxu0
  %v6994 = vadd.f32 %v6980, %v6993
  %6995 = vdwg.mxu0
  %6996 = vmatpush.bf16.msra.mxu0 %v4763
  %6997 = vmatpush.bf16.msra.mxu0 %v4759
  %6998 = vmatpush.bf16.msra.mxu0 %v4755
  %6999 = vmatpush.bf16.msra.mxu0 %v4751
  %7000 = vmatpush.bf16.msra.mxu0 %v4747
  %7001 = vmatpush.bf16.msra.mxu0 %v4743
  %7002 = vmatpush.bf16.msra.mxu0 %v4739
  %7003 = vmatpush.bf16.msra.mxu0 %v4735
  %7004 = vmatmul.bf16.gmra.mxu0 %v1195
  %v7005 = vpop.f32.mrf.mxu0
  %v7006 = vadd.f32 %v6992, %v7005
  %v7007 = vpop.f32.mrf.mxu0
  %v7008 = vadd.f32 %v6994, %v7007
  %7009 = vdwg.mxu0
  %7010 = vmatpush.bf16.msra.mxu0 %v4795
  %7011 = vmatpush.bf16.msra.mxu0 %v4791
  %7012 = vmatpush.bf16.msra.mxu0 %v4787
  %7013 = vmatpush.bf16.msra.mxu0 %v4783
  %7014 = vmatpush.bf16.msra.mxu0 %v4779
  %7015 = vmatpush.bf16.msra.mxu0 %v4775
  %7016 = vmatpush.bf16.msra.mxu0 %v4771
  %7017 = vmatpush.bf16.msra.mxu0 %v4767
  %7018 = vmatmul.bf16.gmra.mxu0 %v1196
  %v7019 = vpop.f32.mrf.mxu0
  %v7020 = vadd.f32 %v7006, %v7019
  %v7021 = vpop.f32.mrf.mxu0
  %v7022 = vadd.f32 %v7008, %v7021
  %7023 = vdwg.mxu0
  %7024 = vmatpush.bf16.msra.mxu0 %v4827
  %7025 = vmatpush.bf16.msra.mxu0 %v4823
  %7026 = vmatpush.bf16.msra.mxu0 %v4819
  %7027 = vmatpush.bf16.msra.mxu0 %v4815
  %7028 = vmatpush.bf16.msra.mxu0 %v4811
  %7029 = vmatpush.bf16.msra.mxu0 %v4807
  %7030 = vmatpush.bf16.msra.mxu0 %v4803
  %7031 = vmatpush.bf16.msra.mxu0 %v4799
  %7032 = vmatmul.bf16.gmra.mxu0 %v1197
  %v7033 = vpop.f32.mrf.mxu0
  %v7034 = vadd.f32 %v7020, %v7033
  %v7035 = vpop.f32.mrf.mxu0
  %v7036 = vadd.f32 %v7022, %v7035
  %7037 = vdwg.mxu0
  %7038 = vmatpush.bf16.msra.mxu0 %v4859
  %7039 = vmatpush.bf16.msra.mxu0 %v4855
  %7040 = vmatpush.bf16.msra.mxu0 %v4851
  %7041 = vmatpush.bf16.msra.mxu0 %v4847
  %7042 = vmatpush.bf16.msra.mxu0 %v4843
  %7043 = vmatpush.bf16.msra.mxu0 %v4839
  %7044 = vmatpush.bf16.msra.mxu0 %v4835
  %7045 = vmatpush.bf16.msra.mxu0 %v4831
  %7046 = vmatmul.bf16.gmra.mxu0 %v1198
  %v7047 = vpop.f32.mrf.mxu0
  %v7048 = vadd.f32 %v7034, %v7047
  %v7049 = vpop.f32.mrf.mxu0
  %v7050 = vadd.f32 %v7036, %v7049
  %7051 = vdwg.mxu0
  %7052 = vmatpush.bf16.msra.mxu0 %v4891
  %7053 = vmatpush.bf16.msra.mxu0 %v4887
  %7054 = vmatpush.bf16.msra.mxu0 %v4883
  %7055 = vmatpush.bf16.msra.mxu0 %v4879
  %7056 = vmatpush.bf16.msra.mxu0 %v4875
  %7057 = vmatpush.bf16.msra.mxu0 %v4871
  %7058 = vmatpush.bf16.msra.mxu0 %v4867
  %7059 = vmatpush.bf16.msra.mxu0 %v4863
  %7060 = vmatmul.bf16.gmra.mxu0 %v1199
  %v7061 = vpop.f32.mrf.mxu0
  %v7062 = vadd.f32 %v7048, %v7061
  %v7063 = vpop.f32.mrf.mxu0
  %v7064 = vadd.f32 %v7050, %v7063
  %7065 = vdwg.mxu0
  %7066 = vmatpush.bf16.msra.mxu0 %v4923
  %7067 = vmatpush.bf16.msra.mxu0 %v4919
  %7068 = vmatpush.bf16.msra.mxu0 %v4915
  %7069 = vmatpush.bf16.msra.mxu0 %v4911
  %7070 = vmatpush.bf16.msra.mxu0 %v4907
  %7071 = vmatpush.bf16.msra.mxu0 %v4903
  %7072 = vmatpush.bf16.msra.mxu0 %v4899
  %7073 = vmatpush.bf16.msra.mxu0 %v4895
  %7074 = vmatmul.bf16.gmra.mxu0 %v1200
  %v7075 = vpop.f32.mrf.mxu0
  %v7076 = vadd.f32 %v7062, %v7075
  %v7077 = vpop.f32.mrf.mxu0
  %v7078 = vadd.f32 %v7064, %v7077
  %7079 = vdwg.mxu0
  %7080 = vmatpush.bf16.msra.mxu0 %v4955
  %7081 = vmatpush.bf16.msra.mxu0 %v4951
  %7082 = vmatpush.bf16.msra.mxu0 %v4947
  %7083 = vmatpush.bf16.msra.mxu0 %v4943
  %7084 = vmatpush.bf16.msra.mxu0 %v4939
  %7085 = vmatpush.bf16.msra.mxu0 %v4935
  %7086 = vmatpush.bf16.msra.mxu0 %v4931
  %7087 = vmatpush.bf16.msra.mxu0 %v4927
  %7088 = vmatmul.bf16.gmra.mxu0 %v1201
  %v7089 = vpop.f32.mrf.mxu0
  %v7090 = vadd.f32 %v7076, %v7089
  %v7091 = vpop.f32.mrf.mxu0
  %v7092 = vadd.f32 %v7078, %v7091
  %7093 = vdwg.mxu0
  %7094 = vmatpush.bf16.msra.mxu0 %v4987
  %7095 = vmatpush.bf16.msra.mxu0 %v4983
  %7096 = vmatpush.bf16.msra.mxu0 %v4979
  %7097 = vmatpush.bf16.msra.mxu0 %v4975
  %7098 = vmatpush.bf16.msra.mxu0 %v4971
  %7099 = vmatpush.bf16.msra.mxu0 %v4967
  %7100 = vmatpush.bf16.msra.mxu0 %v4963
  %7101 = vmatpush.bf16.msra.mxu0 %v4959
  %7102 = vmatmul.bf16.gmra.mxu0 %v1202
  %v7103 = vpop.f32.mrf.mxu0
  %v7104 = vadd.f32 %v7090, %v7103
  %v7105 = vpop.f32.mrf.mxu0
  %v7106 = vadd.f32 %v7092, %v7105
  %7107 = vdwg.mxu0
  %7108 = vmatpush.bf16.msra.mxu0 %v5019
  %7109 = vmatpush.bf16.msra.mxu0 %v5015
  %7110 = vmatpush.bf16.msra.mxu0 %v5011
  %7111 = vmatpush.bf16.msra.mxu0 %v5007
  %7112 = vmatpush.bf16.msra.mxu0 %v5003
  %7113 = vmatpush.bf16.msra.mxu0 %v4999
  %7114 = vmatpush.bf16.msra.mxu0 %v4995
  %7115 = vmatpush.bf16.msra.mxu0 %v4991
  %7116 = vmatmul.bf16.gmra.mxu0 %v1203
  %v7117 = vpop.f32.mrf.mxu0
  %v7118 = vadd.f32 %v7104, %v7117
  %v7119 = vpop.f32.mrf.mxu0
  %v7120 = vadd.f32 %v7106, %v7119
  %7121 = vdwg.mxu0
  %7122 = vmatpush.bf16.msra.mxu0 %v5051
  %7123 = vmatpush.bf16.msra.mxu0 %v5047
  %7124 = vmatpush.bf16.msra.mxu0 %v5043
  %7125 = vmatpush.bf16.msra.mxu0 %v5039
  %7126 = vmatpush.bf16.msra.mxu0 %v5035
  %7127 = vmatpush.bf16.msra.mxu0 %v5031
  %7128 = vmatpush.bf16.msra.mxu0 %v5027
  %7129 = vmatpush.bf16.msra.mxu0 %v5023
  %7130 = vmatmul.bf16.gmra.mxu0 %v1204
  %v7131 = vpop.f32.mrf.mxu0
  %v7132 = vadd.f32 %v7118, %v7131
  %v7133 = vpop.f32.mrf.mxu0
  %v7134 = vadd.f32 %v7120, %v7133
  %7135 = vdwg.mxu0
  %7136 = vmatpush.bf16.msra.mxu0 %v5083
  %7137 = vmatpush.bf16.msra.mxu0 %v5079
  %7138 = vmatpush.bf16.msra.mxu0 %v5075
  %7139 = vmatpush.bf16.msra.mxu0 %v5071
  %7140 = vmatpush.bf16.msra.mxu0 %v5067
  %7141 = vmatpush.bf16.msra.mxu0 %v5063
  %7142 = vmatpush.bf16.msra.mxu0 %v5059
  %7143 = vmatpush.bf16.msra.mxu0 %v5055
  %7144 = vmatmul.bf16.gmra.mxu0 %v1205
  %v7145 = vpop.f32.mrf.mxu0
  %v7146 = vadd.f32 %v7132, %v7145
  %v7147 = vpop.f32.mrf.mxu0
  %v7148 = vadd.f32 %v7134, %v7147
  %7149 = vdwg.mxu0
  %7150 = vmatpush.bf16.msra.mxu0 %v5115
  %7151 = vmatpush.bf16.msra.mxu0 %v5111
  %7152 = vmatpush.bf16.msra.mxu0 %v5107
  %7153 = vmatpush.bf16.msra.mxu0 %v5103
  %7154 = vmatpush.bf16.msra.mxu0 %v5099
  %7155 = vmatpush.bf16.msra.mxu0 %v5095
  %7156 = vmatpush.bf16.msra.mxu0 %v5091
  %7157 = vmatpush.bf16.msra.mxu0 %v5087
  %7158 = vmatmul.bf16.gmra.mxu0 %v1206
  %v7159 = vpop.f32.mrf.mxu0
  %v7160 = vadd.f32 %v7146, %v7159
  %v7161 = vpop.f32.mrf.mxu0
  %v7162 = vadd.f32 %v7148, %v7161
  %7163 = vdwg.mxu0
  %7164 = vmatpush.bf16.msra.mxu0 %v5147
  %7165 = vmatpush.bf16.msra.mxu0 %v5143
  %7166 = vmatpush.bf16.msra.mxu0 %v5139
  %7167 = vmatpush.bf16.msra.mxu0 %v5135
  %7168 = vmatpush.bf16.msra.mxu0 %v5131
  %7169 = vmatpush.bf16.msra.mxu0 %v5127
  %7170 = vmatpush.bf16.msra.mxu0 %v5123
  %7171 = vmatpush.bf16.msra.mxu0 %v5119
  %7172 = vmatmul.bf16.gmra.mxu0 %v1207
  %v7173 = vpop.f32.mrf.mxu0
  %v7174 = vadd.f32 %v7160, %v7173
  %v7175 = vpop.f32.mrf.mxu0
  %v7176 = vadd.f32 %v7162, %v7175
  %7177 = vdwg.mxu0
  %7178 = vmatpush.bf16.msra.mxu0 %v5179
  %7179 = vmatpush.bf16.msra.mxu0 %v5175
  %7180 = vmatpush.bf16.msra.mxu0 %v5171
  %7181 = vmatpush.bf16.msra.mxu0 %v5167
  %7182 = vmatpush.bf16.msra.mxu0 %v5163
  %7183 = vmatpush.bf16.msra.mxu0 %v5159
  %7184 = vmatpush.bf16.msra.mxu0 %v5155
  %7185 = vmatpush.bf16.msra.mxu0 %v5151
  %7186 = vmatmul.bf16.gmra.mxu0 %v1208
  %v7187 = vpop.f32.mrf.mxu0
  %v7188 = vadd.f32 %v7174, %v7187
  %v7189 = vpop.f32.mrf.mxu0
  %v7190 = vadd.f32 %v7176, %v7189
  %7191 = vdwg.mxu0
  %7192 = vmatpush.bf16.msra.mxu0 %v5211
  %7193 = vmatpush.bf16.msra.mxu0 %v5207
  %7194 = vmatpush.bf16.msra.mxu0 %v5203
  %7195 = vmatpush.bf16.msra.mxu0 %v5199
  %7196 = vmatpush.bf16.msra.mxu0 %v5195
  %7197 = vmatpush.bf16.msra.mxu0 %v5191
  %7198 = vmatpush.bf16.msra.mxu0 %v5187
  %7199 = vmatpush.bf16.msra.mxu0 %v5183
  %7200 = vmatmul.bf16.gmra.mxu0 %v1209
  %v7201 = vpop.f32.mrf.mxu0
  %v7202 = vadd.f32 %v7188, %v7201
  %v7203 = vpop.f32.mrf.mxu0
  %v7204 = vadd.f32 %v7190, %v7203
  %7205 = vdwg.mxu0
  %7206 = vmatpush.bf16.msra.mxu0 %v5243
  %7207 = vmatpush.bf16.msra.mxu0 %v5239
  %7208 = vmatpush.bf16.msra.mxu0 %v5235
  %7209 = vmatpush.bf16.msra.mxu0 %v5231
  %7210 = vmatpush.bf16.msra.mxu0 %v5227
  %7211 = vmatpush.bf16.msra.mxu0 %v5223
  %7212 = vmatpush.bf16.msra.mxu0 %v5219
  %7213 = vmatpush.bf16.msra.mxu0 %v5215
  %7214 = vmatmul.bf16.gmra.mxu0 %v1210
  %v7215 = vpop.f32.mrf.mxu0
  %v7216 = vadd.f32 %v7202, %v7215
  %v7217 = vpop.f32.mrf.mxu0
  %v7218 = vadd.f32 %v7204, %v7217
  %7219 = vdwg.mxu0
  %7220 = vmatpush.bf16.msra.mxu0 %v5275
  %7221 = vmatpush.bf16.msra.mxu0 %v5271
  %7222 = vmatpush.bf16.msra.mxu0 %v5267
  %7223 = vmatpush.bf16.msra.mxu0 %v5263
  %7224 = vmatpush.bf16.msra.mxu0 %v5259
  %7225 = vmatpush.bf16.msra.mxu0 %v5255
  %7226 = vmatpush.bf16.msra.mxu0 %v5251
  %7227 = vmatpush.bf16.msra.mxu0 %v5247
  %7228 = vmatmul.bf16.gmra.mxu0 %v1211
  %v7229 = vpop.f32.mrf.mxu0
  %v7230 = vadd.f32 %v7216, %v7229
  %v7231 = vpop.f32.mrf.mxu0
  %v7232 = vadd.f32 %v7218, %v7231
  %7233 = vdwg.mxu0
  %7234 = vmatpush.bf16.msra.mxu0 %v5307
  %7235 = vmatpush.bf16.msra.mxu0 %v5303
  %7236 = vmatpush.bf16.msra.mxu0 %v5299
  %7237 = vmatpush.bf16.msra.mxu0 %v5295
  %7238 = vmatpush.bf16.msra.mxu0 %v5291
  %7239 = vmatpush.bf16.msra.mxu0 %v5287
  %7240 = vmatpush.bf16.msra.mxu0 %v5283
  %7241 = vmatpush.bf16.msra.mxu0 %v5279
  %7242 = vmatmul.bf16.gmra.mxu0 %v1212
  %v7243 = vpop.f32.mrf.mxu0
  %v7244 = vadd.f32 %v7230, %v7243
  %v7245 = vpop.f32.mrf.mxu0
  %v7246 = vadd.f32 %v7232, %v7245
  %7247 = vdwg.mxu0
  %7248 = vmatpush.bf16.msra.mxu0 %v5339
  %7249 = vmatpush.bf16.msra.mxu0 %v5335
  %7250 = vmatpush.bf16.msra.mxu0 %v5331
  %7251 = vmatpush.bf16.msra.mxu0 %v5327
  %7252 = vmatpush.bf16.msra.mxu0 %v5323
  %7253 = vmatpush.bf16.msra.mxu0 %v5319
  %7254 = vmatpush.bf16.msra.mxu0 %v5315
  %7255 = vmatpush.bf16.msra.mxu0 %v5311
  %7256 = vmatmul.bf16.gmra.mxu0 %v1213
  %v7257 = vpop.f32.mrf.mxu0
  %v7258 = vadd.f32 %v7244, %v7257
  %v7259 = vpop.f32.mrf.mxu0
  %v7260 = vadd.f32 %v7246, %v7259
  %7261 = vdwg.mxu0
  %7262 = vmatpush.bf16.msra.mxu0 %v4348
  %7263 = vmatpush.bf16.msra.mxu0 %v4344
  %7264 = vmatpush.bf16.msra.mxu0 %v4340
  %7265 = vmatpush.bf16.msra.mxu0 %v4336
  %7266 = vmatpush.bf16.msra.mxu0 %v4332
  %7267 = vmatpush.bf16.msra.mxu0 %v4328
  %7268 = vmatpush.bf16.msra.mxu0 %v4324
  %7269 = vmatpush.bf16.msra.mxu0 %v4320
  %7270 = vmatmul.bf16.gmra.mxu0 %v1182
  %v7271 = vpop.f32.mrf.mxu0
  %v7272 = vadd.f32 %v1080, %v7271
  %v7273 = vpop.f32.mrf.mxu0
  %v7274 = vadd.f32 %v1080, %v7273
  %7275 = vdwg.mxu0
  %7276 = vmatpush.bf16.msra.mxu0 %v4380
  %7277 = vmatpush.bf16.msra.mxu0 %v4376
  %7278 = vmatpush.bf16.msra.mxu0 %v4372
  %7279 = vmatpush.bf16.msra.mxu0 %v4368
  %7280 = vmatpush.bf16.msra.mxu0 %v4364
  %7281 = vmatpush.bf16.msra.mxu0 %v4360
  %7282 = vmatpush.bf16.msra.mxu0 %v4356
  %7283 = vmatpush.bf16.msra.mxu0 %v4352
  %7284 = vmatmul.bf16.gmra.mxu0 %v1183
  %v7285 = vpop.f32.mrf.mxu0
  %v7286 = vadd.f32 %v7272, %v7285
  %v7287 = vpop.f32.mrf.mxu0
  %v7288 = vadd.f32 %v7274, %v7287
  %7289 = vdwg.mxu0
  %7290 = vmatpush.bf16.msra.mxu0 %v4412
  %7291 = vmatpush.bf16.msra.mxu0 %v4408
  %7292 = vmatpush.bf16.msra.mxu0 %v4404
  %7293 = vmatpush.bf16.msra.mxu0 %v4400
  %7294 = vmatpush.bf16.msra.mxu0 %v4396
  %7295 = vmatpush.bf16.msra.mxu0 %v4392
  %7296 = vmatpush.bf16.msra.mxu0 %v4388
  %7297 = vmatpush.bf16.msra.mxu0 %v4384
  %7298 = vmatmul.bf16.gmra.mxu0 %v1184
  %v7299 = vpop.f32.mrf.mxu0
  %v7300 = vadd.f32 %v7286, %v7299
  %v7301 = vpop.f32.mrf.mxu0
  %v7302 = vadd.f32 %v7288, %v7301
  %7303 = vdwg.mxu0
  %7304 = vmatpush.bf16.msra.mxu0 %v4444
  %7305 = vmatpush.bf16.msra.mxu0 %v4440
  %7306 = vmatpush.bf16.msra.mxu0 %v4436
  %7307 = vmatpush.bf16.msra.mxu0 %v4432
  %7308 = vmatpush.bf16.msra.mxu0 %v4428
  %7309 = vmatpush.bf16.msra.mxu0 %v4424
  %7310 = vmatpush.bf16.msra.mxu0 %v4420
  %7311 = vmatpush.bf16.msra.mxu0 %v4416
  %7312 = vmatmul.bf16.gmra.mxu0 %v1185
  %v7313 = vpop.f32.mrf.mxu0
  %v7314 = vadd.f32 %v7300, %v7313
  %v7315 = vpop.f32.mrf.mxu0
  %v7316 = vadd.f32 %v7302, %v7315
  %7317 = vdwg.mxu0
  %7318 = vmatpush.bf16.msra.mxu0 %v4476
  %7319 = vmatpush.bf16.msra.mxu0 %v4472
  %7320 = vmatpush.bf16.msra.mxu0 %v4468
  %7321 = vmatpush.bf16.msra.mxu0 %v4464
  %7322 = vmatpush.bf16.msra.mxu0 %v4460
  %7323 = vmatpush.bf16.msra.mxu0 %v4456
  %7324 = vmatpush.bf16.msra.mxu0 %v4452
  %7325 = vmatpush.bf16.msra.mxu0 %v4448
  %7326 = vmatmul.bf16.gmra.mxu0 %v1186
  %v7327 = vpop.f32.mrf.mxu0
  %v7328 = vadd.f32 %v7314, %v7327
  %v7329 = vpop.f32.mrf.mxu0
  %v7330 = vadd.f32 %v7316, %v7329
  %7331 = vdwg.mxu0
  %7332 = vmatpush.bf16.msra.mxu0 %v4508
  %7333 = vmatpush.bf16.msra.mxu0 %v4504
  %7334 = vmatpush.bf16.msra.mxu0 %v4500
  %7335 = vmatpush.bf16.msra.mxu0 %v4496
  %7336 = vmatpush.bf16.msra.mxu0 %v4492
  %7337 = vmatpush.bf16.msra.mxu0 %v4488
  %7338 = vmatpush.bf16.msra.mxu0 %v4484
  %7339 = vmatpush.bf16.msra.mxu0 %v4480
  %7340 = vmatmul.bf16.gmra.mxu0 %v1187
  %v7341 = vpop.f32.mrf.mxu0
  %v7342 = vadd.f32 %v7328, %v7341
  %v7343 = vpop.f32.mrf.mxu0
  %v7344 = vadd.f32 %v7330, %v7343
  %7345 = vdwg.mxu0
  %7346 = vmatpush.bf16.msra.mxu0 %v4540
  %7347 = vmatpush.bf16.msra.mxu0 %v4536
  %7348 = vmatpush.bf16.msra.mxu0 %v4532
  %7349 = vmatpush.bf16.msra.mxu0 %v4528
  %7350 = vmatpush.bf16.msra.mxu0 %v4524
  %7351 = vmatpush.bf16.msra.mxu0 %v4520
  %7352 = vmatpush.bf16.msra.mxu0 %v4516
  %7353 = vmatpush.bf16.msra.mxu0 %v4512
  %7354 = vmatmul.bf16.gmra.mxu0 %v1188
  %v7355 = vpop.f32.mrf.mxu0
  %v7356 = vadd.f32 %v7342, %v7355
  %v7357 = vpop.f32.mrf.mxu0
  %v7358 = vadd.f32 %v7344, %v7357
  %7359 = vdwg.mxu0
  %7360 = vmatpush.bf16.msra.mxu0 %v4572
  %7361 = vmatpush.bf16.msra.mxu0 %v4568
  %7362 = vmatpush.bf16.msra.mxu0 %v4564
  %7363 = vmatpush.bf16.msra.mxu0 %v4560
  %7364 = vmatpush.bf16.msra.mxu0 %v4556
  %7365 = vmatpush.bf16.msra.mxu0 %v4552
  %7366 = vmatpush.bf16.msra.mxu0 %v4548
  %7367 = vmatpush.bf16.msra.mxu0 %v4544
  %7368 = vmatmul.bf16.gmra.mxu0 %v1189
  %v7369 = vpop.f32.mrf.mxu0
  %v7370 = vadd.f32 %v7356, %v7369
  %v7371 = vpop.f32.mrf.mxu0
  %v7372 = vadd.f32 %v7358, %v7371
  %7373 = vdwg.mxu0
  %7374 = vmatpush.bf16.msra.mxu0 %v4604
  %7375 = vmatpush.bf16.msra.mxu0 %v4600
  %7376 = vmatpush.bf16.msra.mxu0 %v4596
  %7377 = vmatpush.bf16.msra.mxu0 %v4592
  %7378 = vmatpush.bf16.msra.mxu0 %v4588
  %7379 = vmatpush.bf16.msra.mxu0 %v4584
  %7380 = vmatpush.bf16.msra.mxu0 %v4580
  %7381 = vmatpush.bf16.msra.mxu0 %v4576
  %7382 = vmatmul.bf16.gmra.mxu0 %v1190
  %v7383 = vpop.f32.mrf.mxu0
  %v7384 = vadd.f32 %v7370, %v7383
  %v7385 = vpop.f32.mrf.mxu0
  %v7386 = vadd.f32 %v7372, %v7385
  %7387 = vdwg.mxu0
  %7388 = vmatpush.bf16.msra.mxu0 %v4636
  %7389 = vmatpush.bf16.msra.mxu0 %v4632
  %7390 = vmatpush.bf16.msra.mxu0 %v4628
  %7391 = vmatpush.bf16.msra.mxu0 %v4624
  %7392 = vmatpush.bf16.msra.mxu0 %v4620
  %7393 = vmatpush.bf16.msra.mxu0 %v4616
  %7394 = vmatpush.bf16.msra.mxu0 %v4612
  %7395 = vmatpush.bf16.msra.mxu0 %v4608
  %7396 = vmatmul.bf16.gmra.mxu0 %v1191
  %v7397 = vpop.f32.mrf.mxu0
  %v7398 = vadd.f32 %v7384, %v7397
  %v7399 = vpop.f32.mrf.mxu0
  %v7400 = vadd.f32 %v7386, %v7399
  %7401 = vdwg.mxu0
  %7402 = vmatpush.bf16.msra.mxu0 %v4668
  %7403 = vmatpush.bf16.msra.mxu0 %v4664
  %7404 = vmatpush.bf16.msra.mxu0 %v4660
  %7405 = vmatpush.bf16.msra.mxu0 %v4656
  %7406 = vmatpush.bf16.msra.mxu0 %v4652
  %7407 = vmatpush.bf16.msra.mxu0 %v4648
  %7408 = vmatpush.bf16.msra.mxu0 %v4644
  %7409 = vmatpush.bf16.msra.mxu0 %v4640
  %7410 = vmatmul.bf16.gmra.mxu0 %v1192
  %v7411 = vpop.f32.mrf.mxu0
  %v7412 = vadd.f32 %v7398, %v7411
  %v7413 = vpop.f32.mrf.mxu0
  %v7414 = vadd.f32 %v7400, %v7413
  %7415 = vdwg.mxu0
  %7416 = vmatpush.bf16.msra.mxu0 %v4700
  %7417 = vmatpush.bf16.msra.mxu0 %v4696
  %7418 = vmatpush.bf16.msra.mxu0 %v4692
  %7419 = vmatpush.bf16.msra.mxu0 %v4688
  %7420 = vmatpush.bf16.msra.mxu0 %v4684
  %7421 = vmatpush.bf16.msra.mxu0 %v4680
  %7422 = vmatpush.bf16.msra.mxu0 %v4676
  %7423 = vmatpush.bf16.msra.mxu0 %v4672
  %7424 = vmatmul.bf16.gmra.mxu0 %v1193
  %v7425 = vpop.f32.mrf.mxu0
  %v7426 = vadd.f32 %v7412, %v7425
  %v7427 = vpop.f32.mrf.mxu0
  %v7428 = vadd.f32 %v7414, %v7427
  %7429 = vdwg.mxu0
  %7430 = vmatpush.bf16.msra.mxu0 %v4732
  %7431 = vmatpush.bf16.msra.mxu0 %v4728
  %7432 = vmatpush.bf16.msra.mxu0 %v4724
  %7433 = vmatpush.bf16.msra.mxu0 %v4720
  %7434 = vmatpush.bf16.msra.mxu0 %v4716
  %7435 = vmatpush.bf16.msra.mxu0 %v4712
  %7436 = vmatpush.bf16.msra.mxu0 %v4708
  %7437 = vmatpush.bf16.msra.mxu0 %v4704
  %7438 = vmatmul.bf16.gmra.mxu0 %v1194
  %v7439 = vpop.f32.mrf.mxu0
  %v7440 = vadd.f32 %v7426, %v7439
  %v7441 = vpop.f32.mrf.mxu0
  %v7442 = vadd.f32 %v7428, %v7441
  %7443 = vdwg.mxu0
  %7444 = vmatpush.bf16.msra.mxu0 %v4764
  %7445 = vmatpush.bf16.msra.mxu0 %v4760
  %7446 = vmatpush.bf16.msra.mxu0 %v4756
  %7447 = vmatpush.bf16.msra.mxu0 %v4752
  %7448 = vmatpush.bf16.msra.mxu0 %v4748
  %7449 = vmatpush.bf16.msra.mxu0 %v4744
  %7450 = vmatpush.bf16.msra.mxu0 %v4740
  %7451 = vmatpush.bf16.msra.mxu0 %v4736
  %7452 = vmatmul.bf16.gmra.mxu0 %v1195
  %v7453 = vpop.f32.mrf.mxu0
  %v7454 = vadd.f32 %v7440, %v7453
  %v7455 = vpop.f32.mrf.mxu0
  %v7456 = vadd.f32 %v7442, %v7455
  %7457 = vdwg.mxu0
  %7458 = vmatpush.bf16.msra.mxu0 %v4796
  %7459 = vmatpush.bf16.msra.mxu0 %v4792
  %7460 = vmatpush.bf16.msra.mxu0 %v4788
  %7461 = vmatpush.bf16.msra.mxu0 %v4784
  %7462 = vmatpush.bf16.msra.mxu0 %v4780
  %7463 = vmatpush.bf16.msra.mxu0 %v4776
  %7464 = vmatpush.bf16.msra.mxu0 %v4772
  %7465 = vmatpush.bf16.msra.mxu0 %v4768
  %7466 = vmatmul.bf16.gmra.mxu0 %v1196
  %v7467 = vpop.f32.mrf.mxu0
  %v7468 = vadd.f32 %v7454, %v7467
  %v7469 = vpop.f32.mrf.mxu0
  %v7470 = vadd.f32 %v7456, %v7469
  %7471 = vdwg.mxu0
  %7472 = vmatpush.bf16.msra.mxu0 %v4828
  %7473 = vmatpush.bf16.msra.mxu0 %v4824
  %7474 = vmatpush.bf16.msra.mxu0 %v4820
  %7475 = vmatpush.bf16.msra.mxu0 %v4816
  %7476 = vmatpush.bf16.msra.mxu0 %v4812
  %7477 = vmatpush.bf16.msra.mxu0 %v4808
  %7478 = vmatpush.bf16.msra.mxu0 %v4804
  %7479 = vmatpush.bf16.msra.mxu0 %v4800
  %7480 = vmatmul.bf16.gmra.mxu0 %v1197
  %v7481 = vpop.f32.mrf.mxu0
  %v7482 = vadd.f32 %v7468, %v7481
  %v7483 = vpop.f32.mrf.mxu0
  %v7484 = vadd.f32 %v7470, %v7483
  %7485 = vdwg.mxu0
  %7486 = vmatpush.bf16.msra.mxu0 %v4860
  %7487 = vmatpush.bf16.msra.mxu0 %v4856
  %7488 = vmatpush.bf16.msra.mxu0 %v4852
  %7489 = vmatpush.bf16.msra.mxu0 %v4848
  %7490 = vmatpush.bf16.msra.mxu0 %v4844
  %7491 = vmatpush.bf16.msra.mxu0 %v4840
  %7492 = vmatpush.bf16.msra.mxu0 %v4836
  %7493 = vmatpush.bf16.msra.mxu0 %v4832
  %7494 = vmatmul.bf16.gmra.mxu0 %v1198
  %v7495 = vpop.f32.mrf.mxu0
  %v7496 = vadd.f32 %v7482, %v7495
  %v7497 = vpop.f32.mrf.mxu0
  %v7498 = vadd.f32 %v7484, %v7497
  %7499 = vdwg.mxu0
  %7500 = vmatpush.bf16.msra.mxu0 %v4892
  %7501 = vmatpush.bf16.msra.mxu0 %v4888
  %7502 = vmatpush.bf16.msra.mxu0 %v4884
  %7503 = vmatpush.bf16.msra.mxu0 %v4880
  %7504 = vmatpush.bf16.msra.mxu0 %v4876
  %7505 = vmatpush.bf16.msra.mxu0 %v4872
  %7506 = vmatpush.bf16.msra.mxu0 %v4868
  %7507 = vmatpush.bf16.msra.mxu0 %v4864
  %7508 = vmatmul.bf16.gmra.mxu0 %v1199
  %v7509 = vpop.f32.mrf.mxu0
  %v7510 = vadd.f32 %v7496, %v7509
  %v7511 = vpop.f32.mrf.mxu0
  %v7512 = vadd.f32 %v7498, %v7511
  %7513 = vdwg.mxu0
  %7514 = vmatpush.bf16.msra.mxu0 %v4924
  %7515 = vmatpush.bf16.msra.mxu0 %v4920
  %7516 = vmatpush.bf16.msra.mxu0 %v4916
  %7517 = vmatpush.bf16.msra.mxu0 %v4912
  %7518 = vmatpush.bf16.msra.mxu0 %v4908
  %7519 = vmatpush.bf16.msra.mxu0 %v4904
  %7520 = vmatpush.bf16.msra.mxu0 %v4900
  %7521 = vmatpush.bf16.msra.mxu0 %v4896
  %7522 = vmatmul.bf16.gmra.mxu0 %v1200
  %v7523 = vpop.f32.mrf.mxu0
  %v7524 = vadd.f32 %v7510, %v7523
  %v7525 = vpop.f32.mrf.mxu0
  %v7526 = vadd.f32 %v7512, %v7525
  %7527 = vdwg.mxu0
  %7528 = vmatpush.bf16.msra.mxu0 %v4956
  %7529 = vmatpush.bf16.msra.mxu0 %v4952
  %7530 = vmatpush.bf16.msra.mxu0 %v4948
  %7531 = vmatpush.bf16.msra.mxu0 %v4944
  %7532 = vmatpush.bf16.msra.mxu0 %v4940
  %7533 = vmatpush.bf16.msra.mxu0 %v4936
  %7534 = vmatpush.bf16.msra.mxu0 %v4932
  %7535 = vmatpush.bf16.msra.mxu0 %v4928
  %7536 = vmatmul.bf16.gmra.mxu0 %v1201
  %v7537 = vpop.f32.mrf.mxu0
  %v7538 = vadd.f32 %v7524, %v7537
  %v7539 = vpop.f32.mrf.mxu0
  %v7540 = vadd.f32 %v7526, %v7539
  %7541 = vdwg.mxu0
  %7542 = vmatpush.bf16.msra.mxu0 %v4988
  %7543 = vmatpush.bf16.msra.mxu0 %v4984
  %7544 = vmatpush.bf16.msra.mxu0 %v4980
  %7545 = vmatpush.bf16.msra.mxu0 %v4976
  %7546 = vmatpush.bf16.msra.mxu0 %v4972
  %7547 = vmatpush.bf16.msra.mxu0 %v4968
  %7548 = vmatpush.bf16.msra.mxu0 %v4964
  %7549 = vmatpush.bf16.msra.mxu0 %v4960
  %7550 = vmatmul.bf16.gmra.mxu0 %v1202
  %v7551 = vpop.f32.mrf.mxu0
  %v7552 = vadd.f32 %v7538, %v7551
  %v7553 = vpop.f32.mrf.mxu0
  %v7554 = vadd.f32 %v7540, %v7553
  %7555 = vdwg.mxu0
  %7556 = vmatpush.bf16.msra.mxu0 %v5020
  %7557 = vmatpush.bf16.msra.mxu0 %v5016
  %7558 = vmatpush.bf16.msra.mxu0 %v5012
  %7559 = vmatpush.bf16.msra.mxu0 %v5008
  %7560 = vmatpush.bf16.msra.mxu0 %v5004
  %7561 = vmatpush.bf16.msra.mxu0 %v5000
  %7562 = vmatpush.bf16.msra.mxu0 %v4996
  %7563 = vmatpush.bf16.msra.mxu0 %v4992
  %7564 = vmatmul.bf16.gmra.mxu0 %v1203
  %v7565 = vpop.f32.mrf.mxu0
  %v7566 = vadd.f32 %v7552, %v7565
  %v7567 = vpop.f32.mrf.mxu0
  %v7568 = vadd.f32 %v7554, %v7567
  %7569 = vdwg.mxu0
  %7570 = vmatpush.bf16.msra.mxu0 %v5052
  %7571 = vmatpush.bf16.msra.mxu0 %v5048
  %7572 = vmatpush.bf16.msra.mxu0 %v5044
  %7573 = vmatpush.bf16.msra.mxu0 %v5040
  %7574 = vmatpush.bf16.msra.mxu0 %v5036
  %7575 = vmatpush.bf16.msra.mxu0 %v5032
  %7576 = vmatpush.bf16.msra.mxu0 %v5028
  %7577 = vmatpush.bf16.msra.mxu0 %v5024
  %7578 = vmatmul.bf16.gmra.mxu0 %v1204
  %v7579 = vpop.f32.mrf.mxu0
  %v7580 = vadd.f32 %v7566, %v7579
  %v7581 = vpop.f32.mrf.mxu0
  %v7582 = vadd.f32 %v7568, %v7581
  %7583 = vdwg.mxu0
  %7584 = vmatpush.bf16.msra.mxu0 %v5084
  %7585 = vmatpush.bf16.msra.mxu0 %v5080
  %7586 = vmatpush.bf16.msra.mxu0 %v5076
  %7587 = vmatpush.bf16.msra.mxu0 %v5072
  %7588 = vmatpush.bf16.msra.mxu0 %v5068
  %7589 = vmatpush.bf16.msra.mxu0 %v5064
  %7590 = vmatpush.bf16.msra.mxu0 %v5060
  %7591 = vmatpush.bf16.msra.mxu0 %v5056
  %7592 = vmatmul.bf16.gmra.mxu0 %v1205
  %v7593 = vpop.f32.mrf.mxu0
  %v7594 = vadd.f32 %v7580, %v7593
  %v7595 = vpop.f32.mrf.mxu0
  %v7596 = vadd.f32 %v7582, %v7595
  %7597 = vdwg.mxu0
  %7598 = vmatpush.bf16.msra.mxu0 %v5116
  %7599 = vmatpush.bf16.msra.mxu0 %v5112
  %7600 = vmatpush.bf16.msra.mxu0 %v5108
  %7601 = vmatpush.bf16.msra.mxu0 %v5104
  %7602 = vmatpush.bf16.msra.mxu0 %v5100
  %7603 = vmatpush.bf16.msra.mxu0 %v5096
  %7604 = vmatpush.bf16.msra.mxu0 %v5092
  %7605 = vmatpush.bf16.msra.mxu0 %v5088
  %7606 = vmatmul.bf16.gmra.mxu0 %v1206
  %v7607 = vpop.f32.mrf.mxu0
  %v7608 = vadd.f32 %v7594, %v7607
  %v7609 = vpop.f32.mrf.mxu0
  %v7610 = vadd.f32 %v7596, %v7609
  %7611 = vdwg.mxu0
  %7612 = vmatpush.bf16.msra.mxu0 %v5148
  %7613 = vmatpush.bf16.msra.mxu0 %v5144
  %7614 = vmatpush.bf16.msra.mxu0 %v5140
  %7615 = vmatpush.bf16.msra.mxu0 %v5136
  %7616 = vmatpush.bf16.msra.mxu0 %v5132
  %7617 = vmatpush.bf16.msra.mxu0 %v5128
  %7618 = vmatpush.bf16.msra.mxu0 %v5124
  %7619 = vmatpush.bf16.msra.mxu0 %v5120
  %7620 = vmatmul.bf16.gmra.mxu0 %v1207
  %v7621 = vpop.f32.mrf.mxu0
  %v7622 = vadd.f32 %v7608, %v7621
  %v7623 = vpop.f32.mrf.mxu0
  %v7624 = vadd.f32 %v7610, %v7623
  %7625 = vdwg.mxu0
  %7626 = vmatpush.bf16.msra.mxu0 %v5180
  %7627 = vmatpush.bf16.msra.mxu0 %v5176
  %7628 = vmatpush.bf16.msra.mxu0 %v5172
  %7629 = vmatpush.bf16.msra.mxu0 %v5168
  %7630 = vmatpush.bf16.msra.mxu0 %v5164
  %7631 = vmatpush.bf16.msra.mxu0 %v5160
  %7632 = vmatpush.bf16.msra.mxu0 %v5156
  %7633 = vmatpush.bf16.msra.mxu0 %v5152
  %7634 = vmatmul.bf16.gmra.mxu0 %v1208
  %v7635 = vpop.f32.mrf.mxu0
  %v7636 = vadd.f32 %v7622, %v7635
  %v7637 = vpop.f32.mrf.mxu0
  %v7638 = vadd.f32 %v7624, %v7637
  %7639 = vdwg.mxu0
  %7640 = vmatpush.bf16.msra.mxu0 %v5212
  %7641 = vmatpush.bf16.msra.mxu0 %v5208
  %7642 = vmatpush.bf16.msra.mxu0 %v5204
  %7643 = vmatpush.bf16.msra.mxu0 %v5200
  %7644 = vmatpush.bf16.msra.mxu0 %v5196
  %7645 = vmatpush.bf16.msra.mxu0 %v5192
  %7646 = vmatpush.bf16.msra.mxu0 %v5188
  %7647 = vmatpush.bf16.msra.mxu0 %v5184
  %7648 = vmatmul.bf16.gmra.mxu0 %v1209
  %v7649 = vpop.f32.mrf.mxu0
  %v7650 = vadd.f32 %v7636, %v7649
  %v7651 = vpop.f32.mrf.mxu0
  %v7652 = vadd.f32 %v7638, %v7651
  %7653 = vdwg.mxu0
  %7654 = vmatpush.bf16.msra.mxu0 %v5244
  %7655 = vmatpush.bf16.msra.mxu0 %v5240
  %7656 = vmatpush.bf16.msra.mxu0 %v5236
  %7657 = vmatpush.bf16.msra.mxu0 %v5232
  %7658 = vmatpush.bf16.msra.mxu0 %v5228
  %7659 = vmatpush.bf16.msra.mxu0 %v5224
  %7660 = vmatpush.bf16.msra.mxu0 %v5220
  %7661 = vmatpush.bf16.msra.mxu0 %v5216
  %7662 = vmatmul.bf16.gmra.mxu0 %v1210
  %v7663 = vpop.f32.mrf.mxu0
  %v7664 = vadd.f32 %v7650, %v7663
  %v7665 = vpop.f32.mrf.mxu0
  %v7666 = vadd.f32 %v7652, %v7665
  %7667 = vdwg.mxu0
  %7668 = vmatpush.bf16.msra.mxu0 %v5276
  %7669 = vmatpush.bf16.msra.mxu0 %v5272
  %7670 = vmatpush.bf16.msra.mxu0 %v5268
  %7671 = vmatpush.bf16.msra.mxu0 %v5264
  %7672 = vmatpush.bf16.msra.mxu0 %v5260
  %7673 = vmatpush.bf16.msra.mxu0 %v5256
  %7674 = vmatpush.bf16.msra.mxu0 %v5252
  %7675 = vmatpush.bf16.msra.mxu0 %v5248
  %7676 = vmatmul.bf16.gmra.mxu0 %v1211
  %v7677 = vpop.f32.mrf.mxu0
  %v7678 = vadd.f32 %v7664, %v7677
  %v7679 = vpop.f32.mrf.mxu0
  %v7680 = vadd.f32 %v7666, %v7679
  %7681 = vdwg.mxu0
  %7682 = vmatpush.bf16.msra.mxu0 %v5308
  %7683 = vmatpush.bf16.msra.mxu0 %v5304
  %7684 = vmatpush.bf16.msra.mxu0 %v5300
  %7685 = vmatpush.bf16.msra.mxu0 %v5296
  %7686 = vmatpush.bf16.msra.mxu0 %v5292
  %7687 = vmatpush.bf16.msra.mxu0 %v5288
  %7688 = vmatpush.bf16.msra.mxu0 %v5284
  %7689 = vmatpush.bf16.msra.mxu0 %v5280
  %7690 = vmatmul.bf16.gmra.mxu0 %v1212
  %v7691 = vpop.f32.mrf.mxu0
  %v7692 = vadd.f32 %v7678, %v7691
  %v7693 = vpop.f32.mrf.mxu0
  %v7694 = vadd.f32 %v7680, %v7693
  %7695 = vdwg.mxu0
  %7696 = vmatpush.bf16.msra.mxu0 %v5340
  %7697 = vmatpush.bf16.msra.mxu0 %v5336
  %7698 = vmatpush.bf16.msra.mxu0 %v5332
  %7699 = vmatpush.bf16.msra.mxu0 %v5328
  %7700 = vmatpush.bf16.msra.mxu0 %v5324
  %7701 = vmatpush.bf16.msra.mxu0 %v5320
  %7702 = vmatpush.bf16.msra.mxu0 %v5316
  %7703 = vmatpush.bf16.msra.mxu0 %v5312
  %7704 = vmatmul.bf16.gmra.mxu0 %v1213
  %v7705 = vpop.f32.mrf.mxu0
  %v7706 = vadd.f32 %v7692, %v7705
  %v7707 = vpop.f32.mrf.mxu0
  %v7708 = vadd.f32 %v7694, %v7707
  %7709 = vdwg.mxu0
  %7710 = vmatpush.bf16.msra.mxu0 %v4349
  %7711 = vmatpush.bf16.msra.mxu0 %v4345
  %7712 = vmatpush.bf16.msra.mxu0 %v4341
  %7713 = vmatpush.bf16.msra.mxu0 %v4337
  %7714 = vmatpush.bf16.msra.mxu0 %v4333
  %7715 = vmatpush.bf16.msra.mxu0 %v4329
  %7716 = vmatpush.bf16.msra.mxu0 %v4325
  %7717 = vmatpush.bf16.msra.mxu0 %v4321
  %7718 = vmatmul.bf16.gmra.mxu0 %v1182
  %v7719 = vpop.f32.mrf.mxu0
  %v7720 = vadd.f32 %v1081, %v7719
  %v7721 = vpop.f32.mrf.mxu0
  %v7722 = vadd.f32 %v1081, %v7721
  %7723 = vdwg.mxu0
  %7724 = vmatpush.bf16.msra.mxu0 %v4381
  %7725 = vmatpush.bf16.msra.mxu0 %v4377
  %7726 = vmatpush.bf16.msra.mxu0 %v4373
  %7727 = vmatpush.bf16.msra.mxu0 %v4369
  %7728 = vmatpush.bf16.msra.mxu0 %v4365
  %7729 = vmatpush.bf16.msra.mxu0 %v4361
  %7730 = vmatpush.bf16.msra.mxu0 %v4357
  %7731 = vmatpush.bf16.msra.mxu0 %v4353
  %7732 = vmatmul.bf16.gmra.mxu0 %v1183
  %v7733 = vpop.f32.mrf.mxu0
  %v7734 = vadd.f32 %v7720, %v7733
  %v7735 = vpop.f32.mrf.mxu0
  %v7736 = vadd.f32 %v7722, %v7735
  %7737 = vdwg.mxu0
  %7738 = vmatpush.bf16.msra.mxu0 %v4413
  %7739 = vmatpush.bf16.msra.mxu0 %v4409
  %7740 = vmatpush.bf16.msra.mxu0 %v4405
  %7741 = vmatpush.bf16.msra.mxu0 %v4401
  %7742 = vmatpush.bf16.msra.mxu0 %v4397
  %7743 = vmatpush.bf16.msra.mxu0 %v4393
  %7744 = vmatpush.bf16.msra.mxu0 %v4389
  %7745 = vmatpush.bf16.msra.mxu0 %v4385
  %7746 = vmatmul.bf16.gmra.mxu0 %v1184
  %v7747 = vpop.f32.mrf.mxu0
  %v7748 = vadd.f32 %v7734, %v7747
  %v7749 = vpop.f32.mrf.mxu0
  %v7750 = vadd.f32 %v7736, %v7749
  %7751 = vdwg.mxu0
  %7752 = vmatpush.bf16.msra.mxu0 %v4445
  %7753 = vmatpush.bf16.msra.mxu0 %v4441
  %7754 = vmatpush.bf16.msra.mxu0 %v4437
  %7755 = vmatpush.bf16.msra.mxu0 %v4433
  %7756 = vmatpush.bf16.msra.mxu0 %v4429
  %7757 = vmatpush.bf16.msra.mxu0 %v4425
  %7758 = vmatpush.bf16.msra.mxu0 %v4421
  %7759 = vmatpush.bf16.msra.mxu0 %v4417
  %7760 = vmatmul.bf16.gmra.mxu0 %v1185
  %v7761 = vpop.f32.mrf.mxu0
  %v7762 = vadd.f32 %v7748, %v7761
  %v7763 = vpop.f32.mrf.mxu0
  %v7764 = vadd.f32 %v7750, %v7763
  %7765 = vdwg.mxu0
  %7766 = vmatpush.bf16.msra.mxu0 %v4477
  %7767 = vmatpush.bf16.msra.mxu0 %v4473
  %7768 = vmatpush.bf16.msra.mxu0 %v4469
  %7769 = vmatpush.bf16.msra.mxu0 %v4465
  %7770 = vmatpush.bf16.msra.mxu0 %v4461
  %7771 = vmatpush.bf16.msra.mxu0 %v4457
  %7772 = vmatpush.bf16.msra.mxu0 %v4453
  %7773 = vmatpush.bf16.msra.mxu0 %v4449
  %7774 = vmatmul.bf16.gmra.mxu0 %v1186
  %v7775 = vpop.f32.mrf.mxu0
  %v7776 = vadd.f32 %v7762, %v7775
  %v7777 = vpop.f32.mrf.mxu0
  %v7778 = vadd.f32 %v7764, %v7777
  %7779 = vdwg.mxu0
  %7780 = vmatpush.bf16.msra.mxu0 %v4509
  %7781 = vmatpush.bf16.msra.mxu0 %v4505
  %7782 = vmatpush.bf16.msra.mxu0 %v4501
  %7783 = vmatpush.bf16.msra.mxu0 %v4497
  %7784 = vmatpush.bf16.msra.mxu0 %v4493
  %7785 = vmatpush.bf16.msra.mxu0 %v4489
  %7786 = vmatpush.bf16.msra.mxu0 %v4485
  %7787 = vmatpush.bf16.msra.mxu0 %v4481
  %7788 = vmatmul.bf16.gmra.mxu0 %v1187
  %v7789 = vpop.f32.mrf.mxu0
  %v7790 = vadd.f32 %v7776, %v7789
  %v7791 = vpop.f32.mrf.mxu0
  %v7792 = vadd.f32 %v7778, %v7791
  %7793 = vdwg.mxu0
  %7794 = vmatpush.bf16.msra.mxu0 %v4541
  %7795 = vmatpush.bf16.msra.mxu0 %v4537
  %7796 = vmatpush.bf16.msra.mxu0 %v4533
  %7797 = vmatpush.bf16.msra.mxu0 %v4529
  %7798 = vmatpush.bf16.msra.mxu0 %v4525
  %7799 = vmatpush.bf16.msra.mxu0 %v4521
  %7800 = vmatpush.bf16.msra.mxu0 %v4517
  %7801 = vmatpush.bf16.msra.mxu0 %v4513
  %7802 = vmatmul.bf16.gmra.mxu0 %v1188
  %v7803 = vpop.f32.mrf.mxu0
  %v7804 = vadd.f32 %v7790, %v7803
  %v7805 = vpop.f32.mrf.mxu0
  %v7806 = vadd.f32 %v7792, %v7805
  %7807 = vdwg.mxu0
  %7808 = vmatpush.bf16.msra.mxu0 %v4573
  %7809 = vmatpush.bf16.msra.mxu0 %v4569
  %7810 = vmatpush.bf16.msra.mxu0 %v4565
  %7811 = vmatpush.bf16.msra.mxu0 %v4561
  %7812 = vmatpush.bf16.msra.mxu0 %v4557
  %7813 = vmatpush.bf16.msra.mxu0 %v4553
  %7814 = vmatpush.bf16.msra.mxu0 %v4549
  %7815 = vmatpush.bf16.msra.mxu0 %v4545
  %7816 = vmatmul.bf16.gmra.mxu0 %v1189
  %v7817 = vpop.f32.mrf.mxu0
  %v7818 = vadd.f32 %v7804, %v7817
  %v7819 = vpop.f32.mrf.mxu0
  %v7820 = vadd.f32 %v7806, %v7819
  %7821 = vdwg.mxu0
  %7822 = vmatpush.bf16.msra.mxu0 %v4605
  %7823 = vmatpush.bf16.msra.mxu0 %v4601
  %7824 = vmatpush.bf16.msra.mxu0 %v4597
  %7825 = vmatpush.bf16.msra.mxu0 %v4593
  %7826 = vmatpush.bf16.msra.mxu0 %v4589
  %7827 = vmatpush.bf16.msra.mxu0 %v4585
  %7828 = vmatpush.bf16.msra.mxu0 %v4581
  %7829 = vmatpush.bf16.msra.mxu0 %v4577
  %7830 = vmatmul.bf16.gmra.mxu0 %v1190
  %v7831 = vpop.f32.mrf.mxu0
  %v7832 = vadd.f32 %v7818, %v7831
  %v7833 = vpop.f32.mrf.mxu0
  %v7834 = vadd.f32 %v7820, %v7833
  %7835 = vdwg.mxu0
  %7836 = vmatpush.bf16.msra.mxu0 %v4637
  %7837 = vmatpush.bf16.msra.mxu0 %v4633
  %7838 = vmatpush.bf16.msra.mxu0 %v4629
  %7839 = vmatpush.bf16.msra.mxu0 %v4625
  %7840 = vmatpush.bf16.msra.mxu0 %v4621
  %7841 = vmatpush.bf16.msra.mxu0 %v4617
  %7842 = vmatpush.bf16.msra.mxu0 %v4613
  %7843 = vmatpush.bf16.msra.mxu0 %v4609
  %7844 = vmatmul.bf16.gmra.mxu0 %v1191
  %v7845 = vpop.f32.mrf.mxu0
  %v7846 = vadd.f32 %v7832, %v7845
  %v7847 = vpop.f32.mrf.mxu0
  %v7848 = vadd.f32 %v7834, %v7847
  %7849 = vdwg.mxu0
  %7850 = vmatpush.bf16.msra.mxu0 %v4669
  %7851 = vmatpush.bf16.msra.mxu0 %v4665
  %7852 = vmatpush.bf16.msra.mxu0 %v4661
  %7853 = vmatpush.bf16.msra.mxu0 %v4657
  %7854 = vmatpush.bf16.msra.mxu0 %v4653
  %7855 = vmatpush.bf16.msra.mxu0 %v4649
  %7856 = vmatpush.bf16.msra.mxu0 %v4645
  %7857 = vmatpush.bf16.msra.mxu0 %v4641
  %7858 = vmatmul.bf16.gmra.mxu0 %v1192
  %v7859 = vpop.f32.mrf.mxu0
  %v7860 = vadd.f32 %v7846, %v7859
  %v7861 = vpop.f32.mrf.mxu0
  %v7862 = vadd.f32 %v7848, %v7861
  %7863 = vdwg.mxu0
  %7864 = vmatpush.bf16.msra.mxu0 %v4701
  %7865 = vmatpush.bf16.msra.mxu0 %v4697
  %7866 = vmatpush.bf16.msra.mxu0 %v4693
  %7867 = vmatpush.bf16.msra.mxu0 %v4689
  %7868 = vmatpush.bf16.msra.mxu0 %v4685
  %7869 = vmatpush.bf16.msra.mxu0 %v4681
  %7870 = vmatpush.bf16.msra.mxu0 %v4677
  %7871 = vmatpush.bf16.msra.mxu0 %v4673
  %7872 = vmatmul.bf16.gmra.mxu0 %v1193
  %v7873 = vpop.f32.mrf.mxu0
  %v7874 = vadd.f32 %v7860, %v7873
  %v7875 = vpop.f32.mrf.mxu0
  %v7876 = vadd.f32 %v7862, %v7875
  %7877 = vdwg.mxu0
  %7878 = vmatpush.bf16.msra.mxu0 %v4733
  %7879 = vmatpush.bf16.msra.mxu0 %v4729
  %7880 = vmatpush.bf16.msra.mxu0 %v4725
  %7881 = vmatpush.bf16.msra.mxu0 %v4721
  %7882 = vmatpush.bf16.msra.mxu0 %v4717
  %7883 = vmatpush.bf16.msra.mxu0 %v4713
  %7884 = vmatpush.bf16.msra.mxu0 %v4709
  %7885 = vmatpush.bf16.msra.mxu0 %v4705
  %7886 = vmatmul.bf16.gmra.mxu0 %v1194
  %v7887 = vpop.f32.mrf.mxu0
  %v7888 = vadd.f32 %v7874, %v7887
  %v7889 = vpop.f32.mrf.mxu0
  %v7890 = vadd.f32 %v7876, %v7889
  %7891 = vdwg.mxu0
  %7892 = vmatpush.bf16.msra.mxu0 %v4765
  %7893 = vmatpush.bf16.msra.mxu0 %v4761
  %7894 = vmatpush.bf16.msra.mxu0 %v4757
  %7895 = vmatpush.bf16.msra.mxu0 %v4753
  %7896 = vmatpush.bf16.msra.mxu0 %v4749
  %7897 = vmatpush.bf16.msra.mxu0 %v4745
  %7898 = vmatpush.bf16.msra.mxu0 %v4741
  %7899 = vmatpush.bf16.msra.mxu0 %v4737
  %7900 = vmatmul.bf16.gmra.mxu0 %v1195
  %v7901 = vpop.f32.mrf.mxu0
  %v7902 = vadd.f32 %v7888, %v7901
  %v7903 = vpop.f32.mrf.mxu0
  %v7904 = vadd.f32 %v7890, %v7903
  %7905 = vdwg.mxu0
  %7906 = vmatpush.bf16.msra.mxu0 %v4797
  %7907 = vmatpush.bf16.msra.mxu0 %v4793
  %7908 = vmatpush.bf16.msra.mxu0 %v4789
  %7909 = vmatpush.bf16.msra.mxu0 %v4785
  %7910 = vmatpush.bf16.msra.mxu0 %v4781
  %7911 = vmatpush.bf16.msra.mxu0 %v4777
  %7912 = vmatpush.bf16.msra.mxu0 %v4773
  %7913 = vmatpush.bf16.msra.mxu0 %v4769
  %7914 = vmatmul.bf16.gmra.mxu0 %v1196
  %v7915 = vpop.f32.mrf.mxu0
  %v7916 = vadd.f32 %v7902, %v7915
  %v7917 = vpop.f32.mrf.mxu0
  %v7918 = vadd.f32 %v7904, %v7917
  %7919 = vdwg.mxu0
  %7920 = vmatpush.bf16.msra.mxu0 %v4829
  %7921 = vmatpush.bf16.msra.mxu0 %v4825
  %7922 = vmatpush.bf16.msra.mxu0 %v4821
  %7923 = vmatpush.bf16.msra.mxu0 %v4817
  %7924 = vmatpush.bf16.msra.mxu0 %v4813
  %7925 = vmatpush.bf16.msra.mxu0 %v4809
  %7926 = vmatpush.bf16.msra.mxu0 %v4805
  %7927 = vmatpush.bf16.msra.mxu0 %v4801
  %7928 = vmatmul.bf16.gmra.mxu0 %v1197
  %v7929 = vpop.f32.mrf.mxu0
  %v7930 = vadd.f32 %v7916, %v7929
  %v7931 = vpop.f32.mrf.mxu0
  %v7932 = vadd.f32 %v7918, %v7931
  %7933 = vdwg.mxu0
  %7934 = vmatpush.bf16.msra.mxu0 %v4861
  %7935 = vmatpush.bf16.msra.mxu0 %v4857
  %7936 = vmatpush.bf16.msra.mxu0 %v4853
  %7937 = vmatpush.bf16.msra.mxu0 %v4849
  %7938 = vmatpush.bf16.msra.mxu0 %v4845
  %7939 = vmatpush.bf16.msra.mxu0 %v4841
  %7940 = vmatpush.bf16.msra.mxu0 %v4837
  %7941 = vmatpush.bf16.msra.mxu0 %v4833
  %7942 = vmatmul.bf16.gmra.mxu0 %v1198
  %v7943 = vpop.f32.mrf.mxu0
  %v7944 = vadd.f32 %v7930, %v7943
  %v7945 = vpop.f32.mrf.mxu0
  %v7946 = vadd.f32 %v7932, %v7945
  %7947 = vdwg.mxu0
  %7948 = vmatpush.bf16.msra.mxu0 %v4893
  %7949 = vmatpush.bf16.msra.mxu0 %v4889
  %7950 = vmatpush.bf16.msra.mxu0 %v4885
  %7951 = vmatpush.bf16.msra.mxu0 %v4881
  %7952 = vmatpush.bf16.msra.mxu0 %v4877
  %7953 = vmatpush.bf16.msra.mxu0 %v4873
  %7954 = vmatpush.bf16.msra.mxu0 %v4869
  %7955 = vmatpush.bf16.msra.mxu0 %v4865
  %7956 = vmatmul.bf16.gmra.mxu0 %v1199
  %v7957 = vpop.f32.mrf.mxu0
  %v7958 = vadd.f32 %v7944, %v7957
  %v7959 = vpop.f32.mrf.mxu0
  %v7960 = vadd.f32 %v7946, %v7959
  %7961 = vdwg.mxu0
  %7962 = vmatpush.bf16.msra.mxu0 %v4925
  %7963 = vmatpush.bf16.msra.mxu0 %v4921
  %7964 = vmatpush.bf16.msra.mxu0 %v4917
  %7965 = vmatpush.bf16.msra.mxu0 %v4913
  %7966 = vmatpush.bf16.msra.mxu0 %v4909
  %7967 = vmatpush.bf16.msra.mxu0 %v4905
  %7968 = vmatpush.bf16.msra.mxu0 %v4901
  %7969 = vmatpush.bf16.msra.mxu0 %v4897
  %7970 = vmatmul.bf16.gmra.mxu0 %v1200
  %v7971 = vpop.f32.mrf.mxu0
  %v7972 = vadd.f32 %v7958, %v7971
  %v7973 = vpop.f32.mrf.mxu0
  %v7974 = vadd.f32 %v7960, %v7973
  %7975 = vdwg.mxu0
  %7976 = vmatpush.bf16.msra.mxu0 %v4957
  %7977 = vmatpush.bf16.msra.mxu0 %v4953
  %7978 = vmatpush.bf16.msra.mxu0 %v4949
  %7979 = vmatpush.bf16.msra.mxu0 %v4945
  %7980 = vmatpush.bf16.msra.mxu0 %v4941
  %7981 = vmatpush.bf16.msra.mxu0 %v4937
  %7982 = vmatpush.bf16.msra.mxu0 %v4933
  %7983 = vmatpush.bf16.msra.mxu0 %v4929
  %7984 = vmatmul.bf16.gmra.mxu0 %v1201
  %v7985 = vpop.f32.mrf.mxu0
  %v7986 = vadd.f32 %v7972, %v7985
  %v7987 = vpop.f32.mrf.mxu0
  %v7988 = vadd.f32 %v7974, %v7987
  %7989 = vdwg.mxu0
  %7990 = vmatpush.bf16.msra.mxu0 %v4989
  %7991 = vmatpush.bf16.msra.mxu0 %v4985
  %7992 = vmatpush.bf16.msra.mxu0 %v4981
  %7993 = vmatpush.bf16.msra.mxu0 %v4977
  %7994 = vmatpush.bf16.msra.mxu0 %v4973
  %7995 = vmatpush.bf16.msra.mxu0 %v4969
  %7996 = vmatpush.bf16.msra.mxu0 %v4965
  %7997 = vmatpush.bf16.msra.mxu0 %v4961
  %7998 = vmatmul.bf16.gmra.mxu0 %v1202
  %v7999 = vpop.f32.mrf.mxu0
  %v8000 = vadd.f32 %v7986, %v7999
  %v8001 = vpop.f32.mrf.mxu0
  %v8002 = vadd.f32 %v7988, %v8001
  %8003 = vdwg.mxu0
  %8004 = vmatpush.bf16.msra.mxu0 %v5021
  %8005 = vmatpush.bf16.msra.mxu0 %v5017
  %8006 = vmatpush.bf16.msra.mxu0 %v5013
  %8007 = vmatpush.bf16.msra.mxu0 %v5009
  %8008 = vmatpush.bf16.msra.mxu0 %v5005
  %8009 = vmatpush.bf16.msra.mxu0 %v5001
  %8010 = vmatpush.bf16.msra.mxu0 %v4997
  %8011 = vmatpush.bf16.msra.mxu0 %v4993
  %8012 = vmatmul.bf16.gmra.mxu0 %v1203
  %v8013 = vpop.f32.mrf.mxu0
  %v8014 = vadd.f32 %v8000, %v8013
  %v8015 = vpop.f32.mrf.mxu0
  %v8016 = vadd.f32 %v8002, %v8015
  %8017 = vdwg.mxu0
  %8018 = vmatpush.bf16.msra.mxu0 %v5053
  %8019 = vmatpush.bf16.msra.mxu0 %v5049
  %8020 = vmatpush.bf16.msra.mxu0 %v5045
  %8021 = vmatpush.bf16.msra.mxu0 %v5041
  %8022 = vmatpush.bf16.msra.mxu0 %v5037
  %8023 = vmatpush.bf16.msra.mxu0 %v5033
  %8024 = vmatpush.bf16.msra.mxu0 %v5029
  %8025 = vmatpush.bf16.msra.mxu0 %v5025
  %8026 = vmatmul.bf16.gmra.mxu0 %v1204
  %v8027 = vpop.f32.mrf.mxu0
  %v8028 = vadd.f32 %v8014, %v8027
  %v8029 = vpop.f32.mrf.mxu0
  %v8030 = vadd.f32 %v8016, %v8029
  %8031 = vdwg.mxu0
  %8032 = vmatpush.bf16.msra.mxu0 %v5085
  %8033 = vmatpush.bf16.msra.mxu0 %v5081
  %8034 = vmatpush.bf16.msra.mxu0 %v5077
  %8035 = vmatpush.bf16.msra.mxu0 %v5073
  %8036 = vmatpush.bf16.msra.mxu0 %v5069
  %8037 = vmatpush.bf16.msra.mxu0 %v5065
  %8038 = vmatpush.bf16.msra.mxu0 %v5061
  %8039 = vmatpush.bf16.msra.mxu0 %v5057
  %8040 = vmatmul.bf16.gmra.mxu0 %v1205
  %v8041 = vpop.f32.mrf.mxu0
  %v8042 = vadd.f32 %v8028, %v8041
  %v8043 = vpop.f32.mrf.mxu0
  %v8044 = vadd.f32 %v8030, %v8043
  %8045 = vdwg.mxu0
  %8046 = vmatpush.bf16.msra.mxu0 %v5117
  %8047 = vmatpush.bf16.msra.mxu0 %v5113
  %8048 = vmatpush.bf16.msra.mxu0 %v5109
  %8049 = vmatpush.bf16.msra.mxu0 %v5105
  %8050 = vmatpush.bf16.msra.mxu0 %v5101
  %8051 = vmatpush.bf16.msra.mxu0 %v5097
  %8052 = vmatpush.bf16.msra.mxu0 %v5093
  %8053 = vmatpush.bf16.msra.mxu0 %v5089
  %8054 = vmatmul.bf16.gmra.mxu0 %v1206
  %v8055 = vpop.f32.mrf.mxu0
  %v8056 = vadd.f32 %v8042, %v8055
  %v8057 = vpop.f32.mrf.mxu0
  %v8058 = vadd.f32 %v8044, %v8057
  %8059 = vdwg.mxu0
  %8060 = vmatpush.bf16.msra.mxu0 %v5149
  %8061 = vmatpush.bf16.msra.mxu0 %v5145
  %8062 = vmatpush.bf16.msra.mxu0 %v5141
  %8063 = vmatpush.bf16.msra.mxu0 %v5137
  %8064 = vmatpush.bf16.msra.mxu0 %v5133
  %8065 = vmatpush.bf16.msra.mxu0 %v5129
  %8066 = vmatpush.bf16.msra.mxu0 %v5125
  %8067 = vmatpush.bf16.msra.mxu0 %v5121
  %8068 = vmatmul.bf16.gmra.mxu0 %v1207
  %v8069 = vpop.f32.mrf.mxu0
  %v8070 = vadd.f32 %v8056, %v8069
  %v8071 = vpop.f32.mrf.mxu0
  %v8072 = vadd.f32 %v8058, %v8071
  %8073 = vdwg.mxu0
  %8074 = vmatpush.bf16.msra.mxu0 %v5181
  %8075 = vmatpush.bf16.msra.mxu0 %v5177
  %8076 = vmatpush.bf16.msra.mxu0 %v5173
  %8077 = vmatpush.bf16.msra.mxu0 %v5169
  %8078 = vmatpush.bf16.msra.mxu0 %v5165
  %8079 = vmatpush.bf16.msra.mxu0 %v5161
  %8080 = vmatpush.bf16.msra.mxu0 %v5157
  %8081 = vmatpush.bf16.msra.mxu0 %v5153
  %8082 = vmatmul.bf16.gmra.mxu0 %v1208
  %v8083 = vpop.f32.mrf.mxu0
  %v8084 = vadd.f32 %v8070, %v8083
  %v8085 = vpop.f32.mrf.mxu0
  %v8086 = vadd.f32 %v8072, %v8085
  %8087 = vdwg.mxu0
  %8088 = vmatpush.bf16.msra.mxu0 %v5213
  %8089 = vmatpush.bf16.msra.mxu0 %v5209
  %8090 = vmatpush.bf16.msra.mxu0 %v5205
  %8091 = vmatpush.bf16.msra.mxu0 %v5201
  %8092 = vmatpush.bf16.msra.mxu0 %v5197
  %8093 = vmatpush.bf16.msra.mxu0 %v5193
  %8094 = vmatpush.bf16.msra.mxu0 %v5189
  %8095 = vmatpush.bf16.msra.mxu0 %v5185
  %8096 = vmatmul.bf16.gmra.mxu0 %v1209
  %v8097 = vpop.f32.mrf.mxu0
  %v8098 = vadd.f32 %v8084, %v8097
  %v8099 = vpop.f32.mrf.mxu0
  %v8100 = vadd.f32 %v8086, %v8099
  %8101 = vdwg.mxu0
  %8102 = vmatpush.bf16.msra.mxu0 %v5245
  %8103 = vmatpush.bf16.msra.mxu0 %v5241
  %8104 = vmatpush.bf16.msra.mxu0 %v5237
  %8105 = vmatpush.bf16.msra.mxu0 %v5233
  %8106 = vmatpush.bf16.msra.mxu0 %v5229
  %8107 = vmatpush.bf16.msra.mxu0 %v5225
  %8108 = vmatpush.bf16.msra.mxu0 %v5221
  %8109 = vmatpush.bf16.msra.mxu0 %v5217
  %8110 = vmatmul.bf16.gmra.mxu0 %v1210
  %v8111 = vpop.f32.mrf.mxu0
  %v8112 = vadd.f32 %v8098, %v8111
  %v8113 = vpop.f32.mrf.mxu0
  %v8114 = vadd.f32 %v8100, %v8113
  %8115 = vdwg.mxu0
  %8116 = vmatpush.bf16.msra.mxu0 %v5277
  %8117 = vmatpush.bf16.msra.mxu0 %v5273
  %8118 = vmatpush.bf16.msra.mxu0 %v5269
  %8119 = vmatpush.bf16.msra.mxu0 %v5265
  %8120 = vmatpush.bf16.msra.mxu0 %v5261
  %8121 = vmatpush.bf16.msra.mxu0 %v5257
  %8122 = vmatpush.bf16.msra.mxu0 %v5253
  %8123 = vmatpush.bf16.msra.mxu0 %v5249
  %8124 = vmatmul.bf16.gmra.mxu0 %v1211
  %v8125 = vpop.f32.mrf.mxu0
  %v8126 = vadd.f32 %v8112, %v8125
  %v8127 = vpop.f32.mrf.mxu0
  %v8128 = vadd.f32 %v8114, %v8127
  %8129 = vdwg.mxu0
  %8130 = vmatpush.bf16.msra.mxu0 %v5309
  %8131 = vmatpush.bf16.msra.mxu0 %v5305
  %8132 = vmatpush.bf16.msra.mxu0 %v5301
  %8133 = vmatpush.bf16.msra.mxu0 %v5297
  %8134 = vmatpush.bf16.msra.mxu0 %v5293
  %8135 = vmatpush.bf16.msra.mxu0 %v5289
  %8136 = vmatpush.bf16.msra.mxu0 %v5285
  %8137 = vmatpush.bf16.msra.mxu0 %v5281
  %8138 = vmatmul.bf16.gmra.mxu0 %v1212
  %v8139 = vpop.f32.mrf.mxu0
  %v8140 = vadd.f32 %v8126, %v8139
  %v8141 = vpop.f32.mrf.mxu0
  %v8142 = vadd.f32 %v8128, %v8141
  %8143 = vdwg.mxu0
  %8144 = vmatpush.bf16.msra.mxu0 %v5341
  %8145 = vmatpush.bf16.msra.mxu0 %v5337
  %8146 = vmatpush.bf16.msra.mxu0 %v5333
  %8147 = vmatpush.bf16.msra.mxu0 %v5329
  %8148 = vmatpush.bf16.msra.mxu0 %v5325
  %8149 = vmatpush.bf16.msra.mxu0 %v5321
  %8150 = vmatpush.bf16.msra.mxu0 %v5317
  %8151 = vmatpush.bf16.msra.mxu0 %v5313
  %8152 = vmatmul.bf16.gmra.mxu0 %v1213
  %v8153 = vpop.f32.mrf.mxu0
  %v8154 = vadd.f32 %v8140, %v8153
  %v8155 = vpop.f32.mrf.mxu0
  %v8156 = vadd.f32 %v8142, %v8155
  %8157 = vdwg.mxu0
  %v8158 = vmax.f32 %v6810, 0.0
  %v8159 = vmax.f32 %v7258, 0.0
  %v8160 = vmax.f32 %v7706, 0.0
  %v8161 = vmax.f32 %v8154, 0.0
  %v8162 = vmax.f32 %v6812, 0.0
  %v8163 = vmax.f32 %v7260, 0.0
  %v8164 = vmax.f32 %v7708, 0.0
  %v8165 = vmax.f32 %v8156, 0.0
  %v8166 = vpack.c.bf16 %v8162, %v8158
  %v8167 = vpack.c.bf16 %v8163, %v8159
  %v8168 = vpack.c.bf16 %v8164, %v8160
  %v8169 = vpack.c.bf16 %v8165, %v8161
  %v8170 = vld [vmem:[%s3] sm:$0xf]
  %v8171 = vld [vmem:[%s3 + $0x4] sm:$0xf]
  %v8172 = vld [vmem:[%s3 + $0x8] sm:$0xf]
  %v8173 = vld [vmem:[%s3 + $0xc] sm:$0xf]
  %v8174 = vld [vmem:[%s3 + $0x10] sm:$0xf]
  %v8175 = vld [vmem:[%s3 + $0x14] sm:$0xf]
  %v8176 = vld [vmem:[%s3 + $0x18] sm:$0xf]
  %v8177 = vld [vmem:[%s3 + $0x1c] sm:$0xf]
  %v8178 = vld [vmem:[%s3 + $0x20] sm:$0xf]
  %v8179 = vld [vmem:[%s3 + $0x24] sm:$0xf]
  %v8180 = vld [vmem:[%s3 + $0x28] sm:$0xf]
  %v8181 = vld [vmem:[%s3 + $0x2c] sm:$0xf]
  %v8182 = vld [vmem:[%s3 + $0x30] sm:$0xf]
  %v8183 = vld [vmem:[%s3 + $0x34] sm:$0xf]
  %v8184 = vld [vmem:[%s3 + $0x38] sm:$0xf]
  %v8185 = vld [vmem:[%s3 + $0x3c] sm:$0xf]
  %v8186 = vld [vmem:[%s3 + $0x40] sm:$0xf]
  %v8187 = vld [vmem:[%s3 + $0x44] sm:$0xf]
  %v8188 = vld [vmem:[%s3 + $0x48] sm:$0xf]
  %v8189 = vld [vmem:[%s3 + $0x4c] sm:$0xf]
  %v8190 = vld [vmem:[%s3 + $0x50] sm:$0xf]
  %v8191 = vld [vmem:[%s3 + $0x54] sm:$0xf]
  %v8192 = vld [vmem:[%s3 + $0x58] sm:$0xf]
  %v8193 = vld [vmem:[%s3 + $0x5c] sm:$0xf]
  %v8194 = vld [vmem:[%s3 + $0x60] sm:$0xf]
  %v8195 = vld [vmem:[%s3 + $0x64] sm:$0xf]
  %v8196 = vld [vmem:[%s3 + $0x68] sm:$0xf]
  %v8197 = vld [vmem:[%s3 + $0x6c] sm:$0xf]
  %v8198 = vld [vmem:[%s3 + $0x70] sm:$0xf]
  %v8199 = vld [vmem:[%s3 + $0x74] sm:$0xf]
  %v8200 = vld [vmem:[%s3 + $0x78] sm:$0xf]
  %v8201 = vld [vmem:[%s3 + $0x7c] sm:$0xf]
  %v8202 = vld [vmem:[%s3 + $0x80] sm:$0xf]
  %v8203 = vld [vmem:[%s3 + $0x84] sm:$0xf]
  %v8204 = vld [vmem:[%s3 + $0x88] sm:$0xf]
  %v8205 = vld [vmem:[%s3 + $0x8c] sm:$0xf]
  %v8206 = vld [vmem:[%s3 + $0x90] sm:$0xf]
  %v8207 = vld [vmem:[%s3 + $0x94] sm:$0xf]
  %v8208 = vld [vmem:[%s3 + $0x98] sm:$0xf]
  %v8209 = vld [vmem:[%s3 + $0x9c] sm:$0xf]
  %v8210 = vld [vmem:[%s3 + $0xa0] sm:$0xf]
  %v8211 = vld [vmem:[%s3 + $0xa4] sm:$0xf]
  %v8212 = vld [vmem:[%s3 + $0xa8] sm:$0xf]
  %v8213 = vld [vmem:[%s3 + $0xac] sm:$0xf]
  %v8214 = vld [vmem:[%s3 + $0xb0] sm:$0xf]
  %v8215 = vld [vmem:[%s3 + $0xb4] sm:$0xf]
  %v8216 = vld [vmem:[%s3 + $0xb8] sm:$0xf]
  %v8217 = vld [vmem:[%s3 + $0xbc] sm:$0xf]
  %v8218 = vld [vmem:[%s3 + $0xc0] sm:$0xf]
  %v8219 = vld [vmem:[%s3 + $0xc4] sm:$0xf]
  %v8220 = vld [vmem:[%s3 + $0xc8] sm:$0xf]
  %v8221 = vld [vmem:[%s3 + $0xcc] sm:$0xf]
  %v8222 = vld [vmem:[%s3 + $0xd0] sm:$0xf]
  %v8223 = vld [vmem:[%s3 + $0xd4] sm:$0xf]
  %v8224 = vld [vmem:[%s3 + $0xd8] sm:$0xf]
  %v8225 = vld [vmem:[%s3 + $0xdc] sm:$0xf]
  %v8226 = vld [vmem:[%s3 + $0xe0] sm:$0xf]
  %v8227 = vld [vmem:[%s3 + $0xe4] sm:$0xf]
  %v8228 = vld [vmem:[%s3 + $0xe8] sm:$0xf]
  %v8229 = vld [vmem:[%s3 + $0xec] sm:$0xf]
  %v8230 = vld [vmem:[%s3 + $0xf0] sm:$0xf]
  %v8231 = vld [vmem:[%s3 + $0xf4] sm:$0xf]
  %v8232 = vld [vmem:[%s3 + $0xf8] sm:$0xf]
  %v8233 = vld [vmem:[%s3 + $0xfc] sm:$0xf]
  %v8234 = vld [vmem:[%s4] sm:$0x1]
  %v8236 = vperm.slane %v8234, 0
  %v8302 = vunpack.c.l.b16 %v8170
  %v8303 = vunpack.c.l.b16 %v8171
  %v8304 = vunpack.c.l.b16 %v8172
  %v8305 = vunpack.c.l.b16 %v8173
  %v8306 = vunpack.c.l.b16 %v8174
  %v8307 = vunpack.c.l.b16 %v8175
  %v8308 = vunpack.c.l.b16 %v8176
  %v8309 = vunpack.c.l.b16 %v8177
  %v8310 = vunpack.c.l.b16 %v8178
  %v8311 = vunpack.c.l.b16 %v8179
  %v8312 = vunpack.c.l.b16 %v8180
  %v8313 = vunpack.c.l.b16 %v8181
  %v8314 = vunpack.c.l.b16 %v8182
  %v8315 = vunpack.c.l.b16 %v8183
  %v8316 = vunpack.c.l.b16 %v8184
  %v8317 = vunpack.c.l.b16 %v8185
  %v8318 = vunpack.c.l.b16 %v8186
  %v8319 = vunpack.c.l.b16 %v8187
  %v8320 = vunpack.c.l.b16 %v8188
  %v8321 = vunpack.c.l.b16 %v8189
  %v8322 = vunpack.c.l.b16 %v8190
  %v8323 = vunpack.c.l.b16 %v8191
  %v8324 = vunpack.c.l.b16 %v8192
  %v8325 = vunpack.c.l.b16 %v8193
  %v8326 = vunpack.c.l.b16 %v8194
  %v8327 = vunpack.c.l.b16 %v8195
  %v8328 = vunpack.c.l.b16 %v8196
  %v8329 = vunpack.c.l.b16 %v8197
  %v8330 = vunpack.c.l.b16 %v8198
  %v8331 = vunpack.c.l.b16 %v8199
  %v8332 = vunpack.c.l.b16 %v8200
  %v8333 = vunpack.c.l.b16 %v8201
  %v8334 = vunpack.c.l.b16 %v8202
  %v8335 = vunpack.c.l.b16 %v8203
  %v8336 = vunpack.c.l.b16 %v8204
  %v8337 = vunpack.c.l.b16 %v8205
  %v8338 = vunpack.c.l.b16 %v8206
  %v8339 = vunpack.c.l.b16 %v8207
  %v8340 = vunpack.c.l.b16 %v8208
  %v8341 = vunpack.c.l.b16 %v8209
  %v8342 = vunpack.c.l.b16 %v8210
  %v8343 = vunpack.c.l.b16 %v8211
  %v8344 = vunpack.c.l.b16 %v8212
  %v8345 = vunpack.c.l.b16 %v8213
  %v8346 = vunpack.c.l.b16 %v8214
  %v8347 = vunpack.c.l.b16 %v8215
  %v8348 = vunpack.c.l.b16 %v8216
  %v8349 = vunpack.c.l.b16 %v8217
  %v8350 = vunpack.c.l.b16 %v8218
  %v8351 = vunpack.c.l.b16 %v8219
  %v8352 = vunpack.c.l.b16 %v8220
  %v8353 = vunpack.c.l.b16 %v8221
  %v8354 = vunpack.c.l.b16 %v8222
  %v8355 = vunpack.c.l.b16 %v8223
  %v8356 = vunpack.c.l.b16 %v8224
  %v8357 = vunpack.c.l.b16 %v8225
  %v8358 = vunpack.c.l.b16 %v8226
  %v8359 = vunpack.c.l.b16 %v8227
  %v8360 = vunpack.c.l.b16 %v8228
  %v8361 = vunpack.c.l.b16 %v8229
  %v8362 = vunpack.c.l.b16 %v8230
  %v8363 = vunpack.c.l.b16 %v8231
  %v8364 = vunpack.c.l.b16 %v8232
  %v8365 = vunpack.c.l.b16 %v8233
  %v8366 = vpack.c.b16 %v8303, %v8302
  %v8367 = vpack.c.b16 %v8305, %v8304
  %v8368 = vpack.c.b16 %v8307, %v8306
  %v8369 = vpack.c.b16 %v8309, %v8308
  %v8370 = vpack.c.b16 %v8311, %v8310
  %v8371 = vpack.c.b16 %v8313, %v8312
  %v8372 = vpack.c.b16 %v8315, %v8314
  %v8373 = vpack.c.b16 %v8317, %v8316
  %v8374 = vpack.c.b16 %v8319, %v8318
  %v8375 = vpack.c.b16 %v8321, %v8320
  %v8376 = vpack.c.b16 %v8323, %v8322
  %v8377 = vpack.c.b16 %v8325, %v8324
  %v8378 = vpack.c.b16 %v8327, %v8326
  %v8379 = vpack.c.b16 %v8329, %v8328
  %v8380 = vpack.c.b16 %v8331, %v8330
  %v8381 = vpack.c.b16 %v8333, %v8332
  %v8382 = vpack.c.b16 %v8335, %v8334
  %v8383 = vpack.c.b16 %v8337, %v8336
  %v8384 = vpack.c.b16 %v8339, %v8338
  %v8385 = vpack.c.b16 %v8341, %v8340
  %v8386 = vpack.c.b16 %v8343, %v8342
  %v8387 = vpack.c.b16 %v8345, %v8344
  %v8388 = vpack.c.b16 %v8347, %v8346
  %v8389 = vpack.c.b16 %v8349, %v8348
  %v8390 = vpack.c.b16 %v8351, %v8350
  %v8391 = vpack.c.b16 %v8353, %v8352
  %v8392 = vpack.c.b16 %v8355, %v8354
  %v8393 = vpack.c.b16 %v8357, %v8356
  %v8394 = vpack.c.b16 %v8359, %v8358
  %v8395 = vpack.c.b16 %v8361, %v8360
  %v8396 = vpack.c.b16 %v8363, %v8362
  %v8397 = vpack.c.b16 %v8365, %v8364
  %8430 = vmatpush.bf16.msra.mxu0 %v8373
  %8431 = vmatpush.bf16.msra.mxu0 %v8372
  %8432 = vmatpush.bf16.msra.mxu0 %v8371
  %8433 = vmatpush.bf16.msra.mxu0 %v8370
  %8434 = vmatpush.bf16.msra.mxu0 %v8369
  %8435 = vmatpush.bf16.msra.mxu0 %v8368
  %8436 = vmatpush.bf16.msra.mxu0 %v8367
  %8437 = vmatpush.bf16.msra.mxu0 %v8366
  %8438 = vmatmul.bf16.gmra.mxu0 %v8166
  %v8439 = vpop.f32.mrf.mxu0
  %v8440 = vadd.f32 %v8236, %v8439
  %v8441 = vpop.f32.mrf.mxu0
  %v8442 = vadd.f32 %v8236, %v8441
  %8443 = vdwg.mxu0
  %8444 = vmatpush.bf16.msra.mxu0 %v8381
  %8445 = vmatpush.bf16.msra.mxu0 %v8380
  %8446 = vmatpush.bf16.msra.mxu0 %v8379
  %8447 = vmatpush.bf16.msra.mxu0 %v8378
  %8448 = vmatpush.bf16.msra.mxu0 %v8377
  %8449 = vmatpush.bf16.msra.mxu0 %v8376
  %8450 = vmatpush.bf16.msra.mxu0 %v8375
  %8451 = vmatpush.bf16.msra.mxu0 %v8374
  %8452 = vmatmul.bf16.gmra.mxu0 %v8167
  %v8453 = vpop.f32.mrf.mxu0
  %v8454 = vadd.f32 %v8440, %v8453
  %v8455 = vpop.f32.mrf.mxu0
  %v8456 = vadd.f32 %v8442, %v8455
  %8457 = vdwg.mxu0
  %8458 = vmatpush.bf16.msra.mxu0 %v8389
  %8459 = vmatpush.bf16.msra.mxu0 %v8388
  %8460 = vmatpush.bf16.msra.mxu0 %v8387
  %8461 = vmatpush.bf16.msra.mxu0 %v8386
  %8462 = vmatpush.bf16.msra.mxu0 %v8385
  %8463 = vmatpush.bf16.msra.mxu0 %v8384
  %8464 = vmatpush.bf16.msra.mxu0 %v8383
  %8465 = vmatpush.bf16.msra.mxu0 %v8382
  %8466 = vmatmul.bf16.gmra.mxu0 %v8168
  %v8467 = vpop.f32.mrf.mxu0
  %v8468 = vadd.f32 %v8454, %v8467
  %v8469 = vpop.f32.mrf.mxu0
  %v8470 = vadd.f32 %v8456, %v8469
  %8471 = vdwg.mxu0
  %8472 = vmatpush.bf16.msra.mxu0 %v8397
  %8473 = vmatpush.bf16.msra.mxu0 %v8396
  %8474 = vmatpush.bf16.msra.mxu0 %v8395
  %8475 = vmatpush.bf16.msra.mxu0 %v8394
  %8476 = vmatpush.bf16.msra.mxu0 %v8393
  %8477 = vmatpush.bf16.msra.mxu0 %v8392
  %8478 = vmatpush.bf16.msra.mxu0 %v8391
  %8479 = vmatpush.bf16.msra.mxu0 %v8390
  %8480 = vmatmul.bf16.gmra.mxu0 %v8169
  %v8481 = vpop.f32.mrf.mxu0
  %v8482 = vadd.f32 %v8468, %v8481
  %v8483 = vpop.f32.mrf.mxu0
  %v8484 = vadd.f32 %v8470, %v8483
  %8485 = vdwg.mxu0
  %8486 = vst [vmem:[%s5] sm:$0xff] %v8482
  %8487 = vst [vmem:[%s5 + $0x8] sm:$0xff] %v8484
  // Predicated region
  $region22: #{dtn_forward.7} parent=0 // pred_check
    _
  $region23: #{dtn_forward.7} parent=0 // pred_check_branch
    %8489 = sbr.rel (0) target = $region25
  $region24: #{dtn_forward.7} parent=0 // pred_region
    _
  $region25: #{dtn_forward.7} parent=0 // pred_fallthru
    _
  // Predicated region
  $region26: #{dtn_forward.7} parent=0 // pred_check
    _
  $region27: #{dtn_forward.7} parent=0 // pred_check_branch
    %8491 = sbr.rel (0) target = $region29
  $region28: #{dtn_forward.7} parent=0 // pred_region
    _
  $region29: #{dtn_forward.7} parent=0 // pred_fallthru
    _

</llo_original>
